<compile_context>
chip_gen: v7x
topology: tpu7x:2x2x1
jax: 0.10.0
libtpu: 0.0.40
codegen_flags: <defaults>
</compile_context>

<pallas_src>
import functools
import math

import numpy as np
import jax
import jax.numpy as jnp
from jax.experimental import pallas as pl
from jax.experimental.pallas import tpu as pltpu

# ----------------------------- model constants ------------------------------
NODE_IN = 37
NODE_H = 64          # node_hidden
EDGE_IN = 6
EDGE_H = 128         # edge_hidden
MSG_STEPS = 3
T_HIDDEN = 128       # transformer_hidden
HEADS = 8
FC_H = 64            # fc_hidden / GMT out_channels
# GraphMultisetTransformer defaults (PyG): num_nodes=300, pooling_ratio=0.25
PMA1_SEEDS = math.ceil(300 * 0.25)   # 75
PMA3_SEEDS = 1                       # last pool is forced to 1 seed

_VMEM = pl.BlockSpec(memory_space=pltpu.MemorySpace.VMEM)
_F32 = jnp.float32
_BF16 = jnp.bfloat16


def _mxu(a, b):
    """MXU matmul with bf16 inputs and f32 accumulation."""
    return jnp.dot(a.astype(_BF16), b.astype(_BF16), preferred_element_type=_F32)


# --------------------- fused message-passing kernel --------------------------
def _mp_fused_kernel(x_ref, pw_ref, pb_ref, ea_ref, w1_ref, b1_ref, w2_ref, b2_ref,
                     rmat_ref, smat_ref, gsrc_ref, stgt_ref, rw_ref, rb_ref,
                     wi_ref, wh_ref, bi_ref, bh_ref, l1w_ref, l1b_ref, xg_ref):
    # project_node_feats = Linear(37,64) + ReLU
    node0 = jnp.maximum(_mxu(x_ref[...], pw_ref[...]) + pb_ref[...], 0.0)           # [N,64]

    # edge network: Linear(6,128) ReLU Linear(128, 64*64); computed once, kept
    # lane-dense [E,4096] and resident in VMEM for all message steps.
    e1 = jnp.maximum(_mxu(ea_ref[...], w1_ref[...]) + b1_ref[...], 0.0)              # [E,128]
    e2 = _mxu(e1, w2_ref[...]) + b2_ref[...]                                         # [E,4096]

    rmat = rmat_ref[...]     # bf16 [64, 4096]  replicate-64 matrix
    smat = smat_ref[...]     # bf16 [4096, 64]  group-sum matrix
    gsrc = gsrc_ref[...]     # bf16 [E, N]      one-hot source gather
    stgt = stgt_ref[...]     # bf16 [N, E]      one-hot target scatter-add
    rw, rb = rw_ref[...], rb_ref[...]
    wi, wh = wi_ref[...], wh_ref[...]
    bi, bh = bi_ref[...], bh_ref[...]

    def step(_, h):
        # NNConv message msg[e] = x_src[e] @ W_e with W_e = e2[e].reshape(64, 64),
        # evaluated on the MXU without materializing [E,64,64]:
        #   x_rep[e, i*64+o] = x_src[e, i]                       (x_src @ rmat)
        #   msg[e, o]        = sum_i x_rep[e,i*64+o]*e2[e,i*64+o]  ((.) @ smat)
        x_src = jnp.dot(gsrc, h.astype(_BF16), preferred_element_type=_F32)          # [E,64]
        x_rep = jnp.dot(x_src.astype(_BF16), rmat, preferred_element_type=_F32)      # [E,4096]
        msg = jnp.dot((x_rep * e2).astype(_BF16), smat, preferred_element_type=_F32)  # [E,64]
        # scatter-add to target nodes (aggr='add') on the MXU
        # TODO(synk): one-hot scatter is O(N*E); switch to sorted-edge segment-sum with
        # scalar prefetch for production-size batches.
        agg = jnp.dot(stgt, msg.astype(_BF16), preferred_element_type=_F32)          # [N,64]
        m = jnp.maximum(agg + _mxu(h, rw) + rb, 0.0)                                 # relu(NNConv)
        # GRU cell, gate matmuls fused (r|z|n stacked -> [64,192])
        gi = _mxu(m, wi) + bi
        gh = _mxu(h, wh) + bh
        r = jax.nn.sigmoid(gi[:, :NODE_H] + gh[:, :NODE_H])
        z = jax.nn.sigmoid(gi[:, NODE_H:2 * NODE_H] + gh[:, NODE_H:2 * NODE_H])
        n = jnp.tanh(gi[:, 2 * NODE_H:] + r * gh[:, 2 * NODE_H:])
        return (1.0 - z) * n + z * h

    node = jax.lax.fori_loop(0, MSG_STEPS, step, node0, unroll=True)
    # GMT lin1 (64 -> 128): lane-dense output
    xg_ref[...] = _mxu(node, l1w_ref[...]) + l1b_ref[...]


def mp_fused(params, x, edge_attr, g_src, s_tgt, rmat, smat):
    n = x.shape[0]
    # TODO(synk): tile the edge axis with a grid + accumulator for very large graphs
    # (keeps VMEM bounded under v7x's 64 MiB); whole-array residency is fine here.
    return pl.pallas_call(
        _mp_fused_kernel,
        out_shape=jax.ShapeDtypeStruct((n, T_HIDDEN), jnp.float32),
        in_specs=[_VMEM] * 20,
        out_specs=_VMEM,
        compiler_params=pltpu.CompilerParams(vmem_limit_bytes=32 * 1024 * 1024),
    )(x, params["proj_w"], params["proj_b"], edge_attr,
      params["edge_w1"], params["edge_b1"], params["edge_w2"], params["edge_b2"],
      rmat, smat, g_src, s_tgt, params["root_w"], params["root_b"],
      params["gru_wi"], params["gru_wh"], params["gru_bi"], params["gru_bh"],
      params["lin1_w"], params["lin1_b"])


# ------------------------- fused MAB (GMT block) ------------------------------
def _mab_kernel(*refs, heads, use_gcn, use_mask):
    it = iter(refs)
    q_ref = next(it)
    kv_ref = next(it)
    ahat_ref = next(it) if use_gcn else None
    mask_ref = next(it) if use_mask else None
    fcq_w = next(it); fcq_b = next(it)
    kvw = next(it); kvb = next(it)
    fco_w = next(it); fco_b = next(it)
    o_ref = next(it)

    def mm3(x3, w, b=None):
        g, s, d = x3.shape
        y = jnp.dot(x3.reshape(g * s, d).astype(_BF16), w.astype(_BF16),
                    preferred_element_type=_F32)
        if b is not None:
            y = y + b
        return y.reshape(g, s, -1)

    q = q_ref[...]           # [1, Sq, D]
    kv = kv_ref[...]         # [1, Sk, D]
    D = q.shape[-1]
    dh = D // heads

    qp = mm3(q, fcq_w[...], fcq_b[...])            # fc_q            [1, Sq, D]
    xw = mm3(kv, kvw[...])                          # fused K|V proj  [1, Sk, 2D]
    if use_gcn:
        # GCNConv (fused for K and V): out = Ahat @ (X W) + b
        xw = jnp.einsum("bmk,bkf->bmf", ahat_ref[...].astype(_BF16), xw.astype(_BF16),
                        preferred_element_type=_F32)
    kvp = xw + kvb[...]
    kd = kvp[..., :D]
    vd = kvp[..., D:]

    scale = 1.0 / math.sqrt(D)                      # PyG MAB scales by sqrt(dim_V)
    for h in range(heads):
        sl = slice(h * dh, (h + 1) * dh)
        qh = qp[..., sl]
        kh = kd[..., sl]
        vh = vd[..., sl]
        s = jnp.einsum("bqd,bkd->bqk", qh.astype(_BF16), kh.astype(_BF16),
                       preferred_element_type=_F32) * scale
        if use_mask:
            s = s + mask_ref[...]                   # [1,1,Sk] broadcast in-kernel
        # TODO(synk): some PyG GMT releases apply softmax over dim=1 (queries); the
        # standard key-axis softmax (intended attention semantics) is used here.
        s = s - jnp.max(s, axis=-1, keepdims=True)
        e = jnp.exp(s)
        p = e * pl.reciprocal(jnp.sum(e, axis=-1, keepdims=True), approx=True)
        o_ref[:, :, sl] = qh + jnp.einsum("bqk,bkd->bqd", p.astype(_BF16),
                                          vh.astype(_BF16),
                                          preferred_element_type=_F32)
    o = o_ref[...]                                  # [1, Sq, D]
    o_ref[...] = o + jnp.maximum(mm3(o, fco_w[...], fco_b[...]), 0.0)


def mab_fused(q, kv, p, *, ahat=None, mask=None, heads=HEADS):
    b, sq, d = q.shape
    sk = kv.shape[1]
    use_gcn = ahat is not None
    use_mask = mask is not None

    args = [q, kv]
    specs = [pl.BlockSpec((1, sq, d), lambda i: (i, 0, 0)),
             pl.BlockSpec((1, sk, d), lambda i: (i, 0, 0))]
    if use_gcn:
        args.append(ahat)
        specs.append(pl.BlockSpec((1, sk, sk), lambda i: (i, 0, 0)))
    if use_mask:
        args.append(mask)
        specs.append(pl.BlockSpec((1, 1, sk), lambda i: (i, 0, 0)))
    for name in ("fc_q_w", "fc_q_b", "kv_w", "kv_b", "fc_o_w", "fc_o_b"):
        w = p[name]
        args.append(w)
        specs.append(pl.BlockSpec(w.shape, lambda i: (0, 0)))

    return pl.pallas_call(
        functools.partial(_mab_kernel, heads=heads, use_gcn=use_gcn, use_mask=use_mask),
        out_shape=jax.ShapeDtypeStruct((b, sq, d), jnp.float32),
        grid=(b,),
        in_specs=specs,
        out_specs=pl.BlockSpec((1, sq, d), lambda i: (i, 0, 0)),
        compiler_params=pltpu.CompilerParams(dimension_semantics=("parallel",)),
    )(*args)


# ------------------------------ fused head ------------------------------------
def _head_kernel(x_ref, l2w_ref, l2b_ref, fw_ref, fb_ref, ow_ref, ob_ref, o_ref):
    h = jnp.dot(x_ref[...], l2w_ref[...], preferred_element_type=_F32) + l2b_ref[...]
    h = jnp.maximum(jnp.dot(h, fw_ref[...], preferred_element_type=_F32) + fb_ref[...], 0.0)
    # TODO(synk): Dropout(0.2) implemented as identity (inference mode).
    o_ref[...] = jnp.dot(h, ow_ref[...], preferred_element_type=_F32) + ob_ref[...]


def head_fused(x, params):
    b = x.shape[0]
    return pl.pallas_call(
        _head_kernel,
        out_shape=jax.ShapeDtypeStruct((b, 1), jnp.float32),
        in_specs=[_VMEM] * 7,
        out_specs=_VMEM,
    )(x, params["lin2_w"], params["lin2_b"], params["fc0_w"], params["fc0_b"],
      params["out_w"], params["out_b"])


# -------------------------------- glue helpers --------------------------------
def to_dense_batch_index(batch_np, num_graphs):
    counts = np.bincount(batch_np, minlength=num_graphs)
    n_max = int(counts.max())
    idx = np.zeros((num_graphs, n_max), dtype=np.int32)
    mask = np.zeros((num_graphs, n_max), dtype=bool)
    for g in range(num_graphs):
        nodes = np.nonzero(batch_np == g)[0]
        idx[g, : len(nodes)] = nodes
        mask[g, : len(nodes)] = True
    return idx, mask


def build_dense_gcn_norm(edge_index_np, n_nodes, idx, mask):
    # GCNConv normalization: Dhat^-1/2 (A + I) Dhat^-1/2, expressed per-graph dense
    # (graphs in a batch are disjoint, so this equals the flat computation).
    a = np.zeros((n_nodes, n_nodes), np.float32)
    a[edge_index_np[1], edge_index_np[0]] = 1.0      # edge src -> tgt
    a = a + np.eye(n_nodes, dtype=np.float32)        # add self loops
    deg = a.sum(axis=1)
    dinv = 1.0 / np.sqrt(np.maximum(deg, 1e-12))
    ahat = (dinv[:, None] * a) * dinv[None, :]
    num_graphs, n_max = idx.shape
    out = np.zeros((num_graphs, n_max, n_max), np.float32)
    for g in range(num_graphs):
        sel = idx[g][mask[g]]
        k = len(sel)
        out[g, :k, :k] = ahat[np.ix_(sel, sel)]
    return out


# ------------------------------- parameter init -------------------------------
def init_params(key):
    keys = [key]

    def nxt():
        keys[0], sub = jax.random.split(keys[0])
        return sub

    def dense(shape, scale=0.1):
        return scale * jax.random.normal(nxt(), shape, jnp.float32)

    def mab_params():
        return {
            "fc_q_w": dense((T_HIDDEN, T_HIDDEN)), "fc_q_b": dense((1, T_HIDDEN)),
            # K and V projections fused along the feature axis ([128, 256])
            "kv_w": dense((T_HIDDEN, 2 * T_HIDDEN)), "kv_b": dense((1, 2 * T_HIDDEN)),
            "fc_o_w": dense((T_HIDDEN, T_HIDDEN)), "fc_o_b": dense((1, T_HIDDEN)),
        }

    p = {
        # project_node_feats = Linear(37, 64) + ReLU
        "proj_w": dense((NODE_IN, NODE_H)), "proj_b": dense((1, NODE_H)),
        # edge network: Linear(6,128) ReLU Linear(128, 64*64)
        "edge_w1": dense((EDGE_IN, EDGE_H)), "edge_b1": dense((1, EDGE_H)),
        "edge_w2": dense((EDGE_H, NODE_H * NODE_H), scale=0.02),
        "edge_b2": dense((1, NODE_H * NODE_H), scale=0.02),
        # NNConv root weight + bias
        "root_w": dense((NODE_H, NODE_H)), "root_b": dense((1, NODE_H)),
        # GRU (1 layer, input 64, hidden 64); gates r|z|n stacked -> [64, 192]
        "gru_wi": dense((NODE_H, 3 * NODE_H)), "gru_wh": dense((NODE_H, 3 * NODE_H)),
        "gru_bi": dense((1, 3 * NODE_H)), "gru_bh": dense((1, 3 * NODE_H)),
        # GMT lin1 / lin2
        "lin1_w": dense((NODE_H, T_HIDDEN)), "lin1_b": dense((1, T_HIDDEN)),
        "lin2_w": dense((T_HIDDEN, FC_H)), "lin2_b": dense((1, FC_H)),
        # PMA seeds
        "S1": dense((PMA1_SEEDS, T_HIDDEN)),
        "S3": dense((PMA3_SEEDS, T_HIDDEN)),
        # pooling blocks: GMPool_G (GCN K/V), SelfAtt, GMPool_I
        "mab1": mab_params(),
        "mab2": mab_params(),
        "mab3": mab_params(),
        # fc head + output
        "fc0_w": dense((FC_H, FC_H)), "fc0_b": dense((1, FC_H)),
        "out_w": dense((FC_H, 1)), "out_b": dense((1, 1)),
    }
    return p


# --------------------------------- forward ------------------------------------
def mpnn_forward(params, x, edge_index_np, edge_attr, batch_np, num_graphs):
    n_nodes = x.shape[0]
    n_edges = edge_index_np.shape[1]
    src_np, tgt_np = edge_index_np[0], edge_index_np[1]

    # host-side index bookkeeping (glue); 0/1 matrices stored as bf16 (exact)
    g_src = np.zeros((n_edges, n_nodes), np.float32)
    g_src[np.arange(n_edges), src_np] = 1.0
    s_tgt = np.zeros((n_nodes, n_edges), np.float32)
    s_tgt[tgt_np, np.arange(n_edges)] = 1.0
    # replicate / group-sum matrices for the lane-dense NNConv message matmuls
    rmat = np.kron(np.eye(NODE_H, dtype=np.float32), np.ones((1, NODE_H), np.float32))
    smat = np.kron(np.ones((NODE_H, 1), np.float32), np.eye(NODE_H, dtype=np.float32))

    idx, mask_np = to_dense_batch_index(batch_np, num_graphs)
    ahat_dense = build_dense_gcn_norm(edge_index_np, n_nodes, idx, mask_np)
    mask_add = np.where(mask_np, 0.0, -1e9).astype(np.float32)[:, None, :]  # [B,1,Nmax]

    # 1) fused: projection + edge network + 3x (relu(NNConv) -> GRU) + GMT lin1
    xg = mp_fused(params, x, edge_attr,
                  jnp.asarray(g_src, dtype=jnp.bfloat16),
                  jnp.asarray(s_tgt, dtype=jnp.bfloat16),
                  jnp.asarray(rmat, dtype=jnp.bfloat16),
                  jnp.asarray(smat, dtype=jnp.bfloat16))                     # [N, 128]

    # 2) dense batch (index glue)
    xd = jnp.where(jnp.asarray(mask_np)[:, :, None], xg[jnp.asarray(idx)], 0.0)  # [B,Nmax,128]

    # 3) GraphMultisetTransformer pooling: GMPool_G -> SelfAtt -> GMPool_I
    q1 = jnp.broadcast_to(params["S1"][None], (num_graphs, PMA1_SEEDS, T_HIDDEN))
    bx = mab_fused(q1, xd, params["mab1"],
                   ahat=jnp.asarray(ahat_dense), mask=jnp.asarray(mask_add))
    bx = mab_fused(bx, bx, params["mab2"])
    q3 = jnp.broadcast_to(params["S3"][None], (num_graphs, PMA3_SEEDS, T_HIDDEN))
    bx = mab_fused(q3, bx, params["mab3"])                                   # [B, 1, 128]

    # 4) fused head: GMT lin2 -> fc + relu (dropout = identity) -> final linear
    return head_fused(bx.reshape(num_graphs, T_HIDDEN), params)              # [B, 1]


# ----------------------------------- main --------------------------------------
if __name__ == "__main__":
    key = jax.random.PRNGKey(0)
    k_param, k_x, k_e = jax.random.split(key, 3)

    # synthetic batched graph: 2 molecules, 7 + 6 atoms, bidirectional chain bonds
    n0, n1 = 7, 6
    n_nodes = n0 + n1
    batch_np = np.array([0] * n0 + [1] * n1, dtype=np.int32)
    edges = []
    for a in range(n0 - 1):
        edges += [(a, a + 1), (a + 1, a)]
    for a in range(n0, n0 + n1 - 1):
        edges += [(a, a + 1), (a + 1, a)]
    edge_index_np = np.array(edges, dtype=np.int32).T        # [2, E]
    n_edges = edge_index_np.shape[1]

    x = jax.random.normal(k_x, (n_nodes, NODE_IN), jnp.float32)
    edge_attr = jax.random.normal(k_e, (n_edges, EDGE_IN), jnp.float32)

    params = init_params(k_param)

    out = mpnn_forward(params, x, edge_index_np, edge_attr, batch_np, num_graphs=2)
    out = jax.block_until_ready(out)
    assert out.shape == (2, 1) and out.dtype == jnp.float32
    print("KERNEL_OK")
</pallas_src>

<mosaic_0001>
module attributes {stable_mosaic.version = 11 : i64} {
  func.func @_mp_fused_kernel(%arg0: memref<13x37xf32, #tpu.memory_space<vmem>>, %arg1: memref<37x64xf32, #tpu.memory_space<vmem>>, %arg2: memref<1x64xf32, #tpu.memory_space<vmem>>, %arg3: memref<22x6xf32, #tpu.memory_space<vmem>>, %arg4: memref<6x128xf32, #tpu.memory_space<vmem>>, %arg5: memref<1x128xf32, #tpu.memory_space<vmem>>, %arg6: memref<128x4096xf32, #tpu.memory_space<vmem>>, %arg7: memref<1x4096xf32, #tpu.memory_space<vmem>>, %arg8: memref<64x4096xbf16, #tpu.memory_space<vmem>>, %arg9: memref<4096x64xbf16, #tpu.memory_space<vmem>>, %arg10: memref<22x13xbf16, #tpu.memory_space<vmem>>, %arg11: memref<13x22xbf16, #tpu.memory_space<vmem>>, %arg12: memref<64x64xf32, #tpu.memory_space<vmem>>, %arg13: memref<1x64xf32, #tpu.memory_space<vmem>>, %arg14: memref<64x192xf32, #tpu.memory_space<vmem>>, %arg15: memref<64x192xf32, #tpu.memory_space<vmem>>, %arg16: memref<1x192xf32, #tpu.memory_space<vmem>>, %arg17: memref<1x192xf32, #tpu.memory_space<vmem>>, %arg18: memref<64x128xf32, #tpu.memory_space<vmem>>, %arg19: memref<1x128xf32, #tpu.memory_space<vmem>>, %arg20: memref<13x128xf32, #tpu.memory_space<vmem>>) attributes {dimension_semantics = [], scalar_prefetch = 0 : i64, scratch_operands = 0 : i64, tpu.core_type = #tpu.core_type<tc>} {
    %c0 = arith.constant 0 : index
    %c0_0 = arith.constant 0 : index
    %0 = vector.load %arg0[%c0, %c0_0] : memref<13x37xf32, #tpu.memory_space<vmem>>, vector<13x37xf32>
    %c0_1 = arith.constant 0 : index
    %c0_2 = arith.constant 0 : index
    %1 = vector.load %arg1[%c0_1, %c0_2] : memref<37x64xf32, #tpu.memory_space<vmem>>, vector<37x64xf32>
    %2 = arith.truncf %0 : vector<13x37xf32> to vector<13x37xbf16>
    %3 = arith.truncf %1 : vector<37x64xf32> to vector<37x64xbf16>
    %cst = arith.constant dense<0.000000e+00> : vector<13x64xf32>
    %4 = tpu.matmul %2, %3, %cst {dimension_numbers = #tpu.dot_dimension_numbers<[1], [0], [0], [1], [0, 0, 1, 1], [], []>} : vector<13x37xbf16>, vector<37x64xbf16>, vector<13x64xf32> -> vector<13x64xf32>
    %c0_3 = arith.constant 0 : index
    %c0_4 = arith.constant 0 : index
    %5 = vector.load %arg2[%c0_3, %c0_4] : memref<1x64xf32, #tpu.memory_space<vmem>>, vector<1x64xf32>
    %6 = vector.broadcast %5 : vector<1x64xf32> to vector<13x64xf32>
    %7 = arith.addf %4, %6 : vector<13x64xf32>
    %cst_5 = arith.constant 0.000000e+00 : f32
    %8 = vector.broadcast %cst_5 : f32 to vector<13x64xf32>
    %9 = arith.maximumf %7, %8 : vector<13x64xf32>
    %c0_6 = arith.constant 0 : index
    %c0_7 = arith.constant 0 : index
    %10 = vector.load %arg3[%c0_6, %c0_7] : memref<22x6xf32, #tpu.memory_space<vmem>>, vector<22x6xf32>
    %c0_8 = arith.constant 0 : index
    %c0_9 = arith.constant 0 : index
    %11 = vector.load %arg4[%c0_8, %c0_9] : memref<6x128xf32, #tpu.memory_space<vmem>>, vector<6x128xf32>
    %12 = arith.truncf %10 : vector<22x6xf32> to vector<22x6xbf16>
    %13 = arith.truncf %11 : vector<6x128xf32> to vector<6x128xbf16>
    %cst_10 = arith.constant dense<0.000000e+00> : vector<22x128xf32>
    %14 = tpu.matmul %12, %13, %cst_10 {dimension_numbers = #tpu.dot_dimension_numbers<[1], [0], [0], [1], [0, 0, 1, 1], [], []>} : vector<22x6xbf16>, vector<6x128xbf16>, vector<22x128xf32> -> vector<22x128xf32>
    %c0_11 = arith.constant 0 : index
    %c0_12 = arith.constant 0 : index
    %15 = vector.load %arg5[%c0_11, %c0_12] : memref<1x128xf32, #tpu.memory_space<vmem>>, vector<1x128xf32>
    %16 = vector.broadcast %15 : vector<1x128xf32> to vector<22x128xf32>
    %17 = arith.addf %14, %16 : vector<22x128xf32>
    %cst_13 = arith.constant 0.000000e+00 : f32
    %18 = vector.broadcast %cst_13 : f32 to vector<22x128xf32>
    %19 = arith.maximumf %17, %18 : vector<22x128xf32>
    %c0_14 = arith.constant 0 : index
    %c0_15 = arith.constant 0 : index
    %20 = vector.load %arg6[%c0_14, %c0_15] : memref<128x4096xf32, #tpu.memory_space<vmem>>, vector<128x4096xf32>
    %21 = arith.truncf %19 : vector<22x128xf32> to vector<22x128xbf16>
    %22 = arith.truncf %20 : vector<128x4096xf32> to vector<128x4096xbf16>
    %cst_16 = arith.constant dense<0.000000e+00> : vector<22x4096xf32>
    %23 = tpu.matmul %21, %22, %cst_16 {dimension_numbers = #tpu.dot_dimension_numbers<[1], [0], [0], [1], [0, 0, 1, 1], [], []>} : vector<22x128xbf16>, vector<128x4096xbf16>, vector<22x4096xf32> -> vector<22x4096xf32>
    %c0_17 = arith.constant 0 : index
    %c0_18 = arith.constant 0 : index
    %24 = vector.load %arg7[%c0_17, %c0_18] : memref<1x4096xf32, #tpu.memory_space<vmem>>, vector<1x4096xf32>
    %25 = vector.broadcast %24 : vector<1x4096xf32> to vector<22x4096xf32>
    %26 = arith.addf %23, %25 : vector<22x4096xf32>
    %c0_19 = arith.constant 0 : index
    %c0_20 = arith.constant 0 : index
    %27 = vector.load %arg8[%c0_19, %c0_20] : memref<64x4096xbf16, #tpu.memory_space<vmem>>, vector<64x4096xbf16>
    %c0_21 = arith.constant 0 : index
    %c0_22 = arith.constant 0 : index
    %28 = vector.load %arg9[%c0_21, %c0_22] : memref<4096x64xbf16, #tpu.memory_space<vmem>>, vector<4096x64xbf16>
    %c0_23 = arith.constant 0 : index
    %c0_24 = arith.constant 0 : index
    %29 = vector.load %arg10[%c0_23, %c0_24] : memref<22x13xbf16, #tpu.memory_space<vmem>>, vector<22x13xbf16>
    %c0_25 = arith.constant 0 : index
    %c0_26 = arith.constant 0 : index
    %30 = vector.load %arg11[%c0_25, %c0_26] : memref<13x22xbf16, #tpu.memory_space<vmem>>, vector<13x22xbf16>
    %c0_27 = arith.constant 0 : index
    %c0_28 = arith.constant 0 : index
    %31 = vector.load %arg12[%c0_27, %c0_28] : memref<64x64xf32, #tpu.memory_space<vmem>>, vector<64x64xf32>
    %c0_29 = arith.constant 0 : index
    %c0_30 = arith.constant 0 : index
    %32 = vector.load %arg13[%c0_29, %c0_30] : memref<1x64xf32, #tpu.memory_space<vmem>>, vector<1x64xf32>
    %c0_31 = arith.constant 0 : index
    %c0_32 = arith.constant 0 : index
    %33 = vector.load %arg14[%c0_31, %c0_32] : memref<64x192xf32, #tpu.memory_space<vmem>>, vector<64x192xf32>
    %c0_33 = arith.constant 0 : index
    %c0_34 = arith.constant 0 : index
    %34 = vector.load %arg15[%c0_33, %c0_34] : memref<64x192xf32, #tpu.memory_space<vmem>>, vector<64x192xf32>
    %c0_35 = arith.constant 0 : index
    %c0_36 = arith.constant 0 : index
    %35 = vector.load %arg16[%c0_35, %c0_36] : memref<1x192xf32, #tpu.memory_space<vmem>>, vector<1x192xf32>
    %c0_37 = arith.constant 0 : index
    %c0_38 = arith.constant 0 : index
    %36 = vector.load %arg17[%c0_37, %c0_38] : memref<1x192xf32, #tpu.memory_space<vmem>>, vector<1x192xf32>
    %c0_i32 = arith.constant 0 : i32
    %37 = arith.truncf %9 : vector<13x64xf32> to vector<13x64xbf16>
    %cst_39 = arith.constant dense<0.000000e+00> : vector<22x64xf32>
    %38 = tpu.matmul %29, %37, %cst_39 {dimension_numbers = #tpu.dot_dimension_numbers<[1], [0], [0], [1], [0, 0, 1, 1], [], []>} : vector<22x13xbf16>, vector<13x64xbf16>, vector<22x64xf32> -> vector<22x64xf32>
    %39 = arith.truncf %38 : vector<22x64xf32> to vector<22x64xbf16>
    %cst_40 = arith.constant dense<0.000000e+00> : vector<22x4096xf32>
    %40 = tpu.matmul %39, %27, %cst_40 {dimension_numbers = #tpu.dot_dimension_numbers<[1], [0], [0], [1], [0, 0, 1, 1], [], []>} : vector<22x64xbf16>, vector<64x4096xbf16>, vector<22x4096xf32> -> vector<22x4096xf32>
    %41 = arith.mulf %40, %26 : vector<22x4096xf32>
    %42 = arith.truncf %41 : vector<22x4096xf32> to vector<22x4096xbf16>
    %cst_41 = arith.constant dense<0.000000e+00> : vector<22x64xf32>
    %43 = tpu.matmul %42, %28, %cst_41 {dimension_numbers = #tpu.dot_dimension_numbers<[1], [0], [0], [1], [0, 0, 1, 1], [], []>} : vector<22x4096xbf16>, vector<4096x64xbf16>, vector<22x64xf32> -> vector<22x64xf32>
    %44 = arith.truncf %43 : vector<22x64xf32> to vector<22x64xbf16>
    %cst_42 = arith.constant dense<0.000000e+00> : vector<13x64xf32>
    %45 = tpu.matmul %30, %44, %cst_42 {dimension_numbers = #tpu.dot_dimension_numbers<[1], [0], [0], [1], [0, 0, 1, 1], [], []>} : vector<13x22xbf16>, vector<22x64xbf16>, vector<13x64xf32> -> vector<13x64xf32>
    %46 = arith.truncf %9 : vector<13x64xf32> to vector<13x64xbf16>
    %47 = arith.truncf %31 : vector<64x64xf32> to vector<64x64xbf16>
    %cst_43 = arith.constant dense<0.000000e+00> : vector<13x64xf32>
    %48 = tpu.matmul %46, %47, %cst_43 {dimension_numbers = #tpu.dot_dimension_numbers<[1], [0], [0], [1], [0, 0, 1, 1], [], []>} : vector<13x64xbf16>, vector<64x64xbf16>, vector<13x64xf32> -> vector<13x64xf32>
    %49 = arith.addf %45, %48 : vector<13x64xf32>
    %50 = vector.broadcast %32 : vector<1x64xf32> to vector<13x64xf32>
    %51 = arith.addf %49, %50 : vector<13x64xf32>
    %cst_44 = arith.constant 0.000000e+00 : f32
    %52 = vector.broadcast %cst_44 : f32 to vector<13x64xf32>
    %53 = arith.maximumf %51, %52 : vector<13x64xf32>
    %54 = arith.truncf %53 : vector<13x64xf32> to vector<13x64xbf16>
    %55 = arith.truncf %33 : vector<64x192xf32> to vector<64x192xbf16>
    %cst_45 = arith.constant dense<0.000000e+00> : vector<13x192xf32>
    %56 = tpu.matmul %54, %55, %cst_45 {dimension_numbers = #tpu.dot_dimension_numbers<[1], [0], [0], [1], [0, 0, 1, 1], [], []>} : vector<13x64xbf16>, vector<64x192xbf16>, vector<13x192xf32> -> vector<13x192xf32>
    %57 = vector.broadcast %35 : vector<1x192xf32> to vector<13x192xf32>
    %58 = arith.addf %56, %57 : vector<13x192xf32>
    %59 = arith.truncf %9 : vector<13x64xf32> to vector<13x64xbf16>
    %60 = arith.truncf %34 : vector<64x192xf32> to vector<64x192xbf16>
    %cst_46 = arith.constant dense<0.000000e+00> : vector<13x192xf32>
    %61 = tpu.matmul %59, %60, %cst_46 {dimension_numbers = #tpu.dot_dimension_numbers<[1], [0], [0], [1], [0, 0, 1, 1], [], []>} : vector<13x64xbf16>, vector<64x192xbf16>, vector<13x192xf32> -> vector<13x192xf32>
    %62 = vector.broadcast %36 : vector<1x192xf32> to vector<13x192xf32>
    %63 = arith.addf %61, %62 : vector<13x192xf32>
    %64 = vector.extract_strided_slice %58 {offsets = [0, 0], sizes = [13, 64], strides = [1, 1]} : vector<13x192xf32> to vector<13x64xf32>
    %65 = vector.extract_strided_slice %63 {offsets = [0, 0], sizes = [13, 64], strides = [1, 1]} : vector<13x192xf32> to vector<13x64xf32>
    %66 = arith.addf %64, %65 : vector<13x64xf32>
    %67 = arith.negf %66 : vector<13x64xf32>
    %68 = math.exp %67 : vector<13x64xf32>
    %cst_47 = arith.constant 1.000000e+00 : f32
    %69 = vector.broadcast %cst_47 : f32 to vector<13x64xf32>
    %70 = arith.addf %69, %68 : vector<13x64xf32>
    %71 = arith.divf %69, %70 : vector<13x64xf32>
    %72 = vector.extract_strided_slice %58 {offsets = [0, 64], sizes = [13, 64], strides = [1, 1]} : vector<13x192xf32> to vector<13x64xf32>
    %73 = vector.extract_strided_slice %63 {offsets = [0, 64], sizes = [13, 64], strides = [1, 1]} : vector<13x192xf32> to vector<13x64xf32>
    %74 = arith.addf %72, %73 : vector<13x64xf32>
    %75 = arith.negf %74 : vector<13x64xf32>
    %76 = math.exp %75 : vector<13x64xf32>
    %cst_48 = arith.constant 1.000000e+00 : f32
    %77 = vector.broadcast %cst_48 : f32 to vector<13x64xf32>
    %78 = arith.addf %77, %76 : vector<13x64xf32>
    %79 = arith.divf %77, %78 : vector<13x64xf32>
    %80 = vector.extract_strided_slice %58 {offsets = [0, 128], sizes = [13, 64], strides = [1, 1]} : vector<13x192xf32> to vector<13x64xf32>
    %81 = vector.extract_strided_slice %63 {offsets = [0, 128], sizes = [13, 64], strides = [1, 1]} : vector<13x192xf32> to vector<13x64xf32>
    %82 = arith.mulf %71, %81 : vector<13x64xf32>
    %83 = arith.addf %80, %82 : vector<13x64xf32>
    %84 = math.tanh %83 : vector<13x64xf32>
    %cst_49 = arith.constant 1.000000e+00 : f32
    %85 = vector.broadcast %cst_49 : f32 to vector<13x64xf32>
    %86 = arith.subf %85, %79 : vector<13x64xf32>
    %87 = arith.mulf %86, %84 : vector<13x64xf32>
    %88 = arith.mulf %79, %9 : vector<13x64xf32>
    %89 = arith.addf %87, %88 : vector<13x64xf32>
    %c1_i32 = arith.constant 1 : i32
    %90 = arith.truncf %89 : vector<13x64xf32> to vector<13x64xbf16>
    %cst_50 = arith.constant dense<0.000000e+00> : vector<22x64xf32>
    %91 = tpu.matmul %29, %90, %cst_50 {dimension_numbers = #tpu.dot_dimension_numbers<[1], [0], [0], [1], [0, 0, 1, 1], [], []>} : vector<22x13xbf16>, vector<13x64xbf16>, vector<22x64xf32> -> vector<22x64xf32>
    %92 = arith.truncf %91 : vector<22x64xf32> to vector<22x64xbf16>
    %cst_51 = arith.constant dense<0.000000e+00> : vector<22x4096xf32>
    %93 = tpu.matmul %92, %27, %cst_51 {dimension_numbers = #tpu.dot_dimension_numbers<[1], [0], [0], [1], [0, 0, 1, 1], [], []>} : vector<22x64xbf16>, vector<64x4096xbf16>, vector<22x4096xf32> -> vector<22x4096xf32>
    %94 = arith.mulf %93, %26 : vector<22x4096xf32>
    %95 = arith.truncf %94 : vector<22x4096xf32> to vector<22x4096xbf16>
    %cst_52 = arith.constant dense<0.000000e+00> : vector<22x64xf32>
    %96 = tpu.matmul %95, %28, %cst_52 {dimension_numbers = #tpu.dot_dimension_numbers<[1], [0], [0], [1], [0, 0, 1, 1], [], []>} : vector<22x4096xbf16>, vector<4096x64xbf16>, vector<22x64xf32> -> vector<22x64xf32>
    %97 = arith.truncf %96 : vector<22x64xf32> to vector<22x64xbf16>
    %cst_53 = arith.constant dense<0.000000e+00> : vector<13x64xf32>
    %98 = tpu.matmul %30, %97, %cst_53 {dimension_numbers = #tpu.dot_dimension_numbers<[1], [0], [0], [1], [0, 0, 1, 1], [], []>} : vector<13x22xbf16>, vector<22x64xbf16>, vector<13x64xf32> -> vector<13x64xf32>
    %99 = arith.truncf %89 : vector<13x64xf32> to vector<13x64xbf16>
    %100 = arith.truncf %31 : vector<64x64xf32> to vector<64x64xbf16>
    %cst_54 = arith.constant dense<0.000000e+00> : vector<13x64xf32>
    %101 = tpu.matmul %99, %100, %cst_54 {dimension_numbers = #tpu.dot_dimension_numbers<[1], [0], [0], [1], [0, 0, 1, 1], [], []>} : vector<13x64xbf16>, vector<64x64xbf16>, vector<13x64xf32> -> vector<13x64xf32>
    %102 = arith.addf %98, %101 : vector<13x64xf32>
    %103 = vector.broadcast %32 : vector<1x64xf32> to vector<13x64xf32>
    %104 = arith.addf %102, %103 : vector<13x64xf32>
    %cst_55 = arith.constant 0.000000e+00 : f32
    %105 = vector.broadcast %cst_55 : f32 to vector<13x64xf32>
    %106 = arith.maximumf %104, %105 : vector<13x64xf32>
    %107 = arith.truncf %106 : vector<13x64xf32> to vector<13x64xbf16>
    %108 = arith.truncf %33 : vector<64x192xf32> to vector<64x192xbf16>
    %cst_56 = arith.constant dense<0.000000e+00> : vector<13x192xf32>
    %109 = tpu.matmul %107, %108, %cst_56 {dimension_numbers = #tpu.dot_dimension_numbers<[1], [0], [0], [1], [0, 0, 1, 1], [], []>} : vector<13x64xbf16>, vector<64x192xbf16>, vector<13x192xf32> -> vector<13x192xf32>
    %110 = vector.broadcast %35 : vector<1x192xf32> to vector<13x192xf32>
    %111 = arith.addf %109, %110 : vector<13x192xf32>
    %112 = arith.truncf %89 : vector<13x64xf32> to vector<13x64xbf16>
    %113 = arith.truncf %34 : vector<64x192xf32> to vector<64x192xbf16>
    %cst_57 = arith.constant dense<0.000000e+00> : vector<13x192xf32>
    %114 = tpu.matmul %112, %113, %cst_57 {dimension_numbers = #tpu.dot_dimension_numbers<[1], [0], [0], [1], [0, 0, 1, 1], [], []>} : vector<13x64xbf16>, vector<64x192xbf16>, vector<13x192xf32> -> vector<13x192xf32>
    %115 = vector.broadcast %36 : vector<1x192xf32> to vector<13x192xf32>
    %116 = arith.addf %114, %115 : vector<13x192xf32>
    %117 = vector.extract_strided_slice %111 {offsets = [0, 0], sizes = [13, 64], strides = [1, 1]} : vector<13x192xf32> to vector<13x64xf32>
    %118 = vector.extract_strided_slice %116 {offsets = [0, 0], sizes = [13, 64], strides = [1, 1]} : vector<13x192xf32> to vector<13x64xf32>
    %119 = arith.addf %117, %118 : vector<13x64xf32>
    %120 = arith.negf %119 : vector<13x64xf32>
    %121 = math.exp %120 : vector<13x64xf32>
    %cst_58 = arith.constant 1.000000e+00 : f32
    %122 = vector.broadcast %cst_58 : f32 to vector<13x64xf32>
    %123 = arith.addf %122, %121 : vector<13x64xf32>
    %124 = arith.divf %122, %123 : vector<13x64xf32>
    %125 = vector.extract_strided_slice %111 {offsets = [0, 64], sizes = [13, 64], strides = [1, 1]} : vector<13x192xf32> to vector<13x64xf32>
    %126 = vector.extract_strided_slice %116 {offsets = [0, 64], sizes = [13, 64], strides = [1, 1]} : vector<13x192xf32> to vector<13x64xf32>
    %127 = arith.addf %125, %126 : vector<13x64xf32>
    %128 = arith.negf %127 : vector<13x64xf32>
    %129 = math.exp %128 : vector<13x64xf32>
    %cst_59 = arith.constant 1.000000e+00 : f32
    %130 = vector.broadcast %cst_59 : f32 to vector<13x64xf32>
    %131 = arith.addf %130, %129 : vector<13x64xf32>
    %132 = arith.divf %130, %131 : vector<13x64xf32>
    %133 = vector.extract_strided_slice %111 {offsets = [0, 128], sizes = [13, 64], strides = [1, 1]} : vector<13x192xf32> to vector<13x64xf32>
    %134 = vector.extract_strided_slice %116 {offsets = [0, 128], sizes = [13, 64], strides = [1, 1]} : vector<13x192xf32> to vector<13x64xf32>
    %135 = arith.mulf %124, %134 : vector<13x64xf32>
    %136 = arith.addf %133, %135 : vector<13x64xf32>
    %137 = math.tanh %136 : vector<13x64xf32>
    %cst_60 = arith.constant 1.000000e+00 : f32
    %138 = vector.broadcast %cst_60 : f32 to vector<13x64xf32>
    %139 = arith.subf %138, %132 : vector<13x64xf32>
    %140 = arith.mulf %139, %137 : vector<13x64xf32>
    %141 = arith.mulf %132, %89 : vector<13x64xf32>
    %142 = arith.addf %140, %141 : vector<13x64xf32>
    %c2_i32 = arith.constant 2 : i32
    %143 = arith.truncf %142 : vector<13x64xf32> to vector<13x64xbf16>
    %cst_61 = arith.constant dense<0.000000e+00> : vector<22x64xf32>
    %144 = tpu.matmul %29, %143, %cst_61 {dimension_numbers = #tpu.dot_dimension_numbers<[1], [0], [0], [1], [0, 0, 1, 1], [], []>} : vector<22x13xbf16>, vector<13x64xbf16>, vector<22x64xf32> -> vector<22x64xf32>
    %145 = arith.truncf %144 : vector<22x64xf32> to vector<22x64xbf16>
    %cst_62 = arith.constant dense<0.000000e+00> : vector<22x4096xf32>
    %146 = tpu.matmul %145, %27, %cst_62 {dimension_numbers = #tpu.dot_dimension_numbers<[1], [0], [0], [1], [0, 0, 1, 1], [], []>} : vector<22x64xbf16>, vector<64x4096xbf16>, vector<22x4096xf32> -> vector<22x4096xf32>
    %147 = arith.mulf %146, %26 : vector<22x4096xf32>
    %148 = arith.truncf %147 : vector<22x4096xf32> to vector<22x4096xbf16>
    %cst_63 = arith.constant dense<0.000000e+00> : vector<22x64xf32>
    %149 = tpu.matmul %148, %28, %cst_63 {dimension_numbers = #tpu.dot_dimension_numbers<[1], [0], [0], [1], [0, 0, 1, 1], [], []>} : vector<22x4096xbf16>, vector<4096x64xbf16>, vector<22x64xf32> -> vector<22x64xf32>
    %150 = arith.truncf %149 : vector<22x64xf32> to vector<22x64xbf16>
    %cst_64 = arith.constant dense<0.000000e+00> : vector<13x64xf32>
    %151 = tpu.matmul %30, %150, %cst_64 {dimension_numbers = #tpu.dot_dimension_numbers<[1], [0], [0], [1], [0, 0, 1, 1], [], []>} : vector<13x22xbf16>, vector<22x64xbf16>, vector<13x64xf32> -> vector<13x64xf32>
    %152 = arith.truncf %142 : vector<13x64xf32> to vector<13x64xbf16>
    %153 = arith.truncf %31 : vector<64x64xf32> to vector<64x64xbf16>
    %cst_65 = arith.constant dense<0.000000e+00> : vector<13x64xf32>
    %154 = tpu.matmul %152, %153, %cst_65 {dimension_numbers = #tpu.dot_dimension_numbers<[1], [0], [0], [1], [0, 0, 1, 1], [], []>} : vector<13x64xbf16>, vector<64x64xbf16>, vector<13x64xf32> -> vector<13x64xf32>
    %155 = arith.addf %151, %154 : vector<13x64xf32>
    %156 = vector.broadcast %32 : vector<1x64xf32> to vector<13x64xf32>
    %157 = arith.addf %155, %156 : vector<13x64xf32>
    %cst_66 = arith.constant 0.000000e+00 : f32
    %158 = vector.broadcast %cst_66 : f32 to vector<13x64xf32>
    %159 = arith.maximumf %157, %158 : vector<13x64xf32>
    %160 = arith.truncf %159 : vector<13x64xf32> to vector<13x64xbf16>
    %161 = arith.truncf %33 : vector<64x192xf32> to vector<64x192xbf16>
    %cst_67 = arith.constant dense<0.000000e+00> : vector<13x192xf32>
    %162 = tpu.matmul %160, %161, %cst_67 {dimension_numbers = #tpu.dot_dimension_numbers<[1], [0], [0], [1], [0, 0, 1, 1], [], []>} : vector<13x64xbf16>, vector<64x192xbf16>, vector<13x192xf32> -> vector<13x192xf32>
    %163 = vector.broadcast %35 : vector<1x192xf32> to vector<13x192xf32>
    %164 = arith.addf %162, %163 : vector<13x192xf32>
    %165 = arith.truncf %142 : vector<13x64xf32> to vector<13x64xbf16>
    %166 = arith.truncf %34 : vector<64x192xf32> to vector<64x192xbf16>
    %cst_68 = arith.constant dense<0.000000e+00> : vector<13x192xf32>
    %167 = tpu.matmul %165, %166, %cst_68 {dimension_numbers = #tpu.dot_dimension_numbers<[1], [0], [0], [1], [0, 0, 1, 1], [], []>} : vector<13x64xbf16>, vector<64x192xbf16>, vector<13x192xf32> -> vector<13x192xf32>
    %168 = vector.broadcast %36 : vector<1x192xf32> to vector<13x192xf32>
    %169 = arith.addf %167, %168 : vector<13x192xf32>
    %170 = vector.extract_strided_slice %164 {offsets = [0, 0], sizes = [13, 64], strides = [1, 1]} : vector<13x192xf32> to vector<13x64xf32>
    %171 = vector.extract_strided_slice %169 {offsets = [0, 0], sizes = [13, 64], strides = [1, 1]} : vector<13x192xf32> to vector<13x64xf32>
    %172 = arith.addf %170, %171 : vector<13x64xf32>
    %173 = arith.negf %172 : vector<13x64xf32>
    %174 = math.exp %173 : vector<13x64xf32>
    %cst_69 = arith.constant 1.000000e+00 : f32
    %175 = vector.broadcast %cst_69 : f32 to vector<13x64xf32>
    %176 = arith.addf %175, %174 : vector<13x64xf32>
    %177 = arith.divf %175, %176 : vector<13x64xf32>
    %178 = vector.extract_strided_slice %164 {offsets = [0, 64], sizes = [13, 64], strides = [1, 1]} : vector<13x192xf32> to vector<13x64xf32>
    %179 = vector.extract_strided_slice %169 {offsets = [0, 64], sizes = [13, 64], strides = [1, 1]} : vector<13x192xf32> to vector<13x64xf32>
    %180 = arith.addf %178, %179 : vector<13x64xf32>
    %181 = arith.negf %180 : vector<13x64xf32>
    %182 = math.exp %181 : vector<13x64xf32>
    %cst_70 = arith.constant 1.000000e+00 : f32
    %183 = vector.broadcast %cst_70 : f32 to vector<13x64xf32>
    %184 = arith.addf %183, %182 : vector<13x64xf32>
    %185 = arith.divf %183, %184 : vector<13x64xf32>
    %186 = vector.extract_strided_slice %164 {offsets = [0, 128], sizes = [13, 64], strides = [1, 1]} : vector<13x192xf32> to vector<13x64xf32>
    %187 = vector.extract_strided_slice %169 {offsets = [0, 128], sizes = [13, 64], strides = [1, 1]} : vector<13x192xf32> to vector<13x64xf32>
    %188 = arith.mulf %177, %187 : vector<13x64xf32>
    %189 = arith.addf %186, %188 : vector<13x64xf32>
    %190 = math.tanh %189 : vector<13x64xf32>
    %cst_71 = arith.constant 1.000000e+00 : f32
    %191 = vector.broadcast %cst_71 : f32 to vector<13x64xf32>
    %192 = arith.subf %191, %185 : vector<13x64xf32>
    %193 = arith.mulf %192, %190 : vector<13x64xf32>
    %194 = arith.mulf %185, %142 : vector<13x64xf32>
    %195 = arith.addf %193, %194 : vector<13x64xf32>
    %c0_72 = arith.constant 0 : index
    %c0_73 = arith.constant 0 : index
    %196 = vector.load %arg18[%c0_72, %c0_73] : memref<64x128xf32, #tpu.memory_space<vmem>>, vector<64x128xf32>
    %197 = arith.truncf %195 : vector<13x64xf32> to vector<13x64xbf16>
    %198 = arith.truncf %196 : vector<64x128xf32> to vector<64x128xbf16>
    %cst_74 = arith.constant dense<0.000000e+00> : vector<13x128xf32>
    %199 = tpu.matmul %197, %198, %cst_74 {dimension_numbers = #tpu.dot_dimension_numbers<[1], [0], [0], [1], [0, 0, 1, 1], [], []>} : vector<13x64xbf16>, vector<64x128xbf16>, vector<13x128xf32> -> vector<13x128xf32>
    %c0_75 = arith.constant 0 : index
    %c0_76 = arith.constant 0 : index
    %200 = vector.load %arg19[%c0_75, %c0_76] : memref<1x128xf32, #tpu.memory_space<vmem>>, vector<1x128xf32>
    %201 = vector.broadcast %200 : vector<1x128xf32> to vector<13x128xf32>
    %202 = arith.addf %199, %201 : vector<13x128xf32>
    %c0_77 = arith.constant 0 : index
    %c0_78 = arith.constant 0 : index
    %203 = vector.load %arg20[%c0_77, %c0_78] : memref<13x128xf32, #tpu.memory_space<vmem>>, vector<13x128xf32>
    tpu.vector_store %arg20[%c0_77, %c0_78], %202 {strides = array<i32>} : memref<13x128xf32, #tpu.memory_space<vmem>>, vector<13x128xf32>,
    return
  }
}

</mosaic_0001>

<llo_original>
// kernel: tpu_custom_call.1
$region0: #{tpu_custom_call.1}
  #allocation0 [shape = 'u32[]', space=smem, size = 0x4, offset = 0x4, fixed_abs, tag = 'smem constant byte address 0x4 - core index']
  #allocation1 [shape = 'u32[144,128]{1,0:T(1,128)}', space=vmem, size = 0x12000, scoped, tag = 'internal scratch']
  %s0 = inlined_call_operand.hbm [shape: f32[13,37], index: 0, kind: input, shape index: {}]
  %s1 = inlined_call_operand.hbm [shape: f32[37,64], index: 1, kind: input, shape index: {}]
  %s2 = inlined_call_operand.hbm [shape: f32[1,64], index: 2, kind: input, shape index: {}]
  %s3 = inlined_call_operand.vmem [shape: f32[22,6], index: 3, kind: input, shape index: {}]
  %s4 = inlined_call_operand.hbm [shape: f32[6,128], index: 4, kind: input, shape index: {}]
  %s5 = inlined_call_operand.hbm [shape: f32[1,128], index: 5, kind: input, shape index: {}]
  %s6 = inlined_call_operand.hbm [shape: f32[128,4096], index: 6, kind: input, shape index: {}]
  %s7 = inlined_call_operand.hbm [shape: f32[1,4096], index: 7, kind: input, shape index: {}]
  %s8 = inlined_call_operand.hbm [shape: bf16[64,4096], index: 8, kind: input, shape index: {}]
  %s9 = inlined_call_operand.vmem [shape: bf16[4096,64], index: 9, kind: input, shape index: {}]
  %s10 = inlined_call_operand.vmem [shape: bf16[22,13], index: 10, kind: input, shape index: {}]
  %s11 = inlined_call_operand.hbm [shape: bf16[13,22], index: 11, kind: input, shape index: {}]
  %s12 = inlined_call_operand.hbm [shape: f32[64,64], index: 12, kind: input, shape index: {}]
  %s13 = inlined_call_operand.hbm [shape: f32[1,64], index: 13, kind: input, shape index: {}]
  %s14 = inlined_call_operand.hbm [shape: f32[64,192], index: 14, kind: input, shape index: {}]
  %s15 = inlined_call_operand.hbm [shape: f32[64,192], index: 15, kind: input, shape index: {}]
  %s16 = inlined_call_operand.hbm [shape: f32[1,192], index: 16, kind: input, shape index: {}]
  %s17 = inlined_call_operand.hbm [shape: f32[1,192], index: 17, kind: input, shape index: {}]
  %s18 = inlined_call_operand.hbm [shape: f32[64,128], index: 18, kind: input, shape index: {}]
  %s19 = inlined_call_operand.hbm [shape: f32[1,128], index: 19, kind: input, shape index: {}]
  %s20 = inlined_call_operand.hbm [shape: f32[13,128], index: 20, kind: output, shape index: {}]
  %s21 = sld [smem:[#allocation0]]
  $region158: #{tpu_custom_call.1} parent=0
    _
  %s23 = ssub.s32 1, %s21
  %s24 = scalar_select 0, %s23, %s21
  $region1: #{tpu_custom_call.1} parent=0
    #allocation2 [shape = 'u8[8192]{0}', space=vmem, size = 0x2000, scoped, tag = 'input window, operand 0, single buffered']
    #allocation3 [shape = 's32[1]{0}', space=sflag, size = 0x4, scoped, tag = 'scoped memory for tpu_custom_call.1']
    #allocation4 [shape = 's32[1]{0}', space=sflag, size = 0x4, scoped, tag = 'scoped memory for tpu_custom_call.1']
    #allocation5 [shape = 'u8[20480]{0}', space=vmem, size = 0x5000, scoped, tag = 'input window, operand 1, single buffered']
    #allocation6 [shape = 's32[1]{0}', space=sflag, size = 0x4, scoped, tag = 'scoped memory for tpu_custom_call.1']
    #allocation7 [shape = 'u8[512]{0}', space=vmem, size = 0x400, scoped, tag = 'input window, operand 2, single buffered']
    #allocation8 [shape = 'u8[4096]{0}', space=vmem, size = 0x1000, scoped, tag = 'input window, operand 4, single buffered']
    #allocation9 [shape = 's32[1]{0}', space=sflag, size = 0x4, scoped, tag = 'scoped memory for tpu_custom_call.1']
    #allocation10 [shape = 'u8[512]{0}', space=vmem, size = 0x400, scoped, tag = 'input window, operand 5, single buffered']
    #allocation11 [shape = 'u8[2097152]{0}', space=vmem, size = 0x200000, scoped, tag = 'input window, operand 6, single buffered']
    #allocation12 [shape = 's32[1]{0}', space=sflag, size = 0x4, scoped, tag = 'scoped memory for tpu_custom_call.1']
    #allocation13 [shape = 'u8[16384]{0}', space=vmem, size = 0x4000, scoped, tag = 'input window, operand 7, single buffered']
    #allocation14 [shape = 'u8[524288]{0}', space=vmem, size = 0x80000, scoped, tag = 'input window, operand 8, single buffered']
    #allocation15 [shape = 's32[1]{0}', space=sflag, size = 0x4, scoped, tag = 'scoped memory for tpu_custom_call.1']
    #allocation16 [shape = 'u8[4096]{0}', space=vmem, size = 0x1000, scoped, tag = 'input window, operand 11, single buffered']
    #allocation17 [shape = 'u8[32768]{0}', space=vmem, size = 0x8000, scoped, tag = 'input window, operand 12, single buffered']
    #allocation18 [shape = 's32[1]{0}', space=sflag, size = 0x4, scoped, tag = 'scoped memory for tpu_custom_call.1']
    #allocation19 [shape = 'u8[512]{0}', space=vmem, size = 0x400, scoped, tag = 'input window, operand 13, single buffered']
    #allocation20 [shape = 'u8[65536]{0}', space=vmem, size = 0x10000, scoped, tag = 'input window, operand 14, single buffered']
    #allocation21 [shape = 's32[1]{0}', space=sflag, size = 0x4, scoped, tag = 'scoped memory for tpu_custom_call.1']
    #allocation22 [shape = 'u8[65536]{0}', space=vmem, size = 0x10000, scoped, tag = 'input window, operand 15, single buffered']
    #allocation23 [shape = 'u8[1024]{0}', space=vmem, size = 0x400, scoped, tag = 'input window, operand 16, single buffered']
    #allocation24 [shape = 's32[1]{0}', space=sflag, size = 0x4, scoped, tag = 'scoped memory for tpu_custom_call.1']
    #allocation25 [shape = 'u8[1024]{0}', space=vmem, size = 0x400, scoped, tag = 'input window, operand 17, single buffered']
    #allocation26 [shape = 'u8[32768]{0}', space=vmem, size = 0x8000, scoped, tag = 'input window, operand 18, single buffered']
    #allocation27 [shape = 's32[1]{0}', space=sflag, size = 0x4, scoped, tag = 'scoped memory for tpu_custom_call.1']
    #allocation28 [shape = 'u8[512]{0}', space=vmem, size = 0x400, scoped, tag = 'input window, operand 19, single buffered']
    #allocation29 [shape = 'u8[8192]{0}', space=vmem, size = 0x2000, scoped, tag = 'output window, operand 0, single buffered']
    %25 = vsyncpa [#allocation3], 0
    %26 = vsyncpa [#allocation6], 0
    %27 = vsyncpa [#allocation9], 0
    %28 = vsyncpa [#allocation12], 0
    %29 = vsyncpa [#allocation15], 0
    %30 = vsyncpa [#allocation18], 0
    %31 = vsyncpa [#allocation21], 0
    %32 = vsyncpa [#allocation24], 0
    %33 = vsyncpa [#allocation27], 0
    %34 = vsyncpa [#allocation4], 0
    // Predicated region
    $region2: #{tpu_custom_call.1} parent=1 // pred_check
      _
    $region3: #{tpu_custom_call.1} parent=1 // pred_check_branch
      %36 = sbr.rel (0) target = $region5
    $region4: #{tpu_custom_call.1} parent=1 // pred_region
      %s38 = ssub.s32 256, 256
      %39 = vsyncadd [#allocation3], %s38
      %s40 = sshll.u32 [#allocation2], 4
      %s41 = int_to_ptr.vmem [resolvable:$true] %s40
      %46 = dma.hbm_to_vmem [thread:$0]  %s0, 256, %s41, [#allocation3], 128, 128, 8
    $region5: #{tpu_custom_call.1} parent=1 // pred_fallthru
      _
    // Predicated region
    $region6: #{tpu_custom_call.1} parent=1 // pred_check
      _
    $region7: #{tpu_custom_call.1} parent=1 // pred_check_branch
      %48 = sbr.rel (0) target = $region9
    $region8: #{tpu_custom_call.1} parent=1 // pred_region
      %s50 = ssub.s32 640, 640
      %51 = vsyncadd [#allocation6], %s50
      %s52 = sshll.u32 [#allocation5], 4
      %s53 = int_to_ptr.vmem [resolvable:$true] %s52
      %58 = dma.hbm_to_vmem [thread:$0]  %s1, 640, %s53, [#allocation6], 128, 128, 8
    $region9: #{tpu_custom_call.1} parent=1 // pred_fallthru
      _
    // Predicated region
    $region10: #{tpu_custom_call.1} parent=1 // pred_check
      _
    $region11: #{tpu_custom_call.1} parent=1 // pred_check_branch
      %60 = sbr.rel (0) target = $region13
    $region12: #{tpu_custom_call.1} parent=1 // pred_region
      %s62 = ssub.s32 16, 16
      %63 = vsyncadd [#allocation6], %s62
      %s65 = sshll.u32 [#allocation7], 4
      %s66 = int_to_ptr.vmem [resolvable:$true] %s65
      %68 = dma.hbm_to_vmem [thread:$0]  %s2, 16, %s66, [#allocation6]
    $region13: #{tpu_custom_call.1} parent=1 // pred_fallthru
      _
    // Predicated region
    $region14: #{tpu_custom_call.1} parent=1 // pred_check
      _
    $region15: #{tpu_custom_call.1} parent=1 // pred_check_branch
      %70 = sbr.rel (0) target = $region17
    $region16: #{tpu_custom_call.1} parent=1 // pred_region
      _
    $region17: #{tpu_custom_call.1} parent=1 // pred_fallthru
      _
    // Predicated region
    $region18: #{tpu_custom_call.1} parent=1 // pred_check
      _
    $region19: #{tpu_custom_call.1} parent=1 // pred_check_branch
      %72 = sbr.rel (0) target = $region21
    $region20: #{tpu_custom_call.1} parent=1 // pred_region
      %s74 = ssub.s32 128, 128
      %75 = vsyncadd [#allocation9], %s74
      %s77 = sshll.u32 [#allocation8], 4
      %s78 = int_to_ptr.vmem [resolvable:$true] %s77
      %80 = dma.hbm_to_vmem [thread:$0]  %s4, 128, %s78, [#allocation9]
    $region21: #{tpu_custom_call.1} parent=1 // pred_fallthru
      _
    // Predicated region
    $region22: #{tpu_custom_call.1} parent=1 // pred_check
      _
    $region23: #{tpu_custom_call.1} parent=1 // pred_check_branch
      %82 = sbr.rel (0) target = $region25
    $region24: #{tpu_custom_call.1} parent=1 // pred_region
      %s84 = ssub.s32 16, 16
      %85 = vsyncadd [#allocation9], %s84
      %s87 = sshll.u32 [#allocation10], 4
      %s88 = int_to_ptr.vmem [resolvable:$true] %s87
      %90 = dma.hbm_to_vmem [thread:$0]  %s5, 16, %s88, [#allocation9]
    $region25: #{tpu_custom_call.1} parent=1 // pred_fallthru
      _
    // Predicated region
    $region26: #{tpu_custom_call.1} parent=1 // pred_check
      _
    $region27: #{tpu_custom_call.1} parent=1 // pred_check_branch
      %92 = sbr.rel (0) target = $region29
    $region28: #{tpu_custom_call.1} parent=1 // pred_region
      %s94 = ssub.s32 65536, 65536
      %95 = vsyncadd [#allocation12], %s94
      %s96 = sshll.u32 [#allocation11], 4
      %s97 = int_to_ptr.vmem [resolvable:$true] %s96
      %102 = dma.hbm_to_vmem [thread:$0]  %s6, 65536, %s97, [#allocation12], 4096, 4096, 256
    $region29: #{tpu_custom_call.1} parent=1 // pred_fallthru
      _
    // Predicated region
    $region30: #{tpu_custom_call.1} parent=1 // pred_check
      _
    $region31: #{tpu_custom_call.1} parent=1 // pred_check_branch
      %104 = sbr.rel (0) target = $region33
    $region32: #{tpu_custom_call.1} parent=1 // pred_region
      %s106 = ssub.s32 512, 512
      %107 = vsyncadd [#allocation12], %s106
      %s109 = sshll.u32 [#allocation13], 4
      %s110 = int_to_ptr.vmem [resolvable:$true] %s109
      %112 = dma.hbm_to_vmem [thread:$0]  %s7, 512, %s110, [#allocation12]
    $region33: #{tpu_custom_call.1} parent=1 // pred_fallthru
      _
    // Predicated region
    $region34: #{tpu_custom_call.1} parent=1 // pred_check
      _
    $region35: #{tpu_custom_call.1} parent=1 // pred_check_branch
      %114 = sbr.rel (0) target = $region37
    $region36: #{tpu_custom_call.1} parent=1 // pred_region
      %s116 = ssub.s32 16384, 16384
      %117 = vsyncadd [#allocation15], %s116
      %s118 = sshll.u32 [#allocation14], 4
      %s119 = int_to_ptr.vmem [resolvable:$true] %s118
      %124 = dma.hbm_to_vmem [thread:$0]  %s8, 16384, %s119, [#allocation15], 2048, 2048, 128
    $region37: #{tpu_custom_call.1} parent=1 // pred_fallthru
      _
    // Predicated region
    $region38: #{tpu_custom_call.1} parent=1 // pred_check
      _
    $region39: #{tpu_custom_call.1} parent=1 // pred_check_branch
      %126 = sbr.rel (0) target = $region41
    $region40: #{tpu_custom_call.1} parent=1 // pred_region
      _
    $region41: #{tpu_custom_call.1} parent=1 // pred_fallthru
      _
    // Predicated region
    $region42: #{tpu_custom_call.1} parent=1 // pred_check
      _
    $region43: #{tpu_custom_call.1} parent=1 // pred_check_branch
      %128 = sbr.rel (0) target = $region45
    $region44: #{tpu_custom_call.1} parent=1 // pred_region
      _
    $region45: #{tpu_custom_call.1} parent=1 // pred_fallthru
      _
    // Predicated region
    $region46: #{tpu_custom_call.1} parent=1 // pred_check
      _
    $region47: #{tpu_custom_call.1} parent=1 // pred_check_branch
      %130 = sbr.rel (0) target = $region49
    $region48: #{tpu_custom_call.1} parent=1 // pred_region
      %s132 = ssub.s32 128, 128
      %133 = vsyncadd [#allocation15], %s132
      %s134 = sshll.u32 [#allocation16], 4
      %s135 = int_to_ptr.vmem [resolvable:$true] %s134
      %140 = dma.hbm_to_vmem [thread:$0]  %s11, 128, %s135, [#allocation15], 64, 64, 4
    $region49: #{tpu_custom_call.1} parent=1 // pred_fallthru
      _
    // Predicated region
    $region50: #{tpu_custom_call.1} parent=1 // pred_check
      _
    $region51: #{tpu_custom_call.1} parent=1 // pred_check_branch
      %142 = sbr.rel (0) target = $region53
    $region52: #{tpu_custom_call.1} parent=1 // pred_region
      %s144 = ssub.s32 1024, 1024
      %145 = vsyncadd [#allocation18], %s144
      %s146 = sshll.u32 [#allocation17], 4
      %s147 = int_to_ptr.vmem [resolvable:$true] %s146
      %152 = dma.hbm_to_vmem [thread:$0]  %s12, 1024, %s147, [#allocation18], 128, 128, 8
    $region53: #{tpu_custom_call.1} parent=1 // pred_fallthru
      _
    // Predicated region
    $region54: #{tpu_custom_call.1} parent=1 // pred_check
      _
    $region55: #{tpu_custom_call.1} parent=1 // pred_check_branch
      %154 = sbr.rel (0) target = $region57
    $region56: #{tpu_custom_call.1} parent=1 // pred_region
      %s156 = ssub.s32 16, 16
      %157 = vsyncadd [#allocation18], %s156
      %s159 = sshll.u32 [#allocation19], 4
      %s160 = int_to_ptr.vmem [resolvable:$true] %s159
      %162 = dma.hbm_to_vmem [thread:$0]  %s13, 16, %s160, [#allocation18]
    $region57: #{tpu_custom_call.1} parent=1 // pred_fallthru
      _
    // Predicated region
    $region58: #{tpu_custom_call.1} parent=1 // pred_check
      _
    $region59: #{tpu_custom_call.1} parent=1 // pred_check_branch
      %164 = sbr.rel (0) target = $region61
    $region60: #{tpu_custom_call.1} parent=1 // pred_region
      %s166 = ssub.s32 2048, 2048
      %167 = vsyncadd [#allocation21], %s166
      %s168 = sshll.u32 [#allocation20], 4
      %s169 = int_to_ptr.vmem [resolvable:$true] %s168
      %174 = dma.hbm_to_vmem [thread:$0]  %s14, 2048, %s169, [#allocation21], 256, 256, 16
    $region61: #{tpu_custom_call.1} parent=1 // pred_fallthru
      _
    // Predicated region
    $region62: #{tpu_custom_call.1} parent=1 // pred_check
      _
    $region63: #{tpu_custom_call.1} parent=1 // pred_check_branch
      %176 = sbr.rel (0) target = $region65
    $region64: #{tpu_custom_call.1} parent=1 // pred_region
      %s178 = ssub.s32 2048, 2048
      %179 = vsyncadd [#allocation21], %s178
      %s180 = sshll.u32 [#allocation22], 4
      %s181 = int_to_ptr.vmem [resolvable:$true] %s180
      %186 = dma.hbm_to_vmem [thread:$0]  %s15, 2048, %s181, [#allocation21], 256, 256, 16
    $region65: #{tpu_custom_call.1} parent=1 // pred_fallthru
      _
    // Predicated region
    $region66: #{tpu_custom_call.1} parent=1 // pred_check
      _
    $region67: #{tpu_custom_call.1} parent=1 // pred_check_branch
      %188 = sbr.rel (0) target = $region69
    $region68: #{tpu_custom_call.1} parent=1 // pred_region
      %s190 = ssub.s32 32, 32
      %191 = vsyncadd [#allocation24], %s190
      %s193 = sshll.u32 [#allocation23], 4
      %s194 = int_to_ptr.vmem [resolvable:$true] %s193
      %196 = dma.hbm_to_vmem [thread:$0]  %s16, 32, %s194, [#allocation24]
    $region69: #{tpu_custom_call.1} parent=1 // pred_fallthru
      _
    // Predicated region
    $region70: #{tpu_custom_call.1} parent=1 // pred_check
      _
    $region71: #{tpu_custom_call.1} parent=1 // pred_check_branch
      %198 = sbr.rel (0) target = $region73
    $region72: #{tpu_custom_call.1} parent=1 // pred_region
      %s200 = ssub.s32 32, 32
      %201 = vsyncadd [#allocation24], %s200
      %s203 = sshll.u32 [#allocation25], 4
      %s204 = int_to_ptr.vmem [resolvable:$true] %s203
      %206 = dma.hbm_to_vmem [thread:$0]  %s17, 32, %s204, [#allocation24]
    $region73: #{tpu_custom_call.1} parent=1 // pred_fallthru
      _
    // Predicated region
    $region74: #{tpu_custom_call.1} parent=1 // pred_check
      _
    $region75: #{tpu_custom_call.1} parent=1 // pred_check_branch
      %208 = sbr.rel (0) target = $region77
    $region76: #{tpu_custom_call.1} parent=1 // pred_region
      %s210 = ssub.s32 1024, 1024
      %211 = vsyncadd [#allocation27], %s210
      %s212 = sshll.u32 [#allocation26], 4
      %s213 = int_to_ptr.vmem [resolvable:$true] %s212
      %218 = dma.hbm_to_vmem [thread:$0]  %s18, 1024, %s213, [#allocation27], 128, 128, 8
    $region77: #{tpu_custom_call.1} parent=1 // pred_fallthru
      _
    // Predicated region
    $region78: #{tpu_custom_call.1} parent=1 // pred_check
      _
    $region79: #{tpu_custom_call.1} parent=1 // pred_check_branch
      %220 = sbr.rel (0) target = $region81
    $region80: #{tpu_custom_call.1} parent=1 // pred_region
      %s222 = ssub.s32 16, 16
      %223 = vsyncadd [#allocation27], %s222
      %s225 = sshll.u32 [#allocation28], 4
      %s226 = int_to_ptr.vmem [resolvable:$true] %s225
      %228 = dma.hbm_to_vmem [thread:$0]  %s19, 16, %s226, [#allocation27]
    $region81: #{tpu_custom_call.1} parent=1 // pred_fallthru
      _
    // Predicated region
    $region82: #{tpu_custom_call.1} parent=1 // pred_check
      _
    $region83: #{tpu_custom_call.1} parent=1 // pred_check_branch
      %230 = sbr.rel (0) target = $region85
    $region84: #{tpu_custom_call.1} parent=1 // pred_region
      %231 = dma.done [#allocation3], 256
    $region85: #{tpu_custom_call.1} parent=1 // pred_fallthru
      _
    // Predicated region
    $region86: #{tpu_custom_call.1} parent=1 // pred_check
      _
    $region87: #{tpu_custom_call.1} parent=1 // pred_check_branch
      %233 = sbr.rel (0) target = $region89
    $region88: #{tpu_custom_call.1} parent=1 // pred_region
      %234 = dma.done [#allocation6], 640
    $region89: #{tpu_custom_call.1} parent=1 // pred_fallthru
      _
    // Predicated region
    $region90: #{tpu_custom_call.1} parent=1 // pred_check
      _
    $region91: #{tpu_custom_call.1} parent=1 // pred_check_branch
      %236 = sbr.rel (0) target = $region93
    $region92: #{tpu_custom_call.1} parent=1 // pred_region
      %237 = dma.done [#allocation6], 16
    $region93: #{tpu_custom_call.1} parent=1 // pred_fallthru
      _
    // Predicated region
    $region94: #{tpu_custom_call.1} parent=1 // pred_check
      _
    $region95: #{tpu_custom_call.1} parent=1 // pred_check_branch
      %239 = sbr.rel (0) target = $region97
    $region96: #{tpu_custom_call.1} parent=1 // pred_region
      %240 = dma.done [#allocation9], 128
    $region97: #{tpu_custom_call.1} parent=1 // pred_fallthru
      _
    // Predicated region
    $region98: #{tpu_custom_call.1} parent=1 // pred_check
      _
    $region99: #{tpu_custom_call.1} parent=1 // pred_check_branch
      %242 = sbr.rel (0) target = $region101
    $region100: #{tpu_custom_call.1} parent=1 // pred_region
      %243 = dma.done [#allocation9], 16
    $region101: #{tpu_custom_call.1} parent=1 // pred_fallthru
      _
    // Predicated region
    $region102: #{tpu_custom_call.1} parent=1 // pred_check
      _
    $region103: #{tpu_custom_call.1} parent=1 // pred_check_branch
      %245 = sbr.rel (0) target = $region105
    $region104: #{tpu_custom_call.1} parent=1 // pred_region
      %246 = dma.done [#allocation12], 65536
    $region105: #{tpu_custom_call.1} parent=1 // pred_fallthru
      _
    // Predicated region
    $region106: #{tpu_custom_call.1} parent=1 // pred_check
      _
    $region107: #{tpu_custom_call.1} parent=1 // pred_check_branch
      %248 = sbr.rel (0) target = $region109
    $region108: #{tpu_custom_call.1} parent=1 // pred_region
      %249 = dma.done [#allocation12], 512
    $region109: #{tpu_custom_call.1} parent=1 // pred_fallthru
      _
    // Predicated region
    $region110: #{tpu_custom_call.1} parent=1 // pred_check
      _
    $region111: #{tpu_custom_call.1} parent=1 // pred_check_branch
      %251 = sbr.rel (0) target = $region113
    $region112: #{tpu_custom_call.1} parent=1 // pred_region
      %252 = dma.done [#allocation15], 16384
    $region113: #{tpu_custom_call.1} parent=1 // pred_fallthru
      _
    // Predicated region
    $region114: #{tpu_custom_call.1} parent=1 // pred_check
      _
    $region115: #{tpu_custom_call.1} parent=1 // pred_check_branch
      %254 = sbr.rel (0) target = $region117
    $region116: #{tpu_custom_call.1} parent=1 // pred_region
      %255 = dma.done [#allocation15], 128
    $region117: #{tpu_custom_call.1} parent=1 // pred_fallthru
      _
    // Predicated region
    $region118: #{tpu_custom_call.1} parent=1 // pred_check
      _
    $region119: #{tpu_custom_call.1} parent=1 // pred_check_branch
      %257 = sbr.rel (0) target = $region121
    $region120: #{tpu_custom_call.1} parent=1 // pred_region
      %258 = dma.done [#allocation18], 1024
    $region121: #{tpu_custom_call.1} parent=1 // pred_fallthru
      _
    // Predicated region
    $region122: #{tpu_custom_call.1} parent=1 // pred_check
      _
    $region123: #{tpu_custom_call.1} parent=1 // pred_check_branch
      %260 = sbr.rel (0) target = $region125
    $region124: #{tpu_custom_call.1} parent=1 // pred_region
      %261 = dma.done [#allocation18], 16
    $region125: #{tpu_custom_call.1} parent=1 // pred_fallthru
      _
    // Predicated region
    $region126: #{tpu_custom_call.1} parent=1 // pred_check
      _
    $region127: #{tpu_custom_call.1} parent=1 // pred_check_branch
      %263 = sbr.rel (0) target = $region129
    $region128: #{tpu_custom_call.1} parent=1 // pred_region
      %264 = dma.done [#allocation21], 2048
    $region129: #{tpu_custom_call.1} parent=1 // pred_fallthru
      _
    // Predicated region
    $region130: #{tpu_custom_call.1} parent=1 // pred_check
      _
    $region131: #{tpu_custom_call.1} parent=1 // pred_check_branch
      %266 = sbr.rel (0) target = $region133
    $region132: #{tpu_custom_call.1} parent=1 // pred_region
      %267 = dma.done [#allocation21], 2048
    $region133: #{tpu_custom_call.1} parent=1 // pred_fallthru
      _
    // Predicated region
    $region134: #{tpu_custom_call.1} parent=1 // pred_check
      _
    $region135: #{tpu_custom_call.1} parent=1 // pred_check_branch
      %269 = sbr.rel (0) target = $region137
    $region136: #{tpu_custom_call.1} parent=1 // pred_region
      %270 = dma.done [#allocation24], 32
    $region137: #{tpu_custom_call.1} parent=1 // pred_fallthru
      _
    // Predicated region
    $region138: #{tpu_custom_call.1} parent=1 // pred_check
      _
    $region139: #{tpu_custom_call.1} parent=1 // pred_check_branch
      %272 = sbr.rel (0) target = $region141
    $region140: #{tpu_custom_call.1} parent=1 // pred_region
      %273 = dma.done [#allocation24], 32
    $region141: #{tpu_custom_call.1} parent=1 // pred_fallthru
      _
    // Predicated region
    $region142: #{tpu_custom_call.1} parent=1 // pred_check
      _
    $region143: #{tpu_custom_call.1} parent=1 // pred_check_branch
      %275 = sbr.rel (0) target = $region145
    $region144: #{tpu_custom_call.1} parent=1 // pred_region
      %276 = dma.done [#allocation27], 1024
    $region145: #{tpu_custom_call.1} parent=1 // pred_fallthru
      _
    // Predicated region
    $region146: #{tpu_custom_call.1} parent=1 // pred_check
      _
    $region147: #{tpu_custom_call.1} parent=1 // pred_check_branch
      %278 = sbr.rel (0) target = $region149
    $region148: #{tpu_custom_call.1} parent=1 // pred_region
      %279 = dma.done [#allocation27], 16
    $region149: #{tpu_custom_call.1} parent=1 // pred_fallthru
      _
    %v281 = vld [vmem:[#allocation2] sm:$0xff]
    %v282 = vld [vmem:[#allocation2 + $0x8] sm:$0x1f]
    %v283 = vld [vmem:[#allocation5] sm:$0xff]
    %v284 = vld [vmem:[#allocation5 + $0x8] sm:$0xff]
    %v285 = vld [vmem:[#allocation5 + $0x10] sm:$0xff]
    %v286 = vld [vmem:[#allocation5 + $0x18] sm:$0xff]
    %v287 = vld [vmem:[#allocation5 + $0x20] sm:$0x1f]
    %v288 = vpack.c.bf16 %v282, %v281
    %v289 = vpack.c.bf16 %v284, %v283
    %v290 = vpack.c.bf16 %v286, %v285
    %v291 = vpack.c.bf16 %v287, %v287
    %v292 = vld [vmem:[#allocation7] sm:$0x1]
    %v294 = vlaneseq
    %v295 = vshrl.u32 %v294, 7
    %v296 = vsub.s32 0, %v295
    %v297 = vrot.slane %v292, %v296
    %vm299 = vcmask 302080
    %v301 = vsel %vm299, %v288, 0
    %vm303 = vcmask 1041408
    %vm304 = vcmask 1042432
    %v305 = vsel %vm303, 4294967295, 65535
    %v306 = vsel %vm304, %v305, 0
    %v308 = vand.u32 %v291, %v306
    %310 = vmatprep.subr.bf16.mxu0 0
    %311 = vmatpush1.bf16.msra.mxu0 %v289
    %312 = vmatprep.subr.bf16.mxu0 0
    %313 = vmatpush1.bf16.msra.mxu0 %v290
    %314 = vmatprep.subr.bf16.mxu0 0
    %315 = vmatpush1.bf16.msra.mxu0 %v308
    %316 = vmatprep.subr.bf16.mxu0 0
    %317 = vmatpush1.bf16.msra.mxu0 0
    %318 = vmatprep.subr.bf16.mxu0 0
    %319 = vmatpush1.bf16.msra.mxu0 0
    %320 = vmatprep.subr.bf16.mxu0 0
    %321 = vmatpush1.bf16.msra.mxu0 0
    %322 = vmatprep.subr.bf16.mxu0 0
    %323 = vmatpush1.bf16.msra.mxu0 0
    %324 = vmatprep.subr.bf16.mxu0 0
    %325 = vmatpush1.bf16.msra.mxu0 0
    %326 = vmatprep.subr.bf16.mxu0 0
    %327 = vmatpush1.bf16.msra.mxu0 0
    %328 = vmatprep.subr.bf16.mxu0 0
    %329 = vmatpush1.bf16.msra.mxu0 0
    %330 = vmatprep.subr.bf16.mxu0 0
    %331 = vmatpush1.bf16.msra.mxu0 0
    %332 = vmatprep.subr.bf16.mxu0 0
    %333 = vmatpush1.bf16.msra.mxu0 0
    %334 = vmatprep.subr.bf16.mxu0 0
    %335 = vmatpush1.bf16.msra.mxu0 0
    %336 = vmatprep.subr.bf16.mxu0 0
    %337 = vmatpush1.bf16.msra.mxu0 0
    %338 = vmatprep.subr.bf16.mxu0 0
    %339 = vmatpush1.bf16.msra.mxu0 0
    %340 = vmatprep.subr.bf16.mxu0 0
    %341 = vmatpush1.bf16.msra.mxu0 0
    %342 = vmatprep.mubr.bf16.mxu0 0
    %343 = vmatmul.mubr.bf16.gmra.mrb[0].mxu0 %v301
    %v344 = vpop.f32.mrb[0].mxu0
    %v345 = vadd.f32 %v297, %v344
    %v346 = vpop.f32.mrb[0].mxu0
    %v347 = vpop.f32.mrb[0].mxu0
    %v348 = vadd.f32 %v297, %v347
    %v349 = vpop.f32.mrb[0].mxu0
    %350 = vdwg.mxu0
    %v351 = vmax.f32 %v345, 0.0
    %v352 = vmax.f32 %v348, 0.0
    %v353 = vld [vmem:[%s3] sm:$0xff]
    %v354 = vld [vmem:[%s3 + $0x8] sm:$0xff]
    %v355 = vld [vmem:[%s3 + $0x10] sm:$0x3f]
    %v356 = vld [vmem:[#allocation8] sm:$0x3f]
    %v357 = vpack.c.bf16 %v354, %v353
    %v358 = vpack.c.bf16 %v355, %v355
    %v359 = vpack.c.bf16 %v356, %v356
    %v360 = vld [vmem:[#allocation10] sm:$0x1]
    %v362 = vlaneseq
    %v363 = vshrl.u32 %v362, 7
    %v364 = vsub.s32 0, %v363
    %v365 = vrot.slane %v360, %v364
    %vm367 = vcmask 48128
    %v369 = vsel %vm367, %v357, 0
    %v372 = vsel %vm367, %v358, 0
    %v375 = vsel %vm304, %v359, 0
    %377 = vmatprep.subr.bf16.mxu0 0
    %378 = vmatpush1.bf16.msra.mxu0 %v375
    %379 = vmatprep.subr.bf16.mxu0 0
    %380 = vmatpush1.bf16.msra.mxu0 0
    %381 = vmatprep.subr.bf16.mxu0 0
    %382 = vmatpush1.bf16.msra.mxu0 0
    %383 = vmatprep.subr.bf16.mxu0 0
    %384 = vmatpush1.bf16.msra.mxu0 0
    %385 = vmatprep.subr.bf16.mxu0 0
    %386 = vmatpush1.bf16.msra.mxu0 0
    %387 = vmatprep.subr.bf16.mxu0 0
    %388 = vmatpush1.bf16.msra.mxu0 0
    %389 = vmatprep.subr.bf16.mxu0 0
    %390 = vmatpush1.bf16.msra.mxu0 0
    %391 = vmatprep.subr.bf16.mxu0 0
    %392 = vmatpush1.bf16.msra.mxu0 0
    %393 = vmatprep.subr.bf16.mxu0 0
    %394 = vmatpush1.bf16.msra.mxu0 0
    %395 = vmatprep.subr.bf16.mxu0 0
    %396 = vmatpush1.bf16.msra.mxu0 0
    %397 = vmatprep.subr.bf16.mxu0 0
    %398 = vmatpush1.bf16.msra.mxu0 0
    %399 = vmatprep.subr.bf16.mxu0 0
    %400 = vmatpush1.bf16.msra.mxu0 0
    %401 = vmatprep.subr.bf16.mxu0 0
    %402 = vmatpush1.bf16.msra.mxu0 0
    %403 = vmatprep.subr.bf16.mxu0 0
    %404 = vmatpush1.bf16.msra.mxu0 0
    %405 = vmatprep.subr.bf16.mxu0 0
    %406 = vmatpush1.bf16.msra.mxu0 0
    %407 = vmatprep.subr.bf16.mxu0 0
    %408 = vmatpush1.bf16.msra.mxu0 0
    %409 = vmatprep.mubr.bf16.mxu0 0
    %410 = vmatmul.mubr.bf16.gmra.mrb[0].mxu0 %v369
    %v411 = vpop.f32.mrb[0].mxu0
    %v412 = vadd.f32 %v365, %v411
    %v413 = vpop.f32.mrb[0].mxu0
    %v414 = vpop.f32.mrb[0].mxu0
    %v415 = vadd.f32 %v365, %v414
    %v416 = vpop.f32.mrb[0].mxu0
    %417 = vmatprep.mubr.bf16.mxu0 0
    %418 = vmatmul.mubr.bf16.gmra.mrb[0].mxu0 %v372
    %v419 = vpop.f32.mrb[0].mxu0
    %v420 = vadd.f32 %v365, %v419
    %v421 = vpop.f32.mrb[0].mxu0
    %v422 = vpop.f32.mrb[0].mxu0
    %v423 = vpop.f32.mrb[0].mxu0
    %424 = vdwg.mxu0
    %v425 = vmax.f32 %v412, 0.0
    %v426 = vmax.f32 %v415, 0.0
    %v427 = vmax.f32 %v420, 0.0
    %v428 = vld [vmem:[#allocation11] sm:$0xff]
    %v429 = vld [vmem:[#allocation11 + $0x8] sm:$0xff]
    %v430 = vld [vmem:[#allocation11 + $0x10] sm:$0xff]
    %v431 = vld [vmem:[#allocation11 + $0x18] sm:$0xff]
    %v432 = vld [vmem:[#allocation11 + $0x20] sm:$0xff]
    %v433 = vld [vmem:[#allocation11 + $0x28] sm:$0xff]
    %v434 = vld [vmem:[#allocation11 + $0x30] sm:$0xff]
    %v435 = vld [vmem:[#allocation11 + $0x38] sm:$0xff]
    %v436 = vld [vmem:[#allocation11 + $0x40] sm:$0xff]
    %v437 = vld [vmem:[#allocation11 + $0x48] sm:$0xff]
    %v438 = vld [vmem:[#allocation11 + $0x50] sm:$0xff]
    %v439 = vld [vmem:[#allocation11 + $0x58] sm:$0xff]
    %v440 = vld [vmem:[#allocation11 + $0x60] sm:$0xff]
    %v441 = vld [vmem:[#allocation11 + $0x68] sm:$0xff]
    %v442 = vld [vmem:[#allocation11 + $0x70] sm:$0xff]
    %v443 = vld [vmem:[#allocation11 + $0x78] sm:$0xff]
    %v444 = vld [vmem:[#allocation11 + $0x80] sm:$0xff]
    %v445 = vld [vmem:[#allocation11 + $0x88] sm:$0xff]
    %v446 = vld [vmem:[#allocation11 + $0x90] sm:$0xff]
    %v447 = vld [vmem:[#allocation11 + $0x98] sm:$0xff]
    %v448 = vld [vmem:[#allocation11 + $0xa0] sm:$0xff]
    %v449 = vld [vmem:[#allocation11 + $0xa8] sm:$0xff]
    %v450 = vld [vmem:[#allocation11 + $0xb0] sm:$0xff]
    %v451 = vld [vmem:[#allocation11 + $0xb8] sm:$0xff]
    %v452 = vld [vmem:[#allocation11 + $0xc0] sm:$0xff]
    %v453 = vld [vmem:[#allocation11 + $0xc8] sm:$0xff]
    %v454 = vld [vmem:[#allocation11 + $0xd0] sm:$0xff]
    %v455 = vld [vmem:[#allocation11 + $0xd8] sm:$0xff]
    %v456 = vld [vmem:[#allocation11 + $0xe0] sm:$0xff]
    %v457 = vld [vmem:[#allocation11 + $0xe8] sm:$0xff]
    %v458 = vld [vmem:[#allocation11 + $0xf0] sm:$0xff]
    %v459 = vld [vmem:[#allocation11 + $0xf8] sm:$0xff]
    %v460 = vld [vmem:[#allocation11 + $0x100] sm:$0xff]
    %v461 = vld [vmem:[#allocation11 + $0x108] sm:$0xff]
    %v462 = vld [vmem:[#allocation11 + $0x110] sm:$0xff]
    %v463 = vld [vmem:[#allocation11 + $0x118] sm:$0xff]
    %v464 = vld [vmem:[#allocation11 + $0x120] sm:$0xff]
    %v465 = vld [vmem:[#allocation11 + $0x128] sm:$0xff]
    %v466 = vld [vmem:[#allocation11 + $0x130] sm:$0xff]
    %v467 = vld [vmem:[#allocation11 + $0x138] sm:$0xff]
    %v468 = vld [vmem:[#allocation11 + $0x140] sm:$0xff]
    %v469 = vld [vmem:[#allocation11 + $0x148] sm:$0xff]
    %v470 = vld [vmem:[#allocation11 + $0x150] sm:$0xff]
    %v471 = vld [vmem:[#allocation11 + $0x158] sm:$0xff]
    %v472 = vld [vmem:[#allocation11 + $0x160] sm:$0xff]
    %v473 = vld [vmem:[#allocation11 + $0x168] sm:$0xff]
    %v474 = vld [vmem:[#allocation11 + $0x170] sm:$0xff]
    %v475 = vld [vmem:[#allocation11 + $0x178] sm:$0xff]
    %v476 = vld [vmem:[#allocation11 + $0x180] sm:$0xff]
    %v477 = vld [vmem:[#allocation11 + $0x188] sm:$0xff]
    %v478 = vld [vmem:[#allocation11 + $0x190] sm:$0xff]
    %v479 = vld [vmem:[#allocation11 + $0x198] sm:$0xff]
    %v480 = vld [vmem:[#allocation11 + $0x1a0] sm:$0xff]
    %v481 = vld [vmem:[#allocation11 + $0x1a8] sm:$0xff]
    %v482 = vld [vmem:[#allocation11 + $0x1b0] sm:$0xff]
    %v483 = vld [vmem:[#allocation11 + $0x1b8] sm:$0xff]
    %v484 = vld [vmem:[#allocation11 + $0x1c0] sm:$0xff]
    %v485 = vld [vmem:[#allocation11 + $0x1c8] sm:$0xff]
    %v486 = vld [vmem:[#allocation11 + $0x1d0] sm:$0xff]
    %v487 = vld [vmem:[#allocation11 + $0x1d8] sm:$0xff]
    %v488 = vld [vmem:[#allocation11 + $0x1e0] sm:$0xff]
    %v489 = vld [vmem:[#allocation11 + $0x1e8] sm:$0xff]
    %v490 = vld [vmem:[#allocation11 + $0x1f0] sm:$0xff]
    %v491 = vld [vmem:[#allocation11 + $0x1f8] sm:$0xff]
    %v492 = vld [vmem:[#allocation11 + $0x200] sm:$0xff]
    %v493 = vld [vmem:[#allocation11 + $0x208] sm:$0xff]
    %v494 = vld [vmem:[#allocation11 + $0x210] sm:$0xff]
    %v495 = vld [vmem:[#allocation11 + $0x218] sm:$0xff]
    %v496 = vld [vmem:[#allocation11 + $0x220] sm:$0xff]
    %v497 = vld [vmem:[#allocation11 + $0x228] sm:$0xff]
    %v498 = vld [vmem:[#allocation11 + $0x230] sm:$0xff]
    %v499 = vld [vmem:[#allocation11 + $0x238] sm:$0xff]
    %v500 = vld [vmem:[#allocation11 + $0x240] sm:$0xff]
    %v501 = vld [vmem:[#allocation11 + $0x248] sm:$0xff]
    %v502 = vld [vmem:[#allocation11 + $0x250] sm:$0xff]
    %v503 = vld [vmem:[#allocation11 + $0x258] sm:$0xff]
    %v504 = vld [vmem:[#allocation11 + $0x260] sm:$0xff]
    %v505 = vld [vmem:[#allocation11 + $0x268] sm:$0xff]
    %v506 = vld [vmem:[#allocation11 + $0x270] sm:$0xff]
    %v507 = vld [vmem:[#allocation11 + $0x278] sm:$0xff]
    %v508 = vld [vmem:[#allocation11 + $0x280] sm:$0xff]
    %v509 = vld [vmem:[#allocation11 + $0x288] sm:$0xff]
    %v510 = vld [vmem:[#allocation11 + $0x290] sm:$0xff]
    %v511 = vld [vmem:[#allocation11 + $0x298] sm:$0xff]
    %v512 = vld [vmem:[#allocation11 + $0x2a0] sm:$0xff]
    %v513 = vld [vmem:[#allocation11 + $0x2a8] sm:$0xff]
    %v514 = vld [vmem:[#allocation11 + $0x2b0] sm:$0xff]
    %v515 = vld [vmem:[#allocation11 + $0x2b8] sm:$0xff]
    %v516 = vld [vmem:[#allocation11 + $0x2c0] sm:$0xff]
    %v517 = vld [vmem:[#allocation11 + $0x2c8] sm:$0xff]
    %v518 = vld [vmem:[#allocation11 + $0x2d0] sm:$0xff]
    %v519 = vld [vmem:[#allocation11 + $0x2d8] sm:$0xff]
    %v520 = vld [vmem:[#allocation11 + $0x2e0] sm:$0xff]
    %v521 = vld [vmem:[#allocation11 + $0x2e8] sm:$0xff]
    %v522 = vld [vmem:[#allocation11 + $0x2f0] sm:$0xff]
    %v523 = vld [vmem:[#allocation11 + $0x2f8] sm:$0xff]
    %v524 = vld [vmem:[#allocation11 + $0x300] sm:$0xff]
    %v525 = vld [vmem:[#allocation11 + $0x308] sm:$0xff]
    %v526 = vld [vmem:[#allocation11 + $0x310] sm:$0xff]
    %v527 = vld [vmem:[#allocation11 + $0x318] sm:$0xff]
    %v528 = vld [vmem:[#allocation11 + $0x320] sm:$0xff]
    %v529 = vld [vmem:[#allocation11 + $0x328] sm:$0xff]
    %v530 = vld [vmem:[#allocation11 + $0x330] sm:$0xff]
    %v531 = vld [vmem:[#allocation11 + $0x338] sm:$0xff]
    %v532 = vld [vmem:[#allocation11 + $0x340] sm:$0xff]
    %v533 = vld [vmem:[#allocation11 + $0x348] sm:$0xff]
    %v534 = vld [vmem:[#allocation11 + $0x350] sm:$0xff]
    %v535 = vld [vmem:[#allocation11 + $0x358] sm:$0xff]
    %v536 = vld [vmem:[#allocation11 + $0x360] sm:$0xff]
    %v537 = vld [vmem:[#allocation11 + $0x368] sm:$0xff]
    %v538 = vld [vmem:[#allocation11 + $0x370] sm:$0xff]
    %v539 = vld [vmem:[#allocation11 + $0x378] sm:$0xff]
    %v540 = vld [vmem:[#allocation11 + $0x380] sm:$0xff]
    %v541 = vld [vmem:[#allocation11 + $0x388] sm:$0xff]
    %v542 = vld [vmem:[#allocation11 + $0x390] sm:$0xff]
    %v543 = vld [vmem:[#allocation11 + $0x398] sm:$0xff]
    %v544 = vld [vmem:[#allocation11 + $0x3a0] sm:$0xff]
    %v545 = vld [vmem:[#allocation11 + $0x3a8] sm:$0xff]
    %v546 = vld [vmem:[#allocation11 + $0x3b0] sm:$0xff]
    %v547 = vld [vmem:[#allocation11 + $0x3b8] sm:$0xff]
    %v548 = vld [vmem:[#allocation11 + $0x3c0] sm:$0xff]
    %v549 = vld [vmem:[#allocation11 + $0x3c8] sm:$0xff]
    %v550 = vld [vmem:[#allocation11 + $0x3d0] sm:$0xff]
    %v551 = vld [vmem:[#allocation11 + $0x3d8] sm:$0xff]
    %v552 = vld [vmem:[#allocation11 + $0x3e0] sm:$0xff]
    %v553 = vld [vmem:[#allocation11 + $0x3e8] sm:$0xff]
    %v554 = vld [vmem:[#allocation11 + $0x3f0] sm:$0xff]
    %v555 = vld [vmem:[#allocation11 + $0x3f8] sm:$0xff]
    %v556 = vld [vmem:[#allocation11 + $0x400] sm:$0xff]
    %v557 = vld [vmem:[#allocation11 + $0x408] sm:$0xff]
    %v558 = vld [vmem:[#allocation11 + $0x410] sm:$0xff]
    %v559 = vld [vmem:[#allocation11 + $0x418] sm:$0xff]
    %v560 = vld [vmem:[#allocation11 + $0x420] sm:$0xff]
    %v561 = vld [vmem:[#allocation11 + $0x428] sm:$0xff]
    %v562 = vld [vmem:[#allocation11 + $0x430] sm:$0xff]
    %v563 = vld [vmem:[#allocation11 + $0x438] sm:$0xff]
    %v564 = vld [vmem:[#allocation11 + $0x440] sm:$0xff]
    %v565 = vld [vmem:[#allocation11 + $0x448] sm:$0xff]
    %v566 = vld [vmem:[#allocation11 + $0x450] sm:$0xff]
    %v567 = vld [vmem:[#allocation11 + $0x458] sm:$0xff]
    %v568 = vld [vmem:[#allocation11 + $0x460] sm:$0xff]
    %v569 = vld [vmem:[#allocation11 + $0x468] sm:$0xff]
    %v570 = vld [vmem:[#allocation11 + $0x470] sm:$0xff]
    %v571 = vld [vmem:[#allocation11 + $0x478] sm:$0xff]
    %v572 = vld [vmem:[#allocation11 + $0x480] sm:$0xff]
    %v573 = vld [vmem:[#allocation11 + $0x488] sm:$0xff]
    %v574 = vld [vmem:[#allocation11 + $0x490] sm:$0xff]
    %v575 = vld [vmem:[#allocation11 + $0x498] sm:$0xff]
    %v576 = vld [vmem:[#allocation11 + $0x4a0] sm:$0xff]
    %v577 = vld [vmem:[#allocation11 + $0x4a8] sm:$0xff]
    %v578 = vld [vmem:[#allocation11 + $0x4b0] sm:$0xff]
    %v579 = vld [vmem:[#allocation11 + $0x4b8] sm:$0xff]
    %v580 = vld [vmem:[#allocation11 + $0x4c0] sm:$0xff]
    %v581 = vld [vmem:[#allocation11 + $0x4c8] sm:$0xff]
    %v582 = vld [vmem:[#allocation11 + $0x4d0] sm:$0xff]
    %v583 = vld [vmem:[#allocation11 + $0x4d8] sm:$0xff]
    %v584 = vld [vmem:[#allocation11 + $0x4e0] sm:$0xff]
    %v585 = vld [vmem:[#allocation11 + $0x4e8] sm:$0xff]
    %v586 = vld [vmem:[#allocation11 + $0x4f0] sm:$0xff]
    %v587 = vld [vmem:[#allocation11 + $0x4f8] sm:$0xff]
    %v588 = vld [vmem:[#allocation11 + $0x500] sm:$0xff]
    %v589 = vld [vmem:[#allocation11 + $0x508] sm:$0xff]
    %v590 = vld [vmem:[#allocation11 + $0x510] sm:$0xff]
    %v591 = vld [vmem:[#allocation11 + $0x518] sm:$0xff]
    %v592 = vld [vmem:[#allocation11 + $0x520] sm:$0xff]
    %v593 = vld [vmem:[#allocation11 + $0x528] sm:$0xff]
    %v594 = vld [vmem:[#allocation11 + $0x530] sm:$0xff]
    %v595 = vld [vmem:[#allocation11 + $0x538] sm:$0xff]
    %v596 = vld [vmem:[#allocation11 + $0x540] sm:$0xff]
    %v597 = vld [vmem:[#allocation11 + $0x548] sm:$0xff]
    %v598 = vld [vmem:[#allocation11 + $0x550] sm:$0xff]
    %v599 = vld [vmem:[#allocation11 + $0x558] sm:$0xff]
    %v600 = vld [vmem:[#allocation11 + $0x560] sm:$0xff]
    %v601 = vld [vmem:[#allocation11 + $0x568] sm:$0xff]
    %v602 = vld [vmem:[#allocation11 + $0x570] sm:$0xff]
    %v603 = vld [vmem:[#allocation11 + $0x578] sm:$0xff]
    %v604 = vld [vmem:[#allocation11 + $0x580] sm:$0xff]
    %v605 = vld [vmem:[#allocation11 + $0x588] sm:$0xff]
    %v606 = vld [vmem:[#allocation11 + $0x590] sm:$0xff]
    %v607 = vld [vmem:[#allocation11 + $0x598] sm:$0xff]
    %v608 = vld [vmem:[#allocation11 + $0x5a0] sm:$0xff]
    %v609 = vld [vmem:[#allocation11 + $0x5a8] sm:$0xff]
    %v610 = vld [vmem:[#allocation11 + $0x5b0] sm:$0xff]
    %v611 = vld [vmem:[#allocation11 + $0x5b8] sm:$0xff]
    %v612 = vld [vmem:[#allocation11 + $0x5c0] sm:$0xff]
    %v613 = vld [vmem:[#allocation11 + $0x5c8] sm:$0xff]
    %v614 = vld [vmem:[#allocation11 + $0x5d0] sm:$0xff]
    %v615 = vld [vmem:[#allocation11 + $0x5d8] sm:$0xff]
    %v616 = vld [vmem:[#allocation11 + $0x5e0] sm:$0xff]
    %v617 = vld [vmem:[#allocation11 + $0x5e8] sm:$0xff]
    %v618 = vld [vmem:[#allocation11 + $0x5f0] sm:$0xff]
    %v619 = vld [vmem:[#allocation11 + $0x5f8] sm:$0xff]
    %v620 = vld [vmem:[#allocation11 + $0x600] sm:$0xff]
    %v621 = vld [vmem:[#allocation11 + $0x608] sm:$0xff]
    %v622 = vld [vmem:[#allocation11 + $0x610] sm:$0xff]
    %v623 = vld [vmem:[#allocation11 + $0x618] sm:$0xff]
    %v624 = vld [vmem:[#allocation11 + $0x620] sm:$0xff]
    %v625 = vld [vmem:[#allocation11 + $0x628] sm:$0xff]
    %v626 = vld [vmem:[#allocation11 + $0x630] sm:$0xff]
    %v627 = vld [vmem:[#allocation11 + $0x638] sm:$0xff]
    %v628 = vld [vmem:[#allocation11 + $0x640] sm:$0xff]
    %v629 = vld [vmem:[#allocation11 + $0x648] sm:$0xff]
    %v630 = vld [vmem:[#allocation11 + $0x650] sm:$0xff]
    %v631 = vld [vmem:[#allocation11 + $0x658] sm:$0xff]
    %v632 = vld [vmem:[#allocation11 + $0x660] sm:$0xff]
    %v633 = vld [vmem:[#allocation11 + $0x668] sm:$0xff]
    %v634 = vld [vmem:[#allocation11 + $0x670] sm:$0xff]
    %v635 = vld [vmem:[#allocation11 + $0x678] sm:$0xff]
    %v636 = vld [vmem:[#allocation11 + $0x680] sm:$0xff]
    %v637 = vld [vmem:[#allocation11 + $0x688] sm:$0xff]
    %v638 = vld [vmem:[#allocation11 + $0x690] sm:$0xff]
    %v639 = vld [vmem:[#allocation11 + $0x698] sm:$0xff]
    %v640 = vld [vmem:[#allocation11 + $0x6a0] sm:$0xff]
    %v641 = vld [vmem:[#allocation11 + $0x6a8] sm:$0xff]
    %v642 = vld [vmem:[#allocation11 + $0x6b0] sm:$0xff]
    %v643 = vld [vmem:[#allocation11 + $0x6b8] sm:$0xff]
    %v644 = vld [vmem:[#allocation11 + $0x6c0] sm:$0xff]
    %v645 = vld [vmem:[#allocation11 + $0x6c8] sm:$0xff]
    %v646 = vld [vmem:[#allocation11 + $0x6d0] sm:$0xff]
    %v647 = vld [vmem:[#allocation11 + $0x6d8] sm:$0xff]
    %v648 = vld [vmem:[#allocation11 + $0x6e0] sm:$0xff]
    %v649 = vld [vmem:[#allocation11 + $0x6e8] sm:$0xff]
    %v650 = vld [vmem:[#allocation11 + $0x6f0] sm:$0xff]
    %v651 = vld [vmem:[#allocation11 + $0x6f8] sm:$0xff]
    %v652 = vld [vmem:[#allocation11 + $0x700] sm:$0xff]
    %v653 = vld [vmem:[#allocation11 + $0x708] sm:$0xff]
    %v654 = vld [vmem:[#allocation11 + $0x710] sm:$0xff]
    %v655 = vld [vmem:[#allocation11 + $0x718] sm:$0xff]
    %v656 = vld [vmem:[#allocation11 + $0x720] sm:$0xff]
    %v657 = vld [vmem:[#allocation11 + $0x728] sm:$0xff]
    %v658 = vld [vmem:[#allocation11 + $0x730] sm:$0xff]
    %v659 = vld [vmem:[#allocation11 + $0x738] sm:$0xff]
    %v660 = vld [vmem:[#allocation11 + $0x740] sm:$0xff]
    %v661 = vld [vmem:[#allocation11 + $0x748] sm:$0xff]
    %v662 = vld [vmem:[#allocation11 + $0x750] sm:$0xff]
    %v663 = vld [vmem:[#allocation11 + $0x758] sm:$0xff]
    %v664 = vld [vmem:[#allocation11 + $0x760] sm:$0xff]
    %v665 = vld [vmem:[#allocation11 + $0x768] sm:$0xff]
    %v666 = vld [vmem:[#allocation11 + $0x770] sm:$0xff]
    %v667 = vld [vmem:[#allocation11 + $0x778] sm:$0xff]
    %v668 = vld [vmem:[#allocation11 + $0x780] sm:$0xff]
    %v669 = vld [vmem:[#allocation11 + $0x788] sm:$0xff]
    %v670 = vld [vmem:[#allocation11 + $0x790] sm:$0xff]
    %v671 = vld [vmem:[#allocation11 + $0x798] sm:$0xff]
    %v672 = vld [vmem:[#allocation11 + $0x7a0] sm:$0xff]
    %v673 = vld [vmem:[#allocation11 + $0x7a8] sm:$0xff]
    %v674 = vld [vmem:[#allocation11 + $0x7b0] sm:$0xff]
    %v675 = vld [vmem:[#allocation11 + $0x7b8] sm:$0xff]
    %v676 = vld [vmem:[#allocation11 + $0x7c0] sm:$0xff]
    %v677 = vld [vmem:[#allocation11 + $0x7c8] sm:$0xff]
    %v678 = vld [vmem:[#allocation11 + $0x7d0] sm:$0xff]
    %v679 = vld [vmem:[#allocation11 + $0x7d8] sm:$0xff]
    %v680 = vld [vmem:[#allocation11 + $0x7e0] sm:$0xff]
    %v681 = vld [vmem:[#allocation11 + $0x7e8] sm:$0xff]
    %v682 = vld [vmem:[#allocation11 + $0x7f0] sm:$0xff]
    %v683 = vld [vmem:[#allocation11 + $0x7f8] sm:$0xff]
    %v684 = vld [vmem:[#allocation11 + $0x800] sm:$0xff]
    %v685 = vld [vmem:[#allocation11 + $0x808] sm:$0xff]
    %v686 = vld [vmem:[#allocation11 + $0x810] sm:$0xff]
    %v687 = vld [vmem:[#allocation11 + $0x818] sm:$0xff]
    %v688 = vld [vmem:[#allocation11 + $0x820] sm:$0xff]
    %v689 = vld [vmem:[#allocation11 + $0x828] sm:$0xff]
    %v690 = vld [vmem:[#allocation11 + $0x830] sm:$0xff]
    %v691 = vld [vmem:[#allocation11 + $0x838] sm:$0xff]
    %v692 = vld [vmem:[#allocation11 + $0x840] sm:$0xff]
    %v693 = vld [vmem:[#allocation11 + $0x848] sm:$0xff]
    %v694 = vld [vmem:[#allocation11 + $0x850] sm:$0xff]
    %v695 = vld [vmem:[#allocation11 + $0x858] sm:$0xff]
    %v696 = vld [vmem:[#allocation11 + $0x860] sm:$0xff]
    %v697 = vld [vmem:[#allocation11 + $0x868] sm:$0xff]
    %v698 = vld [vmem:[#allocation11 + $0x870] sm:$0xff]
    %v699 = vld [vmem:[#allocation11 + $0x878] sm:$0xff]
    %v700 = vld [vmem:[#allocation11 + $0x880] sm:$0xff]
    %v701 = vld [vmem:[#allocation11 + $0x888] sm:$0xff]
    %v702 = vld [vmem:[#allocation11 + $0x890] sm:$0xff]
    %v703 = vld [vmem:[#allocation11 + $0x898] sm:$0xff]
    %v704 = vld [vmem:[#allocation11 + $0x8a0] sm:$0xff]
    %v705 = vld [vmem:[#allocation11 + $0x8a8] sm:$0xff]
    %v706 = vld [vmem:[#allocation11 + $0x8b0] sm:$0xff]
    %v707 = vld [vmem:[#allocation11 + $0x8b8] sm:$0xff]
    %v708 = vld [vmem:[#allocation11 + $0x8c0] sm:$0xff]
    %v709 = vld [vmem:[#allocation11 + $0x8c8] sm:$0xff]
    %v710 = vld [vmem:[#allocation11 + $0x8d0] sm:$0xff]
    %v711 = vld [vmem:[#allocation11 + $0x8d8] sm:$0xff]
    %v712 = vld [vmem:[#allocation11 + $0x8e0] sm:$0xff]
    %v713 = vld [vmem:[#allocation11 + $0x8e8] sm:$0xff]
    %v714 = vld [vmem:[#allocation11 + $0x8f0] sm:$0xff]
    %v715 = vld [vmem:[#allocation11 + $0x8f8] sm:$0xff]
    %v716 = vld [vmem:[#allocation11 + $0x900] sm:$0xff]
    %v717 = vld [vmem:[#allocation11 + $0x908] sm:$0xff]
    %v718 = vld [vmem:[#allocation11 + $0x910] sm:$0xff]
    %v719 = vld [vmem:[#allocation11 + $0x918] sm:$0xff]
    %v720 = vld [vmem:[#allocation11 + $0x920] sm:$0xff]
    %v721 = vld [vmem:[#allocation11 + $0x928] sm:$0xff]
    %v722 = vld [vmem:[#allocation11 + $0x930] sm:$0xff]
    %v723 = vld [vmem:[#allocation11 + $0x938] sm:$0xff]
    %v724 = vld [vmem:[#allocation11 + $0x940] sm:$0xff]
    %v725 = vld [vmem:[#allocation11 + $0x948] sm:$0xff]
    %v726 = vld [vmem:[#allocation11 + $0x950] sm:$0xff]
    %v727 = vld [vmem:[#allocation11 + $0x958] sm:$0xff]
    %v728 = vld [vmem:[#allocation11 + $0x960] sm:$0xff]
    %v729 = vld [vmem:[#allocation11 + $0x968] sm:$0xff]
    %v730 = vld [vmem:[#allocation11 + $0x970] sm:$0xff]
    %v731 = vld [vmem:[#allocation11 + $0x978] sm:$0xff]
    %v732 = vld [vmem:[#allocation11 + $0x980] sm:$0xff]
    %v733 = vld [vmem:[#allocation11 + $0x988] sm:$0xff]
    %v734 = vld [vmem:[#allocation11 + $0x990] sm:$0xff]
    %v735 = vld [vmem:[#allocation11 + $0x998] sm:$0xff]
    %v736 = vld [vmem:[#allocation11 + $0x9a0] sm:$0xff]
    %v737 = vld [vmem:[#allocation11 + $0x9a8] sm:$0xff]
    %v738 = vld [vmem:[#allocation11 + $0x9b0] sm:$0xff]
    %v739 = vld [vmem:[#allocation11 + $0x9b8] sm:$0xff]
    %v740 = vld [vmem:[#allocation11 + $0x9c0] sm:$0xff]
    %v741 = vld [vmem:[#allocation11 + $0x9c8] sm:$0xff]
    %v742 = vld [vmem:[#allocation11 + $0x9d0] sm:$0xff]
    %v743 = vld [vmem:[#allocation11 + $0x9d8] sm:$0xff]
    %v744 = vld [vmem:[#allocation11 + $0x9e0] sm:$0xff]
    %v745 = vld [vmem:[#allocation11 + $0x9e8] sm:$0xff]
    %v746 = vld [vmem:[#allocation11 + $0x9f0] sm:$0xff]
    %v747 = vld [vmem:[#allocation11 + $0x9f8] sm:$0xff]
    %v748 = vld [vmem:[#allocation11 + $0xa00] sm:$0xff]
    %v749 = vld [vmem:[#allocation11 + $0xa08] sm:$0xff]
    %v750 = vld [vmem:[#allocation11 + $0xa10] sm:$0xff]
    %v751 = vld [vmem:[#allocation11 + $0xa18] sm:$0xff]
    %v752 = vld [vmem:[#allocation11 + $0xa20] sm:$0xff]
    %v753 = vld [vmem:[#allocation11 + $0xa28] sm:$0xff]
    %v754 = vld [vmem:[#allocation11 + $0xa30] sm:$0xff]
    %v755 = vld [vmem:[#allocation11 + $0xa38] sm:$0xff]
    %v756 = vld [vmem:[#allocation11 + $0xa40] sm:$0xff]
    %v757 = vld [vmem:[#allocation11 + $0xa48] sm:$0xff]
    %v758 = vld [vmem:[#allocation11 + $0xa50] sm:$0xff]
    %v759 = vld [vmem:[#allocation11 + $0xa58] sm:$0xff]
    %v760 = vld [vmem:[#allocation11 + $0xa60] sm:$0xff]
    %v761 = vld [vmem:[#allocation11 + $0xa68] sm:$0xff]
    %v762 = vld [vmem:[#allocation11 + $0xa70] sm:$0xff]
    %v763 = vld [vmem:[#allocation11 + $0xa78] sm:$0xff]
    %v764 = vld [vmem:[#allocation11 + $0xa80] sm:$0xff]
    %v765 = vld [vmem:[#allocation11 + $0xa88] sm:$0xff]
    %v766 = vld [vmem:[#allocation11 + $0xa90] sm:$0xff]
    %v767 = vld [vmem:[#allocation11 + $0xa98] sm:$0xff]
    %v768 = vld [vmem:[#allocation11 + $0xaa0] sm:$0xff]
    %v769 = vld [vmem:[#allocation11 + $0xaa8] sm:$0xff]
    %v770 = vld [vmem:[#allocation11 + $0xab0] sm:$0xff]
    %v771 = vld [vmem:[#allocation11 + $0xab8] sm:$0xff]
    %v772 = vld [vmem:[#allocation11 + $0xac0] sm:$0xff]
    %v773 = vld [vmem:[#allocation11 + $0xac8] sm:$0xff]
    %v774 = vld [vmem:[#allocation11 + $0xad0] sm:$0xff]
    %v775 = vld [vmem:[#allocation11 + $0xad8] sm:$0xff]
    %v776 = vld [vmem:[#allocation11 + $0xae0] sm:$0xff]
    %v777 = vld [vmem:[#allocation11 + $0xae8] sm:$0xff]
    %v778 = vld [vmem:[#allocation11 + $0xaf0] sm:$0xff]
    %v779 = vld [vmem:[#allocation11 + $0xaf8] sm:$0xff]
    %v780 = vld [vmem:[#allocation11 + $0xb00] sm:$0xff]
    %v781 = vld [vmem:[#allocation11 + $0xb08] sm:$0xff]
    %v782 = vld [vmem:[#allocation11 + $0xb10] sm:$0xff]
    %v783 = vld [vmem:[#allocation11 + $0xb18] sm:$0xff]
    %v784 = vld [vmem:[#allocation11 + $0xb20] sm:$0xff]
    %v785 = vld [vmem:[#allocation11 + $0xb28] sm:$0xff]
    %v786 = vld [vmem:[#allocation11 + $0xb30] sm:$0xff]
    %v787 = vld [vmem:[#allocation11 + $0xb38] sm:$0xff]
    %v788 = vld [vmem:[#allocation11 + $0xb40] sm:$0xff]
    %v789 = vld [vmem:[#allocation11 + $0xb48] sm:$0xff]
    %v790 = vld [vmem:[#allocation11 + $0xb50] sm:$0xff]
    %v791 = vld [vmem:[#allocation11 + $0xb58] sm:$0xff]
    %v792 = vld [vmem:[#allocation11 + $0xb60] sm:$0xff]
    %v793 = vld [vmem:[#allocation11 + $0xb68] sm:$0xff]
    %v794 = vld [vmem:[#allocation11 + $0xb70] sm:$0xff]
    %v795 = vld [vmem:[#allocation11 + $0xb78] sm:$0xff]
    %v796 = vld [vmem:[#allocation11 + $0xb80] sm:$0xff]
    %v797 = vld [vmem:[#allocation11 + $0xb88] sm:$0xff]
    %v798 = vld [vmem:[#allocation11 + $0xb90] sm:$0xff]
    %v799 = vld [vmem:[#allocation11 + $0xb98] sm:$0xff]
    %v800 = vld [vmem:[#allocation11 + $0xba0] sm:$0xff]
    %v801 = vld [vmem:[#allocation11 + $0xba8] sm:$0xff]
    %v802 = vld [vmem:[#allocation11 + $0xbb0] sm:$0xff]
    %v803 = vld [vmem:[#allocation11 + $0xbb8] sm:$0xff]
    %v804 = vld [vmem:[#allocation11 + $0xbc0] sm:$0xff]
    %v805 = vld [vmem:[#allocation11 + $0xbc8] sm:$0xff]
    %v806 = vld [vmem:[#allocation11 + $0xbd0] sm:$0xff]
    %v807 = vld [vmem:[#allocation11 + $0xbd8] sm:$0xff]
    %v808 = vld [vmem:[#allocation11 + $0xbe0] sm:$0xff]
    %v809 = vld [vmem:[#allocation11 + $0xbe8] sm:$0xff]
    %v810 = vld [vmem:[#allocation11 + $0xbf0] sm:$0xff]
    %v811 = vld [vmem:[#allocation11 + $0xbf8] sm:$0xff]
    %v812 = vld [vmem:[#allocation11 + $0xc00] sm:$0xff]
    %v813 = vld [vmem:[#allocation11 + $0xc08] sm:$0xff]
    %v814 = vld [vmem:[#allocation11 + $0xc10] sm:$0xff]
    %v815 = vld [vmem:[#allocation11 + $0xc18] sm:$0xff]
    %v816 = vld [vmem:[#allocation11 + $0xc20] sm:$0xff]
    %v817 = vld [vmem:[#allocation11 + $0xc28] sm:$0xff]
    %v818 = vld [vmem:[#allocation11 + $0xc30] sm:$0xff]
    %v819 = vld [vmem:[#allocation11 + $0xc38] sm:$0xff]
    %v820 = vld [vmem:[#allocation11 + $0xc40] sm:$0xff]
    %v821 = vld [vmem:[#allocation11 + $0xc48] sm:$0xff]
    %v822 = vld [vmem:[#allocation11 + $0xc50] sm:$0xff]
    %v823 = vld [vmem:[#allocation11 + $0xc58] sm:$0xff]
    %v824 = vld [vmem:[#allocation11 + $0xc60] sm:$0xff]
    %v825 = vld [vmem:[#allocation11 + $0xc68] sm:$0xff]
    %v826 = vld [vmem:[#allocation11 + $0xc70] sm:$0xff]
    %v827 = vld [vmem:[#allocation11 + $0xc78] sm:$0xff]
    %v828 = vld [vmem:[#allocation11 + $0xc80] sm:$0xff]
    %v829 = vld [vmem:[#allocation11 + $0xc88] sm:$0xff]
    %v830 = vld [vmem:[#allocation11 + $0xc90] sm:$0xff]
    %v831 = vld [vmem:[#allocation11 + $0xc98] sm:$0xff]
    %v832 = vld [vmem:[#allocation11 + $0xca0] sm:$0xff]
    %v833 = vld [vmem:[#allocation11 + $0xca8] sm:$0xff]
    %v834 = vld [vmem:[#allocation11 + $0xcb0] sm:$0xff]
    %v835 = vld [vmem:[#allocation11 + $0xcb8] sm:$0xff]
    %v836 = vld [vmem:[#allocation11 + $0xcc0] sm:$0xff]
    %v837 = vld [vmem:[#allocation11 + $0xcc8] sm:$0xff]
    %v838 = vld [vmem:[#allocation11 + $0xcd0] sm:$0xff]
    %v839 = vld [vmem:[#allocation11 + $0xcd8] sm:$0xff]
    %v840 = vld [vmem:[#allocation11 + $0xce0] sm:$0xff]
    %v841 = vld [vmem:[#allocation11 + $0xce8] sm:$0xff]
    %v842 = vld [vmem:[#allocation11 + $0xcf0] sm:$0xff]
    %v843 = vld [vmem:[#allocation11 + $0xcf8] sm:$0xff]
    %v844 = vld [vmem:[#allocation11 + $0xd00] sm:$0xff]
    %v845 = vld [vmem:[#allocation11 + $0xd08] sm:$0xff]
    %v846 = vld [vmem:[#allocation11 + $0xd10] sm:$0xff]
    %v847 = vld [vmem:[#allocation11 + $0xd18] sm:$0xff]
    %v848 = vld [vmem:[#allocation11 + $0xd20] sm:$0xff]
    %v849 = vld [vmem:[#allocation11 + $0xd28] sm:$0xff]
    %v850 = vld [vmem:[#allocation11 + $0xd30] sm:$0xff]
    %v851 = vld [vmem:[#allocation11 + $0xd38] sm:$0xff]
    %v852 = vld [vmem:[#allocation11 + $0xd40] sm:$0xff]
    %v853 = vld [vmem:[#allocation11 + $0xd48] sm:$0xff]
    %v854 = vld [vmem:[#allocation11 + $0xd50] sm:$0xff]
    %v855 = vld [vmem:[#allocation11 + $0xd58] sm:$0xff]
    %v856 = vld [vmem:[#allocation11 + $0xd60] sm:$0xff]
    %v857 = vld [vmem:[#allocation11 + $0xd68] sm:$0xff]
    %v858 = vld [vmem:[#allocation11 + $0xd70] sm:$0xff]
    %v859 = vld [vmem:[#allocation11 + $0xd78] sm:$0xff]
    %v860 = vld [vmem:[#allocation11 + $0xd80] sm:$0xff]
    %v861 = vld [vmem:[#allocation11 + $0xd88] sm:$0xff]
    %v862 = vld [vmem:[#allocation11 + $0xd90] sm:$0xff]
    %v863 = vld [vmem:[#allocation11 + $0xd98] sm:$0xff]
    %v864 = vld [vmem:[#allocation11 + $0xda0] sm:$0xff]
    %v865 = vld [vmem:[#allocation11 + $0xda8] sm:$0xff]
    %v866 = vld [vmem:[#allocation11 + $0xdb0] sm:$0xff]
    %v867 = vld [vmem:[#allocation11 + $0xdb8] sm:$0xff]
    %v868 = vld [vmem:[#allocation11 + $0xdc0] sm:$0xff]
    %v869 = vld [vmem:[#allocation11 + $0xdc8] sm:$0xff]
    %v870 = vld [vmem:[#allocation11 + $0xdd0] sm:$0xff]
    %v871 = vld [vmem:[#allocation11 + $0xdd8] sm:$0xff]
    %v872 = vld [vmem:[#allocation11 + $0xde0] sm:$0xff]
    %v873 = vld [vmem:[#allocation11 + $0xde8] sm:$0xff]
    %v874 = vld [vmem:[#allocation11 + $0xdf0] sm:$0xff]
    %v875 = vld [vmem:[#allocation11 + $0xdf8] sm:$0xff]
    %v876 = vld [vmem:[#allocation11 + $0xe00] sm:$0xff]
    %v877 = vld [vmem:[#allocation11 + $0xe08] sm:$0xff]
    %v878 = vld [vmem:[#allocation11 + $0xe10] sm:$0xff]
    %v879 = vld [vmem:[#allocation11 + $0xe18] sm:$0xff]
    %v880 = vld [vmem:[#allocation11 + $0xe20] sm:$0xff]
    %v881 = vld [vmem:[#allocation11 + $0xe28] sm:$0xff]
    %v882 = vld [vmem:[#allocation11 + $0xe30] sm:$0xff]
    %v883 = vld [vmem:[#allocation11 + $0xe38] sm:$0xff]
    %v884 = vld [vmem:[#allocation11 + $0xe40] sm:$0xff]
    %v885 = vld [vmem:[#allocation11 + $0xe48] sm:$0xff]
    %v886 = vld [vmem:[#allocation11 + $0xe50] sm:$0xff]
    %v887 = vld [vmem:[#allocation11 + $0xe58] sm:$0xff]
    %v888 = vld [vmem:[#allocation11 + $0xe60] sm:$0xff]
    %v889 = vld [vmem:[#allocation11 + $0xe68] sm:$0xff]
    %v890 = vld [vmem:[#allocation11 + $0xe70] sm:$0xff]
    %v891 = vld [vmem:[#allocation11 + $0xe78] sm:$0xff]
    %v892 = vld [vmem:[#allocation11 + $0xe80] sm:$0xff]
    %v893 = vld [vmem:[#allocation11 + $0xe88] sm:$0xff]
    %v894 = vld [vmem:[#allocation11 + $0xe90] sm:$0xff]
    %v895 = vld [vmem:[#allocation11 + $0xe98] sm:$0xff]
    %v896 = vld [vmem:[#allocation11 + $0xea0] sm:$0xff]
    %v897 = vld [vmem:[#allocation11 + $0xea8] sm:$0xff]
    %v898 = vld [vmem:[#allocation11 + $0xeb0] sm:$0xff]
    %v899 = vld [vmem:[#allocation11 + $0xeb8] sm:$0xff]
    %v900 = vld [vmem:[#allocation11 + $0xec0] sm:$0xff]
    %v901 = vld [vmem:[#allocation11 + $0xec8] sm:$0xff]
    %v902 = vld [vmem:[#allocation11 + $0xed0] sm:$0xff]
    %v903 = vld [vmem:[#allocation11 + $0xed8] sm:$0xff]
    %v904 = vld [vmem:[#allocation11 + $0xee0] sm:$0xff]
    %v905 = vld [vmem:[#allocation11 + $0xee8] sm:$0xff]
    %v906 = vld [vmem:[#allocation11 + $0xef0] sm:$0xff]
    %v907 = vld [vmem:[#allocation11 + $0xef8] sm:$0xff]
    %v908 = vld [vmem:[#allocation11 + $0xf00] sm:$0xff]
    %v909 = vld [vmem:[#allocation11 + $0xf08] sm:$0xff]
    %v910 = vld [vmem:[#allocation11 + $0xf10] sm:$0xff]
    %v911 = vld [vmem:[#allocation11 + $0xf18] sm:$0xff]
    %v912 = vld [vmem:[#allocation11 + $0xf20] sm:$0xff]
    %v913 = vld [vmem:[#allocation11 + $0xf28] sm:$0xff]
    %v914 = vld [vmem:[#allocation11 + $0xf30] sm:$0xff]
    %v915 = vld [vmem:[#allocation11 + $0xf38] sm:$0xff]
    %v916 = vld [vmem:[#allocation11 + $0xf40] sm:$0xff]
    %v917 = vld [vmem:[#allocation11 + $0xf48] sm:$0xff]
    %v918 = vld [vmem:[#allocation11 + $0xf50] sm:$0xff]
    %v919 = vld [vmem:[#allocation11 + $0xf58] sm:$0xff]
    %v920 = vld [vmem:[#allocation11 + $0xf60] sm:$0xff]
    %v921 = vld [vmem:[#allocation11 + $0xf68] sm:$0xff]
    %v922 = vld [vmem:[#allocation11 + $0xf70] sm:$0xff]
    %v923 = vld [vmem:[#allocation11 + $0xf78] sm:$0xff]
    %v924 = vld [vmem:[#allocation11 + $0xf80] sm:$0xff]
    %v925 = vld [vmem:[#allocation11 + $0xf88] sm:$0xff]
    %v926 = vld [vmem:[#allocation11 + $0xf90] sm:$0xff]
    %v927 = vld [vmem:[#allocation11 + $0xf98] sm:$0xff]
    %v928 = vld [vmem:[#allocation11 + $0xfa0] sm:$0xff]
    %v929 = vld [vmem:[#allocation11 + $0xfa8] sm:$0xff]
    %v930 = vld [vmem:[#allocation11 + $0xfb0] sm:$0xff]
    %v931 = vld [vmem:[#allocation11 + $0xfb8] sm:$0xff]
    %v932 = vld [vmem:[#allocation11 + $0xfc0] sm:$0xff]
    %v933 = vld [vmem:[#allocation11 + $0xfc8] sm:$0xff]
    %v934 = vld [vmem:[#allocation11 + $0xfd0] sm:$0xff]
    %v935 = vld [vmem:[#allocation11 + $0xfd8] sm:$0xff]
    %v936 = vld [vmem:[#allocation11 + $0xfe0] sm:$0xff]
    %v937 = vld [vmem:[#allocation11 + $0xfe8] sm:$0xff]
    %v938 = vld [vmem:[#allocation11 + $0xff0] sm:$0xff]
    %v939 = vld [vmem:[#allocation11 + $0xff8] sm:$0xff]
    %v940 = vpack.c.bf16 %v426, %v425
    %v941 = vpack.c.bf16 %v427, %v427
    %v942 = vpack.c.bf16 %v460, %v428
    %v943 = vpack.c.bf16 %v461, %v429
    %v944 = vpack.c.bf16 %v462, %v430
    %v945 = vpack.c.bf16 %v463, %v431
    %v946 = vpack.c.bf16 %v464, %v432
    %v947 = vpack.c.bf16 %v465, %v433
    %v948 = vpack.c.bf16 %v466, %v434
    %v949 = vpack.c.bf16 %v467, %v435
    %v950 = vpack.c.bf16 %v468, %v436
    %v951 = vpack.c.bf16 %v469, %v437
    %v952 = vpack.c.bf16 %v470, %v438
    %v953 = vpack.c.bf16 %v471, %v439
    %v954 = vpack.c.bf16 %v472, %v440
    %v955 = vpack.c.bf16 %v473, %v441
    %v956 = vpack.c.bf16 %v474, %v442
    %v957 = vpack.c.bf16 %v475, %v443
    %v958 = vpack.c.bf16 %v476, %v444
    %v959 = vpack.c.bf16 %v477, %v445
    %v960 = vpack.c.bf16 %v478, %v446
    %v961 = vpack.c.bf16 %v479, %v447
    %v962 = vpack.c.bf16 %v480, %v448
    %v963 = vpack.c.bf16 %v481, %v449
    %v964 = vpack.c.bf16 %v482, %v450
    %v965 = vpack.c.bf16 %v483, %v451
    %v966 = vpack.c.bf16 %v484, %v452
    %v967 = vpack.c.bf16 %v485, %v453
    %v968 = vpack.c.bf16 %v486, %v454
    %v969 = vpack.c.bf16 %v487, %v455
    %v970 = vpack.c.bf16 %v488, %v456
    %v971 = vpack.c.bf16 %v489, %v457
    %v972 = vpack.c.bf16 %v490, %v458
    %v973 = vpack.c.bf16 %v491, %v459
    %v974 = vpack.c.bf16 %v524, %v492
    %v975 = vpack.c.bf16 %v525, %v493
    %v976 = vpack.c.bf16 %v526, %v494
    %v977 = vpack.c.bf16 %v527, %v495
    %v978 = vpack.c.bf16 %v528, %v496
    %v979 = vpack.c.bf16 %v529, %v497
    %v980 = vpack.c.bf16 %v530, %v498
    %v981 = vpack.c.bf16 %v531, %v499
    %v982 = vpack.c.bf16 %v532, %v500
    %v983 = vpack.c.bf16 %v533, %v501
    %v984 = vpack.c.bf16 %v534, %v502
    %v985 = vpack.c.bf16 %v535, %v503
    %v986 = vpack.c.bf16 %v536, %v504
    %v987 = vpack.c.bf16 %v537, %v505
    %v988 = vpack.c.bf16 %v538, %v506
    %v989 = vpack.c.bf16 %v539, %v507
    %v990 = vpack.c.bf16 %v540, %v508
    %v991 = vpack.c.bf16 %v541, %v509
    %v992 = vpack.c.bf16 %v542, %v510
    %v993 = vpack.c.bf16 %v543, %v511
    %v994 = vpack.c.bf16 %v544, %v512
    %v995 = vpack.c.bf16 %v545, %v513
    %v996 = vpack.c.bf16 %v546, %v514
    %v997 = vpack.c.bf16 %v547, %v515
    %v998 = vpack.c.bf16 %v548, %v516
    %v999 = vpack.c.bf16 %v549, %v517
    %v1000 = vpack.c.bf16 %v550, %v518
    %v1001 = vpack.c.bf16 %v551, %v519
    %v1002 = vpack.c.bf16 %v552, %v520
    %v1003 = vpack.c.bf16 %v553, %v521
    %v1004 = vpack.c.bf16 %v554, %v522
    %v1005 = vpack.c.bf16 %v555, %v523
    %v1006 = vpack.c.bf16 %v588, %v556
    %v1007 = vpack.c.bf16 %v589, %v557
    %v1008 = vpack.c.bf16 %v590, %v558
    %v1009 = vpack.c.bf16 %v591, %v559
    %v1010 = vpack.c.bf16 %v592, %v560
    %v1011 = vpack.c.bf16 %v593, %v561
    %v1012 = vpack.c.bf16 %v594, %v562
    %v1013 = vpack.c.bf16 %v595, %v563
    %v1014 = vpack.c.bf16 %v596, %v564
    %v1015 = vpack.c.bf16 %v597, %v565
    %v1016 = vpack.c.bf16 %v598, %v566
    %v1017 = vpack.c.bf16 %v599, %v567
    %v1018 = vpack.c.bf16 %v600, %v568
    %v1019 = vpack.c.bf16 %v601, %v569
    %v1020 = vpack.c.bf16 %v602, %v570
    %v1021 = vpack.c.bf16 %v603, %v571
    %v1022 = vpack.c.bf16 %v604, %v572
    %v1023 = vpack.c.bf16 %v605, %v573
    %v1024 = vpack.c.bf16 %v606, %v574
    %v1025 = vpack.c.bf16 %v607, %v575
    %v1026 = vpack.c.bf16 %v608, %v576
    %v1027 = vpack.c.bf16 %v609, %v577
    %v1028 = vpack.c.bf16 %v610, %v578
    %v1029 = vpack.c.bf16 %v611, %v579
    %v1030 = vpack.c.bf16 %v612, %v580
    %v1031 = vpack.c.bf16 %v613, %v581
    %v1032 = vpack.c.bf16 %v614, %v582
    %v1033 = vpack.c.bf16 %v615, %v583
    %v1034 = vpack.c.bf16 %v616, %v584
    %v1035 = vpack.c.bf16 %v617, %v585
    %v1036 = vpack.c.bf16 %v618, %v586
    %v1037 = vpack.c.bf16 %v619, %v587
    %v1038 = vpack.c.bf16 %v652, %v620
    %v1039 = vpack.c.bf16 %v653, %v621
    %v1040 = vpack.c.bf16 %v654, %v622
    %v1041 = vpack.c.bf16 %v655, %v623
    %v1042 = vpack.c.bf16 %v656, %v624
    %v1043 = vpack.c.bf16 %v657, %v625
    %v1044 = vpack.c.bf16 %v658, %v626
    %v1045 = vpack.c.bf16 %v659, %v627
    %v1046 = vpack.c.bf16 %v660, %v628
    %v1047 = vpack.c.bf16 %v661, %v629
    %v1048 = vpack.c.bf16 %v662, %v630
    %v1049 = vpack.c.bf16 %v663, %v631
    %v1050 = vpack.c.bf16 %v664, %v632
    %v1051 = vpack.c.bf16 %v665, %v633
    %v1052 = vpack.c.bf16 %v666, %v634
    %v1053 = vpack.c.bf16 %v667, %v635
    %v1054 = vpack.c.bf16 %v668, %v636
    %v1055 = vpack.c.bf16 %v669, %v637
    %v1056 = vpack.c.bf16 %v670, %v638
    %v1057 = vpack.c.bf16 %v671, %v639
    %v1058 = vpack.c.bf16 %v672, %v640
    %v1059 = vpack.c.bf16 %v673, %v641
    %v1060 = vpack.c.bf16 %v674, %v642
    %v1061 = vpack.c.bf16 %v675, %v643
    %v1062 = vpack.c.bf16 %v676, %v644
    %v1063 = vpack.c.bf16 %v677, %v645
    %v1064 = vpack.c.bf16 %v678, %v646
    %v1065 = vpack.c.bf16 %v679, %v647
    %v1066 = vpack.c.bf16 %v680, %v648
    %v1067 = vpack.c.bf16 %v681, %v649
    %v1068 = vpack.c.bf16 %v682, %v650
    %v1069 = vpack.c.bf16 %v683, %v651
    %v1070 = vpack.c.bf16 %v716, %v684
    %v1071 = vpack.c.bf16 %v717, %v685
    %v1072 = vpack.c.bf16 %v718, %v686
    %v1073 = vpack.c.bf16 %v719, %v687
    %v1074 = vpack.c.bf16 %v720, %v688
    %v1075 = vpack.c.bf16 %v721, %v689
    %v1076 = vpack.c.bf16 %v722, %v690
    %v1077 = vpack.c.bf16 %v723, %v691
    %v1078 = vpack.c.bf16 %v724, %v692
    %v1079 = vpack.c.bf16 %v725, %v693
    %v1080 = vpack.c.bf16 %v726, %v694
    %v1081 = vpack.c.bf16 %v727, %v695
    %v1082 = vpack.c.bf16 %v728, %v696
    %v1083 = vpack.c.bf16 %v729, %v697
    %v1084 = vpack.c.bf16 %v730, %v698
    %v1085 = vpack.c.bf16 %v731, %v699
    %v1086 = vpack.c.bf16 %v732, %v700
    %v1087 = vpack.c.bf16 %v733, %v701
    %v1088 = vpack.c.bf16 %v734, %v702
    %v1089 = vpack.c.bf16 %v735, %v703
    %v1090 = vpack.c.bf16 %v736, %v704
    %v1091 = vpack.c.bf16 %v737, %v705
    %v1092 = vpack.c.bf16 %v738, %v706
    %v1093 = vpack.c.bf16 %v739, %v707
    %v1094 = vpack.c.bf16 %v740, %v708
    %v1095 = vpack.c.bf16 %v741, %v709
    %v1096 = vpack.c.bf16 %v742, %v710
    %v1097 = vpack.c.bf16 %v743, %v711
    %v1098 = vpack.c.bf16 %v744, %v712
    %v1099 = vpack.c.bf16 %v745, %v713
    %v1100 = vpack.c.bf16 %v746, %v714
    %v1101 = vpack.c.bf16 %v747, %v715
    %v1102 = vpack.c.bf16 %v780, %v748
    %v1103 = vpack.c.bf16 %v781, %v749
    %v1104 = vpack.c.bf16 %v782, %v750
    %v1105 = vpack.c.bf16 %v783, %v751
    %v1106 = vpack.c.bf16 %v784, %v752
    %v1107 = vpack.c.bf16 %v785, %v753
    %v1108 = vpack.c.bf16 %v786, %v754
    %v1109 = vpack.c.bf16 %v787, %v755
    %v1110 = vpack.c.bf16 %v788, %v756
    %v1111 = vpack.c.bf16 %v789, %v757
    %v1112 = vpack.c.bf16 %v790, %v758
    %v1113 = vpack.c.bf16 %v791, %v759
    %v1114 = vpack.c.bf16 %v792, %v760
    %v1115 = vpack.c.bf16 %v793, %v761
    %v1116 = vpack.c.bf16 %v794, %v762
    %v1117 = vpack.c.bf16 %v795, %v763
    %v1118 = vpack.c.bf16 %v796, %v764
    %v1119 = vpack.c.bf16 %v797, %v765
    %v1120 = vpack.c.bf16 %v798, %v766
    %v1121 = vpack.c.bf16 %v799, %v767
    %v1122 = vpack.c.bf16 %v800, %v768
    %v1123 = vpack.c.bf16 %v801, %v769
    %v1124 = vpack.c.bf16 %v802, %v770
    %v1125 = vpack.c.bf16 %v803, %v771
    %v1126 = vpack.c.bf16 %v804, %v772
    %v1127 = vpack.c.bf16 %v805, %v773
    %v1128 = vpack.c.bf16 %v806, %v774
    %v1129 = vpack.c.bf16 %v807, %v775
    %v1130 = vpack.c.bf16 %v808, %v776
    %v1131 = vpack.c.bf16 %v809, %v777
    %v1132 = vpack.c.bf16 %v810, %v778
    %v1133 = vpack.c.bf16 %v811, %v779
    %v1134 = vpack.c.bf16 %v844, %v812
    %v1135 = vpack.c.bf16 %v845, %v813
    %v1136 = vpack.c.bf16 %v846, %v814
    %v1137 = vpack.c.bf16 %v847, %v815
    %v1138 = vpack.c.bf16 %v848, %v816
    %v1139 = vpack.c.bf16 %v849, %v817
    %v1140 = vpack.c.bf16 %v850, %v818
    %v1141 = vpack.c.bf16 %v851, %v819
    %v1142 = vpack.c.bf16 %v852, %v820
    %v1143 = vpack.c.bf16 %v853, %v821
    %v1144 = vpack.c.bf16 %v854, %v822
    %v1145 = vpack.c.bf16 %v855, %v823
    %v1146 = vpack.c.bf16 %v856, %v824
    %v1147 = vpack.c.bf16 %v857, %v825
    %v1148 = vpack.c.bf16 %v858, %v826
    %v1149 = vpack.c.bf16 %v859, %v827
    %v1150 = vpack.c.bf16 %v860, %v828
    %v1151 = vpack.c.bf16 %v861, %v829
    %v1152 = vpack.c.bf16 %v862, %v830
    %v1153 = vpack.c.bf16 %v863, %v831
    %v1154 = vpack.c.bf16 %v864, %v832
    %v1155 = vpack.c.bf16 %v865, %v833
    %v1156 = vpack.c.bf16 %v866, %v834
    %v1157 = vpack.c.bf16 %v867, %v835
    %v1158 = vpack.c.bf16 %v868, %v836
    %v1159 = vpack.c.bf16 %v869, %v837
    %v1160 = vpack.c.bf16 %v870, %v838
    %v1161 = vpack.c.bf16 %v871, %v839
    %v1162 = vpack.c.bf16 %v872, %v840
    %v1163 = vpack.c.bf16 %v873, %v841
    %v1164 = vpack.c.bf16 %v874, %v842
    %v1165 = vpack.c.bf16 %v875, %v843
    %v1166 = vpack.c.bf16 %v908, %v876
    %v1167 = vpack.c.bf16 %v909, %v877
    %v1168 = vpack.c.bf16 %v910, %v878
    %v1169 = vpack.c.bf16 %v911, %v879
    %v1170 = vpack.c.bf16 %v912, %v880
    %v1171 = vpack.c.bf16 %v913, %v881
    %v1172 = vpack.c.bf16 %v914, %v882
    %v1173 = vpack.c.bf16 %v915, %v883
    %v1174 = vpack.c.bf16 %v916, %v884
    %v1175 = vpack.c.bf16 %v917, %v885
    %v1176 = vpack.c.bf16 %v918, %v886
    %v1177 = vpack.c.bf16 %v919, %v887
    %v1178 = vpack.c.bf16 %v920, %v888
    %v1179 = vpack.c.bf16 %v921, %v889
    %v1180 = vpack.c.bf16 %v922, %v890
    %v1181 = vpack.c.bf16 %v923, %v891
    %v1182 = vpack.c.bf16 %v924, %v892
    %v1183 = vpack.c.bf16 %v925, %v893
    %v1184 = vpack.c.bf16 %v926, %v894
    %v1185 = vpack.c.bf16 %v927, %v895
    %v1186 = vpack.c.bf16 %v928, %v896
    %v1187 = vpack.c.bf16 %v929, %v897
    %v1188 = vpack.c.bf16 %v930, %v898
    %v1189 = vpack.c.bf16 %v931, %v899
    %v1190 = vpack.c.bf16 %v932, %v900
    %v1191 = vpack.c.bf16 %v933, %v901
    %v1192 = vpack.c.bf16 %v934, %v902
    %v1193 = vpack.c.bf16 %v935, %v903
    %v1194 = vpack.c.bf16 %v936, %v904
    %v1195 = vpack.c.bf16 %v937, %v905
    %v1196 = vpack.c.bf16 %v938, %v906
    %v1197 = vpack.c.bf16 %v939, %v907
    %v1198 = vld [vmem:[#allocation13] sm:$0xff]
    %v1199 = vld [vmem:[#allocation13 + $0x8] sm:$0xff]
    %v1200 = vld [vmem:[#allocation13 + $0x10] sm:$0xff]
    %v1201 = vld [vmem:[#allocation13 + $0x18] sm:$0xff]
    %v1206 = vlaneseq
    %v1207 = vshrl.u32 %v1206, 7
    %v1208 = vsub.s32 0, %v1207
    %v1209 = vrot.slane %v1198, %v1208
    %v1210 = vlaneseq
    %v1211 = vshrl.u32 %v1210, 7
    %v1212 = vsub.s32 1, %v1211
    %v1213 = vrot.slane %v1198, %v1212
    %v1214 = vlaneseq
    %v1215 = vshrl.u32 %v1214, 7
    %v1216 = vsub.s32 2, %v1215
    %v1217 = vrot.slane %v1198, %v1216
    %v1218 = vlaneseq
    %v1219 = vshrl.u32 %v1218, 7
    %v1220 = vsub.s32 3, %v1219
    %v1221 = vrot.slane %v1198, %v1220
    %v1222 = vlaneseq
    %v1223 = vshrl.u32 %v1222, 7
    %v1224 = vsub.s32 4, %v1223
    %v1225 = vrot.slane %v1198, %v1224
    %v1226 = vlaneseq
    %v1227 = vshrl.u32 %v1226, 7
    %v1228 = vsub.s32 5, %v1227
    %v1229 = vrot.slane %v1198, %v1228
    %v1230 = vlaneseq
    %v1231 = vshrl.u32 %v1230, 7
    %v1232 = vsub.s32 6, %v1231
    %v1233 = vrot.slane %v1198, %v1232
    %v1234 = vlaneseq
    %v1235 = vshrl.u32 %v1234, 7
    %v1236 = vsub.s32 7, %v1235
    %v1237 = vrot.slane %v1198, %v1236
    %v1238 = vlaneseq
    %v1239 = vshrl.u32 %v1238, 7
    %v1240 = vsub.s32 0, %v1239
    %v1241 = vrot.slane %v1199, %v1240
    %v1242 = vlaneseq
    %v1243 = vshrl.u32 %v1242, 7
    %v1244 = vsub.s32 1, %v1243
    %v1245 = vrot.slane %v1199, %v1244
    %v1246 = vlaneseq
    %v1247 = vshrl.u32 %v1246, 7
    %v1248 = vsub.s32 2, %v1247
    %v1249 = vrot.slane %v1199, %v1248
    %v1250 = vlaneseq
    %v1251 = vshrl.u32 %v1250, 7
    %v1252 = vsub.s32 3, %v1251
    %v1253 = vrot.slane %v1199, %v1252
    %v1254 = vlaneseq
    %v1255 = vshrl.u32 %v1254, 7
    %v1256 = vsub.s32 4, %v1255
    %v1257 = vrot.slane %v1199, %v1256
    %v1258 = vlaneseq
    %v1259 = vshrl.u32 %v1258, 7
    %v1260 = vsub.s32 5, %v1259
    %v1261 = vrot.slane %v1199, %v1260
    %v1262 = vlaneseq
    %v1263 = vshrl.u32 %v1262, 7
    %v1264 = vsub.s32 6, %v1263
    %v1265 = vrot.slane %v1199, %v1264
    %v1266 = vlaneseq
    %v1267 = vshrl.u32 %v1266, 7
    %v1268 = vsub.s32 7, %v1267
    %v1269 = vrot.slane %v1199, %v1268
    %v1270 = vlaneseq
    %v1271 = vshrl.u32 %v1270, 7
    %v1272 = vsub.s32 0, %v1271
    %v1273 = vrot.slane %v1200, %v1272
    %v1274 = vlaneseq
    %v1275 = vshrl.u32 %v1274, 7
    %v1276 = vsub.s32 1, %v1275
    %v1277 = vrot.slane %v1200, %v1276
    %v1278 = vlaneseq
    %v1279 = vshrl.u32 %v1278, 7
    %v1280 = vsub.s32 2, %v1279
    %v1281 = vrot.slane %v1200, %v1280
    %v1282 = vlaneseq
    %v1283 = vshrl.u32 %v1282, 7
    %v1284 = vsub.s32 3, %v1283
    %v1285 = vrot.slane %v1200, %v1284
    %v1286 = vlaneseq
    %v1287 = vshrl.u32 %v1286, 7
    %v1288 = vsub.s32 4, %v1287
    %v1289 = vrot.slane %v1200, %v1288
    %v1290 = vlaneseq
    %v1291 = vshrl.u32 %v1290, 7
    %v1292 = vsub.s32 5, %v1291
    %v1293 = vrot.slane %v1200, %v1292
    %v1294 = vlaneseq
    %v1295 = vshrl.u32 %v1294, 7
    %v1296 = vsub.s32 6, %v1295
    %v1297 = vrot.slane %v1200, %v1296
    %v1298 = vlaneseq
    %v1299 = vshrl.u32 %v1298, 7
    %v1300 = vsub.s32 7, %v1299
    %v1301 = vrot.slane %v1200, %v1300
    %v1302 = vlaneseq
    %v1303 = vshrl.u32 %v1302, 7
    %v1304 = vsub.s32 0, %v1303
    %v1305 = vrot.slane %v1201, %v1304
    %v1306 = vlaneseq
    %v1307 = vshrl.u32 %v1306, 7
    %v1308 = vsub.s32 1, %v1307
    %v1309 = vrot.slane %v1201, %v1308
    %v1310 = vlaneseq
    %v1311 = vshrl.u32 %v1310, 7
    %v1312 = vsub.s32 2, %v1311
    %v1313 = vrot.slane %v1201, %v1312
    %v1314 = vlaneseq
    %v1315 = vshrl.u32 %v1314, 7
    %v1316 = vsub.s32 3, %v1315
    %v1317 = vrot.slane %v1201, %v1316
    %v1318 = vlaneseq
    %v1319 = vshrl.u32 %v1318, 7
    %v1320 = vsub.s32 4, %v1319
    %v1321 = vrot.slane %v1201, %v1320
    %v1322 = vlaneseq
    %v1323 = vshrl.u32 %v1322, 7
    %v1324 = vsub.s32 5, %v1323
    %v1325 = vrot.slane %v1201, %v1324
    %v1326 = vlaneseq
    %v1327 = vshrl.u32 %v1326, 7
    %v1328 = vsub.s32 6, %v1327
    %v1329 = vrot.slane %v1201, %v1328
    %v1330 = vlaneseq
    %v1331 = vshrl.u32 %v1330, 7
    %v1332 = vsub.s32 7, %v1331
    %v1333 = vrot.slane %v1201, %v1332
    %1366 = vmatprep.subr.bf16.mxu0 %v943
    %1367 = vmatpush1.bf16.msra.mxu0 %v942
    %1368 = vmatprep.subr.bf16.mxu0 %v975
    %1369 = vmatpush1.bf16.msra.mxu0 %v974
    %1370 = vmatprep.subr.bf16.mxu0 %v1007
    %1371 = vmatpush1.bf16.msra.mxu0 %v1006
    %1372 = vmatprep.subr.bf16.mxu0 %v1039
    %1373 = vmatpush1.bf16.msra.mxu0 %v1038
    %1374 = vmatprep.subr.bf16.mxu0 %v1071
    %1375 = vmatpush1.bf16.msra.mxu0 %v1070
    %1376 = vmatprep.subr.bf16.mxu0 %v1103
    %1377 = vmatpush1.bf16.msra.mxu0 %v1102
    %1378 = vmatprep.subr.bf16.mxu0 %v1135
    %1379 = vmatpush1.bf16.msra.mxu0 %v1134
    %1380 = vmatprep.subr.bf16.mxu0 %v1167
    %1381 = vmatpush1.bf16.msra.mxu0 %v1166
    %1382 = vmatprep.subr.bf16.mxu0 0
    %1383 = vmatpush1.bf16.msra.mxu0 0
    %1384 = vmatprep.subr.bf16.mxu0 0
    %1385 = vmatpush1.bf16.msra.mxu0 0
    %1386 = vmatprep.subr.bf16.mxu0 0
    %1387 = vmatpush1.bf16.msra.mxu0 0
    %1388 = vmatprep.subr.bf16.mxu0 0
    %1389 = vmatpush1.bf16.msra.mxu0 0
    %1390 = vmatprep.subr.bf16.mxu0 0
    %1391 = vmatpush1.bf16.msra.mxu0 0
    %1392 = vmatprep.subr.bf16.mxu0 0
    %1393 = vmatpush1.bf16.msra.mxu0 0
    %1394 = vmatprep.subr.bf16.mxu0 0
    %1395 = vmatpush1.bf16.msra.mxu0 0
    %1396 = vmatprep.subr.bf16.mxu0 0
    %1397 = vmatpush1.bf16.msra.mxu0 0
    %1398 = vmatprep.mubr.bf16.mxu0 0
    %1399 = vmatmul.mubr.bf16.gmra.mrb[0].mxu0 %v940
    %v1400 = vpop.f32.mrb[0].mxu0
    %v1401 = vadd.f32 %v1209, %v1400
    %v1402 = vpop.f32.mrb[0].mxu0
    %v1403 = vadd.f32 %v1213, %v1402
    %v1404 = vpop.f32.mrb[0].mxu0
    %v1405 = vadd.f32 %v1209, %v1404
    %v1406 = vpop.f32.mrb[0].mxu0
    %v1407 = vadd.f32 %v1213, %v1406
    %1408 = vmatprep.mubr.bf16.mxu0 0
    %1409 = vmatmul.mubr.bf16.gmra.mrb[0].mxu0 %v941
    %v1410 = vpop.f32.mrb[0].mxu0
    %v1411 = vadd.f32 %v1209, %v1410
    %v1412 = vpop.f32.mrb[0].mxu0
    %v1413 = vadd.f32 %v1213, %v1412
    %v1414 = vpop.f32.mrb[0].mxu0
    %v1415 = vpop.f32.mrb[0].mxu0
    %1416 = vdwg.mxu0
    %1417 = vmatprep.subr.bf16.mxu0 %v945
    %1418 = vmatpush1.bf16.msra.mxu0 %v944
    %1419 = vmatprep.subr.bf16.mxu0 %v977
    %1420 = vmatpush1.bf16.msra.mxu0 %v976
    %1421 = vmatprep.subr.bf16.mxu0 %v1009
    %1422 = vmatpush1.bf16.msra.mxu0 %v1008
    %1423 = vmatprep.subr.bf16.mxu0 %v1041
    %1424 = vmatpush1.bf16.msra.mxu0 %v1040
    %1425 = vmatprep.subr.bf16.mxu0 %v1073
    %1426 = vmatpush1.bf16.msra.mxu0 %v1072
    %1427 = vmatprep.subr.bf16.mxu0 %v1105
    %1428 = vmatpush1.bf16.msra.mxu0 %v1104
    %1429 = vmatprep.subr.bf16.mxu0 %v1137
    %1430 = vmatpush1.bf16.msra.mxu0 %v1136
    %1431 = vmatprep.subr.bf16.mxu0 %v1169
    %1432 = vmatpush1.bf16.msra.mxu0 %v1168
    %1433 = vmatprep.subr.bf16.mxu0 0
    %1434 = vmatpush1.bf16.msra.mxu0 0
    %1435 = vmatprep.subr.bf16.mxu0 0
    %1436 = vmatpush1.bf16.msra.mxu0 0
    %1437 = vmatprep.subr.bf16.mxu0 0
    %1438 = vmatpush1.bf16.msra.mxu0 0
    %1439 = vmatprep.subr.bf16.mxu0 0
    %1440 = vmatpush1.bf16.msra.mxu0 0
    %1441 = vmatprep.subr.bf16.mxu0 0
    %1442 = vmatpush1.bf16.msra.mxu0 0
    %1443 = vmatprep.subr.bf16.mxu0 0
    %1444 = vmatpush1.bf16.msra.mxu0 0
    %1445 = vmatprep.subr.bf16.mxu0 0
    %1446 = vmatpush1.bf16.msra.mxu0 0
    %1447 = vmatprep.subr.bf16.mxu0 0
    %1448 = vmatpush1.bf16.msra.mxu0 0
    %1449 = vmatprep.mubr.bf16.mxu0 0
    %1450 = vmatmul.mubr.bf16.gmra.mrb[0].mxu0 %v940
    %v1451 = vpop.f32.mrb[0].mxu0
    %v1452 = vadd.f32 %v1217, %v1451
    %v1453 = vpop.f32.mrb[0].mxu0
    %v1454 = vadd.f32 %v1221, %v1453
    %v1455 = vpop.f32.mrb[0].mxu0
    %v1456 = vadd.f32 %v1217, %v1455
    %v1457 = vpop.f32.mrb[0].mxu0
    %v1458 = vadd.f32 %v1221, %v1457
    %1459 = vmatprep.mubr.bf16.mxu0 0
    %1460 = vmatmul.mubr.bf16.gmra.mrb[0].mxu0 %v941
    %v1461 = vpop.f32.mrb[0].mxu0
    %v1462 = vadd.f32 %v1217, %v1461
    %v1463 = vpop.f32.mrb[0].mxu0
    %v1464 = vadd.f32 %v1221, %v1463
    %v1465 = vpop.f32.mrb[0].mxu0
    %v1466 = vpop.f32.mrb[0].mxu0
    %1467 = vdwg.mxu0
    %1468 = vmatprep.subr.bf16.mxu0 %v947
    %1469 = vmatpush1.bf16.msra.mxu0 %v946
    %1470 = vmatprep.subr.bf16.mxu0 %v979
    %1471 = vmatpush1.bf16.msra.mxu0 %v978
    %1472 = vmatprep.subr.bf16.mxu0 %v1011
    %1473 = vmatpush1.bf16.msra.mxu0 %v1010
    %1474 = vmatprep.subr.bf16.mxu0 %v1043
    %1475 = vmatpush1.bf16.msra.mxu0 %v1042
    %1476 = vmatprep.subr.bf16.mxu0 %v1075
    %1477 = vmatpush1.bf16.msra.mxu0 %v1074
    %1478 = vmatprep.subr.bf16.mxu0 %v1107
    %1479 = vmatpush1.bf16.msra.mxu0 %v1106
    %1480 = vmatprep.subr.bf16.mxu0 %v1139
    %1481 = vmatpush1.bf16.msra.mxu0 %v1138
    %1482 = vmatprep.subr.bf16.mxu0 %v1171
    %1483 = vmatpush1.bf16.msra.mxu0 %v1170
    %1484 = vmatprep.subr.bf16.mxu0 0
    %1485 = vmatpush1.bf16.msra.mxu0 0
    %1486 = vmatprep.subr.bf16.mxu0 0
    %1487 = vmatpush1.bf16.msra.mxu0 0
    %1488 = vmatprep.subr.bf16.mxu0 0
    %1489 = vmatpush1.bf16.msra.mxu0 0
    %1490 = vmatprep.subr.bf16.mxu0 0
    %1491 = vmatpush1.bf16.msra.mxu0 0
    %1492 = vmatprep.subr.bf16.mxu0 0
    %1493 = vmatpush1.bf16.msra.mxu0 0
    %1494 = vmatprep.subr.bf16.mxu0 0
    %1495 = vmatpush1.bf16.msra.mxu0 0
    %1496 = vmatprep.subr.bf16.mxu0 0
    %1497 = vmatpush1.bf16.msra.mxu0 0
    %1498 = vmatprep.subr.bf16.mxu0 0
    %1499 = vmatpush1.bf16.msra.mxu0 0
    %1500 = vmatprep.mubr.bf16.mxu0 0
    %1501 = vmatmul.mubr.bf16.gmra.mrb[0].mxu0 %v940
    %v1502 = vpop.f32.mrb[0].mxu0
    %v1503 = vadd.f32 %v1225, %v1502
    %v1504 = vpop.f32.mrb[0].mxu0
    %v1505 = vadd.f32 %v1229, %v1504
    %v1506 = vpop.f32.mrb[0].mxu0
    %v1507 = vadd.f32 %v1225, %v1506
    %v1508 = vpop.f32.mrb[0].mxu0
    %v1509 = vadd.f32 %v1229, %v1508
    %1510 = vmatprep.mubr.bf16.mxu0 0
    %1511 = vmatmul.mubr.bf16.gmra.mrb[0].mxu0 %v941
    %v1512 = vpop.f32.mrb[0].mxu0
    %v1513 = vadd.f32 %v1225, %v1512
    %v1514 = vpop.f32.mrb[0].mxu0
    %v1515 = vadd.f32 %v1229, %v1514
    %v1516 = vpop.f32.mrb[0].mxu0
    %v1517 = vpop.f32.mrb[0].mxu0
    %1518 = vdwg.mxu0
    %1519 = vmatprep.subr.bf16.mxu0 %v949
    %1520 = vmatpush1.bf16.msra.mxu0 %v948
    %1521 = vmatprep.subr.bf16.mxu0 %v981
    %1522 = vmatpush1.bf16.msra.mxu0 %v980
    %1523 = vmatprep.subr.bf16.mxu0 %v1013
    %1524 = vmatpush1.bf16.msra.mxu0 %v1012
    %1525 = vmatprep.subr.bf16.mxu0 %v1045
    %1526 = vmatpush1.bf16.msra.mxu0 %v1044
    %1527 = vmatprep.subr.bf16.mxu0 %v1077
    %1528 = vmatpush1.bf16.msra.mxu0 %v1076
    %1529 = vmatprep.subr.bf16.mxu0 %v1109
    %1530 = vmatpush1.bf16.msra.mxu0 %v1108
    %1531 = vmatprep.subr.bf16.mxu0 %v1141
    %1532 = vmatpush1.bf16.msra.mxu0 %v1140
    %1533 = vmatprep.subr.bf16.mxu0 %v1173
    %1534 = vmatpush1.bf16.msra.mxu0 %v1172
    %1535 = vmatprep.subr.bf16.mxu0 0
    %1536 = vmatpush1.bf16.msra.mxu0 0
    %1537 = vmatprep.subr.bf16.mxu0 0
    %1538 = vmatpush1.bf16.msra.mxu0 0
    %1539 = vmatprep.subr.bf16.mxu0 0
    %1540 = vmatpush1.bf16.msra.mxu0 0
    %1541 = vmatprep.subr.bf16.mxu0 0
    %1542 = vmatpush1.bf16.msra.mxu0 0
    %1543 = vmatprep.subr.bf16.mxu0 0
    %1544 = vmatpush1.bf16.msra.mxu0 0
    %1545 = vmatprep.subr.bf16.mxu0 0
    %1546 = vmatpush1.bf16.msra.mxu0 0
    %1547 = vmatprep.subr.bf16.mxu0 0
    %1548 = vmatpush1.bf16.msra.mxu0 0
    %1549 = vmatprep.subr.bf16.mxu0 0
    %1550 = vmatpush1.bf16.msra.mxu0 0
    %1551 = vmatprep.mubr.bf16.mxu0 0
    %1552 = vmatmul.mubr.bf16.gmra.mrb[0].mxu0 %v940
    %v1553 = vpop.f32.mrb[0].mxu0
    %v1554 = vadd.f32 %v1233, %v1553
    %v1555 = vpop.f32.mrb[0].mxu0
    %v1556 = vadd.f32 %v1237, %v1555
    %v1557 = vpop.f32.mrb[0].mxu0
    %v1558 = vadd.f32 %v1233, %v1557
    %v1559 = vpop.f32.mrb[0].mxu0
    %v1560 = vadd.f32 %v1237, %v1559
    %1561 = vmatprep.mubr.bf16.mxu0 0
    %1562 = vmatmul.mubr.bf16.gmra.mrb[0].mxu0 %v941
    %v1563 = vpop.f32.mrb[0].mxu0
    %v1564 = vadd.f32 %v1233, %v1563
    %v1565 = vpop.f32.mrb[0].mxu0
    %v1566 = vadd.f32 %v1237, %v1565
    %v1567 = vpop.f32.mrb[0].mxu0
    %v1568 = vpop.f32.mrb[0].mxu0
    %1569 = vdwg.mxu0
    %1570 = vmatprep.subr.bf16.mxu0 %v951
    %1571 = vmatpush1.bf16.msra.mxu0 %v950
    %1572 = vmatprep.subr.bf16.mxu0 %v983
    %1573 = vmatpush1.bf16.msra.mxu0 %v982
    %1574 = vmatprep.subr.bf16.mxu0 %v1015
    %1575 = vmatpush1.bf16.msra.mxu0 %v1014
    %1576 = vmatprep.subr.bf16.mxu0 %v1047
    %1577 = vmatpush1.bf16.msra.mxu0 %v1046
    %1578 = vmatprep.subr.bf16.mxu0 %v1079
    %1579 = vmatpush1.bf16.msra.mxu0 %v1078
    %1580 = vmatprep.subr.bf16.mxu0 %v1111
    %1581 = vmatpush1.bf16.msra.mxu0 %v1110
    %1582 = vmatprep.subr.bf16.mxu0 %v1143
    %1583 = vmatpush1.bf16.msra.mxu0 %v1142
    %1584 = vmatprep.subr.bf16.mxu0 %v1175
    %1585 = vmatpush1.bf16.msra.mxu0 %v1174
    %1586 = vmatprep.subr.bf16.mxu0 0
    %1587 = vmatpush1.bf16.msra.mxu0 0
    %1588 = vmatprep.subr.bf16.mxu0 0
    %1589 = vmatpush1.bf16.msra.mxu0 0
    %1590 = vmatprep.subr.bf16.mxu0 0
    %1591 = vmatpush1.bf16.msra.mxu0 0
    %1592 = vmatprep.subr.bf16.mxu0 0
    %1593 = vmatpush1.bf16.msra.mxu0 0
    %1594 = vmatprep.subr.bf16.mxu0 0
    %1595 = vmatpush1.bf16.msra.mxu0 0
    %1596 = vmatprep.subr.bf16.mxu0 0
    %1597 = vmatpush1.bf16.msra.mxu0 0
    %1598 = vmatprep.subr.bf16.mxu0 0
    %1599 = vmatpush1.bf16.msra.mxu0 0
    %1600 = vmatprep.subr.bf16.mxu0 0
    %1601 = vmatpush1.bf16.msra.mxu0 0
    %1602 = vmatprep.mubr.bf16.mxu0 0
    %1603 = vmatmul.mubr.bf16.gmra.mrb[0].mxu0 %v940
    %v1604 = vpop.f32.mrb[0].mxu0
    %v1605 = vadd.f32 %v1241, %v1604
    %v1606 = vpop.f32.mrb[0].mxu0
    %v1607 = vadd.f32 %v1245, %v1606
    %v1608 = vpop.f32.mrb[0].mxu0
    %v1609 = vadd.f32 %v1241, %v1608
    %v1610 = vpop.f32.mrb[0].mxu0
    %v1611 = vadd.f32 %v1245, %v1610
    %1612 = vmatprep.mubr.bf16.mxu0 0
    %1613 = vmatmul.mubr.bf16.gmra.mrb[0].mxu0 %v941
    %v1614 = vpop.f32.mrb[0].mxu0
    %v1615 = vadd.f32 %v1241, %v1614
    %v1616 = vpop.f32.mrb[0].mxu0
    %v1617 = vadd.f32 %v1245, %v1616
    %v1618 = vpop.f32.mrb[0].mxu0
    %v1619 = vpop.f32.mrb[0].mxu0
    %1620 = vdwg.mxu0
    %1621 = vmatprep.subr.bf16.mxu0 %v953
    %1622 = vmatpush1.bf16.msra.mxu0 %v952
    %1623 = vmatprep.subr.bf16.mxu0 %v985
    %1624 = vmatpush1.bf16.msra.mxu0 %v984
    %1625 = vmatprep.subr.bf16.mxu0 %v1017
    %1626 = vmatpush1.bf16.msra.mxu0 %v1016
    %1627 = vmatprep.subr.bf16.mxu0 %v1049
    %1628 = vmatpush1.bf16.msra.mxu0 %v1048
    %1629 = vmatprep.subr.bf16.mxu0 %v1081
    %1630 = vmatpush1.bf16.msra.mxu0 %v1080
    %1631 = vmatprep.subr.bf16.mxu0 %v1113
    %1632 = vmatpush1.bf16.msra.mxu0 %v1112
    %1633 = vmatprep.subr.bf16.mxu0 %v1145
    %1634 = vmatpush1.bf16.msra.mxu0 %v1144
    %1635 = vmatprep.subr.bf16.mxu0 %v1177
    %1636 = vmatpush1.bf16.msra.mxu0 %v1176
    %1637 = vmatprep.subr.bf16.mxu0 0
    %1638 = vmatpush1.bf16.msra.mxu0 0
    %1639 = vmatprep.subr.bf16.mxu0 0
    %1640 = vmatpush1.bf16.msra.mxu0 0
    %1641 = vmatprep.subr.bf16.mxu0 0
    %1642 = vmatpush1.bf16.msra.mxu0 0
    %1643 = vmatprep.subr.bf16.mxu0 0
    %1644 = vmatpush1.bf16.msra.mxu0 0
    %1645 = vmatprep.subr.bf16.mxu0 0
    %1646 = vmatpush1.bf16.msra.mxu0 0
    %1647 = vmatprep.subr.bf16.mxu0 0
    %1648 = vmatpush1.bf16.msra.mxu0 0
    %1649 = vmatprep.subr.bf16.mxu0 0
    %1650 = vmatpush1.bf16.msra.mxu0 0
    %1651 = vmatprep.subr.bf16.mxu0 0
    %1652 = vmatpush1.bf16.msra.mxu0 0
    %1653 = vmatprep.mubr.bf16.mxu0 0
    %1654 = vmatmul.mubr.bf16.gmra.mrb[0].mxu0 %v940
    %v1655 = vpop.f32.mrb[0].mxu0
    %v1656 = vadd.f32 %v1249, %v1655
    %v1657 = vpop.f32.mrb[0].mxu0
    %v1658 = vadd.f32 %v1253, %v1657
    %v1659 = vpop.f32.mrb[0].mxu0
    %v1660 = vadd.f32 %v1249, %v1659
    %v1661 = vpop.f32.mrb[0].mxu0
    %v1662 = vadd.f32 %v1253, %v1661
    %1663 = vmatprep.mubr.bf16.mxu0 0
    %1664 = vmatmul.mubr.bf16.gmra.mrb[0].mxu0 %v941
    %v1665 = vpop.f32.mrb[0].mxu0
    %v1666 = vadd.f32 %v1249, %v1665
    %v1667 = vpop.f32.mrb[0].mxu0
    %v1668 = vadd.f32 %v1253, %v1667
    %v1669 = vpop.f32.mrb[0].mxu0
    %v1670 = vpop.f32.mrb[0].mxu0
    %1671 = vdwg.mxu0
    %1672 = vmatprep.subr.bf16.mxu0 %v955
    %1673 = vmatpush1.bf16.msra.mxu0 %v954
    %1674 = vmatprep.subr.bf16.mxu0 %v987
    %1675 = vmatpush1.bf16.msra.mxu0 %v986
    %1676 = vmatprep.subr.bf16.mxu0 %v1019
    %1677 = vmatpush1.bf16.msra.mxu0 %v1018
    %1678 = vmatprep.subr.bf16.mxu0 %v1051
    %1679 = vmatpush1.bf16.msra.mxu0 %v1050
    %1680 = vmatprep.subr.bf16.mxu0 %v1083
    %1681 = vmatpush1.bf16.msra.mxu0 %v1082
    %1682 = vmatprep.subr.bf16.mxu0 %v1115
    %1683 = vmatpush1.bf16.msra.mxu0 %v1114
    %1684 = vmatprep.subr.bf16.mxu0 %v1147
    %1685 = vmatpush1.bf16.msra.mxu0 %v1146
    %1686 = vmatprep.subr.bf16.mxu0 %v1179
    %1687 = vmatpush1.bf16.msra.mxu0 %v1178
    %1688 = vmatprep.subr.bf16.mxu0 0
    %1689 = vmatpush1.bf16.msra.mxu0 0
    %1690 = vmatprep.subr.bf16.mxu0 0
    %1691 = vmatpush1.bf16.msra.mxu0 0
    %1692 = vmatprep.subr.bf16.mxu0 0
    %1693 = vmatpush1.bf16.msra.mxu0 0
    %1694 = vmatprep.subr.bf16.mxu0 0
    %1695 = vmatpush1.bf16.msra.mxu0 0
    %1696 = vmatprep.subr.bf16.mxu0 0
    %1697 = vmatpush1.bf16.msra.mxu0 0
    %1698 = vmatprep.subr.bf16.mxu0 0
    %1699 = vmatpush1.bf16.msra.mxu0 0
    %1700 = vmatprep.subr.bf16.mxu0 0
    %1701 = vmatpush1.bf16.msra.mxu0 0
    %1702 = vmatprep.subr.bf16.mxu0 0
    %1703 = vmatpush1.bf16.msra.mxu0 0
    %1704 = vmatprep.mubr.bf16.mxu0 0
    %1705 = vmatmul.mubr.bf16.gmra.mrb[0].mxu0 %v940
    %v1706 = vpop.f32.mrb[0].mxu0
    %v1707 = vadd.f32 %v1257, %v1706
    %v1708 = vpop.f32.mrb[0].mxu0
    %v1709 = vadd.f32 %v1261, %v1708
    %v1710 = vpop.f32.mrb[0].mxu0
    %v1711 = vadd.f32 %v1257, %v1710
    %v1712 = vpop.f32.mrb[0].mxu0
    %v1713 = vadd.f32 %v1261, %v1712
    %1714 = vmatprep.mubr.bf16.mxu0 0
    %1715 = vmatmul.mubr.bf16.gmra.mrb[0].mxu0 %v941
    %v1716 = vpop.f32.mrb[0].mxu0
    %v1717 = vadd.f32 %v1257, %v1716
    %v1718 = vpop.f32.mrb[0].mxu0
    %v1719 = vadd.f32 %v1261, %v1718
    %v1720 = vpop.f32.mrb[0].mxu0
    %v1721 = vpop.f32.mrb[0].mxu0
    %1722 = vdwg.mxu0
    %1723 = vmatprep.subr.bf16.mxu0 %v957
    %1724 = vmatpush1.bf16.msra.mxu0 %v956
    %1725 = vmatprep.subr.bf16.mxu0 %v989
    %1726 = vmatpush1.bf16.msra.mxu0 %v988
    %1727 = vmatprep.subr.bf16.mxu0 %v1021
    %1728 = vmatpush1.bf16.msra.mxu0 %v1020
    %1729 = vmatprep.subr.bf16.mxu0 %v1053
    %1730 = vmatpush1.bf16.msra.mxu0 %v1052
    %1731 = vmatprep.subr.bf16.mxu0 %v1085
    %1732 = vmatpush1.bf16.msra.mxu0 %v1084
    %1733 = vmatprep.subr.bf16.mxu0 %v1117
    %1734 = vmatpush1.bf16.msra.mxu0 %v1116
    %1735 = vmatprep.subr.bf16.mxu0 %v1149
    %1736 = vmatpush1.bf16.msra.mxu0 %v1148
    %1737 = vmatprep.subr.bf16.mxu0 %v1181
    %1738 = vmatpush1.bf16.msra.mxu0 %v1180
    %1739 = vmatprep.subr.bf16.mxu0 0
    %1740 = vmatpush1.bf16.msra.mxu0 0
    %1741 = vmatprep.subr.bf16.mxu0 0
    %1742 = vmatpush1.bf16.msra.mxu0 0
    %1743 = vmatprep.subr.bf16.mxu0 0
    %1744 = vmatpush1.bf16.msra.mxu0 0
    %1745 = vmatprep.subr.bf16.mxu0 0
    %1746 = vmatpush1.bf16.msra.mxu0 0
    %1747 = vmatprep.subr.bf16.mxu0 0
    %1748 = vmatpush1.bf16.msra.mxu0 0
    %1749 = vmatprep.subr.bf16.mxu0 0
    %1750 = vmatpush1.bf16.msra.mxu0 0
    %1751 = vmatprep.subr.bf16.mxu0 0
    %1752 = vmatpush1.bf16.msra.mxu0 0
    %1753 = vmatprep.subr.bf16.mxu0 0
    %1754 = vmatpush1.bf16.msra.mxu0 0
    %1755 = vmatprep.mubr.bf16.mxu0 0
    %1756 = vmatmul.mubr.bf16.gmra.mrb[0].mxu0 %v940
    %v1757 = vpop.f32.mrb[0].mxu0
    %v1758 = vadd.f32 %v1265, %v1757
    %v1759 = vpop.f32.mrb[0].mxu0
    %v1760 = vadd.f32 %v1269, %v1759
    %v1761 = vpop.f32.mrb[0].mxu0
    %v1762 = vadd.f32 %v1265, %v1761
    %v1763 = vpop.f32.mrb[0].mxu0
    %v1764 = vadd.f32 %v1269, %v1763
    %1765 = vmatprep.mubr.bf16.mxu0 0
    %1766 = vmatmul.mubr.bf16.gmra.mrb[0].mxu0 %v941
    %v1767 = vpop.f32.mrb[0].mxu0
    %v1768 = vadd.f32 %v1265, %v1767
    %v1769 = vpop.f32.mrb[0].mxu0
    %v1770 = vadd.f32 %v1269, %v1769
    %v1771 = vpop.f32.mrb[0].mxu0
    %v1772 = vpop.f32.mrb[0].mxu0
    %1773 = vdwg.mxu0
    %1774 = vmatprep.subr.bf16.mxu0 %v959
    %1775 = vmatpush1.bf16.msra.mxu0 %v958
    %1776 = vmatprep.subr.bf16.mxu0 %v991
    %1777 = vmatpush1.bf16.msra.mxu0 %v990
    %1778 = vmatprep.subr.bf16.mxu0 %v1023
    %1779 = vmatpush1.bf16.msra.mxu0 %v1022
    %1780 = vmatprep.subr.bf16.mxu0 %v1055
    %1781 = vmatpush1.bf16.msra.mxu0 %v1054
    %1782 = vmatprep.subr.bf16.mxu0 %v1087
    %1783 = vmatpush1.bf16.msra.mxu0 %v1086
    %1784 = vmatprep.subr.bf16.mxu0 %v1119
    %1785 = vmatpush1.bf16.msra.mxu0 %v1118
    %1786 = vmatprep.subr.bf16.mxu0 %v1151
    %1787 = vmatpush1.bf16.msra.mxu0 %v1150
    %1788 = vmatprep.subr.bf16.mxu0 %v1183
    %1789 = vmatpush1.bf16.msra.mxu0 %v1182
    %1790 = vmatprep.subr.bf16.mxu0 0
    %1791 = vmatpush1.bf16.msra.mxu0 0
    %1792 = vmatprep.subr.bf16.mxu0 0
    %1793 = vmatpush1.bf16.msra.mxu0 0
    %1794 = vmatprep.subr.bf16.mxu0 0
    %1795 = vmatpush1.bf16.msra.mxu0 0
    %1796 = vmatprep.subr.bf16.mxu0 0
    %1797 = vmatpush1.bf16.msra.mxu0 0
    %1798 = vmatprep.subr.bf16.mxu0 0
    %1799 = vmatpush1.bf16.msra.mxu0 0
    %1800 = vmatprep.subr.bf16.mxu0 0
    %1801 = vmatpush1.bf16.msra.mxu0 0
    %1802 = vmatprep.subr.bf16.mxu0 0
    %1803 = vmatpush1.bf16.msra.mxu0 0
    %1804 = vmatprep.subr.bf16.mxu0 0
    %1805 = vmatpush1.bf16.msra.mxu0 0
    %1806 = vmatprep.mubr.bf16.mxu0 0
    %1807 = vmatmul.mubr.bf16.gmra.mrb[0].mxu0 %v940
    %v1808 = vpop.f32.mrb[0].mxu0
    %v1809 = vadd.f32 %v1273, %v1808
    %v1810 = vpop.f32.mrb[0].mxu0
    %v1811 = vadd.f32 %v1277, %v1810
    %v1812 = vpop.f32.mrb[0].mxu0
    %v1813 = vadd.f32 %v1273, %v1812
    %v1814 = vpop.f32.mrb[0].mxu0
    %v1815 = vadd.f32 %v1277, %v1814
    %1816 = vmatprep.mubr.bf16.mxu0 0
    %1817 = vmatmul.mubr.bf16.gmra.mrb[0].mxu0 %v941
    %v1818 = vpop.f32.mrb[0].mxu0
    %v1819 = vadd.f32 %v1273, %v1818
    %v1820 = vpop.f32.mrb[0].mxu0
    %v1821 = vadd.f32 %v1277, %v1820
    %v1822 = vpop.f32.mrb[0].mxu0
    %v1823 = vpop.f32.mrb[0].mxu0
    %1824 = vdwg.mxu0
    %1825 = vmatprep.subr.bf16.mxu0 %v961
    %1826 = vmatpush1.bf16.msra.mxu0 %v960
    %1827 = vmatprep.subr.bf16.mxu0 %v993
    %1828 = vmatpush1.bf16.msra.mxu0 %v992
    %1829 = vmatprep.subr.bf16.mxu0 %v1025
    %1830 = vmatpush1.bf16.msra.mxu0 %v1024
    %1831 = vmatprep.subr.bf16.mxu0 %v1057
    %1832 = vmatpush1.bf16.msra.mxu0 %v1056
    %1833 = vmatprep.subr.bf16.mxu0 %v1089
    %1834 = vmatpush1.bf16.msra.mxu0 %v1088
    %1835 = vmatprep.subr.bf16.mxu0 %v1121
    %1836 = vmatpush1.bf16.msra.mxu0 %v1120
    %1837 = vmatprep.subr.bf16.mxu0 %v1153
    %1838 = vmatpush1.bf16.msra.mxu0 %v1152
    %1839 = vmatprep.subr.bf16.mxu0 %v1185
    %1840 = vmatpush1.bf16.msra.mxu0 %v1184
    %1841 = vmatprep.subr.bf16.mxu0 0
    %1842 = vmatpush1.bf16.msra.mxu0 0
    %1843 = vmatprep.subr.bf16.mxu0 0
    %1844 = vmatpush1.bf16.msra.mxu0 0
    %1845 = vmatprep.subr.bf16.mxu0 0
    %1846 = vmatpush1.bf16.msra.mxu0 0
    %1847 = vmatprep.subr.bf16.mxu0 0
    %1848 = vmatpush1.bf16.msra.mxu0 0
    %1849 = vmatprep.subr.bf16.mxu0 0
    %1850 = vmatpush1.bf16.msra.mxu0 0
    %1851 = vmatprep.subr.bf16.mxu0 0
    %1852 = vmatpush1.bf16.msra.mxu0 0
    %1853 = vmatprep.subr.bf16.mxu0 0
    %1854 = vmatpush1.bf16.msra.mxu0 0
    %1855 = vmatprep.subr.bf16.mxu0 0
    %1856 = vmatpush1.bf16.msra.mxu0 0
    %1857 = vmatprep.mubr.bf16.mxu0 0
    %1858 = vmatmul.mubr.bf16.gmra.mrb[0].mxu0 %v940
    %v1859 = vpop.f32.mrb[0].mxu0
    %v1860 = vadd.f32 %v1281, %v1859
    %v1861 = vpop.f32.mrb[0].mxu0
    %v1862 = vadd.f32 %v1285, %v1861
    %v1863 = vpop.f32.mrb[0].mxu0
    %v1864 = vadd.f32 %v1281, %v1863
    %v1865 = vpop.f32.mrb[0].mxu0
    %v1866 = vadd.f32 %v1285, %v1865
    %1867 = vmatprep.mubr.bf16.mxu0 0
    %1868 = vmatmul.mubr.bf16.gmra.mrb[0].mxu0 %v941
    %v1869 = vpop.f32.mrb[0].mxu0
    %v1870 = vadd.f32 %v1281, %v1869
    %v1871 = vpop.f32.mrb[0].mxu0
    %v1872 = vadd.f32 %v1285, %v1871
    %v1873 = vpop.f32.mrb[0].mxu0
    %v1874 = vpop.f32.mrb[0].mxu0
    %1875 = vdwg.mxu0
    %1876 = vmatprep.subr.bf16.mxu0 %v963
    %1877 = vmatpush1.bf16.msra.mxu0 %v962
    %1878 = vmatprep.subr.bf16.mxu0 %v995
    %1879 = vmatpush1.bf16.msra.mxu0 %v994
    %1880 = vmatprep.subr.bf16.mxu0 %v1027
    %1881 = vmatpush1.bf16.msra.mxu0 %v1026
    %1882 = vmatprep.subr.bf16.mxu0 %v1059
    %1883 = vmatpush1.bf16.msra.mxu0 %v1058
    %1884 = vmatprep.subr.bf16.mxu0 %v1091
    %1885 = vmatpush1.bf16.msra.mxu0 %v1090
    %1886 = vmatprep.subr.bf16.mxu0 %v1123
    %1887 = vmatpush1.bf16.msra.mxu0 %v1122
    %1888 = vmatprep.subr.bf16.mxu0 %v1155
    %1889 = vmatpush1.bf16.msra.mxu0 %v1154
    %1890 = vmatprep.subr.bf16.mxu0 %v1187
    %1891 = vmatpush1.bf16.msra.mxu0 %v1186
    %1892 = vmatprep.subr.bf16.mxu0 0
    %1893 = vmatpush1.bf16.msra.mxu0 0
    %1894 = vmatprep.subr.bf16.mxu0 0
    %1895 = vmatpush1.bf16.msra.mxu0 0
    %1896 = vmatprep.subr.bf16.mxu0 0
    %1897 = vmatpush1.bf16.msra.mxu0 0
    %1898 = vmatprep.subr.bf16.mxu0 0
    %1899 = vmatpush1.bf16.msra.mxu0 0
    %1900 = vmatprep.subr.bf16.mxu0 0
    %1901 = vmatpush1.bf16.msra.mxu0 0
    %1902 = vmatprep.subr.bf16.mxu0 0
    %1903 = vmatpush1.bf16.msra.mxu0 0
    %1904 = vmatprep.subr.bf16.mxu0 0
    %1905 = vmatpush1.bf16.msra.mxu0 0
    %1906 = vmatprep.subr.bf16.mxu0 0
    %1907 = vmatpush1.bf16.msra.mxu0 0
    %1908 = vmatprep.mubr.bf16.mxu0 0
    %1909 = vmatmul.mubr.bf16.gmra.mrb[0].mxu0 %v940
    %v1910 = vpop.f32.mrb[0].mxu0
    %v1911 = vadd.f32 %v1289, %v1910
    %v1912 = vpop.f32.mrb[0].mxu0
    %v1913 = vadd.f32 %v1293, %v1912
    %v1914 = vpop.f32.mrb[0].mxu0
    %v1915 = vadd.f32 %v1289, %v1914
    %v1916 = vpop.f32.mrb[0].mxu0
    %v1917 = vadd.f32 %v1293, %v1916
    %1918 = vmatprep.mubr.bf16.mxu0 0
    %1919 = vmatmul.mubr.bf16.gmra.mrb[0].mxu0 %v941
    %v1920 = vpop.f32.mrb[0].mxu0
    %v1921 = vadd.f32 %v1289, %v1920
    %v1922 = vpop.f32.mrb[0].mxu0
    %v1923 = vadd.f32 %v1293, %v1922
    %v1924 = vpop.f32.mrb[0].mxu0
    %v1925 = vpop.f32.mrb[0].mxu0
    %1926 = vdwg.mxu0
    %1927 = vmatprep.subr.bf16.mxu0 %v965
    %1928 = vmatpush1.bf16.msra.mxu0 %v964
    %1929 = vmatprep.subr.bf16.mxu0 %v997
    %1930 = vmatpush1.bf16.msra.mxu0 %v996
    %1931 = vmatprep.subr.bf16.mxu0 %v1029
    %1932 = vmatpush1.bf16.msra.mxu0 %v1028
    %1933 = vmatprep.subr.bf16.mxu0 %v1061
    %1934 = vmatpush1.bf16.msra.mxu0 %v1060
    %1935 = vmatprep.subr.bf16.mxu0 %v1093
    %1936 = vmatpush1.bf16.msra.mxu0 %v1092
    %1937 = vmatprep.subr.bf16.mxu0 %v1125
    %1938 = vmatpush1.bf16.msra.mxu0 %v1124
    %1939 = vmatprep.subr.bf16.mxu0 %v1157
    %1940 = vmatpush1.bf16.msra.mxu0 %v1156
    %1941 = vmatprep.subr.bf16.mxu0 %v1189
    %1942 = vmatpush1.bf16.msra.mxu0 %v1188
    %1943 = vmatprep.subr.bf16.mxu0 0
    %1944 = vmatpush1.bf16.msra.mxu0 0
    %1945 = vmatprep.subr.bf16.mxu0 0
    %1946 = vmatpush1.bf16.msra.mxu0 0
    %1947 = vmatprep.subr.bf16.mxu0 0
    %1948 = vmatpush1.bf16.msra.mxu0 0
    %1949 = vmatprep.subr.bf16.mxu0 0
    %1950 = vmatpush1.bf16.msra.mxu0 0
    %1951 = vmatprep.subr.bf16.mxu0 0
    %1952 = vmatpush1.bf16.msra.mxu0 0
    %1953 = vmatprep.subr.bf16.mxu0 0
    %1954 = vmatpush1.bf16.msra.mxu0 0
    %1955 = vmatprep.subr.bf16.mxu0 0
    %1956 = vmatpush1.bf16.msra.mxu0 0
    %1957 = vmatprep.subr.bf16.mxu0 0
    %1958 = vmatpush1.bf16.msra.mxu0 0
    %1959 = vmatprep.mubr.bf16.mxu0 0
    %1960 = vmatmul.mubr.bf16.gmra.mrb[0].mxu0 %v940
    %v1961 = vpop.f32.mrb[0].mxu0
    %v1962 = vadd.f32 %v1297, %v1961
    %v1963 = vpop.f32.mrb[0].mxu0
    %v1964 = vadd.f32 %v1301, %v1963
    %v1965 = vpop.f32.mrb[0].mxu0
    %v1966 = vadd.f32 %v1297, %v1965
    %v1967 = vpop.f32.mrb[0].mxu0
    %v1968 = vadd.f32 %v1301, %v1967
    %1969 = vmatprep.mubr.bf16.mxu0 0
    %1970 = vmatmul.mubr.bf16.gmra.mrb[0].mxu0 %v941
    %v1971 = vpop.f32.mrb[0].mxu0
    %v1972 = vadd.f32 %v1297, %v1971
    %v1973 = vpop.f32.mrb[0].mxu0
    %v1974 = vadd.f32 %v1301, %v1973
    %v1975 = vpop.f32.mrb[0].mxu0
    %v1976 = vpop.f32.mrb[0].mxu0
    %1977 = vdwg.mxu0
    %1978 = vmatprep.subr.bf16.mxu0 %v967
    %1979 = vmatpush1.bf16.msra.mxu0 %v966
    %1980 = vmatprep.subr.bf16.mxu0 %v999
    %1981 = vmatpush1.bf16.msra.mxu0 %v998
    %1982 = vmatprep.subr.bf16.mxu0 %v1031
    %1983 = vmatpush1.bf16.msra.mxu0 %v1030
    %1984 = vmatprep.subr.bf16.mxu0 %v1063
    %1985 = vmatpush1.bf16.msra.mxu0 %v1062
    %1986 = vmatprep.subr.bf16.mxu0 %v1095
    %1987 = vmatpush1.bf16.msra.mxu0 %v1094
    %1988 = vmatprep.subr.bf16.mxu0 %v1127
    %1989 = vmatpush1.bf16.msra.mxu0 %v1126
    %1990 = vmatprep.subr.bf16.mxu0 %v1159
    %1991 = vmatpush1.bf16.msra.mxu0 %v1158
    %1992 = vmatprep.subr.bf16.mxu0 %v1191
    %1993 = vmatpush1.bf16.msra.mxu0 %v1190
    %1994 = vmatprep.subr.bf16.mxu0 0
    %1995 = vmatpush1.bf16.msra.mxu0 0
    %1996 = vmatprep.subr.bf16.mxu0 0
    %1997 = vmatpush1.bf16.msra.mxu0 0
    %1998 = vmatprep.subr.bf16.mxu0 0
    %1999 = vmatpush1.bf16.msra.mxu0 0
    %2000 = vmatprep.subr.bf16.mxu0 0
    %2001 = vmatpush1.bf16.msra.mxu0 0
    %2002 = vmatprep.subr.bf16.mxu0 0
    %2003 = vmatpush1.bf16.msra.mxu0 0
    %2004 = vmatprep.subr.bf16.mxu0 0
    %2005 = vmatpush1.bf16.msra.mxu0 0
    %2006 = vmatprep.subr.bf16.mxu0 0
    %2007 = vmatpush1.bf16.msra.mxu0 0
    %2008 = vmatprep.subr.bf16.mxu0 0
    %2009 = vmatpush1.bf16.msra.mxu0 0
    %2010 = vmatprep.mubr.bf16.mxu0 0
    %2011 = vmatmul.mubr.bf16.gmra.mrb[0].mxu0 %v940
    %v2012 = vpop.f32.mrb[0].mxu0
    %v2013 = vadd.f32 %v1305, %v2012
    %v2014 = vpop.f32.mrb[0].mxu0
    %v2015 = vadd.f32 %v1309, %v2014
    %v2016 = vpop.f32.mrb[0].mxu0
    %v2017 = vadd.f32 %v1305, %v2016
    %v2018 = vpop.f32.mrb[0].mxu0
    %v2019 = vadd.f32 %v1309, %v2018
    %2020 = vmatprep.mubr.bf16.mxu0 0
    %2021 = vmatmul.mubr.bf16.gmra.mrb[0].mxu0 %v941
    %v2022 = vpop.f32.mrb[0].mxu0
    %v2023 = vadd.f32 %v1305, %v2022
    %v2024 = vpop.f32.mrb[0].mxu0
    %v2025 = vadd.f32 %v1309, %v2024
    %v2026 = vpop.f32.mrb[0].mxu0
    %v2027 = vpop.f32.mrb[0].mxu0
    %2028 = vdwg.mxu0
    %2029 = vmatprep.subr.bf16.mxu0 %v969
    %2030 = vmatpush1.bf16.msra.mxu0 %v968
    %2031 = vmatprep.subr.bf16.mxu0 %v1001
    %2032 = vmatpush1.bf16.msra.mxu0 %v1000
    %2033 = vmatprep.subr.bf16.mxu0 %v1033
    %2034 = vmatpush1.bf16.msra.mxu0 %v1032
    %2035 = vmatprep.subr.bf16.mxu0 %v1065
    %2036 = vmatpush1.bf16.msra.mxu0 %v1064
    %2037 = vmatprep.subr.bf16.mxu0 %v1097
    %2038 = vmatpush1.bf16.msra.mxu0 %v1096
    %2039 = vmatprep.subr.bf16.mxu0 %v1129
    %2040 = vmatpush1.bf16.msra.mxu0 %v1128
    %2041 = vmatprep.subr.bf16.mxu0 %v1161
    %2042 = vmatpush1.bf16.msra.mxu0 %v1160
    %2043 = vmatprep.subr.bf16.mxu0 %v1193
    %2044 = vmatpush1.bf16.msra.mxu0 %v1192
    %2045 = vmatprep.subr.bf16.mxu0 0
    %2046 = vmatpush1.bf16.msra.mxu0 0
    %2047 = vmatprep.subr.bf16.mxu0 0
    %2048 = vmatpush1.bf16.msra.mxu0 0
    %2049 = vmatprep.subr.bf16.mxu0 0
    %2050 = vmatpush1.bf16.msra.mxu0 0
    %2051 = vmatprep.subr.bf16.mxu0 0
    %2052 = vmatpush1.bf16.msra.mxu0 0
    %2053 = vmatprep.subr.bf16.mxu0 0
    %2054 = vmatpush1.bf16.msra.mxu0 0
    %2055 = vmatprep.subr.bf16.mxu0 0
    %2056 = vmatpush1.bf16.msra.mxu0 0
    %2057 = vmatprep.subr.bf16.mxu0 0
    %2058 = vmatpush1.bf16.msra.mxu0 0
    %2059 = vmatprep.subr.bf16.mxu0 0
    %2060 = vmatpush1.bf16.msra.mxu0 0
    %2061 = vmatprep.mubr.bf16.mxu0 0
    %2062 = vmatmul.mubr.bf16.gmra.mrb[0].mxu0 %v940
    %v2063 = vpop.f32.mrb[0].mxu0
    %v2064 = vadd.f32 %v1313, %v2063
    %v2065 = vpop.f32.mrb[0].mxu0
    %v2066 = vadd.f32 %v1317, %v2065
    %v2067 = vpop.f32.mrb[0].mxu0
    %v2068 = vadd.f32 %v1313, %v2067
    %v2069 = vpop.f32.mrb[0].mxu0
    %v2070 = vadd.f32 %v1317, %v2069
    %2071 = vmatprep.mubr.bf16.mxu0 0
    %2072 = vmatmul.mubr.bf16.gmra.mrb[0].mxu0 %v941
    %v2073 = vpop.f32.mrb[0].mxu0
    %v2074 = vadd.f32 %v1313, %v2073
    %v2075 = vpop.f32.mrb[0].mxu0
    %v2076 = vadd.f32 %v1317, %v2075
    %v2077 = vpop.f32.mrb[0].mxu0
    %v2078 = vpop.f32.mrb[0].mxu0
    %2079 = vdwg.mxu0
    %2080 = vmatprep.subr.bf16.mxu0 %v971
    %2081 = vmatpush1.bf16.msra.mxu0 %v970
    %2082 = vmatprep.subr.bf16.mxu0 %v1003
    %2083 = vmatpush1.bf16.msra.mxu0 %v1002
    %2084 = vmatprep.subr.bf16.mxu0 %v1035
    %2085 = vmatpush1.bf16.msra.mxu0 %v1034
    %2086 = vmatprep.subr.bf16.mxu0 %v1067
    %2087 = vmatpush1.bf16.msra.mxu0 %v1066
    %2088 = vmatprep.subr.bf16.mxu0 %v1099
    %2089 = vmatpush1.bf16.msra.mxu0 %v1098
    %2090 = vmatprep.subr.bf16.mxu0 %v1131
    %2091 = vmatpush1.bf16.msra.mxu0 %v1130
    %2092 = vmatprep.subr.bf16.mxu0 %v1163
    %2093 = vmatpush1.bf16.msra.mxu0 %v1162
    %2094 = vmatprep.subr.bf16.mxu0 %v1195
    %2095 = vmatpush1.bf16.msra.mxu0 %v1194
    %2096 = vmatprep.subr.bf16.mxu0 0
    %2097 = vmatpush1.bf16.msra.mxu0 0
    %2098 = vmatprep.subr.bf16.mxu0 0
    %2099 = vmatpush1.bf16.msra.mxu0 0
    %2100 = vmatprep.subr.bf16.mxu0 0
    %2101 = vmatpush1.bf16.msra.mxu0 0
    %2102 = vmatprep.subr.bf16.mxu0 0
    %2103 = vmatpush1.bf16.msra.mxu0 0
    %2104 = vmatprep.subr.bf16.mxu0 0
    %2105 = vmatpush1.bf16.msra.mxu0 0
    %2106 = vmatprep.subr.bf16.mxu0 0
    %2107 = vmatpush1.bf16.msra.mxu0 0
    %2108 = vmatprep.subr.bf16.mxu0 0
    %2109 = vmatpush1.bf16.msra.mxu0 0
    %2110 = vmatprep.subr.bf16.mxu0 0
    %2111 = vmatpush1.bf16.msra.mxu0 0
    %2112 = vmatprep.mubr.bf16.mxu0 0
    %2113 = vmatmul.mubr.bf16.gmra.mrb[0].mxu0 %v940
    %v2114 = vpop.f32.mrb[0].mxu0
    %v2115 = vadd.f32 %v1321, %v2114
    %v2116 = vpop.f32.mrb[0].mxu0
    %v2117 = vadd.f32 %v1325, %v2116
    %v2118 = vpop.f32.mrb[0].mxu0
    %v2119 = vadd.f32 %v1321, %v2118
    %v2120 = vpop.f32.mrb[0].mxu0
    %v2121 = vadd.f32 %v1325, %v2120
    %2122 = vmatprep.mubr.bf16.mxu0 0
    %2123 = vmatmul.mubr.bf16.gmra.mrb[0].mxu0 %v941
    %v2124 = vpop.f32.mrb[0].mxu0
    %v2125 = vadd.f32 %v1321, %v2124
    %v2126 = vpop.f32.mrb[0].mxu0
    %v2127 = vadd.f32 %v1325, %v2126
    %v2128 = vpop.f32.mrb[0].mxu0
    %v2129 = vpop.f32.mrb[0].mxu0
    %2130 = vdwg.mxu0
    %2131 = vmatprep.subr.bf16.mxu0 %v973
    %2132 = vmatpush1.bf16.msra.mxu0 %v972
    %2133 = vmatprep.subr.bf16.mxu0 %v1005
    %2134 = vmatpush1.bf16.msra.mxu0 %v1004
    %2135 = vmatprep.subr.bf16.mxu0 %v1037
    %2136 = vmatpush1.bf16.msra.mxu0 %v1036
    %2137 = vmatprep.subr.bf16.mxu0 %v1069
    %2138 = vmatpush1.bf16.msra.mxu0 %v1068
    %2139 = vmatprep.subr.bf16.mxu0 %v1101
    %2140 = vmatpush1.bf16.msra.mxu0 %v1100
    %2141 = vmatprep.subr.bf16.mxu0 %v1133
    %2142 = vmatpush1.bf16.msra.mxu0 %v1132
    %2143 = vmatprep.subr.bf16.mxu0 %v1165
    %2144 = vmatpush1.bf16.msra.mxu0 %v1164
    %2145 = vmatprep.subr.bf16.mxu0 %v1197
    %2146 = vmatpush1.bf16.msra.mxu0 %v1196
    %2147 = vmatprep.subr.bf16.mxu0 0
    %2148 = vmatpush1.bf16.msra.mxu0 0
    %2149 = vmatprep.subr.bf16.mxu0 0
    %2150 = vmatpush1.bf16.msra.mxu0 0
    %2151 = vmatprep.subr.bf16.mxu0 0
    %2152 = vmatpush1.bf16.msra.mxu0 0
    %2153 = vmatprep.subr.bf16.mxu0 0
    %2154 = vmatpush1.bf16.msra.mxu0 0
    %2155 = vmatprep.subr.bf16.mxu0 0
    %2156 = vmatpush1.bf16.msra.mxu0 0
    %2157 = vmatprep.subr.bf16.mxu0 0
    %2158 = vmatpush1.bf16.msra.mxu0 0
    %2159 = vmatprep.subr.bf16.mxu0 0
    %2160 = vmatpush1.bf16.msra.mxu0 0
    %2161 = vmatprep.subr.bf16.mxu0 0
    %2162 = vmatpush1.bf16.msra.mxu0 0
    %2163 = vmatprep.mubr.bf16.mxu0 0
    %2164 = vmatmul.mubr.bf16.gmra.mrb[0].mxu0 %v940
    %v2165 = vpop.f32.mrb[0].mxu0
    %v2166 = vadd.f32 %v1329, %v2165
    %v2167 = vpop.f32.mrb[0].mxu0
    %v2168 = vadd.f32 %v1333, %v2167
    %v2169 = vpop.f32.mrb[0].mxu0
    %v2170 = vadd.f32 %v1329, %v2169
    %v2171 = vpop.f32.mrb[0].mxu0
    %v2172 = vadd.f32 %v1333, %v2171
    %2173 = vmatprep.mubr.bf16.mxu0 0
    %2174 = vmatmul.mubr.bf16.gmra.mrb[0].mxu0 %v941
    %v2175 = vpop.f32.mrb[0].mxu0
    %v2176 = vadd.f32 %v1329, %v2175
    %v2177 = vpop.f32.mrb[0].mxu0
    %v2178 = vadd.f32 %v1333, %v2177
    %v2179 = vpop.f32.mrb[0].mxu0
    %v2180 = vpop.f32.mrb[0].mxu0
    %2181 = vdwg.mxu0
    %v2182 = vld [vmem:[#allocation14] sm:$0xff]
    %v2183 = vld [vmem:[#allocation14 + $0x8] sm:$0xff]
    %v2184 = vld [vmem:[#allocation14 + $0x10] sm:$0xff]
    %v2185 = vld [vmem:[#allocation14 + $0x18] sm:$0xff]
    %v2186 = vld [vmem:[#allocation14 + $0x20] sm:$0xff]
    %v2187 = vld [vmem:[#allocation14 + $0x28] sm:$0xff]
    %v2188 = vld [vmem:[#allocation14 + $0x30] sm:$0xff]
    %v2189 = vld [vmem:[#allocation14 + $0x38] sm:$0xff]
    %v2190 = vld [vmem:[#allocation14 + $0x40] sm:$0xff]
    %v2191 = vld [vmem:[#allocation14 + $0x48] sm:$0xff]
    %v2192 = vld [vmem:[#allocation14 + $0x50] sm:$0xff]
    %v2193 = vld [vmem:[#allocation14 + $0x58] sm:$0xff]
    %v2194 = vld [vmem:[#allocation14 + $0x60] sm:$0xff]
    %v2195 = vld [vmem:[#allocation14 + $0x68] sm:$0xff]
    %v2196 = vld [vmem:[#allocation14 + $0x70] sm:$0xff]
    %v2197 = vld [vmem:[#allocation14 + $0x78] sm:$0xff]
    %v2198 = vld [vmem:[#allocation14 + $0x80] sm:$0xff]
    %v2199 = vld [vmem:[#allocation14 + $0x88] sm:$0xff]
    %v2200 = vld [vmem:[#allocation14 + $0x90] sm:$0xff]
    %v2201 = vld [vmem:[#allocation14 + $0x98] sm:$0xff]
    %v2202 = vld [vmem:[#allocation14 + $0xa0] sm:$0xff]
    %v2203 = vld [vmem:[#allocation14 + $0xa8] sm:$0xff]
    %v2204 = vld [vmem:[#allocation14 + $0xb0] sm:$0xff]
    %v2205 = vld [vmem:[#allocation14 + $0xb8] sm:$0xff]
    %v2206 = vld [vmem:[#allocation14 + $0xc0] sm:$0xff]
    %v2207 = vld [vmem:[#allocation14 + $0xc8] sm:$0xff]
    %v2208 = vld [vmem:[#allocation14 + $0xd0] sm:$0xff]
    %v2209 = vld [vmem:[#allocation14 + $0xd8] sm:$0xff]
    %v2210 = vld [vmem:[#allocation14 + $0xe0] sm:$0xff]
    %v2211 = vld [vmem:[#allocation14 + $0xe8] sm:$0xff]
    %v2212 = vld [vmem:[#allocation14 + $0xf0] sm:$0xff]
    %v2213 = vld [vmem:[#allocation14 + $0xf8] sm:$0xff]
    %v2214 = vld [vmem:[#allocation14 + $0x100] sm:$0xff]
    %v2215 = vld [vmem:[#allocation14 + $0x108] sm:$0xff]
    %v2216 = vld [vmem:[#allocation14 + $0x110] sm:$0xff]
    %v2217 = vld [vmem:[#allocation14 + $0x118] sm:$0xff]
    %v2218 = vld [vmem:[#allocation14 + $0x120] sm:$0xff]
    %v2219 = vld [vmem:[#allocation14 + $0x128] sm:$0xff]
    %v2220 = vld [vmem:[#allocation14 + $0x130] sm:$0xff]
    %v2221 = vld [vmem:[#allocation14 + $0x138] sm:$0xff]
    %v2222 = vld [vmem:[#allocation14 + $0x140] sm:$0xff]
    %v2223 = vld [vmem:[#allocation14 + $0x148] sm:$0xff]
    %v2224 = vld [vmem:[#allocation14 + $0x150] sm:$0xff]
    %v2225 = vld [vmem:[#allocation14 + $0x158] sm:$0xff]
    %v2226 = vld [vmem:[#allocation14 + $0x160] sm:$0xff]
    %v2227 = vld [vmem:[#allocation14 + $0x168] sm:$0xff]
    %v2228 = vld [vmem:[#allocation14 + $0x170] sm:$0xff]
    %v2229 = vld [vmem:[#allocation14 + $0x178] sm:$0xff]
    %v2230 = vld [vmem:[#allocation14 + $0x180] sm:$0xff]
    %v2231 = vld [vmem:[#allocation14 + $0x188] sm:$0xff]
    %v2232 = vld [vmem:[#allocation14 + $0x190] sm:$0xff]
    %v2233 = vld [vmem:[#allocation14 + $0x198] sm:$0xff]
    %v2234 = vld [vmem:[#allocation14 + $0x1a0] sm:$0xff]
    %v2235 = vld [vmem:[#allocation14 + $0x1a8] sm:$0xff]
    %v2236 = vld [vmem:[#allocation14 + $0x1b0] sm:$0xff]
    %v2237 = vld [vmem:[#allocation14 + $0x1b8] sm:$0xff]
    %v2238 = vld [vmem:[#allocation14 + $0x1c0] sm:$0xff]
    %v2239 = vld [vmem:[#allocation14 + $0x1c8] sm:$0xff]
    %v2240 = vld [vmem:[#allocation14 + $0x1d0] sm:$0xff]
    %v2241 = vld [vmem:[#allocation14 + $0x1d8] sm:$0xff]
    %v2242 = vld [vmem:[#allocation14 + $0x1e0] sm:$0xff]
    %v2243 = vld [vmem:[#allocation14 + $0x1e8] sm:$0xff]
    %v2244 = vld [vmem:[#allocation14 + $0x1f0] sm:$0xff]
    %v2245 = vld [vmem:[#allocation14 + $0x1f8] sm:$0xff]
    %v2246 = vld [vmem:[#allocation14 + $0x200] sm:$0xff]
    %v2247 = vld [vmem:[#allocation14 + $0x208] sm:$0xff]
    %v2248 = vld [vmem:[#allocation14 + $0x210] sm:$0xff]
    %v2249 = vld [vmem:[#allocation14 + $0x218] sm:$0xff]
    %v2250 = vld [vmem:[#allocation14 + $0x220] sm:$0xff]
    %v2251 = vld [vmem:[#allocation14 + $0x228] sm:$0xff]
    %v2252 = vld [vmem:[#allocation14 + $0x230] sm:$0xff]
    %v2253 = vld [vmem:[#allocation14 + $0x238] sm:$0xff]
    %v2254 = vld [vmem:[#allocation14 + $0x240] sm:$0xff]
    %v2255 = vld [vmem:[#allocation14 + $0x248] sm:$0xff]
    %v2256 = vld [vmem:[#allocation14 + $0x250] sm:$0xff]
    %v2257 = vld [vmem:[#allocation14 + $0x258] sm:$0xff]
    %v2258 = vld [vmem:[#allocation14 + $0x260] sm:$0xff]
    %v2259 = vld [vmem:[#allocation14 + $0x268] sm:$0xff]
    %v2260 = vld [vmem:[#allocation14 + $0x270] sm:$0xff]
    %v2261 = vld [vmem:[#allocation14 + $0x278] sm:$0xff]
    %v2262 = vld [vmem:[#allocation14 + $0x280] sm:$0xff]
    %v2263 = vld [vmem:[#allocation14 + $0x288] sm:$0xff]
    %v2264 = vld [vmem:[#allocation14 + $0x290] sm:$0xff]
    %v2265 = vld [vmem:[#allocation14 + $0x298] sm:$0xff]
    %v2266 = vld [vmem:[#allocation14 + $0x2a0] sm:$0xff]
    %v2267 = vld [vmem:[#allocation14 + $0x2a8] sm:$0xff]
    %v2268 = vld [vmem:[#allocation14 + $0x2b0] sm:$0xff]
    %v2269 = vld [vmem:[#allocation14 + $0x2b8] sm:$0xff]
    %v2270 = vld [vmem:[#allocation14 + $0x2c0] sm:$0xff]
    %v2271 = vld [vmem:[#allocation14 + $0x2c8] sm:$0xff]
    %v2272 = vld [vmem:[#allocation14 + $0x2d0] sm:$0xff]
    %v2273 = vld [vmem:[#allocation14 + $0x2d8] sm:$0xff]
    %v2274 = vld [vmem:[#allocation14 + $0x2e0] sm:$0xff]
    %v2275 = vld [vmem:[#allocation14 + $0x2e8] sm:$0xff]
    %v2276 = vld [vmem:[#allocation14 + $0x2f0] sm:$0xff]
    %v2277 = vld [vmem:[#allocation14 + $0x2f8] sm:$0xff]
    %v2278 = vld [vmem:[#allocation14 + $0x300] sm:$0xff]
    %v2279 = vld [vmem:[#allocation14 + $0x308] sm:$0xff]
    %v2280 = vld [vmem:[#allocation14 + $0x310] sm:$0xff]
    %v2281 = vld [vmem:[#allocation14 + $0x318] sm:$0xff]
    %v2282 = vld [vmem:[#allocation14 + $0x320] sm:$0xff]
    %v2283 = vld [vmem:[#allocation14 + $0x328] sm:$0xff]
    %v2284 = vld [vmem:[#allocation14 + $0x330] sm:$0xff]
    %v2285 = vld [vmem:[#allocation14 + $0x338] sm:$0xff]
    %v2286 = vld [vmem:[#allocation14 + $0x340] sm:$0xff]
    %v2287 = vld [vmem:[#allocation14 + $0x348] sm:$0xff]
    %v2288 = vld [vmem:[#allocation14 + $0x350] sm:$0xff]
    %v2289 = vld [vmem:[#allocation14 + $0x358] sm:$0xff]
    %v2290 = vld [vmem:[#allocation14 + $0x360] sm:$0xff]
    %v2291 = vld [vmem:[#allocation14 + $0x368] sm:$0xff]
    %v2292 = vld [vmem:[#allocation14 + $0x370] sm:$0xff]
    %v2293 = vld [vmem:[#allocation14 + $0x378] sm:$0xff]
    %v2294 = vld [vmem:[#allocation14 + $0x380] sm:$0xff]
    %v2295 = vld [vmem:[#allocation14 + $0x388] sm:$0xff]
    %v2296 = vld [vmem:[#allocation14 + $0x390] sm:$0xff]
    %v2297 = vld [vmem:[#allocation14 + $0x398] sm:$0xff]
    %v2298 = vld [vmem:[#allocation14 + $0x3a0] sm:$0xff]
    %v2299 = vld [vmem:[#allocation14 + $0x3a8] sm:$0xff]
    %v2300 = vld [vmem:[#allocation14 + $0x3b0] sm:$0xff]
    %v2301 = vld [vmem:[#allocation14 + $0x3b8] sm:$0xff]
    %v2302 = vld [vmem:[#allocation14 + $0x3c0] sm:$0xff]
    %v2303 = vld [vmem:[#allocation14 + $0x3c8] sm:$0xff]
    %v2304 = vld [vmem:[#allocation14 + $0x3d0] sm:$0xff]
    %v2305 = vld [vmem:[#allocation14 + $0x3d8] sm:$0xff]
    %v2306 = vld [vmem:[#allocation14 + $0x3e0] sm:$0xff]
    %v2307 = vld [vmem:[#allocation14 + $0x3e8] sm:$0xff]
    %v2308 = vld [vmem:[#allocation14 + $0x3f0] sm:$0xff]
    %v2309 = vld [vmem:[#allocation14 + $0x3f8] sm:$0xff]
    %v2310 = vld [vmem:[%s9] sm:$0xf]
    %v2311 = vld [vmem:[%s9 + $0x4] sm:$0xf]
    %v2312 = vld [vmem:[%s9 + $0x8] sm:$0xf]
    %v2313 = vld [vmem:[%s9 + $0xc] sm:$0xf]
    %v2314 = vld [vmem:[%s9 + $0x10] sm:$0xf]
    %v2315 = vld [vmem:[%s9 + $0x14] sm:$0xf]
    %v2316 = vld [vmem:[%s9 + $0x18] sm:$0xf]
    %v2317 = vld [vmem:[%s9 + $0x1c] sm:$0xf]
    %v2318 = vld [vmem:[%s9 + $0x20] sm:$0xf]
    %v2319 = vld [vmem:[%s9 + $0x24] sm:$0xf]
    %v2320 = vld [vmem:[%s9 + $0x28] sm:$0xf]
    %v2321 = vld [vmem:[%s9 + $0x2c] sm:$0xf]
    %v2322 = vld [vmem:[%s9 + $0x30] sm:$0xf]
    %v2323 = vld [vmem:[%s9 + $0x34] sm:$0xf]
    %v2324 = vld [vmem:[%s9 + $0x38] sm:$0xf]
    %v2325 = vld [vmem:[%s9 + $0x3c] sm:$0xf]
    %v2326 = vld [vmem:[%s9 + $0x40] sm:$0xf]
    %v2327 = vld [vmem:[%s9 + $0x44] sm:$0xf]
    %v2328 = vld [vmem:[%s9 + $0x48] sm:$0xf]
    %v2329 = vld [vmem:[%s9 + $0x4c] sm:$0xf]
    %v2330 = vld [vmem:[%s9 + $0x50] sm:$0xf]
    %v2331 = vld [vmem:[%s9 + $0x54] sm:$0xf]
    %v2332 = vld [vmem:[%s9 + $0x58] sm:$0xf]
    %v2333 = vld [vmem:[%s9 + $0x5c] sm:$0xf]
    %v2334 = vld [vmem:[%s9 + $0x60] sm:$0xf]
    %v2335 = vld [vmem:[%s9 + $0x64] sm:$0xf]
    %v2336 = vld [vmem:[%s9 + $0x68] sm:$0xf]
    %v2337 = vld [vmem:[%s9 + $0x6c] sm:$0xf]
    %v2338 = vld [vmem:[%s9 + $0x70] sm:$0xf]
    %v2339 = vld [vmem:[%s9 + $0x74] sm:$0xf]
    %v2340 = vld [vmem:[%s9 + $0x78] sm:$0xf]
    %v2341 = vld [vmem:[%s9 + $0x7c] sm:$0xf]
    %v2342 = vld [vmem:[%s9 + $0x80] sm:$0xf]
    %v2343 = vld [vmem:[%s9 + $0x84] sm:$0xf]
    %v2344 = vld [vmem:[%s9 + $0x88] sm:$0xf]
    %v2345 = vld [vmem:[%s9 + $0x8c] sm:$0xf]
    %v2346 = vld [vmem:[%s9 + $0x90] sm:$0xf]
    %v2347 = vld [vmem:[%s9 + $0x94] sm:$0xf]
    %v2348 = vld [vmem:[%s9 + $0x98] sm:$0xf]
    %v2349 = vld [vmem:[%s9 + $0x9c] sm:$0xf]
    %v2350 = vld [vmem:[%s9 + $0xa0] sm:$0xf]
    %v2351 = vld [vmem:[%s9 + $0xa4] sm:$0xf]
    %v2352 = vld [vmem:[%s9 + $0xa8] sm:$0xf]
    %v2353 = vld [vmem:[%s9 + $0xac] sm:$0xf]
    %v2354 = vld [vmem:[%s9 + $0xb0] sm:$0xf]
    %v2355 = vld [vmem:[%s9 + $0xb4] sm:$0xf]
    %v2356 = vld [vmem:[%s9 + $0xb8] sm:$0xf]
    %v2357 = vld [vmem:[%s9 + $0xbc] sm:$0xf]
    %v2358 = vld [vmem:[%s9 + $0xc0] sm:$0xf]
    %v2359 = vld [vmem:[%s9 + $0xc4] sm:$0xf]
    %v2360 = vld [vmem:[%s9 + $0xc8] sm:$0xf]
    %v2361 = vld [vmem:[%s9 + $0xcc] sm:$0xf]
    %v2362 = vld [vmem:[%s9 + $0xd0] sm:$0xf]
    %v2363 = vld [vmem:[%s9 + $0xd4] sm:$0xf]
    %v2364 = vld [vmem:[%s9 + $0xd8] sm:$0xf]
    %v2365 = vld [vmem:[%s9 + $0xdc] sm:$0xf]
    %v2366 = vld [vmem:[%s9 + $0xe0] sm:$0xf]
    %v2367 = vld [vmem:[%s9 + $0xe4] sm:$0xf]
    %v2368 = vld [vmem:[%s9 + $0xe8] sm:$0xf]
    %v2369 = vld [vmem:[%s9 + $0xec] sm:$0xf]
    %v2370 = vld [vmem:[%s9 + $0xf0] sm:$0xf]
    %v2371 = vld [vmem:[%s9 + $0xf4] sm:$0xf]
    %v2372 = vld [vmem:[%s9 + $0xf8] sm:$0xf]
    %v2373 = vld [vmem:[%s9 + $0xfc] sm:$0xf]
    %v2374 = vld [vmem:[%s9 + $0x100] sm:$0xf]
    %v2375 = vld [vmem:[%s9 + $0x104] sm:$0xf]
    %v2376 = vld [vmem:[%s9 + $0x108] sm:$0xf]
    %v2377 = vld [vmem:[%s9 + $0x10c] sm:$0xf]
    %v2378 = vld [vmem:[%s9 + $0x110] sm:$0xf]
    %v2379 = vld [vmem:[%s9 + $0x114] sm:$0xf]
    %v2380 = vld [vmem:[%s9 + $0x118] sm:$0xf]
    %v2381 = vld [vmem:[%s9 + $0x11c] sm:$0xf]
    %v2382 = vld [vmem:[%s9 + $0x120] sm:$0xf]
    %v2383 = vld [vmem:[%s9 + $0x124] sm:$0xf]
    %v2384 = vld [vmem:[%s9 + $0x128] sm:$0xf]
    %v2385 = vld [vmem:[%s9 + $0x12c] sm:$0xf]
    %v2386 = vld [vmem:[%s9 + $0x130] sm:$0xf]
    %v2387 = vld [vmem:[%s9 + $0x134] sm:$0xf]
    %v2388 = vld [vmem:[%s9 + $0x138] sm:$0xf]
    %v2389 = vld [vmem:[%s9 + $0x13c] sm:$0xf]
    %v2390 = vld [vmem:[%s9 + $0x140] sm:$0xf]
    %v2391 = vld [vmem:[%s9 + $0x144] sm:$0xf]
    %v2392 = vld [vmem:[%s9 + $0x148] sm:$0xf]
    %v2393 = vld [vmem:[%s9 + $0x14c] sm:$0xf]
    %v2394 = vld [vmem:[%s9 + $0x150] sm:$0xf]
    %v2395 = vld [vmem:[%s9 + $0x154] sm:$0xf]
    %v2396 = vld [vmem:[%s9 + $0x158] sm:$0xf]
    %v2397 = vld [vmem:[%s9 + $0x15c] sm:$0xf]
    %v2398 = vld [vmem:[%s9 + $0x160] sm:$0xf]
    %v2399 = vld [vmem:[%s9 + $0x164] sm:$0xf]
    %v2400 = vld [vmem:[%s9 + $0x168] sm:$0xf]
    %v2401 = vld [vmem:[%s9 + $0x16c] sm:$0xf]
    %v2402 = vld [vmem:[%s9 + $0x170] sm:$0xf]
    %v2403 = vld [vmem:[%s9 + $0x174] sm:$0xf]
    %v2404 = vld [vmem:[%s9 + $0x178] sm:$0xf]
    %v2405 = vld [vmem:[%s9 + $0x17c] sm:$0xf]
    %v2406 = vld [vmem:[%s9 + $0x180] sm:$0xf]
    %v2407 = vld [vmem:[%s9 + $0x184] sm:$0xf]
    %v2408 = vld [vmem:[%s9 + $0x188] sm:$0xf]
    %v2409 = vld [vmem:[%s9 + $0x18c] sm:$0xf]
    %v2410 = vld [vmem:[%s9 + $0x190] sm:$0xf]
    %v2411 = vld [vmem:[%s9 + $0x194] sm:$0xf]
    %v2412 = vld [vmem:[%s9 + $0x198] sm:$0xf]
    %v2413 = vld [vmem:[%s9 + $0x19c] sm:$0xf]
    %v2414 = vld [vmem:[%s9 + $0x1a0] sm:$0xf]
    %v2415 = vld [vmem:[%s9 + $0x1a4] sm:$0xf]
    %v2416 = vld [vmem:[%s9 + $0x1a8] sm:$0xf]
    %v2417 = vld [vmem:[%s9 + $0x1ac] sm:$0xf]
    %v2418 = vld [vmem:[%s9 + $0x1b0] sm:$0xf]
    %v2419 = vld [vmem:[%s9 + $0x1b4] sm:$0xf]
    %v2420 = vld [vmem:[%s9 + $0x1b8] sm:$0xf]
    %v2421 = vld [vmem:[%s9 + $0x1bc] sm:$0xf]
    %v2422 = vld [vmem:[%s9 + $0x1c0] sm:$0xf]
    %v2423 = vld [vmem:[%s9 + $0x1c4] sm:$0xf]
    %v2424 = vld [vmem:[%s9 + $0x1c8] sm:$0xf]
    %v2425 = vld [vmem:[%s9 + $0x1cc] sm:$0xf]
    %v2426 = vld [vmem:[%s9 + $0x1d0] sm:$0xf]
    %v2427 = vld [vmem:[%s9 + $0x1d4] sm:$0xf]
    %v2428 = vld [vmem:[%s9 + $0x1d8] sm:$0xf]
    %v2429 = vld [vmem:[%s9 + $0x1dc] sm:$0xf]
    %v2430 = vld [vmem:[%s9 + $0x1e0] sm:$0xf]
    %v2431 = vld [vmem:[%s9 + $0x1e4] sm:$0xf]
    %v2432 = vld [vmem:[%s9 + $0x1e8] sm:$0xf]
    %v2433 = vld [vmem:[%s9 + $0x1ec] sm:$0xf]
    %v2434 = vld [vmem:[%s9 + $0x1f0] sm:$0xf]
    %v2435 = vld [vmem:[%s9 + $0x1f4] sm:$0xf]
    %v2436 = vld [vmem:[%s9 + $0x1f8] sm:$0xf]
    %v2437 = vld [vmem:[%s9 + $0x1fc] sm:$0xf]
    %v2438 = vld [vmem:[%s9 + $0x200] sm:$0xf]
    %v2439 = vld [vmem:[%s9 + $0x204] sm:$0xf]
    %v2440 = vld [vmem:[%s9 + $0x208] sm:$0xf]
    %v2441 = vld [vmem:[%s9 + $0x20c] sm:$0xf]
    %v2442 = vld [vmem:[%s9 + $0x210] sm:$0xf]
    %v2443 = vld [vmem:[%s9 + $0x214] sm:$0xf]
    %v2444 = vld [vmem:[%s9 + $0x218] sm:$0xf]
    %v2445 = vld [vmem:[%s9 + $0x21c] sm:$0xf]
    %v2446 = vld [vmem:[%s9 + $0x220] sm:$0xf]
    %v2447 = vld [vmem:[%s9 + $0x224] sm:$0xf]
    %v2448 = vld [vmem:[%s9 + $0x228] sm:$0xf]
    %v2449 = vld [vmem:[%s9 + $0x22c] sm:$0xf]
    %v2450 = vld [vmem:[%s9 + $0x230] sm:$0xf]
    %v2451 = vld [vmem:[%s9 + $0x234] sm:$0xf]
    %v2452 = vld [vmem:[%s9 + $0x238] sm:$0xf]
    %v2453 = vld [vmem:[%s9 + $0x23c] sm:$0xf]
    %v2454 = vld [vmem:[%s9 + $0x240] sm:$0xf]
    %v2455 = vld [vmem:[%s9 + $0x244] sm:$0xf]
    %v2456 = vld [vmem:[%s9 + $0x248] sm:$0xf]
    %v2457 = vld [vmem:[%s9 + $0x24c] sm:$0xf]
    %v2458 = vld [vmem:[%s9 + $0x250] sm:$0xf]
    %v2459 = vld [vmem:[%s9 + $0x254] sm:$0xf]
    %v2460 = vld [vmem:[%s9 + $0x258] sm:$0xf]
    %v2461 = vld [vmem:[%s9 + $0x25c] sm:$0xf]
    %v2462 = vld [vmem:[%s9 + $0x260] sm:$0xf]
    %v2463 = vld [vmem:[%s9 + $0x264] sm:$0xf]
    %v2464 = vld [vmem:[%s9 + $0x268] sm:$0xf]
    %v2465 = vld [vmem:[%s9 + $0x26c] sm:$0xf]
    %v2466 = vld [vmem:[%s9 + $0x270] sm:$0xf]
    %v2467 = vld [vmem:[%s9 + $0x274] sm:$0xf]
    %v2468 = vld [vmem:[%s9 + $0x278] sm:$0xf]
    %v2469 = vld [vmem:[%s9 + $0x27c] sm:$0xf]
    %v2470 = vld [vmem:[%s9 + $0x280] sm:$0xf]
    %v2471 = vld [vmem:[%s9 + $0x284] sm:$0xf]
    %v2472 = vld [vmem:[%s9 + $0x288] sm:$0xf]
    %v2473 = vld [vmem:[%s9 + $0x28c] sm:$0xf]
    %v2474 = vld [vmem:[%s9 + $0x290] sm:$0xf]
    %v2475 = vld [vmem:[%s9 + $0x294] sm:$0xf]
    %v2476 = vld [vmem:[%s9 + $0x298] sm:$0xf]
    %v2477 = vld [vmem:[%s9 + $0x29c] sm:$0xf]
    %v2478 = vld [vmem:[%s9 + $0x2a0] sm:$0xf]
    %v2479 = vld [vmem:[%s9 + $0x2a4] sm:$0xf]
    %v2480 = vld [vmem:[%s9 + $0x2a8] sm:$0xf]
    %v2481 = vld [vmem:[%s9 + $0x2ac] sm:$0xf]
    %v2482 = vld [vmem:[%s9 + $0x2b0] sm:$0xf]
    %v2483 = vld [vmem:[%s9 + $0x2b4] sm:$0xf]
    %v2484 = vld [vmem:[%s9 + $0x2b8] sm:$0xf]
    %v2485 = vld [vmem:[%s9 + $0x2bc] sm:$0xf]
    %v2486 = vld [vmem:[%s9 + $0x2c0] sm:$0xf]
    %v2487 = vld [vmem:[%s9 + $0x2c4] sm:$0xf]
    %v2488 = vld [vmem:[%s9 + $0x2c8] sm:$0xf]
    %v2489 = vld [vmem:[%s9 + $0x2cc] sm:$0xf]
    %v2490 = vld [vmem:[%s9 + $0x2d0] sm:$0xf]
    %v2491 = vld [vmem:[%s9 + $0x2d4] sm:$0xf]
    %v2492 = vld [vmem:[%s9 + $0x2d8] sm:$0xf]
    %v2493 = vld [vmem:[%s9 + $0x2dc] sm:$0xf]
    %v2494 = vld [vmem:[%s9 + $0x2e0] sm:$0xf]
    %v2495 = vld [vmem:[%s9 + $0x2e4] sm:$0xf]
    %v2496 = vld [vmem:[%s9 + $0x2e8] sm:$0xf]
    %v2497 = vld [vmem:[%s9 + $0x2ec] sm:$0xf]
    %v2498 = vld [vmem:[%s9 + $0x2f0] sm:$0xf]
    %v2499 = vld [vmem:[%s9 + $0x2f4] sm:$0xf]
    %v2500 = vld [vmem:[%s9 + $0x2f8] sm:$0xf]
    %v2501 = vld [vmem:[%s9 + $0x2fc] sm:$0xf]
    %v2502 = vld [vmem:[%s9 + $0x300] sm:$0xf]
    %v2503 = vld [vmem:[%s9 + $0x304] sm:$0xf]
    %v2504 = vld [vmem:[%s9 + $0x308] sm:$0xf]
    %v2505 = vld [vmem:[%s9 + $0x30c] sm:$0xf]
    %v2506 = vld [vmem:[%s9 + $0x310] sm:$0xf]
    %v2507 = vld [vmem:[%s9 + $0x314] sm:$0xf]
    %v2508 = vld [vmem:[%s9 + $0x318] sm:$0xf]
    %v2509 = vld [vmem:[%s9 + $0x31c] sm:$0xf]
    %v2510 = vld [vmem:[%s9 + $0x320] sm:$0xf]
    %v2511 = vld [vmem:[%s9 + $0x324] sm:$0xf]
    %v2512 = vld [vmem:[%s9 + $0x328] sm:$0xf]
    %v2513 = vld [vmem:[%s9 + $0x32c] sm:$0xf]
    %v2514 = vld [vmem:[%s9 + $0x330] sm:$0xf]
    %v2515 = vld [vmem:[%s9 + $0x334] sm:$0xf]
    %v2516 = vld [vmem:[%s9 + $0x338] sm:$0xf]
    %v2517 = vld [vmem:[%s9 + $0x33c] sm:$0xf]
    %v2518 = vld [vmem:[%s9 + $0x340] sm:$0xf]
    %v2519 = vld [vmem:[%s9 + $0x344] sm:$0xf]
    %v2520 = vld [vmem:[%s9 + $0x348] sm:$0xf]
    %v2521 = vld [vmem:[%s9 + $0x34c] sm:$0xf]
    %v2522 = vld [vmem:[%s9 + $0x350] sm:$0xf]
    %v2523 = vld [vmem:[%s9 + $0x354] sm:$0xf]
    %v2524 = vld [vmem:[%s9 + $0x358] sm:$0xf]
    %v2525 = vld [vmem:[%s9 + $0x35c] sm:$0xf]
    %v2526 = vld [vmem:[%s9 + $0x360] sm:$0xf]
    %v2527 = vld [vmem:[%s9 + $0x364] sm:$0xf]
    %v2528 = vld [vmem:[%s9 + $0x368] sm:$0xf]
    %v2529 = vld [vmem:[%s9 + $0x36c] sm:$0xf]
    %v2530 = vld [vmem:[%s9 + $0x370] sm:$0xf]
    %v2531 = vld [vmem:[%s9 + $0x374] sm:$0xf]
    %v2532 = vld [vmem:[%s9 + $0x378] sm:$0xf]
    %v2533 = vld [vmem:[%s9 + $0x37c] sm:$0xf]
    %v2534 = vld [vmem:[%s9 + $0x380] sm:$0xf]
    %v2535 = vld [vmem:[%s9 + $0x384] sm:$0xf]
    %v2536 = vld [vmem:[%s9 + $0x388] sm:$0xf]
    %v2537 = vld [vmem:[%s9 + $0x38c] sm:$0xf]
    %v2538 = vld [vmem:[%s9 + $0x390] sm:$0xf]
    %v2539 = vld [vmem:[%s9 + $0x394] sm:$0xf]
    %v2540 = vld [vmem:[%s9 + $0x398] sm:$0xf]
    %v2541 = vld [vmem:[%s9 + $0x39c] sm:$0xf]
    %v2542 = vld [vmem:[%s9 + $0x3a0] sm:$0xf]
    %v2543 = vld [vmem:[%s9 + $0x3a4] sm:$0xf]
    %v2544 = vld [vmem:[%s9 + $0x3a8] sm:$0xf]
    %v2545 = vld [vmem:[%s9 + $0x3ac] sm:$0xf]
    %v2546 = vld [vmem:[%s9 + $0x3b0] sm:$0xf]
    %v2547 = vld [vmem:[%s9 + $0x3b4] sm:$0xf]
    %v2548 = vld [vmem:[%s9 + $0x3b8] sm:$0xf]
    %v2549 = vld [vmem:[%s9 + $0x3bc] sm:$0xf]
    %v2550 = vld [vmem:[%s9 + $0x3c0] sm:$0xf]
    %v2551 = vld [vmem:[%s9 + $0x3c4] sm:$0xf]
    %v2552 = vld [vmem:[%s9 + $0x3c8] sm:$0xf]
    %v2553 = vld [vmem:[%s9 + $0x3cc] sm:$0xf]
    %v2554 = vld [vmem:[%s9 + $0x3d0] sm:$0xf]
    %v2555 = vld [vmem:[%s9 + $0x3d4] sm:$0xf]
    %v2556 = vld [vmem:[%s9 + $0x3d8] sm:$0xf]
    %v2557 = vld [vmem:[%s9 + $0x3dc] sm:$0xf]
    %v2558 = vld [vmem:[%s9 + $0x3e0] sm:$0xf]
    %v2559 = vld [vmem:[%s9 + $0x3e4] sm:$0xf]
    %v2560 = vld [vmem:[%s9 + $0x3e8] sm:$0xf]
    %v2561 = vld [vmem:[%s9 + $0x3ec] sm:$0xf]
    %v2562 = vld [vmem:[%s9 + $0x3f0] sm:$0xf]
    %v2563 = vld [vmem:[%s9 + $0x3f4] sm:$0xf]
    %v2564 = vld [vmem:[%s9 + $0x3f8] sm:$0xf]
    %v2565 = vld [vmem:[%s9 + $0x3fc] sm:$0xf]
    %v2566 = vld [vmem:[%s9 + $0x400] sm:$0xf]
    %v2567 = vld [vmem:[%s9 + $0x404] sm:$0xf]
    %v2568 = vld [vmem:[%s9 + $0x408] sm:$0xf]
    %v2569 = vld [vmem:[%s9 + $0x40c] sm:$0xf]
    %v2570 = vld [vmem:[%s9 + $0x410] sm:$0xf]
    %v2571 = vld [vmem:[%s9 + $0x414] sm:$0xf]
    %v2572 = vld [vmem:[%s9 + $0x418] sm:$0xf]
    %v2573 = vld [vmem:[%s9 + $0x41c] sm:$0xf]
    %v2574 = vld [vmem:[%s9 + $0x420] sm:$0xf]
    %v2575 = vld [vmem:[%s9 + $0x424] sm:$0xf]
    %v2576 = vld [vmem:[%s9 + $0x428] sm:$0xf]
    %v2577 = vld [vmem:[%s9 + $0x42c] sm:$0xf]
    %v2578 = vld [vmem:[%s9 + $0x430] sm:$0xf]
    %v2579 = vld [vmem:[%s9 + $0x434] sm:$0xf]
    %v2580 = vld [vmem:[%s9 + $0x438] sm:$0xf]
    %v2581 = vld [vmem:[%s9 + $0x43c] sm:$0xf]
    %v2582 = vld [vmem:[%s9 + $0x440] sm:$0xf]
    %v2583 = vld [vmem:[%s9 + $0x444] sm:$0xf]
    %v2584 = vld [vmem:[%s9 + $0x448] sm:$0xf]
    %v2585 = vld [vmem:[%s9 + $0x44c] sm:$0xf]
    %v2586 = vld [vmem:[%s9 + $0x450] sm:$0xf]
    %v2587 = vld [vmem:[%s9 + $0x454] sm:$0xf]
    %v2588 = vld [vmem:[%s9 + $0x458] sm:$0xf]
    %v2589 = vld [vmem:[%s9 + $0x45c] sm:$0xf]
    %v2590 = vld [vmem:[%s9 + $0x460] sm:$0xf]
    %v2591 = vld [vmem:[%s9 + $0x464] sm:$0xf]
    %v2592 = vld [vmem:[%s9 + $0x468] sm:$0xf]
    %v2593 = vld [vmem:[%s9 + $0x46c] sm:$0xf]
    %v2594 = vld [vmem:[%s9 + $0x470] sm:$0xf]
    %v2595 = vld [vmem:[%s9 + $0x474] sm:$0xf]
    %v2596 = vld [vmem:[%s9 + $0x478] sm:$0xf]
    %v2597 = vld [vmem:[%s9 + $0x47c] sm:$0xf]
    %v2598 = vld [vmem:[%s9 + $0x480] sm:$0xf]
    %v2599 = vld [vmem:[%s9 + $0x484] sm:$0xf]
    %v2600 = vld [vmem:[%s9 + $0x488] sm:$0xf]
    %v2601 = vld [vmem:[%s9 + $0x48c] sm:$0xf]
    %v2602 = vld [vmem:[%s9 + $0x490] sm:$0xf]
    %v2603 = vld [vmem:[%s9 + $0x494] sm:$0xf]
    %v2604 = vld [vmem:[%s9 + $0x498] sm:$0xf]
    %v2605 = vld [vmem:[%s9 + $0x49c] sm:$0xf]
    %v2606 = vld [vmem:[%s9 + $0x4a0] sm:$0xf]
    %v2607 = vld [vmem:[%s9 + $0x4a4] sm:$0xf]
    %v2608 = vld [vmem:[%s9 + $0x4a8] sm:$0xf]
    %v2609 = vld [vmem:[%s9 + $0x4ac] sm:$0xf]
    %v2610 = vld [vmem:[%s9 + $0x4b0] sm:$0xf]
    %v2611 = vld [vmem:[%s9 + $0x4b4] sm:$0xf]
    %v2612 = vld [vmem:[%s9 + $0x4b8] sm:$0xf]
    %v2613 = vld [vmem:[%s9 + $0x4bc] sm:$0xf]
    %v2614 = vld [vmem:[%s9 + $0x4c0] sm:$0xf]
    %v2615 = vld [vmem:[%s9 + $0x4c4] sm:$0xf]
    %v2616 = vld [vmem:[%s9 + $0x4c8] sm:$0xf]
    %v2617 = vld [vmem:[%s9 + $0x4cc] sm:$0xf]
    %v2618 = vld [vmem:[%s9 + $0x4d0] sm:$0xf]
    %v2619 = vld [vmem:[%s9 + $0x4d4] sm:$0xf]
    %v2620 = vld [vmem:[%s9 + $0x4d8] sm:$0xf]
    %v2621 = vld [vmem:[%s9 + $0x4dc] sm:$0xf]
    %v2622 = vld [vmem:[%s9 + $0x4e0] sm:$0xf]
    %v2623 = vld [vmem:[%s9 + $0x4e4] sm:$0xf]
    %v2624 = vld [vmem:[%s9 + $0x4e8] sm:$0xf]
    %v2625 = vld [vmem:[%s9 + $0x4ec] sm:$0xf]
    %v2626 = vld [vmem:[%s9 + $0x4f0] sm:$0xf]
    %v2627 = vld [vmem:[%s9 + $0x4f4] sm:$0xf]
    %v2628 = vld [vmem:[%s9 + $0x4f8] sm:$0xf]
    %v2629 = vld [vmem:[%s9 + $0x4fc] sm:$0xf]
    %v2630 = vld [vmem:[%s9 + $0x500] sm:$0xf]
    %v2631 = vld [vmem:[%s9 + $0x504] sm:$0xf]
    %v2632 = vld [vmem:[%s9 + $0x508] sm:$0xf]
    %v2633 = vld [vmem:[%s9 + $0x50c] sm:$0xf]
    %v2634 = vld [vmem:[%s9 + $0x510] sm:$0xf]
    %v2635 = vld [vmem:[%s9 + $0x514] sm:$0xf]
    %v2636 = vld [vmem:[%s9 + $0x518] sm:$0xf]
    %v2637 = vld [vmem:[%s9 + $0x51c] sm:$0xf]
    %v2638 = vld [vmem:[%s9 + $0x520] sm:$0xf]
    %v2639 = vld [vmem:[%s9 + $0x524] sm:$0xf]
    %v2640 = vld [vmem:[%s9 + $0x528] sm:$0xf]
    %v2641 = vld [vmem:[%s9 + $0x52c] sm:$0xf]
    %v2642 = vld [vmem:[%s9 + $0x530] sm:$0xf]
    %v2643 = vld [vmem:[%s9 + $0x534] sm:$0xf]
    %v2644 = vld [vmem:[%s9 + $0x538] sm:$0xf]
    %v2645 = vld [vmem:[%s9 + $0x53c] sm:$0xf]
    %v2646 = vld [vmem:[%s9 + $0x540] sm:$0xf]
    %v2647 = vld [vmem:[%s9 + $0x544] sm:$0xf]
    %v2648 = vld [vmem:[%s9 + $0x548] sm:$0xf]
    %v2649 = vld [vmem:[%s9 + $0x54c] sm:$0xf]
    %v2650 = vld [vmem:[%s9 + $0x550] sm:$0xf]
    %v2651 = vld [vmem:[%s9 + $0x554] sm:$0xf]
    %v2652 = vld [vmem:[%s9 + $0x558] sm:$0xf]
    %v2653 = vld [vmem:[%s9 + $0x55c] sm:$0xf]
    %v2654 = vld [vmem:[%s9 + $0x560] sm:$0xf]
    %v2655 = vld [vmem:[%s9 + $0x564] sm:$0xf]
    %v2656 = vld [vmem:[%s9 + $0x568] sm:$0xf]
    %v2657 = vld [vmem:[%s9 + $0x56c] sm:$0xf]
    %v2658 = vld [vmem:[%s9 + $0x570] sm:$0xf]
    %v2659 = vld [vmem:[%s9 + $0x574] sm:$0xf]
    %v2660 = vld [vmem:[%s9 + $0x578] sm:$0xf]
    %v2661 = vld [vmem:[%s9 + $0x57c] sm:$0xf]
    %v2662 = vld [vmem:[%s9 + $0x580] sm:$0xf]
    %v2663 = vld [vmem:[%s9 + $0x584] sm:$0xf]
    %v2664 = vld [vmem:[%s9 + $0x588] sm:$0xf]
    %v2665 = vld [vmem:[%s9 + $0x58c] sm:$0xf]
    %v2666 = vld [vmem:[%s9 + $0x590] sm:$0xf]
    %v2667 = vld [vmem:[%s9 + $0x594] sm:$0xf]
    %v2668 = vld [vmem:[%s9 + $0x598] sm:$0xf]
    %v2669 = vld [vmem:[%s9 + $0x59c] sm:$0xf]
    %v2670 = vld [vmem:[%s9 + $0x5a0] sm:$0xf]
    %v2671 = vld [vmem:[%s9 + $0x5a4] sm:$0xf]
    %v2672 = vld [vmem:[%s9 + $0x5a8] sm:$0xf]
    %v2673 = vld [vmem:[%s9 + $0x5ac] sm:$0xf]
    %v2674 = vld [vmem:[%s9 + $0x5b0] sm:$0xf]
    %v2675 = vld [vmem:[%s9 + $0x5b4] sm:$0xf]
    %v2676 = vld [vmem:[%s9 + $0x5b8] sm:$0xf]
    %v2677 = vld [vmem:[%s9 + $0x5bc] sm:$0xf]
    %v2678 = vld [vmem:[%s9 + $0x5c0] sm:$0xf]
    %v2679 = vld [vmem:[%s9 + $0x5c4] sm:$0xf]
    %v2680 = vld [vmem:[%s9 + $0x5c8] sm:$0xf]
    %v2681 = vld [vmem:[%s9 + $0x5cc] sm:$0xf]
    %v2682 = vld [vmem:[%s9 + $0x5d0] sm:$0xf]
    %v2683 = vld [vmem:[%s9 + $0x5d4] sm:$0xf]
    %v2684 = vld [vmem:[%s9 + $0x5d8] sm:$0xf]
    %v2685 = vld [vmem:[%s9 + $0x5dc] sm:$0xf]
    %v2686 = vld [vmem:[%s9 + $0x5e0] sm:$0xf]
    %v2687 = vld [vmem:[%s9 + $0x5e4] sm:$0xf]
    %v2688 = vld [vmem:[%s9 + $0x5e8] sm:$0xf]
    %v2689 = vld [vmem:[%s9 + $0x5ec] sm:$0xf]
    %v2690 = vld [vmem:[%s9 + $0x5f0] sm:$0xf]
    %v2691 = vld [vmem:[%s9 + $0x5f4] sm:$0xf]
    %v2692 = vld [vmem:[%s9 + $0x5f8] sm:$0xf]
    %v2693 = vld [vmem:[%s9 + $0x5fc] sm:$0xf]
    %v2694 = vld [vmem:[%s9 + $0x600] sm:$0xf]
    %v2695 = vld [vmem:[%s9 + $0x604] sm:$0xf]
    %v2696 = vld [vmem:[%s9 + $0x608] sm:$0xf]
    %v2697 = vld [vmem:[%s9 + $0x60c] sm:$0xf]
    %v2698 = vld [vmem:[%s9 + $0x610] sm:$0xf]
    %v2699 = vld [vmem:[%s9 + $0x614] sm:$0xf]
    %v2700 = vld [vmem:[%s9 + $0x618] sm:$0xf]
    %v2701 = vld [vmem:[%s9 + $0x61c] sm:$0xf]
    %v2702 = vld [vmem:[%s9 + $0x620] sm:$0xf]
    %v2703 = vld [vmem:[%s9 + $0x624] sm:$0xf]
    %v2704 = vld [vmem:[%s9 + $0x628] sm:$0xf]
    %v2705 = vld [vmem:[%s9 + $0x62c] sm:$0xf]
    %v2706 = vld [vmem:[%s9 + $0x630] sm:$0xf]
    %v2707 = vld [vmem:[%s9 + $0x634] sm:$0xf]
    %v2708 = vld [vmem:[%s9 + $0x638] sm:$0xf]
    %v2709 = vld [vmem:[%s9 + $0x63c] sm:$0xf]
    %v2710 = vld [vmem:[%s9 + $0x640] sm:$0xf]
    %v2711 = vld [vmem:[%s9 + $0x644] sm:$0xf]
    %v2712 = vld [vmem:[%s9 + $0x648] sm:$0xf]
    %v2713 = vld [vmem:[%s9 + $0x64c] sm:$0xf]
    %v2714 = vld [vmem:[%s9 + $0x650] sm:$0xf]
    %v2715 = vld [vmem:[%s9 + $0x654] sm:$0xf]
    %v2716 = vld [vmem:[%s9 + $0x658] sm:$0xf]
    %v2717 = vld [vmem:[%s9 + $0x65c] sm:$0xf]
    %v2718 = vld [vmem:[%s9 + $0x660] sm:$0xf]
    %v2719 = vld [vmem:[%s9 + $0x664] sm:$0xf]
    %v2720 = vld [vmem:[%s9 + $0x668] sm:$0xf]
    %v2721 = vld [vmem:[%s9 + $0x66c] sm:$0xf]
    %v2722 = vld [vmem:[%s9 + $0x670] sm:$0xf]
    %v2723 = vld [vmem:[%s9 + $0x674] sm:$0xf]
    %v2724 = vld [vmem:[%s9 + $0x678] sm:$0xf]
    %v2725 = vld [vmem:[%s9 + $0x67c] sm:$0xf]
    %v2726 = vld [vmem:[%s9 + $0x680] sm:$0xf]
    %v2727 = vld [vmem:[%s9 + $0x684] sm:$0xf]
    %v2728 = vld [vmem:[%s9 + $0x688] sm:$0xf]
    %v2729 = vld [vmem:[%s9 + $0x68c] sm:$0xf]
    %v2730 = vld [vmem:[%s9 + $0x690] sm:$0xf]
    %v2731 = vld [vmem:[%s9 + $0x694] sm:$0xf]
    %v2732 = vld [vmem:[%s9 + $0x698] sm:$0xf]
    %v2733 = vld [vmem:[%s9 + $0x69c] sm:$0xf]
    %v2734 = vld [vmem:[%s9 + $0x6a0] sm:$0xf]
    %v2735 = vld [vmem:[%s9 + $0x6a4] sm:$0xf]
    %v2736 = vld [vmem:[%s9 + $0x6a8] sm:$0xf]
    %v2737 = vld [vmem:[%s9 + $0x6ac] sm:$0xf]
    %v2738 = vld [vmem:[%s9 + $0x6b0] sm:$0xf]
    %v2739 = vld [vmem:[%s9 + $0x6b4] sm:$0xf]
    %v2740 = vld [vmem:[%s9 + $0x6b8] sm:$0xf]
    %v2741 = vld [vmem:[%s9 + $0x6bc] sm:$0xf]
    %v2742 = vld [vmem:[%s9 + $0x6c0] sm:$0xf]
    %v2743 = vld [vmem:[%s9 + $0x6c4] sm:$0xf]
    %v2744 = vld [vmem:[%s9 + $0x6c8] sm:$0xf]
    %v2745 = vld [vmem:[%s9 + $0x6cc] sm:$0xf]
    %v2746 = vld [vmem:[%s9 + $0x6d0] sm:$0xf]
    %v2747 = vld [vmem:[%s9 + $0x6d4] sm:$0xf]
    %v2748 = vld [vmem:[%s9 + $0x6d8] sm:$0xf]
    %v2749 = vld [vmem:[%s9 + $0x6dc] sm:$0xf]
    %v2750 = vld [vmem:[%s9 + $0x6e0] sm:$0xf]
    %v2751 = vld [vmem:[%s9 + $0x6e4] sm:$0xf]
    %v2752 = vld [vmem:[%s9 + $0x6e8] sm:$0xf]
    %v2753 = vld [vmem:[%s9 + $0x6ec] sm:$0xf]
    %v2754 = vld [vmem:[%s9 + $0x6f0] sm:$0xf]
    %v2755 = vld [vmem:[%s9 + $0x6f4] sm:$0xf]
    %v2756 = vld [vmem:[%s9 + $0x6f8] sm:$0xf]
    %v2757 = vld [vmem:[%s9 + $0x6fc] sm:$0xf]
    %v2758 = vld [vmem:[%s9 + $0x700] sm:$0xf]
    %v2759 = vld [vmem:[%s9 + $0x704] sm:$0xf]
    %v2760 = vld [vmem:[%s9 + $0x708] sm:$0xf]
    %v2761 = vld [vmem:[%s9 + $0x70c] sm:$0xf]
    %v2762 = vld [vmem:[%s9 + $0x710] sm:$0xf]
    %v2763 = vld [vmem:[%s9 + $0x714] sm:$0xf]
    %v2764 = vld [vmem:[%s9 + $0x718] sm:$0xf]
    %v2765 = vld [vmem:[%s9 + $0x71c] sm:$0xf]
    %v2766 = vld [vmem:[%s9 + $0x720] sm:$0xf]
    %v2767 = vld [vmem:[%s9 + $0x724] sm:$0xf]
    %v2768 = vld [vmem:[%s9 + $0x728] sm:$0xf]
    %v2769 = vld [vmem:[%s9 + $0x72c] sm:$0xf]
    %v2770 = vld [vmem:[%s9 + $0x730] sm:$0xf]
    %v2771 = vld [vmem:[%s9 + $0x734] sm:$0xf]
    %v2772 = vld [vmem:[%s9 + $0x738] sm:$0xf]
    %v2773 = vld [vmem:[%s9 + $0x73c] sm:$0xf]
    %v2774 = vld [vmem:[%s9 + $0x740] sm:$0xf]
    %v2775 = vld [vmem:[%s9 + $0x744] sm:$0xf]
    %v2776 = vld [vmem:[%s9 + $0x748] sm:$0xf]
    %v2777 = vld [vmem:[%s9 + $0x74c] sm:$0xf]
    %v2778 = vld [vmem:[%s9 + $0x750] sm:$0xf]
    %v2779 = vld [vmem:[%s9 + $0x754] sm:$0xf]
    %v2780 = vld [vmem:[%s9 + $0x758] sm:$0xf]
    %v2781 = vld [vmem:[%s9 + $0x75c] sm:$0xf]
    %v2782 = vld [vmem:[%s9 + $0x760] sm:$0xf]
    %v2783 = vld [vmem:[%s9 + $0x764] sm:$0xf]
    %v2784 = vld [vmem:[%s9 + $0x768] sm:$0xf]
    %v2785 = vld [vmem:[%s9 + $0x76c] sm:$0xf]
    %v2786 = vld [vmem:[%s9 + $0x770] sm:$0xf]
    %v2787 = vld [vmem:[%s9 + $0x774] sm:$0xf]
    %v2788 = vld [vmem:[%s9 + $0x778] sm:$0xf]
    %v2789 = vld [vmem:[%s9 + $0x77c] sm:$0xf]
    %v2790 = vld [vmem:[%s9 + $0x780] sm:$0xf]
    %v2791 = vld [vmem:[%s9 + $0x784] sm:$0xf]
    %v2792 = vld [vmem:[%s9 + $0x788] sm:$0xf]
    %v2793 = vld [vmem:[%s9 + $0x78c] sm:$0xf]
    %v2794 = vld [vmem:[%s9 + $0x790] sm:$0xf]
    %v2795 = vld [vmem:[%s9 + $0x794] sm:$0xf]
    %v2796 = vld [vmem:[%s9 + $0x798] sm:$0xf]
    %v2797 = vld [vmem:[%s9 + $0x79c] sm:$0xf]
    %v2798 = vld [vmem:[%s9 + $0x7a0] sm:$0xf]
    %v2799 = vld [vmem:[%s9 + $0x7a4] sm:$0xf]
    %v2800 = vld [vmem:[%s9 + $0x7a8] sm:$0xf]
    %v2801 = vld [vmem:[%s9 + $0x7ac] sm:$0xf]
    %v2802 = vld [vmem:[%s9 + $0x7b0] sm:$0xf]
    %v2803 = vld [vmem:[%s9 + $0x7b4] sm:$0xf]
    %v2804 = vld [vmem:[%s9 + $0x7b8] sm:$0xf]
    %v2805 = vld [vmem:[%s9 + $0x7bc] sm:$0xf]
    %v2806 = vld [vmem:[%s9 + $0x7c0] sm:$0xf]
    %v2807 = vld [vmem:[%s9 + $0x7c4] sm:$0xf]
    %v2808 = vld [vmem:[%s9 + $0x7c8] sm:$0xf]
    %v2809 = vld [vmem:[%s9 + $0x7cc] sm:$0xf]
    %v2810 = vld [vmem:[%s9 + $0x7d0] sm:$0xf]
    %v2811 = vld [vmem:[%s9 + $0x7d4] sm:$0xf]
    %v2812 = vld [vmem:[%s9 + $0x7d8] sm:$0xf]
    %v2813 = vld [vmem:[%s9 + $0x7dc] sm:$0xf]
    %v2814 = vld [vmem:[%s9 + $0x7e0] sm:$0xf]
    %v2815 = vld [vmem:[%s9 + $0x7e4] sm:$0xf]
    %v2816 = vld [vmem:[%s9 + $0x7e8] sm:$0xf]
    %v2817 = vld [vmem:[%s9 + $0x7ec] sm:$0xf]
    %v2818 = vld [vmem:[%s9 + $0x7f0] sm:$0xf]
    %v2819 = vld [vmem:[%s9 + $0x7f4] sm:$0xf]
    %v2820 = vld [vmem:[%s9 + $0x7f8] sm:$0xf]
    %v2821 = vld [vmem:[%s9 + $0x7fc] sm:$0xf]
    %v2822 = vld [vmem:[%s10] sm:$0xf]
    %v2823 = vld [vmem:[%s10 + $0x4] sm:$0xf]
    %v2824 = vld [vmem:[%s10 + $0x8] sm:$0x7]
    %v2825 = vld [vmem:[#allocation16] sm:$0xf]
    %v2826 = vld [vmem:[#allocation16 + $0x4] sm:$0x7]
    %v2827 = vld [vmem:[#allocation17] sm:$0xff]
    %v2828 = vld [vmem:[#allocation17 + $0x8] sm:$0xff]
    %v2829 = vld [vmem:[#allocation17 + $0x10] sm:$0xff]
    %v2830 = vld [vmem:[#allocation17 + $0x18] sm:$0xff]
    %v2831 = vld [vmem:[#allocation17 + $0x20] sm:$0xff]
    %v2832 = vld [vmem:[#allocation17 + $0x28] sm:$0xff]
    %v2833 = vld [vmem:[#allocation17 + $0x30] sm:$0xff]
    %v2834 = vld [vmem:[#allocation17 + $0x38] sm:$0xff]
    %v2835 = vld [vmem:[#allocation19] sm:$0x1]
    %v2836 = vld [vmem:[#allocation20] sm:$0xff]
    %v2837 = vld [vmem:[#allocation20 + $0x8] sm:$0xff]
    %v2838 = vld [vmem:[#allocation20 + $0x10] sm:$0xff]
    %v2839 = vld [vmem:[#allocation20 + $0x18] sm:$0xff]
    %v2840 = vld [vmem:[#allocation20 + $0x20] sm:$0xff]
    %v2841 = vld [vmem:[#allocation20 + $0x28] sm:$0xff]
    %v2842 = vld [vmem:[#allocation20 + $0x30] sm:$0xff]
    %v2843 = vld [vmem:[#allocation20 + $0x38] sm:$0xff]
    %v2844 = vld [vmem:[#allocation20 + $0x40] sm:$0xff]
    %v2845 = vld [vmem:[#allocation20 + $0x48] sm:$0xff]
    %v2846 = vld [vmem:[#allocation20 + $0x50] sm:$0xff]
    %v2847 = vld [vmem:[#allocation20 + $0x58] sm:$0xff]
    %v2848 = vld [vmem:[#allocation20 + $0x60] sm:$0xff]
    %v2849 = vld [vmem:[#allocation20 + $0x68] sm:$0xff]
    %v2850 = vld [vmem:[#allocation20 + $0x70] sm:$0xff]
    %v2851 = vld [vmem:[#allocation20 + $0x78] sm:$0xff]
    %v2852 = vld [vmem:[#allocation22] sm:$0xff]
    %v2853 = vld [vmem:[#allocation22 + $0x8] sm:$0xff]
    %v2854 = vld [vmem:[#allocation22 + $0x10] sm:$0xff]
    %v2855 = vld [vmem:[#allocation22 + $0x18] sm:$0xff]
    %v2856 = vld [vmem:[#allocation22 + $0x20] sm:$0xff]
    %v2857 = vld [vmem:[#allocation22 + $0x28] sm:$0xff]
    %v2858 = vld [vmem:[#allocation22 + $0x30] sm:$0xff]
    %v2859 = vld [vmem:[#allocation22 + $0x38] sm:$0xff]
    %v2860 = vld [vmem:[#allocation22 + $0x40] sm:$0xff]
    %v2861 = vld [vmem:[#allocation22 + $0x48] sm:$0xff]
    %v2862 = vld [vmem:[#allocation22 + $0x50] sm:$0xff]
    %v2863 = vld [vmem:[#allocation22 + $0x58] sm:$0xff]
    %v2864 = vld [vmem:[#allocation22 + $0x60] sm:$0xff]
    %v2865 = vld [vmem:[#allocation22 + $0x68] sm:$0xff]
    %v2866 = vld [vmem:[#allocation22 + $0x70] sm:$0xff]
    %v2867 = vld [vmem:[#allocation22 + $0x78] sm:$0xff]
    %v2868 = vld [vmem:[#allocation23] sm:$0x3]
    %v2869 = vld [vmem:[#allocation25] sm:$0x3]
    %v2870 = vpack.c.bf16 %v352, %v351
    %v2874 = vunpack.c.l.b16 %v2822
    %v2875 = vunpack.c.l.b16 %v2823
    %v2876 = vunpack.c.l.b16 %v2824
    %v2877 = vpack.c.b16 %v2875, %v2874
    %v2878 = vpack.c.b16 %v2876, %v2876
    %vm2879 = vcmask 105472
    %v2881 = vsel %vm2879, %v2877, 0
    %v2884 = vsel %vm2879, %v2878, 0
    %vm2886 = vcmask 1045504
    %vm2887 = vcmask 1046528
    %v2888 = vsel %vm2886, 4294967295, 65535
    %v2889 = vsel %vm2887, %v2888, 0
    %v2891 = vand.u32 %v2870, %v2889
    %2893 = vmatprep.subr.bf16.mxu0 0
    %2894 = vmatpush1.bf16.msra.mxu0 %v2891
    %2895 = vmatprep.subr.bf16.mxu0 0
    %2896 = vmatpush1.bf16.msra.mxu0 0
    %2897 = vmatprep.subr.bf16.mxu0 0
    %2898 = vmatpush1.bf16.msra.mxu0 0
    %2899 = vmatprep.subr.bf16.mxu0 0
    %2900 = vmatpush1.bf16.msra.mxu0 0
    %2901 = vmatprep.subr.bf16.mxu0 0
    %2902 = vmatpush1.bf16.msra.mxu0 0
    %2903 = vmatprep.subr.bf16.mxu0 0
    %2904 = vmatpush1.bf16.msra.mxu0 0
    %2905 = vmatprep.subr.bf16.mxu0 0
    %2906 = vmatpush1.bf16.msra.mxu0 0
    %2907 = vmatprep.subr.bf16.mxu0 0
    %2908 = vmatpush1.bf16.msra.mxu0 0
    %2909 = vmatprep.subr.bf16.mxu0 0
    %2910 = vmatpush1.bf16.msra.mxu0 0
    %2911 = vmatprep.subr.bf16.mxu0 0
    %2912 = vmatpush1.bf16.msra.mxu0 0
    %2913 = vmatprep.subr.bf16.mxu0 0
    %2914 = vmatpush1.bf16.msra.mxu0 0
    %2915 = vmatprep.subr.bf16.mxu0 0
    %2916 = vmatpush1.bf16.msra.mxu0 0
    %2917 = vmatprep.subr.bf16.mxu0 0
    %2918 = vmatpush1.bf16.msra.mxu0 0
    %2919 = vmatprep.subr.bf16.mxu0 0
    %2920 = vmatpush1.bf16.msra.mxu0 0
    %2921 = vmatprep.subr.bf16.mxu0 0
    %2922 = vmatpush1.bf16.msra.mxu0 0
    %2923 = vmatprep.subr.bf16.mxu0 0
    %2924 = vmatpush1.bf16.msra.mxu0 0
    %2925 = vmatprep.mubr.bf16.mxu0 0
    %2926 = vmatmul.mubr.bf16.gmra.mrb[0].mxu0 %v2881
    %v2927 = vpop.f32.mrb[0].mxu0
    %v2928 = vadd.f32 0.0, %v2927
    %v2929 = vpop.f32.mrb[0].mxu0
    %v2930 = vpop.f32.mrb[0].mxu0
    %v2931 = vadd.f32 0.0, %v2930
    %v2932 = vpop.f32.mrb[0].mxu0
    %2933 = vmatprep.mubr.bf16.mxu0 0
    %2934 = vmatmul.mubr.bf16.gmra.mrb[0].mxu0 %v2884
    %v2935 = vpop.f32.mrb[0].mxu0
    %v2936 = vadd.f32 0.0, %v2935
    %v2937 = vpop.f32.mrb[0].mxu0
    %v2938 = vpop.f32.mrb[0].mxu0
    %v2939 = vpop.f32.mrb[0].mxu0
    %2940 = vdwg.mxu0
    %v2941 = vpack.c.bf16 %v2931, %v2928
    %v2942 = vpack.c.bf16 %v2936, %v2936
    %v3071 = vunpack.c.l.b16 %v2182
    %v3072 = vunpack.c.h.b16 %v2182
    %v3073 = vunpack.c.l.b16 %v2183
    %v3074 = vunpack.c.h.b16 %v2183
    %v3075 = vunpack.c.l.b16 %v2184
    %v3076 = vunpack.c.h.b16 %v2184
    %v3077 = vunpack.c.l.b16 %v2185
    %v3078 = vunpack.c.h.b16 %v2185
    %v3079 = vunpack.c.l.b16 %v2186
    %v3080 = vunpack.c.h.b16 %v2186
    %v3081 = vunpack.c.l.b16 %v2187
    %v3082 = vunpack.c.h.b16 %v2187
    %v3083 = vunpack.c.l.b16 %v2188
    %v3084 = vunpack.c.h.b16 %v2188
    %v3085 = vunpack.c.l.b16 %v2189
    %v3086 = vunpack.c.h.b16 %v2189
    %v3087 = vunpack.c.l.b16 %v2190
    %v3088 = vunpack.c.h.b16 %v2190
    %v3089 = vunpack.c.l.b16 %v2191
    %v3090 = vunpack.c.h.b16 %v2191
    %v3091 = vunpack.c.l.b16 %v2192
    %v3092 = vunpack.c.h.b16 %v2192
    %v3093 = vunpack.c.l.b16 %v2193
    %v3094 = vunpack.c.h.b16 %v2193
    %v3095 = vunpack.c.l.b16 %v2194
    %v3096 = vunpack.c.h.b16 %v2194
    %v3097 = vunpack.c.l.b16 %v2195
    %v3098 = vunpack.c.h.b16 %v2195
    %v3099 = vunpack.c.l.b16 %v2196
    %v3100 = vunpack.c.h.b16 %v2196
    %v3101 = vunpack.c.l.b16 %v2197
    %v3102 = vunpack.c.h.b16 %v2197
    %v3103 = vunpack.c.l.b16 %v2198
    %v3104 = vunpack.c.h.b16 %v2198
    %v3105 = vunpack.c.l.b16 %v2199
    %v3106 = vunpack.c.h.b16 %v2199
    %v3107 = vunpack.c.l.b16 %v2200
    %v3108 = vunpack.c.h.b16 %v2200
    %v3109 = vunpack.c.l.b16 %v2201
    %v3110 = vunpack.c.h.b16 %v2201
    %v3111 = vunpack.c.l.b16 %v2202
    %v3112 = vunpack.c.h.b16 %v2202
    %v3113 = vunpack.c.l.b16 %v2203
    %v3114 = vunpack.c.h.b16 %v2203
    %v3115 = vunpack.c.l.b16 %v2204
    %v3116 = vunpack.c.h.b16 %v2204
    %v3117 = vunpack.c.l.b16 %v2205
    %v3118 = vunpack.c.h.b16 %v2205
    %v3119 = vunpack.c.l.b16 %v2206
    %v3120 = vunpack.c.h.b16 %v2206
    %v3121 = vunpack.c.l.b16 %v2207
    %v3122 = vunpack.c.h.b16 %v2207
    %v3123 = vunpack.c.l.b16 %v2208
    %v3124 = vunpack.c.h.b16 %v2208
    %v3125 = vunpack.c.l.b16 %v2209
    %v3126 = vunpack.c.h.b16 %v2209
    %v3127 = vunpack.c.l.b16 %v2210
    %v3128 = vunpack.c.h.b16 %v2210
    %v3129 = vunpack.c.l.b16 %v2211
    %v3130 = vunpack.c.h.b16 %v2211
    %v3131 = vunpack.c.l.b16 %v2212
    %v3132 = vunpack.c.h.b16 %v2212
    %v3133 = vunpack.c.l.b16 %v2213
    %v3134 = vunpack.c.h.b16 %v2213
    %v3135 = vunpack.c.l.b16 %v2214
    %v3136 = vunpack.c.h.b16 %v2214
    %v3137 = vunpack.c.l.b16 %v2215
    %v3138 = vunpack.c.h.b16 %v2215
    %v3139 = vunpack.c.l.b16 %v2216
    %v3140 = vunpack.c.h.b16 %v2216
    %v3141 = vunpack.c.l.b16 %v2217
    %v3142 = vunpack.c.h.b16 %v2217
    %v3143 = vunpack.c.l.b16 %v2218
    %v3144 = vunpack.c.h.b16 %v2218
    %v3145 = vunpack.c.l.b16 %v2219
    %v3146 = vunpack.c.h.b16 %v2219
    %v3147 = vunpack.c.l.b16 %v2220
    %v3148 = vunpack.c.h.b16 %v2220
    %v3149 = vunpack.c.l.b16 %v2221
    %v3150 = vunpack.c.h.b16 %v2221
    %v3151 = vunpack.c.l.b16 %v2222
    %v3152 = vunpack.c.h.b16 %v2222
    %v3153 = vunpack.c.l.b16 %v2223
    %v3154 = vunpack.c.h.b16 %v2223
    %v3155 = vunpack.c.l.b16 %v2224
    %v3156 = vunpack.c.h.b16 %v2224
    %v3157 = vunpack.c.l.b16 %v2225
    %v3158 = vunpack.c.h.b16 %v2225
    %v3159 = vunpack.c.l.b16 %v2226
    %v3160 = vunpack.c.h.b16 %v2226
    %v3161 = vunpack.c.l.b16 %v2227
    %v3162 = vunpack.c.h.b16 %v2227
    %v3163 = vunpack.c.l.b16 %v2228
    %v3164 = vunpack.c.h.b16 %v2228
    %v3165 = vunpack.c.l.b16 %v2229
    %v3166 = vunpack.c.h.b16 %v2229
    %v3167 = vunpack.c.l.b16 %v2230
    %v3168 = vunpack.c.h.b16 %v2230
    %v3169 = vunpack.c.l.b16 %v2231
    %v3170 = vunpack.c.h.b16 %v2231
    %v3171 = vunpack.c.l.b16 %v2232
    %v3172 = vunpack.c.h.b16 %v2232
    %v3173 = vunpack.c.l.b16 %v2233
    %v3174 = vunpack.c.h.b16 %v2233
    %v3175 = vunpack.c.l.b16 %v2234
    %v3176 = vunpack.c.h.b16 %v2234
    %v3177 = vunpack.c.l.b16 %v2235
    %v3178 = vunpack.c.h.b16 %v2235
    %v3179 = vunpack.c.l.b16 %v2236
    %v3180 = vunpack.c.h.b16 %v2236
    %v3181 = vunpack.c.l.b16 %v2237
    %v3182 = vunpack.c.h.b16 %v2237
    %v3183 = vunpack.c.l.b16 %v2238
    %v3184 = vunpack.c.h.b16 %v2238
    %v3185 = vunpack.c.l.b16 %v2239
    %v3186 = vunpack.c.h.b16 %v2239
    %v3187 = vunpack.c.l.b16 %v2240
    %v3188 = vunpack.c.h.b16 %v2240
    %v3189 = vunpack.c.l.b16 %v2241
    %v3190 = vunpack.c.h.b16 %v2241
    %v3191 = vunpack.c.l.b16 %v2242
    %v3192 = vunpack.c.h.b16 %v2242
    %v3193 = vunpack.c.l.b16 %v2243
    %v3194 = vunpack.c.h.b16 %v2243
    %v3195 = vunpack.c.l.b16 %v2244
    %v3196 = vunpack.c.h.b16 %v2244
    %v3197 = vunpack.c.l.b16 %v2245
    %v3198 = vunpack.c.h.b16 %v2245
    %v3199 = vunpack.c.l.b16 %v2246
    %v3200 = vunpack.c.h.b16 %v2246
    %v3201 = vunpack.c.l.b16 %v2247
    %v3202 = vunpack.c.h.b16 %v2247
    %v3203 = vunpack.c.l.b16 %v2248
    %v3204 = vunpack.c.h.b16 %v2248
    %v3205 = vunpack.c.l.b16 %v2249
    %v3206 = vunpack.c.h.b16 %v2249
    %v3207 = vunpack.c.l.b16 %v2250
    %v3208 = vunpack.c.h.b16 %v2250
    %v3209 = vunpack.c.l.b16 %v2251
    %v3210 = vunpack.c.h.b16 %v2251
    %v3211 = vunpack.c.l.b16 %v2252
    %v3212 = vunpack.c.h.b16 %v2252
    %v3213 = vunpack.c.l.b16 %v2253
    %v3214 = vunpack.c.h.b16 %v2253
    %v3215 = vunpack.c.l.b16 %v2254
    %v3216 = vunpack.c.h.b16 %v2254
    %v3217 = vunpack.c.l.b16 %v2255
    %v3218 = vunpack.c.h.b16 %v2255
    %v3219 = vunpack.c.l.b16 %v2256
    %v3220 = vunpack.c.h.b16 %v2256
    %v3221 = vunpack.c.l.b16 %v2257
    %v3222 = vunpack.c.h.b16 %v2257
    %v3223 = vunpack.c.l.b16 %v2258
    %v3224 = vunpack.c.h.b16 %v2258
    %v3225 = vunpack.c.l.b16 %v2259
    %v3226 = vunpack.c.h.b16 %v2259
    %v3227 = vunpack.c.l.b16 %v2260
    %v3228 = vunpack.c.h.b16 %v2260
    %v3229 = vunpack.c.l.b16 %v2261
    %v3230 = vunpack.c.h.b16 %v2261
    %v3231 = vunpack.c.l.b16 %v2262
    %v3232 = vunpack.c.h.b16 %v2262
    %v3233 = vunpack.c.l.b16 %v2263
    %v3234 = vunpack.c.h.b16 %v2263
    %v3235 = vunpack.c.l.b16 %v2264
    %v3236 = vunpack.c.h.b16 %v2264
    %v3237 = vunpack.c.l.b16 %v2265
    %v3238 = vunpack.c.h.b16 %v2265
    %v3239 = vunpack.c.l.b16 %v2266
    %v3240 = vunpack.c.h.b16 %v2266
    %v3241 = vunpack.c.l.b16 %v2267
    %v3242 = vunpack.c.h.b16 %v2267
    %v3243 = vunpack.c.l.b16 %v2268
    %v3244 = vunpack.c.h.b16 %v2268
    %v3245 = vunpack.c.l.b16 %v2269
    %v3246 = vunpack.c.h.b16 %v2269
    %v3247 = vunpack.c.l.b16 %v2270
    %v3248 = vunpack.c.h.b16 %v2270
    %v3249 = vunpack.c.l.b16 %v2271
    %v3250 = vunpack.c.h.b16 %v2271
    %v3251 = vunpack.c.l.b16 %v2272
    %v3252 = vunpack.c.h.b16 %v2272
    %v3253 = vunpack.c.l.b16 %v2273
    %v3254 = vunpack.c.h.b16 %v2273
    %v3255 = vunpack.c.l.b16 %v2274
    %v3256 = vunpack.c.h.b16 %v2274
    %v3257 = vunpack.c.l.b16 %v2275
    %v3258 = vunpack.c.h.b16 %v2275
    %v3259 = vunpack.c.l.b16 %v2276
    %v3260 = vunpack.c.h.b16 %v2276
    %v3261 = vunpack.c.l.b16 %v2277
    %v3262 = vunpack.c.h.b16 %v2277
    %v3263 = vunpack.c.l.b16 %v2278
    %v3264 = vunpack.c.h.b16 %v2278
    %v3265 = vunpack.c.l.b16 %v2279
    %v3266 = vunpack.c.h.b16 %v2279
    %v3267 = vunpack.c.l.b16 %v2280
    %v3268 = vunpack.c.h.b16 %v2280
    %v3269 = vunpack.c.l.b16 %v2281
    %v3270 = vunpack.c.h.b16 %v2281
    %v3271 = vunpack.c.l.b16 %v2282
    %v3272 = vunpack.c.h.b16 %v2282
    %v3273 = vunpack.c.l.b16 %v2283
    %v3274 = vunpack.c.h.b16 %v2283
    %v3275 = vunpack.c.l.b16 %v2284
    %v3276 = vunpack.c.h.b16 %v2284
    %v3277 = vunpack.c.l.b16 %v2285
    %v3278 = vunpack.c.h.b16 %v2285
    %v3279 = vunpack.c.l.b16 %v2286
    %v3280 = vunpack.c.h.b16 %v2286
    %v3281 = vunpack.c.l.b16 %v2287
    %v3282 = vunpack.c.h.b16 %v2287
    %v3283 = vunpack.c.l.b16 %v2288
    %v3284 = vunpack.c.h.b16 %v2288
    %v3285 = vunpack.c.l.b16 %v2289
    %v3286 = vunpack.c.h.b16 %v2289
    %v3287 = vunpack.c.l.b16 %v2290
    %v3288 = vunpack.c.h.b16 %v2290
    %v3289 = vunpack.c.l.b16 %v2291
    %v3290 = vunpack.c.h.b16 %v2291
    %v3291 = vunpack.c.l.b16 %v2292
    %v3292 = vunpack.c.h.b16 %v2292
    %v3293 = vunpack.c.l.b16 %v2293
    %v3294 = vunpack.c.h.b16 %v2293
    %v3295 = vunpack.c.l.b16 %v2294
    %v3296 = vunpack.c.h.b16 %v2294
    %v3297 = vunpack.c.l.b16 %v2295
    %v3298 = vunpack.c.h.b16 %v2295
    %v3299 = vunpack.c.l.b16 %v2296
    %v3300 = vunpack.c.h.b16 %v2296
    %v3301 = vunpack.c.l.b16 %v2297
    %v3302 = vunpack.c.h.b16 %v2297
    %v3303 = vunpack.c.l.b16 %v2298
    %v3304 = vunpack.c.h.b16 %v2298
    %v3305 = vunpack.c.l.b16 %v2299
    %v3306 = vunpack.c.h.b16 %v2299
    %v3307 = vunpack.c.l.b16 %v2300
    %v3308 = vunpack.c.h.b16 %v2300
    %v3309 = vunpack.c.l.b16 %v2301
    %v3310 = vunpack.c.h.b16 %v2301
    %v3311 = vunpack.c.l.b16 %v2302
    %v3312 = vunpack.c.h.b16 %v2302
    %v3313 = vunpack.c.l.b16 %v2303
    %v3314 = vunpack.c.h.b16 %v2303
    %v3315 = vunpack.c.l.b16 %v2304
    %v3316 = vunpack.c.h.b16 %v2304
    %v3317 = vunpack.c.l.b16 %v2305
    %v3318 = vunpack.c.h.b16 %v2305
    %v3319 = vunpack.c.l.b16 %v2306
    %v3320 = vunpack.c.h.b16 %v2306
    %v3321 = vunpack.c.l.b16 %v2307
    %v3322 = vunpack.c.h.b16 %v2307
    %v3323 = vunpack.c.l.b16 %v2308
    %v3324 = vunpack.c.h.b16 %v2308
    %v3325 = vunpack.c.l.b16 %v2309
    %v3326 = vunpack.c.h.b16 %v2309
    %v3327 = vpack.c.b16 %v3103, %v3071
    %v3328 = vpack.c.b16 %v3104, %v3072
    %v3329 = vpack.c.b16 %v3105, %v3073
    %v3330 = vpack.c.b16 %v3106, %v3074
    %v3331 = vpack.c.b16 %v3107, %v3075
    %v3332 = vpack.c.b16 %v3108, %v3076
    %v3333 = vpack.c.b16 %v3109, %v3077
    %v3334 = vpack.c.b16 %v3110, %v3078
    %v3335 = vpack.c.b16 %v3111, %v3079
    %v3336 = vpack.c.b16 %v3112, %v3080
    %v3337 = vpack.c.b16 %v3113, %v3081
    %v3338 = vpack.c.b16 %v3114, %v3082
    %v3339 = vpack.c.b16 %v3115, %v3083
    %v3340 = vpack.c.b16 %v3116, %v3084
    %v3341 = vpack.c.b16 %v3117, %v3085
    %v3342 = vpack.c.b16 %v3118, %v3086
    %v3343 = vpack.c.b16 %v3119, %v3087
    %v3344 = vpack.c.b16 %v3120, %v3088
    %v3345 = vpack.c.b16 %v3121, %v3089
    %v3346 = vpack.c.b16 %v3122, %v3090
    %v3347 = vpack.c.b16 %v3123, %v3091
    %v3348 = vpack.c.b16 %v3124, %v3092
    %v3349 = vpack.c.b16 %v3125, %v3093
    %v3350 = vpack.c.b16 %v3126, %v3094
    %v3351 = vpack.c.b16 %v3127, %v3095
    %v3352 = vpack.c.b16 %v3128, %v3096
    %v3353 = vpack.c.b16 %v3129, %v3097
    %v3354 = vpack.c.b16 %v3130, %v3098
    %v3355 = vpack.c.b16 %v3131, %v3099
    %v3356 = vpack.c.b16 %v3132, %v3100
    %v3357 = vpack.c.b16 %v3133, %v3101
    %v3358 = vpack.c.b16 %v3134, %v3102
    %v3359 = vpack.c.b16 %v3167, %v3135
    %v3360 = vpack.c.b16 %v3168, %v3136
    %v3361 = vpack.c.b16 %v3169, %v3137
    %v3362 = vpack.c.b16 %v3170, %v3138
    %v3363 = vpack.c.b16 %v3171, %v3139
    %v3364 = vpack.c.b16 %v3172, %v3140
    %v3365 = vpack.c.b16 %v3173, %v3141
    %v3366 = vpack.c.b16 %v3174, %v3142
    %v3367 = vpack.c.b16 %v3175, %v3143
    %v3368 = vpack.c.b16 %v3176, %v3144
    %v3369 = vpack.c.b16 %v3177, %v3145
    %v3370 = vpack.c.b16 %v3178, %v3146
    %v3371 = vpack.c.b16 %v3179, %v3147
    %v3372 = vpack.c.b16 %v3180, %v3148
    %v3373 = vpack.c.b16 %v3181, %v3149
    %v3374 = vpack.c.b16 %v3182, %v3150
    %v3375 = vpack.c.b16 %v3183, %v3151
    %v3376 = vpack.c.b16 %v3184, %v3152
    %v3377 = vpack.c.b16 %v3185, %v3153
    %v3378 = vpack.c.b16 %v3186, %v3154
    %v3379 = vpack.c.b16 %v3187, %v3155
    %v3380 = vpack.c.b16 %v3188, %v3156
    %v3381 = vpack.c.b16 %v3189, %v3157
    %v3382 = vpack.c.b16 %v3190, %v3158
    %v3383 = vpack.c.b16 %v3191, %v3159
    %v3384 = vpack.c.b16 %v3192, %v3160
    %v3385 = vpack.c.b16 %v3193, %v3161
    %v3386 = vpack.c.b16 %v3194, %v3162
    %v3387 = vpack.c.b16 %v3195, %v3163
    %v3388 = vpack.c.b16 %v3196, %v3164
    %v3389 = vpack.c.b16 %v3197, %v3165
    %v3390 = vpack.c.b16 %v3198, %v3166
    %v3391 = vpack.c.b16 %v3231, %v3199
    %v3392 = vpack.c.b16 %v3232, %v3200
    %v3393 = vpack.c.b16 %v3233, %v3201
    %v3394 = vpack.c.b16 %v3234, %v3202
    %v3395 = vpack.c.b16 %v3235, %v3203
    %v3396 = vpack.c.b16 %v3236, %v3204
    %v3397 = vpack.c.b16 %v3237, %v3205
    %v3398 = vpack.c.b16 %v3238, %v3206
    %v3399 = vpack.c.b16 %v3239, %v3207
    %v3400 = vpack.c.b16 %v3240, %v3208
    %v3401 = vpack.c.b16 %v3241, %v3209
    %v3402 = vpack.c.b16 %v3242, %v3210
    %v3403 = vpack.c.b16 %v3243, %v3211
    %v3404 = vpack.c.b16 %v3244, %v3212
    %v3405 = vpack.c.b16 %v3245, %v3213
    %v3406 = vpack.c.b16 %v3246, %v3214
    %v3407 = vpack.c.b16 %v3247, %v3215
    %v3408 = vpack.c.b16 %v3248, %v3216
    %v3409 = vpack.c.b16 %v3249, %v3217
    %v3410 = vpack.c.b16 %v3250, %v3218
    %v3411 = vpack.c.b16 %v3251, %v3219
    %v3412 = vpack.c.b16 %v3252, %v3220
    %v3413 = vpack.c.b16 %v3253, %v3221
    %v3414 = vpack.c.b16 %v3254, %v3222
    %v3415 = vpack.c.b16 %v3255, %v3223
    %v3416 = vpack.c.b16 %v3256, %v3224
    %v3417 = vpack.c.b16 %v3257, %v3225
    %v3418 = vpack.c.b16 %v3258, %v3226
    %v3419 = vpack.c.b16 %v3259, %v3227
    %v3420 = vpack.c.b16 %v3260, %v3228
    %v3421 = vpack.c.b16 %v3261, %v3229
    %v3422 = vpack.c.b16 %v3262, %v3230
    %v3423 = vpack.c.b16 %v3295, %v3263
    %v3424 = vpack.c.b16 %v3296, %v3264
    %v3425 = vpack.c.b16 %v3297, %v3265
    %v3426 = vpack.c.b16 %v3298, %v3266
    %v3427 = vpack.c.b16 %v3299, %v3267
    %v3428 = vpack.c.b16 %v3300, %v3268
    %v3429 = vpack.c.b16 %v3301, %v3269
    %v3430 = vpack.c.b16 %v3302, %v3270
    %v3431 = vpack.c.b16 %v3303, %v3271
    %v3432 = vpack.c.b16 %v3304, %v3272
    %v3433 = vpack.c.b16 %v3305, %v3273
    %v3434 = vpack.c.b16 %v3306, %v3274
    %v3435 = vpack.c.b16 %v3307, %v3275
    %v3436 = vpack.c.b16 %v3308, %v3276
    %v3437 = vpack.c.b16 %v3309, %v3277
    %v3438 = vpack.c.b16 %v3310, %v3278
    %v3439 = vpack.c.b16 %v3311, %v3279
    %v3440 = vpack.c.b16 %v3312, %v3280
    %v3441 = vpack.c.b16 %v3313, %v3281
    %v3442 = vpack.c.b16 %v3314, %v3282
    %v3443 = vpack.c.b16 %v3315, %v3283
    %v3444 = vpack.c.b16 %v3316, %v3284
    %v3445 = vpack.c.b16 %v3317, %v3285
    %v3446 = vpack.c.b16 %v3318, %v3286
    %v3447 = vpack.c.b16 %v3319, %v3287
    %v3448 = vpack.c.b16 %v3320, %v3288
    %v3449 = vpack.c.b16 %v3321, %v3289
    %v3450 = vpack.c.b16 %v3322, %v3290
    %v3451 = vpack.c.b16 %v3323, %v3291
    %v3452 = vpack.c.b16 %v3324, %v3292
    %v3453 = vpack.c.b16 %v3325, %v3293
    %v3454 = vpack.c.b16 %v3326, %v3294
    %vm3583 = vcmask 523264
    %v3585 = vsel %vm3583, %v2941, 0
    %v3588 = vsel %vm3583, %v2942, 0
    %3590 = vmatprep.subr.bf16.mxu0 %v3328
    %3591 = vmatpush1.bf16.msra.mxu0 %v3327
    %3592 = vmatprep.subr.bf16.mxu0 %v3360
    %3593 = vmatpush1.bf16.msra.mxu0 %v3359
    %3594 = vmatprep.subr.bf16.mxu0 %v3392
    %3595 = vmatpush1.bf16.msra.mxu0 %v3391
    %3596 = vmatprep.subr.bf16.mxu0 %v3424
    %3597 = vmatpush1.bf16.msra.mxu0 %v3423
    %3598 = vmatprep.subr.bf16.mxu0 0
    %3599 = vmatpush1.bf16.msra.mxu0 0
    %3600 = vmatprep.subr.bf16.mxu0 0
    %3601 = vmatpush1.bf16.msra.mxu0 0
    %3602 = vmatprep.subr.bf16.mxu0 0
    %3603 = vmatpush1.bf16.msra.mxu0 0
    %3604 = vmatprep.subr.bf16.mxu0 0
    %3605 = vmatpush1.bf16.msra.mxu0 0
    %3606 = vmatprep.subr.bf16.mxu0 0
    %3607 = vmatpush1.bf16.msra.mxu0 0
    %3608 = vmatprep.subr.bf16.mxu0 0
    %3609 = vmatpush1.bf16.msra.mxu0 0
    %3610 = vmatprep.subr.bf16.mxu0 0
    %3611 = vmatpush1.bf16.msra.mxu0 0
    %3612 = vmatprep.subr.bf16.mxu0 0
    %3613 = vmatpush1.bf16.msra.mxu0 0
    %3614 = vmatprep.subr.bf16.mxu0 0
    %3615 = vmatpush1.bf16.msra.mxu0 0
    %3616 = vmatprep.subr.bf16.mxu0 0
    %3617 = vmatpush1.bf16.msra.mxu0 0
    %3618 = vmatprep.subr.bf16.mxu0 0
    %3619 = vmatpush1.bf16.msra.mxu0 0
    %3620 = vmatprep.subr.bf16.mxu0 0
    %3621 = vmatpush1.bf16.msra.mxu0 0
    %3622 = vmatprep.mubr.bf16.mxu0 0
    %3623 = vmatmul.mubr.bf16.gmra.mrb[0].mxu0 %v3585
    %v3624 = vpop.f32.mrb[0].mxu0
    %v3625 = vadd.f32 0.0, %v3624
    %v3626 = vpop.f32.mrb[0].mxu0
    %v3627 = vadd.f32 0.0, %v3626
    %v3628 = vpop.f32.mrb[0].mxu0
    %v3629 = vadd.f32 0.0, %v3628
    %v3630 = vpop.f32.mrb[0].mxu0
    %v3631 = vadd.f32 0.0, %v3630
    %3632 = vmatprep.mubr.bf16.mxu0 0
    %3633 = vmatmul.mubr.bf16.gmra.mrb[0].mxu0 %v3588
    %v3634 = vpop.f32.mrb[0].mxu0
    %v3635 = vadd.f32 0.0, %v3634
    %v3636 = vpop.f32.mrb[0].mxu0
    %v3637 = vadd.f32 0.0, %v3636
    %v3638 = vpop.f32.mrb[0].mxu0
    %v3639 = vpop.f32.mrb[0].mxu0
    %3640 = vdwg.mxu0
    %3641 = vmatprep.subr.bf16.mxu0 %v3330
    %3642 = vmatpush1.bf16.msra.mxu0 %v3329
    %3643 = vmatprep.subr.bf16.mxu0 %v3362
    %3644 = vmatpush1.bf16.msra.mxu0 %v3361
    %3645 = vmatprep.subr.bf16.mxu0 %v3394
    %3646 = vmatpush1.bf16.msra.mxu0 %v3393
    %3647 = vmatprep.subr.bf16.mxu0 %v3426
    %3648 = vmatpush1.bf16.msra.mxu0 %v3425
    %3649 = vmatprep.subr.bf16.mxu0 0
    %3650 = vmatpush1.bf16.msra.mxu0 0
    %3651 = vmatprep.subr.bf16.mxu0 0
    %3652 = vmatpush1.bf16.msra.mxu0 0
    %3653 = vmatprep.subr.bf16.mxu0 0
    %3654 = vmatpush1.bf16.msra.mxu0 0
    %3655 = vmatprep.subr.bf16.mxu0 0
    %3656 = vmatpush1.bf16.msra.mxu0 0
    %3657 = vmatprep.subr.bf16.mxu0 0
    %3658 = vmatpush1.bf16.msra.mxu0 0
    %3659 = vmatprep.subr.bf16.mxu0 0
    %3660 = vmatpush1.bf16.msra.mxu0 0
    %3661 = vmatprep.subr.bf16.mxu0 0
    %3662 = vmatpush1.bf16.msra.mxu0 0
    %3663 = vmatprep.subr.bf16.mxu0 0
    %3664 = vmatpush1.bf16.msra.mxu0 0
    %3665 = vmatprep.subr.bf16.mxu0 0
    %3666 = vmatpush1.bf16.msra.mxu0 0
    %3667 = vmatprep.subr.bf16.mxu0 0
    %3668 = vmatpush1.bf16.msra.mxu0 0
    %3669 = vmatprep.subr.bf16.mxu0 0
    %3670 = vmatpush1.bf16.msra.mxu0 0
    %3671 = vmatprep.subr.bf16.mxu0 0
    %3672 = vmatpush1.bf16.msra.mxu0 0
    %3673 = vmatprep.mubr.bf16.mxu0 0
    %3674 = vmatmul.mubr.bf16.gmra.mrb[0].mxu0 %v3585
    %v3675 = vpop.f32.mrb[0].mxu0
    %v3676 = vadd.f32 0.0, %v3675
    %v3677 = vpop.f32.mrb[0].mxu0
    %v3678 = vadd.f32 0.0, %v3677
    %v3679 = vpop.f32.mrb[0].mxu0
    %v3680 = vadd.f32 0.0, %v3679
    %v3681 = vpop.f32.mrb[0].mxu0
    %v3682 = vadd.f32 0.0, %v3681
    %3683 = vmatprep.mubr.bf16.mxu0 0
    %3684 = vmatmul.mubr.bf16.gmra.mrb[0].mxu0 %v3588
    %v3685 = vpop.f32.mrb[0].mxu0
    %v3686 = vadd.f32 0.0, %v3685
    %v3687 = vpop.f32.mrb[0].mxu0
    %v3688 = vadd.f32 0.0, %v3687
    %v3689 = vpop.f32.mrb[0].mxu0
    %v3690 = vpop.f32.mrb[0].mxu0
    %3691 = vdwg.mxu0
    %3692 = vmatprep.subr.bf16.mxu0 %v3332
    %3693 = vmatpush1.bf16.msra.mxu0 %v3331
    %3694 = vmatprep.subr.bf16.mxu0 %v3364
    %3695 = vmatpush1.bf16.msra.mxu0 %v3363
    %3696 = vmatprep.subr.bf16.mxu0 %v3396
    %3697 = vmatpush1.bf16.msra.mxu0 %v3395
    %3698 = vmatprep.subr.bf16.mxu0 %v3428
    %3699 = vmatpush1.bf16.msra.mxu0 %v3427
    %3700 = vmatprep.subr.bf16.mxu0 0
    %3701 = vmatpush1.bf16.msra.mxu0 0
    %3702 = vmatprep.subr.bf16.mxu0 0
    %3703 = vmatpush1.bf16.msra.mxu0 0
    %3704 = vmatprep.subr.bf16.mxu0 0
    %3705 = vmatpush1.bf16.msra.mxu0 0
    %3706 = vmatprep.subr.bf16.mxu0 0
    %3707 = vmatpush1.bf16.msra.mxu0 0
    %3708 = vmatprep.subr.bf16.mxu0 0
    %3709 = vmatpush1.bf16.msra.mxu0 0
    %3710 = vmatprep.subr.bf16.mxu0 0
    %3711 = vmatpush1.bf16.msra.mxu0 0
    %3712 = vmatprep.subr.bf16.mxu0 0
    %3713 = vmatpush1.bf16.msra.mxu0 0
    %3714 = vmatprep.subr.bf16.mxu0 0
    %3715 = vmatpush1.bf16.msra.mxu0 0
    %3716 = vmatprep.subr.bf16.mxu0 0
    %3717 = vmatpush1.bf16.msra.mxu0 0
    %3718 = vmatprep.subr.bf16.mxu0 0
    %3719 = vmatpush1.bf16.msra.mxu0 0
    %3720 = vmatprep.subr.bf16.mxu0 0
    %3721 = vmatpush1.bf16.msra.mxu0 0
    %3722 = vmatprep.subr.bf16.mxu0 0
    %3723 = vmatpush1.bf16.msra.mxu0 0
    %3724 = vmatprep.mubr.bf16.mxu0 0
    %3725 = vmatmul.mubr.bf16.gmra.mrb[0].mxu0 %v3585
    %v3726 = vpop.f32.mrb[0].mxu0
    %v3727 = vadd.f32 0.0, %v3726
    %v3728 = vpop.f32.mrb[0].mxu0
    %v3729 = vadd.f32 0.0, %v3728
    %v3730 = vpop.f32.mrb[0].mxu0
    %v3731 = vadd.f32 0.0, %v3730
    %v3732 = vpop.f32.mrb[0].mxu0
    %v3733 = vadd.f32 0.0, %v3732
    %3734 = vmatprep.mubr.bf16.mxu0 0
    %3735 = vmatmul.mubr.bf16.gmra.mrb[0].mxu0 %v3588
    %v3736 = vpop.f32.mrb[0].mxu0
    %v3737 = vadd.f32 0.0, %v3736
    %v3738 = vpop.f32.mrb[0].mxu0
    %v3739 = vadd.f32 0.0, %v3738
    %v3740 = vpop.f32.mrb[0].mxu0
    %v3741 = vpop.f32.mrb[0].mxu0
    %3742 = vdwg.mxu0
    %3743 = vmatprep.subr.bf16.mxu0 %v3334
    %3744 = vmatpush1.bf16.msra.mxu0 %v3333
    %3745 = vmatprep.subr.bf16.mxu0 %v3366
    %3746 = vmatpush1.bf16.msra.mxu0 %v3365
    %3747 = vmatprep.subr.bf16.mxu0 %v3398
    %3748 = vmatpush1.bf16.msra.mxu0 %v3397
    %3749 = vmatprep.subr.bf16.mxu0 %v3430
    %3750 = vmatpush1.bf16.msra.mxu0 %v3429
    %3751 = vmatprep.subr.bf16.mxu0 0
    %3752 = vmatpush1.bf16.msra.mxu0 0
    %3753 = vmatprep.subr.bf16.mxu0 0
    %3754 = vmatpush1.bf16.msra.mxu0 0
    %3755 = vmatprep.subr.bf16.mxu0 0
    %3756 = vmatpush1.bf16.msra.mxu0 0
    %3757 = vmatprep.subr.bf16.mxu0 0
    %3758 = vmatpush1.bf16.msra.mxu0 0
    %3759 = vmatprep.subr.bf16.mxu0 0
    %3760 = vmatpush1.bf16.msra.mxu0 0
    %3761 = vmatprep.subr.bf16.mxu0 0
    %3762 = vmatpush1.bf16.msra.mxu0 0
    %3763 = vmatprep.subr.bf16.mxu0 0
    %3764 = vmatpush1.bf16.msra.mxu0 0
    %3765 = vmatprep.subr.bf16.mxu0 0
    %3766 = vmatpush1.bf16.msra.mxu0 0
    %3767 = vmatprep.subr.bf16.mxu0 0
    %3768 = vmatpush1.bf16.msra.mxu0 0
    %3769 = vmatprep.subr.bf16.mxu0 0
    %3770 = vmatpush1.bf16.msra.mxu0 0
    %3771 = vmatprep.subr.bf16.mxu0 0
    %3772 = vmatpush1.bf16.msra.mxu0 0
    %3773 = vmatprep.subr.bf16.mxu0 0
    %3774 = vmatpush1.bf16.msra.mxu0 0
    %3775 = vmatprep.mubr.bf16.mxu0 0
    %3776 = vmatmul.mubr.bf16.gmra.mrb[0].mxu0 %v3585
    %v3777 = vpop.f32.mrb[0].mxu0
    %v3778 = vadd.f32 0.0, %v3777
    %v3779 = vpop.f32.mrb[0].mxu0
    %v3780 = vadd.f32 0.0, %v3779
    %v3781 = vpop.f32.mrb[0].mxu0
    %v3782 = vadd.f32 0.0, %v3781
    %v3783 = vpop.f32.mrb[0].mxu0
    %v3784 = vadd.f32 0.0, %v3783
    %3785 = vmatprep.mubr.bf16.mxu0 0
    %3786 = vmatmul.mubr.bf16.gmra.mrb[0].mxu0 %v3588
    %v3787 = vpop.f32.mrb[0].mxu0
    %v3788 = vadd.f32 0.0, %v3787
    %v3789 = vpop.f32.mrb[0].mxu0
    %v3790 = vadd.f32 0.0, %v3789
    %v3791 = vpop.f32.mrb[0].mxu0
    %v3792 = vpop.f32.mrb[0].mxu0
    %3793 = vdwg.mxu0
    %3794 = vmatprep.subr.bf16.mxu0 %v3336
    %3795 = vmatpush1.bf16.msra.mxu0 %v3335
    %3796 = vmatprep.subr.bf16.mxu0 %v3368
    %3797 = vmatpush1.bf16.msra.mxu0 %v3367
    %3798 = vmatprep.subr.bf16.mxu0 %v3400
    %3799 = vmatpush1.bf16.msra.mxu0 %v3399
    %3800 = vmatprep.subr.bf16.mxu0 %v3432
    %3801 = vmatpush1.bf16.msra.mxu0 %v3431
    %3802 = vmatprep.subr.bf16.mxu0 0
    %3803 = vmatpush1.bf16.msra.mxu0 0
    %3804 = vmatprep.subr.bf16.mxu0 0
    %3805 = vmatpush1.bf16.msra.mxu0 0
    %3806 = vmatprep.subr.bf16.mxu0 0
    %3807 = vmatpush1.bf16.msra.mxu0 0
    %3808 = vmatprep.subr.bf16.mxu0 0
    %3809 = vmatpush1.bf16.msra.mxu0 0
    %3810 = vmatprep.subr.bf16.mxu0 0
    %3811 = vmatpush1.bf16.msra.mxu0 0
    %3812 = vmatprep.subr.bf16.mxu0 0
    %3813 = vmatpush1.bf16.msra.mxu0 0
    %3814 = vmatprep.subr.bf16.mxu0 0
    %3815 = vmatpush1.bf16.msra.mxu0 0
    %3816 = vmatprep.subr.bf16.mxu0 0
    %3817 = vmatpush1.bf16.msra.mxu0 0
    %3818 = vmatprep.subr.bf16.mxu0 0
    %3819 = vmatpush1.bf16.msra.mxu0 0
    %3820 = vmatprep.subr.bf16.mxu0 0
    %3821 = vmatpush1.bf16.msra.mxu0 0
    %3822 = vmatprep.subr.bf16.mxu0 0
    %3823 = vmatpush1.bf16.msra.mxu0 0
    %3824 = vmatprep.subr.bf16.mxu0 0
    %3825 = vmatpush1.bf16.msra.mxu0 0
    %3826 = vmatprep.mubr.bf16.mxu0 0
    %3827 = vmatmul.mubr.bf16.gmra.mrb[0].mxu0 %v3585
    %v3828 = vpop.f32.mrb[0].mxu0
    %v3829 = vadd.f32 0.0, %v3828
    %v3830 = vpop.f32.mrb[0].mxu0
    %v3831 = vadd.f32 0.0, %v3830
    %v3832 = vpop.f32.mrb[0].mxu0
    %v3833 = vadd.f32 0.0, %v3832
    %v3834 = vpop.f32.mrb[0].mxu0
    %v3835 = vadd.f32 0.0, %v3834
    %3836 = vmatprep.mubr.bf16.mxu0 0
    %3837 = vmatmul.mubr.bf16.gmra.mrb[0].mxu0 %v3588
    %v3838 = vpop.f32.mrb[0].mxu0
    %v3839 = vadd.f32 0.0, %v3838
    %v3840 = vpop.f32.mrb[0].mxu0
    %v3841 = vadd.f32 0.0, %v3840
    %v3842 = vpop.f32.mrb[0].mxu0
    %v3843 = vpop.f32.mrb[0].mxu0
    %3844 = vdwg.mxu0
    %3845 = vmatprep.subr.bf16.mxu0 %v3338
    %3846 = vmatpush1.bf16.msra.mxu0 %v3337
    %3847 = vmatprep.subr.bf16.mxu0 %v3370
    %3848 = vmatpush1.bf16.msra.mxu0 %v3369
    %3849 = vmatprep.subr.bf16.mxu0 %v3402
    %3850 = vmatpush1.bf16.msra.mxu0 %v3401
    %3851 = vmatprep.subr.bf16.mxu0 %v3434
    %3852 = vmatpush1.bf16.msra.mxu0 %v3433
    %3853 = vmatprep.subr.bf16.mxu0 0
    %3854 = vmatpush1.bf16.msra.mxu0 0
    %3855 = vmatprep.subr.bf16.mxu0 0
    %3856 = vmatpush1.bf16.msra.mxu0 0
    %3857 = vmatprep.subr.bf16.mxu0 0
    %3858 = vmatpush1.bf16.msra.mxu0 0
    %3859 = vmatprep.subr.bf16.mxu0 0
    %3860 = vmatpush1.bf16.msra.mxu0 0
    %3861 = vmatprep.subr.bf16.mxu0 0
    %3862 = vmatpush1.bf16.msra.mxu0 0
    %3863 = vmatprep.subr.bf16.mxu0 0
    %3864 = vmatpush1.bf16.msra.mxu0 0
    %3865 = vmatprep.subr.bf16.mxu0 0
    %3866 = vmatpush1.bf16.msra.mxu0 0
    %3867 = vmatprep.subr.bf16.mxu0 0
    %3868 = vmatpush1.bf16.msra.mxu0 0
    %3869 = vmatprep.subr.bf16.mxu0 0
    %3870 = vmatpush1.bf16.msra.mxu0 0
    %3871 = vmatprep.subr.bf16.mxu0 0
    %3872 = vmatpush1.bf16.msra.mxu0 0
    %3873 = vmatprep.subr.bf16.mxu0 0
    %3874 = vmatpush1.bf16.msra.mxu0 0
    %3875 = vmatprep.subr.bf16.mxu0 0
    %3876 = vmatpush1.bf16.msra.mxu0 0
    %3877 = vmatprep.mubr.bf16.mxu0 0
    %3878 = vmatmul.mubr.bf16.gmra.mrb[0].mxu0 %v3585
    %v3879 = vpop.f32.mrb[0].mxu0
    %v3880 = vadd.f32 0.0, %v3879
    %v3881 = vpop.f32.mrb[0].mxu0
    %v3882 = vadd.f32 0.0, %v3881
    %v3883 = vpop.f32.mrb[0].mxu0
    %v3884 = vadd.f32 0.0, %v3883
    %v3885 = vpop.f32.mrb[0].mxu0
    %v3886 = vadd.f32 0.0, %v3885
    %3887 = vmatprep.mubr.bf16.mxu0 0
    %3888 = vmatmul.mubr.bf16.gmra.mrb[0].mxu0 %v3588
    %v3889 = vpop.f32.mrb[0].mxu0
    %v3890 = vadd.f32 0.0, %v3889
    %v3891 = vpop.f32.mrb[0].mxu0
    %v3892 = vadd.f32 0.0, %v3891
    %v3893 = vpop.f32.mrb[0].mxu0
    %v3894 = vpop.f32.mrb[0].mxu0
    %3895 = vdwg.mxu0
    %3896 = vmatprep.subr.bf16.mxu0 %v3340
    %3897 = vmatpush1.bf16.msra.mxu0 %v3339
    %3898 = vmatprep.subr.bf16.mxu0 %v3372
    %3899 = vmatpush1.bf16.msra.mxu0 %v3371
    %3900 = vmatprep.subr.bf16.mxu0 %v3404
    %3901 = vmatpush1.bf16.msra.mxu0 %v3403
    %3902 = vmatprep.subr.bf16.mxu0 %v3436
    %3903 = vmatpush1.bf16.msra.mxu0 %v3435
    %3904 = vmatprep.subr.bf16.mxu0 0
    %3905 = vmatpush1.bf16.msra.mxu0 0
    %3906 = vmatprep.subr.bf16.mxu0 0
    %3907 = vmatpush1.bf16.msra.mxu0 0
    %3908 = vmatprep.subr.bf16.mxu0 0
    %3909 = vmatpush1.bf16.msra.mxu0 0
    %3910 = vmatprep.subr.bf16.mxu0 0
    %3911 = vmatpush1.bf16.msra.mxu0 0
    %3912 = vmatprep.subr.bf16.mxu0 0
    %3913 = vmatpush1.bf16.msra.mxu0 0
    %3914 = vmatprep.subr.bf16.mxu0 0
    %3915 = vmatpush1.bf16.msra.mxu0 0
    %3916 = vmatprep.subr.bf16.mxu0 0
    %3917 = vmatpush1.bf16.msra.mxu0 0
    %3918 = vmatprep.subr.bf16.mxu0 0
    %3919 = vmatpush1.bf16.msra.mxu0 0
    %3920 = vmatprep.subr.bf16.mxu0 0
    %3921 = vmatpush1.bf16.msra.mxu0 0
    %3922 = vmatprep.subr.bf16.mxu0 0
    %3923 = vmatpush1.bf16.msra.mxu0 0
    %3924 = vmatprep.subr.bf16.mxu0 0
    %3925 = vmatpush1.bf16.msra.mxu0 0
    %3926 = vmatprep.subr.bf16.mxu0 0
    %3927 = vmatpush1.bf16.msra.mxu0 0
    %3928 = vmatprep.mubr.bf16.mxu0 0
    %3929 = vmatmul.mubr.bf16.gmra.mrb[0].mxu0 %v3585
    %v3930 = vpop.f32.mrb[0].mxu0
    %v3931 = vadd.f32 0.0, %v3930
    %v3932 = vpop.f32.mrb[0].mxu0
    %v3933 = vadd.f32 0.0, %v3932
    %v3934 = vpop.f32.mrb[0].mxu0
    %v3935 = vadd.f32 0.0, %v3934
    %v3936 = vpop.f32.mrb[0].mxu0
    %v3937 = vadd.f32 0.0, %v3936
    %3938 = vmatprep.mubr.bf16.mxu0 0
    %3939 = vmatmul.mubr.bf16.gmra.mrb[0].mxu0 %v3588
    %v3940 = vpop.f32.mrb[0].mxu0
    %v3941 = vadd.f32 0.0, %v3940
    %v3942 = vpop.f32.mrb[0].mxu0
    %v3943 = vadd.f32 0.0, %v3942
    %v3944 = vpop.f32.mrb[0].mxu0
    %v3945 = vpop.f32.mrb[0].mxu0
    %3946 = vdwg.mxu0
    %3947 = vmatprep.subr.bf16.mxu0 %v3342
    %3948 = vmatpush1.bf16.msra.mxu0 %v3341
    %3949 = vmatprep.subr.bf16.mxu0 %v3374
    %3950 = vmatpush1.bf16.msra.mxu0 %v3373
    %3951 = vmatprep.subr.bf16.mxu0 %v3406
    %3952 = vmatpush1.bf16.msra.mxu0 %v3405
    %3953 = vmatprep.subr.bf16.mxu0 %v3438
    %3954 = vmatpush1.bf16.msra.mxu0 %v3437
    %3955 = vmatprep.subr.bf16.mxu0 0
    %3956 = vmatpush1.bf16.msra.mxu0 0
    %3957 = vmatprep.subr.bf16.mxu0 0
    %3958 = vmatpush1.bf16.msra.mxu0 0
    %3959 = vmatprep.subr.bf16.mxu0 0
    %3960 = vmatpush1.bf16.msra.mxu0 0
    %3961 = vmatprep.subr.bf16.mxu0 0
    %3962 = vmatpush1.bf16.msra.mxu0 0
    %3963 = vmatprep.subr.bf16.mxu0 0
    %3964 = vmatpush1.bf16.msra.mxu0 0
    %3965 = vmatprep.subr.bf16.mxu0 0
    %3966 = vmatpush1.bf16.msra.mxu0 0
    %3967 = vmatprep.subr.bf16.mxu0 0
    %3968 = vmatpush1.bf16.msra.mxu0 0
    %3969 = vmatprep.subr.bf16.mxu0 0
    %3970 = vmatpush1.bf16.msra.mxu0 0
    %3971 = vmatprep.subr.bf16.mxu0 0
    %3972 = vmatpush1.bf16.msra.mxu0 0
    %3973 = vmatprep.subr.bf16.mxu0 0
    %3974 = vmatpush1.bf16.msra.mxu0 0
    %3975 = vmatprep.subr.bf16.mxu0 0
    %3976 = vmatpush1.bf16.msra.mxu0 0
    %3977 = vmatprep.subr.bf16.mxu0 0
    %3978 = vmatpush1.bf16.msra.mxu0 0
    %3979 = vmatprep.mubr.bf16.mxu0 0
    %3980 = vmatmul.mubr.bf16.gmra.mrb[0].mxu0 %v3585
    %v3981 = vpop.f32.mrb[0].mxu0
    %v3982 = vadd.f32 0.0, %v3981
    %v3983 = vpop.f32.mrb[0].mxu0
    %v3984 = vadd.f32 0.0, %v3983
    %v3985 = vpop.f32.mrb[0].mxu0
    %v3986 = vadd.f32 0.0, %v3985
    %v3987 = vpop.f32.mrb[0].mxu0
    %v3988 = vadd.f32 0.0, %v3987
    %3989 = vmatprep.mubr.bf16.mxu0 0
    %3990 = vmatmul.mubr.bf16.gmra.mrb[0].mxu0 %v3588
    %v3991 = vpop.f32.mrb[0].mxu0
    %v3992 = vadd.f32 0.0, %v3991
    %v3993 = vpop.f32.mrb[0].mxu0
    %v3994 = vadd.f32 0.0, %v3993
    %v3995 = vpop.f32.mrb[0].mxu0
    %v3996 = vpop.f32.mrb[0].mxu0
    %3997 = vdwg.mxu0
    %3998 = vmatprep.subr.bf16.mxu0 %v3344
    %3999 = vmatpush1.bf16.msra.mxu0 %v3343
    %4000 = vmatprep.subr.bf16.mxu0 %v3376
    %4001 = vmatpush1.bf16.msra.mxu0 %v3375
    %4002 = vmatprep.subr.bf16.mxu0 %v3408
    %4003 = vmatpush1.bf16.msra.mxu0 %v3407
    %4004 = vmatprep.subr.bf16.mxu0 %v3440
    %4005 = vmatpush1.bf16.msra.mxu0 %v3439
    %4006 = vmatprep.subr.bf16.mxu0 0
    %4007 = vmatpush1.bf16.msra.mxu0 0
    %4008 = vmatprep.subr.bf16.mxu0 0
    %4009 = vmatpush1.bf16.msra.mxu0 0
    %4010 = vmatprep.subr.bf16.mxu0 0
    %4011 = vmatpush1.bf16.msra.mxu0 0
    %4012 = vmatprep.subr.bf16.mxu0 0
    %4013 = vmatpush1.bf16.msra.mxu0 0
    %4014 = vmatprep.subr.bf16.mxu0 0
    %4015 = vmatpush1.bf16.msra.mxu0 0
    %4016 = vmatprep.subr.bf16.mxu0 0
    %4017 = vmatpush1.bf16.msra.mxu0 0
    %4018 = vmatprep.subr.bf16.mxu0 0
    %4019 = vmatpush1.bf16.msra.mxu0 0
    %4020 = vmatprep.subr.bf16.mxu0 0
    %4021 = vmatpush1.bf16.msra.mxu0 0
    %4022 = vmatprep.subr.bf16.mxu0 0
    %4023 = vmatpush1.bf16.msra.mxu0 0
    %4024 = vmatprep.subr.bf16.mxu0 0
    %4025 = vmatpush1.bf16.msra.mxu0 0
    %4026 = vmatprep.subr.bf16.mxu0 0
    %4027 = vmatpush1.bf16.msra.mxu0 0
    %4028 = vmatprep.subr.bf16.mxu0 0
    %4029 = vmatpush1.bf16.msra.mxu0 0
    %4030 = vmatprep.mubr.bf16.mxu0 0
    %4031 = vmatmul.mubr.bf16.gmra.mrb[0].mxu0 %v3585
    %v4032 = vpop.f32.mrb[0].mxu0
    %v4033 = vadd.f32 0.0, %v4032
    %v4034 = vpop.f32.mrb[0].mxu0
    %v4035 = vadd.f32 0.0, %v4034
    %v4036 = vpop.f32.mrb[0].mxu0
    %v4037 = vadd.f32 0.0, %v4036
    %v4038 = vpop.f32.mrb[0].mxu0
    %v4039 = vadd.f32 0.0, %v4038
    %4040 = vmatprep.mubr.bf16.mxu0 0
    %4041 = vmatmul.mubr.bf16.gmra.mrb[0].mxu0 %v3588
    %v4042 = vpop.f32.mrb[0].mxu0
    %v4043 = vadd.f32 0.0, %v4042
    %v4044 = vpop.f32.mrb[0].mxu0
    %v4045 = vadd.f32 0.0, %v4044
    %v4046 = vpop.f32.mrb[0].mxu0
    %v4047 = vpop.f32.mrb[0].mxu0
    %4048 = vdwg.mxu0
    %4049 = vmatprep.subr.bf16.mxu0 %v3346
    %4050 = vmatpush1.bf16.msra.mxu0 %v3345
    %4051 = vmatprep.subr.bf16.mxu0 %v3378
    %4052 = vmatpush1.bf16.msra.mxu0 %v3377
    %4053 = vmatprep.subr.bf16.mxu0 %v3410
    %4054 = vmatpush1.bf16.msra.mxu0 %v3409
    %4055 = vmatprep.subr.bf16.mxu0 %v3442
    %4056 = vmatpush1.bf16.msra.mxu0 %v3441
    %4057 = vmatprep.subr.bf16.mxu0 0
    %4058 = vmatpush1.bf16.msra.mxu0 0
    %4059 = vmatprep.subr.bf16.mxu0 0
    %4060 = vmatpush1.bf16.msra.mxu0 0
    %4061 = vmatprep.subr.bf16.mxu0 0
    %4062 = vmatpush1.bf16.msra.mxu0 0
    %4063 = vmatprep.subr.bf16.mxu0 0
    %4064 = vmatpush1.bf16.msra.mxu0 0
    %4065 = vmatprep.subr.bf16.mxu0 0
    %4066 = vmatpush1.bf16.msra.mxu0 0
    %4067 = vmatprep.subr.bf16.mxu0 0
    %4068 = vmatpush1.bf16.msra.mxu0 0
    %4069 = vmatprep.subr.bf16.mxu0 0
    %4070 = vmatpush1.bf16.msra.mxu0 0
    %4071 = vmatprep.subr.bf16.mxu0 0
    %4072 = vmatpush1.bf16.msra.mxu0 0
    %4073 = vmatprep.subr.bf16.mxu0 0
    %4074 = vmatpush1.bf16.msra.mxu0 0
    %4075 = vmatprep.subr.bf16.mxu0 0
    %4076 = vmatpush1.bf16.msra.mxu0 0
    %4077 = vmatprep.subr.bf16.mxu0 0
    %4078 = vmatpush1.bf16.msra.mxu0 0
    %4079 = vmatprep.subr.bf16.mxu0 0
    %4080 = vmatpush1.bf16.msra.mxu0 0
    %4081 = vmatprep.mubr.bf16.mxu0 0
    %4082 = vmatmul.mubr.bf16.gmra.mrb[0].mxu0 %v3585
    %v4083 = vpop.f32.mrb[0].mxu0
    %v4084 = vadd.f32 0.0, %v4083
    %v4085 = vpop.f32.mrb[0].mxu0
    %v4086 = vadd.f32 0.0, %v4085
    %v4087 = vpop.f32.mrb[0].mxu0
    %v4088 = vadd.f32 0.0, %v4087
    %v4089 = vpop.f32.mrb[0].mxu0
    %v4090 = vadd.f32 0.0, %v4089
    %4091 = vmatprep.mubr.bf16.mxu0 0
    %4092 = vmatmul.mubr.bf16.gmra.mrb[0].mxu0 %v3588
    %v4093 = vpop.f32.mrb[0].mxu0
    %v4094 = vadd.f32 0.0, %v4093
    %v4095 = vpop.f32.mrb[0].mxu0
    %v4096 = vadd.f32 0.0, %v4095
    %v4097 = vpop.f32.mrb[0].mxu0
    %v4098 = vpop.f32.mrb[0].mxu0
    %4099 = vdwg.mxu0
    %4100 = vmatprep.subr.bf16.mxu0 %v3348
    %4101 = vmatpush1.bf16.msra.mxu0 %v3347
    %4102 = vmatprep.subr.bf16.mxu0 %v3380
    %4103 = vmatpush1.bf16.msra.mxu0 %v3379
    %4104 = vmatprep.subr.bf16.mxu0 %v3412
    %4105 = vmatpush1.bf16.msra.mxu0 %v3411
    %4106 = vmatprep.subr.bf16.mxu0 %v3444
    %4107 = vmatpush1.bf16.msra.mxu0 %v3443
    %4108 = vmatprep.subr.bf16.mxu0 0
    %4109 = vmatpush1.bf16.msra.mxu0 0
    %4110 = vmatprep.subr.bf16.mxu0 0
    %4111 = vmatpush1.bf16.msra.mxu0 0
    %4112 = vmatprep.subr.bf16.mxu0 0
    %4113 = vmatpush1.bf16.msra.mxu0 0
    %4114 = vmatprep.subr.bf16.mxu0 0
    %4115 = vmatpush1.bf16.msra.mxu0 0
    %4116 = vmatprep.subr.bf16.mxu0 0
    %4117 = vmatpush1.bf16.msra.mxu0 0
    %4118 = vmatprep.subr.bf16.mxu0 0
    %4119 = vmatpush1.bf16.msra.mxu0 0
    %4120 = vmatprep.subr.bf16.mxu0 0
    %4121 = vmatpush1.bf16.msra.mxu0 0
    %4122 = vmatprep.subr.bf16.mxu0 0
    %4123 = vmatpush1.bf16.msra.mxu0 0
    %4124 = vmatprep.subr.bf16.mxu0 0
    %4125 = vmatpush1.bf16.msra.mxu0 0
    %4126 = vmatprep.subr.bf16.mxu0 0
    %4127 = vmatpush1.bf16.msra.mxu0 0
    %4128 = vmatprep.subr.bf16.mxu0 0
    %4129 = vmatpush1.bf16.msra.mxu0 0
    %4130 = vmatprep.subr.bf16.mxu0 0
    %4131 = vmatpush1.bf16.msra.mxu0 0
    %4132 = vmatprep.mubr.bf16.mxu0 0
    %4133 = vmatmul.mubr.bf16.gmra.mrb[0].mxu0 %v3585
    %v4134 = vpop.f32.mrb[0].mxu0
    %v4135 = vadd.f32 0.0, %v4134
    %v4136 = vpop.f32.mrb[0].mxu0
    %v4137 = vadd.f32 0.0, %v4136
    %v4138 = vpop.f32.mrb[0].mxu0
    %v4139 = vadd.f32 0.0, %v4138
    %v4140 = vpop.f32.mrb[0].mxu0
    %v4141 = vadd.f32 0.0, %v4140
    %4142 = vmatprep.mubr.bf16.mxu0 0
    %4143 = vmatmul.mubr.bf16.gmra.mrb[0].mxu0 %v3588
    %v4144 = vpop.f32.mrb[0].mxu0
    %v4145 = vadd.f32 0.0, %v4144
    %v4146 = vpop.f32.mrb[0].mxu0
    %v4147 = vadd.f32 0.0, %v4146
    %v4148 = vpop.f32.mrb[0].mxu0
    %v4149 = vpop.f32.mrb[0].mxu0
    %4150 = vdwg.mxu0
    %4151 = vmatprep.subr.bf16.mxu0 %v3350
    %4152 = vmatpush1.bf16.msra.mxu0 %v3349
    %4153 = vmatprep.subr.bf16.mxu0 %v3382
    %4154 = vmatpush1.bf16.msra.mxu0 %v3381
    %4155 = vmatprep.subr.bf16.mxu0 %v3414
    %4156 = vmatpush1.bf16.msra.mxu0 %v3413
    %4157 = vmatprep.subr.bf16.mxu0 %v3446
    %4158 = vmatpush1.bf16.msra.mxu0 %v3445
    %4159 = vmatprep.subr.bf16.mxu0 0
    %4160 = vmatpush1.bf16.msra.mxu0 0
    %4161 = vmatprep.subr.bf16.mxu0 0
    %4162 = vmatpush1.bf16.msra.mxu0 0
    %4163 = vmatprep.subr.bf16.mxu0 0
    %4164 = vmatpush1.bf16.msra.mxu0 0
    %4165 = vmatprep.subr.bf16.mxu0 0
    %4166 = vmatpush1.bf16.msra.mxu0 0
    %4167 = vmatprep.subr.bf16.mxu0 0
    %4168 = vmatpush1.bf16.msra.mxu0 0
    %4169 = vmatprep.subr.bf16.mxu0 0
    %4170 = vmatpush1.bf16.msra.mxu0 0
    %4171 = vmatprep.subr.bf16.mxu0 0
    %4172 = vmatpush1.bf16.msra.mxu0 0
    %4173 = vmatprep.subr.bf16.mxu0 0
    %4174 = vmatpush1.bf16.msra.mxu0 0
    %4175 = vmatprep.subr.bf16.mxu0 0
    %4176 = vmatpush1.bf16.msra.mxu0 0
    %4177 = vmatprep.subr.bf16.mxu0 0
    %4178 = vmatpush1.bf16.msra.mxu0 0
    %4179 = vmatprep.subr.bf16.mxu0 0
    %4180 = vmatpush1.bf16.msra.mxu0 0
    %4181 = vmatprep.subr.bf16.mxu0 0
    %4182 = vmatpush1.bf16.msra.mxu0 0
    %4183 = vmatprep.mubr.bf16.mxu0 0
    %4184 = vmatmul.mubr.bf16.gmra.mrb[0].mxu0 %v3585
    %v4185 = vpop.f32.mrb[0].mxu0
    %v4186 = vadd.f32 0.0, %v4185
    %v4187 = vpop.f32.mrb[0].mxu0
    %v4188 = vadd.f32 0.0, %v4187
    %v4189 = vpop.f32.mrb[0].mxu0
    %v4190 = vadd.f32 0.0, %v4189
    %v4191 = vpop.f32.mrb[0].mxu0
    %v4192 = vadd.f32 0.0, %v4191
    %4193 = vmatprep.mubr.bf16.mxu0 0
    %4194 = vmatmul.mubr.bf16.gmra.mrb[0].mxu0 %v3588
    %v4195 = vpop.f32.mrb[0].mxu0
    %v4196 = vadd.f32 0.0, %v4195
    %v4197 = vpop.f32.mrb[0].mxu0
    %v4198 = vadd.f32 0.0, %v4197
    %v4199 = vpop.f32.mrb[0].mxu0
    %v4200 = vpop.f32.mrb[0].mxu0
    %4201 = vdwg.mxu0
    %4202 = vmatprep.subr.bf16.mxu0 %v3352
    %4203 = vmatpush1.bf16.msra.mxu0 %v3351
    %4204 = vmatprep.subr.bf16.mxu0 %v3384
    %4205 = vmatpush1.bf16.msra.mxu0 %v3383
    %4206 = vmatprep.subr.bf16.mxu0 %v3416
    %4207 = vmatpush1.bf16.msra.mxu0 %v3415
    %4208 = vmatprep.subr.bf16.mxu0 %v3448
    %4209 = vmatpush1.bf16.msra.mxu0 %v3447
    %4210 = vmatprep.subr.bf16.mxu0 0
    %4211 = vmatpush1.bf16.msra.mxu0 0
    %4212 = vmatprep.subr.bf16.mxu0 0
    %4213 = vmatpush1.bf16.msra.mxu0 0
    %4214 = vmatprep.subr.bf16.mxu0 0
    %4215 = vmatpush1.bf16.msra.mxu0 0
    %4216 = vmatprep.subr.bf16.mxu0 0
    %4217 = vmatpush1.bf16.msra.mxu0 0
    %4218 = vmatprep.subr.bf16.mxu0 0
    %4219 = vmatpush1.bf16.msra.mxu0 0
    %4220 = vmatprep.subr.bf16.mxu0 0
    %4221 = vmatpush1.bf16.msra.mxu0 0
    %4222 = vmatprep.subr.bf16.mxu0 0
    %4223 = vmatpush1.bf16.msra.mxu0 0
    %4224 = vmatprep.subr.bf16.mxu0 0
    %4225 = vmatpush1.bf16.msra.mxu0 0
    %4226 = vmatprep.subr.bf16.mxu0 0
    %4227 = vmatpush1.bf16.msra.mxu0 0
    %4228 = vmatprep.subr.bf16.mxu0 0
    %4229 = vmatpush1.bf16.msra.mxu0 0
    %4230 = vmatprep.subr.bf16.mxu0 0
    %4231 = vmatpush1.bf16.msra.mxu0 0
    %4232 = vmatprep.subr.bf16.mxu0 0
    %4233 = vmatpush1.bf16.msra.mxu0 0
    %4234 = vmatprep.mubr.bf16.mxu0 0
    %4235 = vmatmul.mubr.bf16.gmra.mrb[0].mxu0 %v3585
    %v4236 = vpop.f32.mrb[0].mxu0
    %v4237 = vadd.f32 0.0, %v4236
    %v4238 = vpop.f32.mrb[0].mxu0
    %v4239 = vadd.f32 0.0, %v4238
    %v4240 = vpop.f32.mrb[0].mxu0
    %v4241 = vadd.f32 0.0, %v4240
    %v4242 = vpop.f32.mrb[0].mxu0
    %v4243 = vadd.f32 0.0, %v4242
    %4244 = vmatprep.mubr.bf16.mxu0 0
    %4245 = vmatmul.mubr.bf16.gmra.mrb[0].mxu0 %v3588
    %v4246 = vpop.f32.mrb[0].mxu0
    %v4247 = vadd.f32 0.0, %v4246
    %v4248 = vpop.f32.mrb[0].mxu0
    %v4249 = vadd.f32 0.0, %v4248
    %v4250 = vpop.f32.mrb[0].mxu0
    %v4251 = vpop.f32.mrb[0].mxu0
    %4252 = vdwg.mxu0
    %4253 = vmatprep.subr.bf16.mxu0 %v3354
    %4254 = vmatpush1.bf16.msra.mxu0 %v3353
    %4255 = vmatprep.subr.bf16.mxu0 %v3386
    %4256 = vmatpush1.bf16.msra.mxu0 %v3385
    %4257 = vmatprep.subr.bf16.mxu0 %v3418
    %4258 = vmatpush1.bf16.msra.mxu0 %v3417
    %4259 = vmatprep.subr.bf16.mxu0 %v3450
    %4260 = vmatpush1.bf16.msra.mxu0 %v3449
    %4261 = vmatprep.subr.bf16.mxu0 0
    %4262 = vmatpush1.bf16.msra.mxu0 0
    %4263 = vmatprep.subr.bf16.mxu0 0
    %4264 = vmatpush1.bf16.msra.mxu0 0
    %4265 = vmatprep.subr.bf16.mxu0 0
    %4266 = vmatpush1.bf16.msra.mxu0 0
    %4267 = vmatprep.subr.bf16.mxu0 0
    %4268 = vmatpush1.bf16.msra.mxu0 0
    %4269 = vmatprep.subr.bf16.mxu0 0
    %4270 = vmatpush1.bf16.msra.mxu0 0
    %4271 = vmatprep.subr.bf16.mxu0 0
    %4272 = vmatpush1.bf16.msra.mxu0 0
    %4273 = vmatprep.subr.bf16.mxu0 0
    %4274 = vmatpush1.bf16.msra.mxu0 0
    %4275 = vmatprep.subr.bf16.mxu0 0
    %4276 = vmatpush1.bf16.msra.mxu0 0
    %4277 = vmatprep.subr.bf16.mxu0 0
    %4278 = vmatpush1.bf16.msra.mxu0 0
    %4279 = vmatprep.subr.bf16.mxu0 0
    %4280 = vmatpush1.bf16.msra.mxu0 0
    %4281 = vmatprep.subr.bf16.mxu0 0
    %4282 = vmatpush1.bf16.msra.mxu0 0
    %4283 = vmatprep.subr.bf16.mxu0 0
    %4284 = vmatpush1.bf16.msra.mxu0 0
    %4285 = vmatprep.mubr.bf16.mxu0 0
    %4286 = vmatmul.mubr.bf16.gmra.mrb[0].mxu0 %v3585
    %v4287 = vpop.f32.mrb[0].mxu0
    %v4288 = vadd.f32 0.0, %v4287
    %v4289 = vpop.f32.mrb[0].mxu0
    %v4290 = vadd.f32 0.0, %v4289
    %v4291 = vpop.f32.mrb[0].mxu0
    %v4292 = vadd.f32 0.0, %v4291
    %v4293 = vpop.f32.mrb[0].mxu0
    %v4294 = vadd.f32 0.0, %v4293
    %4295 = vmatprep.mubr.bf16.mxu0 0
    %4296 = vmatmul.mubr.bf16.gmra.mrb[0].mxu0 %v3588
    %v4297 = vpop.f32.mrb[0].mxu0
    %v4298 = vadd.f32 0.0, %v4297
    %v4299 = vpop.f32.mrb[0].mxu0
    %v4300 = vadd.f32 0.0, %v4299
    %v4301 = vpop.f32.mrb[0].mxu0
    %v4302 = vpop.f32.mrb[0].mxu0
    %4303 = vdwg.mxu0
    %4304 = vmatprep.subr.bf16.mxu0 %v3356
    %4305 = vmatpush1.bf16.msra.mxu0 %v3355
    %4306 = vmatprep.subr.bf16.mxu0 %v3388
    %4307 = vmatpush1.bf16.msra.mxu0 %v3387
    %4308 = vmatprep.subr.bf16.mxu0 %v3420
    %4309 = vmatpush1.bf16.msra.mxu0 %v3419
    %4310 = vmatprep.subr.bf16.mxu0 %v3452
    %4311 = vmatpush1.bf16.msra.mxu0 %v3451
    %4312 = vmatprep.subr.bf16.mxu0 0
    %4313 = vmatpush1.bf16.msra.mxu0 0
    %4314 = vmatprep.subr.bf16.mxu0 0
    %4315 = vmatpush1.bf16.msra.mxu0 0
    %4316 = vmatprep.subr.bf16.mxu0 0
    %4317 = vmatpush1.bf16.msra.mxu0 0
    %4318 = vmatprep.subr.bf16.mxu0 0
    %4319 = vmatpush1.bf16.msra.mxu0 0
    %4320 = vmatprep.subr.bf16.mxu0 0
    %4321 = vmatpush1.bf16.msra.mxu0 0
    %4322 = vmatprep.subr.bf16.mxu0 0
    %4323 = vmatpush1.bf16.msra.mxu0 0
    %4324 = vmatprep.subr.bf16.mxu0 0
    %4325 = vmatpush1.bf16.msra.mxu0 0
    %4326 = vmatprep.subr.bf16.mxu0 0
    %4327 = vmatpush1.bf16.msra.mxu0 0
    %4328 = vmatprep.subr.bf16.mxu0 0
    %4329 = vmatpush1.bf16.msra.mxu0 0
    %4330 = vmatprep.subr.bf16.mxu0 0
    %4331 = vmatpush1.bf16.msra.mxu0 0
    %4332 = vmatprep.subr.bf16.mxu0 0
    %4333 = vmatpush1.bf16.msra.mxu0 0
    %4334 = vmatprep.subr.bf16.mxu0 0
    %4335 = vmatpush1.bf16.msra.mxu0 0
    %4336 = vmatprep.mubr.bf16.mxu0 0
    %4337 = vmatmul.mubr.bf16.gmra.mrb[0].mxu0 %v3585
    %v4338 = vpop.f32.mrb[0].mxu0
    %v4339 = vadd.f32 0.0, %v4338
    %v4340 = vpop.f32.mrb[0].mxu0
    %v4341 = vadd.f32 0.0, %v4340
    %v4342 = vpop.f32.mrb[0].mxu0
    %v4343 = vadd.f32 0.0, %v4342
    %v4344 = vpop.f32.mrb[0].mxu0
    %v4345 = vadd.f32 0.0, %v4344
    %4346 = vmatprep.mubr.bf16.mxu0 0
    %4347 = vmatmul.mubr.bf16.gmra.mrb[0].mxu0 %v3588
    %v4348 = vpop.f32.mrb[0].mxu0
    %v4349 = vadd.f32 0.0, %v4348
    %v4350 = vpop.f32.mrb[0].mxu0
    %v4351 = vadd.f32 0.0, %v4350
    %v4352 = vpop.f32.mrb[0].mxu0
    %v4353 = vpop.f32.mrb[0].mxu0
    %4354 = vdwg.mxu0
    %4355 = vmatprep.subr.bf16.mxu0 %v3358
    %4356 = vmatpush1.bf16.msra.mxu0 %v3357
    %4357 = vmatprep.subr.bf16.mxu0 %v3390
    %4358 = vmatpush1.bf16.msra.mxu0 %v3389
    %4359 = vmatprep.subr.bf16.mxu0 %v3422
    %4360 = vmatpush1.bf16.msra.mxu0 %v3421
    %4361 = vmatprep.subr.bf16.mxu0 %v3454
    %4362 = vmatpush1.bf16.msra.mxu0 %v3453
    %4363 = vmatprep.subr.bf16.mxu0 0
    %4364 = vmatpush1.bf16.msra.mxu0 0
    %4365 = vmatprep.subr.bf16.mxu0 0
    %4366 = vmatpush1.bf16.msra.mxu0 0
    %4367 = vmatprep.subr.bf16.mxu0 0
    %4368 = vmatpush1.bf16.msra.mxu0 0
    %4369 = vmatprep.subr.bf16.mxu0 0
    %4370 = vmatpush1.bf16.msra.mxu0 0
    %4371 = vmatprep.subr.bf16.mxu0 0
    %4372 = vmatpush1.bf16.msra.mxu0 0
    %4373 = vmatprep.subr.bf16.mxu0 0
    %4374 = vmatpush1.bf16.msra.mxu0 0
    %4375 = vmatprep.subr.bf16.mxu0 0
    %4376 = vmatpush1.bf16.msra.mxu0 0
    %4377 = vmatprep.subr.bf16.mxu0 0
    %4378 = vmatpush1.bf16.msra.mxu0 0
    %4379 = vmatprep.subr.bf16.mxu0 0
    %4380 = vmatpush1.bf16.msra.mxu0 0
    %4381 = vmatprep.subr.bf16.mxu0 0
    %4382 = vmatpush1.bf16.msra.mxu0 0
    %4383 = vmatprep.subr.bf16.mxu0 0
    %4384 = vmatpush1.bf16.msra.mxu0 0
    %4385 = vmatprep.subr.bf16.mxu0 0
    %4386 = vmatpush1.bf16.msra.mxu0 0
    %4387 = vmatprep.mubr.bf16.mxu0 0
    %4388 = vmatmul.mubr.bf16.gmra.mrb[0].mxu0 %v3585
    %v4389 = vpop.f32.mrb[0].mxu0
    %v4390 = vadd.f32 0.0, %v4389
    %v4391 = vpop.f32.mrb[0].mxu0
    %v4392 = vadd.f32 0.0, %v4391
    %v4393 = vpop.f32.mrb[0].mxu0
    %v4394 = vadd.f32 0.0, %v4393
    %v4395 = vpop.f32.mrb[0].mxu0
    %v4396 = vadd.f32 0.0, %v4395
    %4397 = vmatprep.mubr.bf16.mxu0 0
    %4398 = vmatmul.mubr.bf16.gmra.mrb[0].mxu0 %v3588
    %v4399 = vpop.f32.mrb[0].mxu0
    %v4400 = vadd.f32 0.0, %v4399
    %v4401 = vpop.f32.mrb[0].mxu0
    %v4402 = vadd.f32 0.0, %v4401
    %v4403 = vpop.f32.mrb[0].mxu0
    %v4404 = vpop.f32.mrb[0].mxu0
    %4405 = vdwg.mxu0
    %v4406 = vmul.f32 %v3625, %v1401
    %v4407 = vmul.f32 %v3627, %v1403
    %v4408 = vmul.f32 %v3676, %v1452
    %v4409 = vmul.f32 %v3678, %v1454
    %v4410 = vmul.f32 %v3727, %v1503
    %v4411 = vmul.f32 %v3729, %v1505
    %v4412 = vmul.f32 %v3778, %v1554
    %v4413 = vmul.f32 %v3780, %v1556
    %v4414 = vmul.f32 %v3829, %v1605
    %v4415 = vmul.f32 %v3831, %v1607
    %v4416 = vmul.f32 %v3880, %v1656
    %v4417 = vmul.f32 %v3882, %v1658
    %v4418 = vmul.f32 %v3931, %v1707
    %v4419 = vmul.f32 %v3933, %v1709
    %v4420 = vmul.f32 %v3982, %v1758
    %v4421 = vmul.f32 %v3984, %v1760
    %v4422 = vmul.f32 %v4033, %v1809
    %v4423 = vmul.f32 %v4035, %v1811
    %v4424 = vmul.f32 %v4084, %v1860
    %v4425 = vmul.f32 %v4086, %v1862
    %v4426 = vmul.f32 %v4135, %v1911
    %v4427 = vmul.f32 %v4137, %v1913
    %v4428 = vmul.f32 %v4186, %v1962
    %v4429 = vmul.f32 %v4188, %v1964
    %v4430 = vmul.f32 %v4237, %v2013
    %v4431 = vmul.f32 %v4239, %v2015
    %v4432 = vmul.f32 %v4288, %v2064
    %v4433 = vmul.f32 %v4290, %v2066
    %v4434 = vmul.f32 %v4339, %v2115
    %v4435 = vmul.f32 %v4341, %v2117
    %v4436 = vmul.f32 %v4390, %v2166
    %v4437 = vmul.f32 %v4392, %v2168
    %v4438 = vmul.f32 %v3629, %v1405
    %v4439 = vmul.f32 %v3631, %v1407
    %v4440 = vmul.f32 %v3680, %v1456
    %v4441 = vmul.f32 %v3682, %v1458
    %v4442 = vmul.f32 %v3731, %v1507
    %v4443 = vmul.f32 %v3733, %v1509
    %v4444 = vmul.f32 %v3782, %v1558
    %v4445 = vmul.f32 %v3784, %v1560
    %v4446 = vmul.f32 %v3833, %v1609
    %v4447 = vmul.f32 %v3835, %v1611
    %v4448 = vmul.f32 %v3884, %v1660
    %v4449 = vmul.f32 %v3886, %v1662
    %v4450 = vmul.f32 %v3935, %v1711
    %v4451 = vmul.f32 %v3937, %v1713
    %v4452 = vmul.f32 %v3986, %v1762
    %v4453 = vmul.f32 %v3988, %v1764
    %v4454 = vmul.f32 %v4037, %v1813
    %v4455 = vmul.f32 %v4039, %v1815
    %v4456 = vmul.f32 %v4088, %v1864
    %v4457 = vmul.f32 %v4090, %v1866
    %v4458 = vmul.f32 %v4139, %v1915
    %v4459 = vmul.f32 %v4141, %v1917
    %v4460 = vmul.f32 %v4190, %v1966
    %v4461 = vmul.f32 %v4192, %v1968
    %v4462 = vmul.f32 %v4241, %v2017
    %v4463 = vmul.f32 %v4243, %v2019
    %v4464 = vmul.f32 %v4292, %v2068
    %v4465 = vmul.f32 %v4294, %v2070
    %v4466 = vmul.f32 %v4343, %v2119
    %v4467 = vmul.f32 %v4345, %v2121
    %v4468 = vmul.f32 %v4394, %v2170
    %v4469 = vmul.f32 %v4396, %v2172
    %v4470 = vmul.f32 %v3635, %v1411
    %v4471 = vmul.f32 %v3637, %v1413
    %v4472 = vmul.f32 %v3686, %v1462
    %v4473 = vmul.f32 %v3688, %v1464
    %v4474 = vmul.f32 %v3737, %v1513
    %v4475 = vmul.f32 %v3739, %v1515
    %v4476 = vmul.f32 %v3788, %v1564
    %v4477 = vmul.f32 %v3790, %v1566
    %v4478 = vmul.f32 %v3839, %v1615
    %v4479 = vmul.f32 %v3841, %v1617
    %v4480 = vmul.f32 %v3890, %v1666
    %v4481 = vmul.f32 %v3892, %v1668
    %v4482 = vmul.f32 %v3941, %v1717
    %v4483 = vmul.f32 %v3943, %v1719
    %v4484 = vmul.f32 %v3992, %v1768
    %v4485 = vmul.f32 %v3994, %v1770
    %v4486 = vmul.f32 %v4043, %v1819
    %v4487 = vmul.f32 %v4045, %v1821
    %v4488 = vmul.f32 %v4094, %v1870
    %v4489 = vmul.f32 %v4096, %v1872
    %v4490 = vmul.f32 %v4145, %v1921
    %v4491 = vmul.f32 %v4147, %v1923
    %v4492 = vmul.f32 %v4196, %v1972
    %v4493 = vmul.f32 %v4198, %v1974
    %v4494 = vmul.f32 %v4247, %v2023
    %v4495 = vmul.f32 %v4249, %v2025
    %v4496 = vmul.f32 %v4298, %v2074
    %v4497 = vmul.f32 %v4300, %v2076
    %v4498 = vmul.f32 %v4349, %v2125
    %v4499 = vmul.f32 %v4351, %v2127
    %v4500 = vmul.f32 %v4400, %v2176
    %v4501 = vmul.f32 %v4402, %v2178
    %v4502 = vpack.c.bf16 %v4438, %v4406
    %v4503 = vpack.c.bf16 %v4439, %v4407
    %v4504 = vpack.c.bf16 %v4440, %v4408
    %v4505 = vpack.c.bf16 %v4441, %v4409
    %v4506 = vpack.c.bf16 %v4442, %v4410
    %v4507 = vpack.c.bf16 %v4443, %v4411
    %v4508 = vpack.c.bf16 %v4444, %v4412
    %v4509 = vpack.c.bf16 %v4445, %v4413
    %v4510 = vpack.c.bf16 %v4446, %v4414
    %v4511 = vpack.c.bf16 %v4447, %v4415
    %v4512 = vpack.c.bf16 %v4448, %v4416
    %v4513 = vpack.c.bf16 %v4449, %v4417
    %v4514 = vpack.c.bf16 %v4450, %v4418
    %v4515 = vpack.c.bf16 %v4451, %v4419
    %v4516 = vpack.c.bf16 %v4452, %v4420
    %v4517 = vpack.c.bf16 %v4453, %v4421
    %v4518 = vpack.c.bf16 %v4454, %v4422
    %v4519 = vpack.c.bf16 %v4455, %v4423
    %v4520 = vpack.c.bf16 %v4456, %v4424
    %v4521 = vpack.c.bf16 %v4457, %v4425
    %v4522 = vpack.c.bf16 %v4458, %v4426
    %v4523 = vpack.c.bf16 %v4459, %v4427
    %v4524 = vpack.c.bf16 %v4460, %v4428
    %v4525 = vpack.c.bf16 %v4461, %v4429
    %v4526 = vpack.c.bf16 %v4462, %v4430
    %v4527 = vpack.c.bf16 %v4463, %v4431
    %v4528 = vpack.c.bf16 %v4464, %v4432
    %v4529 = vpack.c.bf16 %v4465, %v4433
    %v4530 = vpack.c.bf16 %v4466, %v4434
    %v4531 = vpack.c.bf16 %v4467, %v4435
    %v4532 = vpack.c.bf16 %v4468, %v4436
    %v4533 = vpack.c.bf16 %v4469, %v4437
    %v4534 = vpack.c.bf16 %v4470, %v4470
    %v4535 = vpack.c.bf16 %v4471, %v4471
    %v4536 = vpack.c.bf16 %v4472, %v4472
    %v4537 = vpack.c.bf16 %v4473, %v4473
    %v4538 = vpack.c.bf16 %v4474, %v4474
    %v4539 = vpack.c.bf16 %v4475, %v4475
    %v4540 = vpack.c.bf16 %v4476, %v4476
    %v4541 = vpack.c.bf16 %v4477, %v4477
    %v4542 = vpack.c.bf16 %v4478, %v4478
    %v4543 = vpack.c.bf16 %v4479, %v4479
    %v4544 = vpack.c.bf16 %v4480, %v4480
    %v4545 = vpack.c.bf16 %v4481, %v4481
    %v4546 = vpack.c.bf16 %v4482, %v4482
    %v4547 = vpack.c.bf16 %v4483, %v4483
    %v4548 = vpack.c.bf16 %v4484, %v4484
    %v4549 = vpack.c.bf16 %v4485, %v4485
    %v4550 = vpack.c.bf16 %v4486, %v4486
    %v4551 = vpack.c.bf16 %v4487, %v4487
    %v4552 = vpack.c.bf16 %v4488, %v4488
    %v4553 = vpack.c.bf16 %v4489, %v4489
    %v4554 = vpack.c.bf16 %v4490, %v4490
    %v4555 = vpack.c.bf16 %v4491, %v4491
    %v4556 = vpack.c.bf16 %v4492, %v4492
    %v4557 = vpack.c.bf16 %v4493, %v4493
    %v4558 = vpack.c.bf16 %v4494, %v4494
    %v4559 = vpack.c.bf16 %v4495, %v4495
    %v4560 = vpack.c.bf16 %v4496, %v4496
    %v4561 = vpack.c.bf16 %v4497, %v4497
    %v4562 = vpack.c.bf16 %v4498, %v4498
    %v4563 = vpack.c.bf16 %v4499, %v4499
    %v4564 = vpack.c.bf16 %v4500, %v4500
    %v4565 = vpack.c.bf16 %v4501, %v4501
    %v5078 = vunpack.c.l.b16 %v2310
    %v5079 = vunpack.c.l.b16 %v2311
    %v5080 = vunpack.c.l.b16 %v2312
    %v5081 = vunpack.c.l.b16 %v2313
    %v5082 = vunpack.c.l.b16 %v2314
    %v5083 = vunpack.c.l.b16 %v2315
    %v5084 = vunpack.c.l.b16 %v2316
    %v5085 = vunpack.c.l.b16 %v2317
    %v5086 = vunpack.c.l.b16 %v2318
    %v5087 = vunpack.c.l.b16 %v2319
    %v5088 = vunpack.c.l.b16 %v2320
    %v5089 = vunpack.c.l.b16 %v2321
    %v5090 = vunpack.c.l.b16 %v2322
    %v5091 = vunpack.c.l.b16 %v2323
    %v5092 = vunpack.c.l.b16 %v2324
    %v5093 = vunpack.c.l.b16 %v2325
    %v5094 = vunpack.c.l.b16 %v2326
    %v5095 = vunpack.c.l.b16 %v2327
    %v5096 = vunpack.c.l.b16 %v2328
    %v5097 = vunpack.c.l.b16 %v2329
    %v5098 = vunpack.c.l.b16 %v2330
    %v5099 = vunpack.c.l.b16 %v2331
    %v5100 = vunpack.c.l.b16 %v2332
    %v5101 = vunpack.c.l.b16 %v2333
    %v5102 = vunpack.c.l.b16 %v2334
    %v5103 = vunpack.c.l.b16 %v2335
    %v5104 = vunpack.c.l.b16 %v2336
    %v5105 = vunpack.c.l.b16 %v2337
    %v5106 = vunpack.c.l.b16 %v2338
    %v5107 = vunpack.c.l.b16 %v2339
    %v5108 = vunpack.c.l.b16 %v2340
    %v5109 = vunpack.c.l.b16 %v2341
    %v5110 = vunpack.c.l.b16 %v2342
    %v5111 = vunpack.c.l.b16 %v2343
    %v5112 = vunpack.c.l.b16 %v2344
    %v5113 = vunpack.c.l.b16 %v2345
    %v5114 = vunpack.c.l.b16 %v2346
    %v5115 = vunpack.c.l.b16 %v2347
    %v5116 = vunpack.c.l.b16 %v2348
    %v5117 = vunpack.c.l.b16 %v2349
    %v5118 = vunpack.c.l.b16 %v2350
    %v5119 = vunpack.c.l.b16 %v2351
    %v5120 = vunpack.c.l.b16 %v2352
    %v5121 = vunpack.c.l.b16 %v2353
    %v5122 = vunpack.c.l.b16 %v2354
    %v5123 = vunpack.c.l.b16 %v2355
    %v5124 = vunpack.c.l.b16 %v2356
    %v5125 = vunpack.c.l.b16 %v2357
    %v5126 = vunpack.c.l.b16 %v2358
    %v5127 = vunpack.c.l.b16 %v2359
    %v5128 = vunpack.c.l.b16 %v2360
    %v5129 = vunpack.c.l.b16 %v2361
    %v5130 = vunpack.c.l.b16 %v2362
    %v5131 = vunpack.c.l.b16 %v2363
    %v5132 = vunpack.c.l.b16 %v2364
    %v5133 = vunpack.c.l.b16 %v2365
    %v5134 = vunpack.c.l.b16 %v2366
    %v5135 = vunpack.c.l.b16 %v2367
    %v5136 = vunpack.c.l.b16 %v2368
    %v5137 = vunpack.c.l.b16 %v2369
    %v5138 = vunpack.c.l.b16 %v2370
    %v5139 = vunpack.c.l.b16 %v2371
    %v5140 = vunpack.c.l.b16 %v2372
    %v5141 = vunpack.c.l.b16 %v2373
    %v5142 = vunpack.c.l.b16 %v2374
    %v5143 = vunpack.c.l.b16 %v2375
    %v5144 = vunpack.c.l.b16 %v2376
    %v5145 = vunpack.c.l.b16 %v2377
    %v5146 = vunpack.c.l.b16 %v2378
    %v5147 = vunpack.c.l.b16 %v2379
    %v5148 = vunpack.c.l.b16 %v2380
    %v5149 = vunpack.c.l.b16 %v2381
    %v5150 = vunpack.c.l.b16 %v2382
    %v5151 = vunpack.c.l.b16 %v2383
    %v5152 = vunpack.c.l.b16 %v2384
    %v5153 = vunpack.c.l.b16 %v2385
    %v5154 = vunpack.c.l.b16 %v2386
    %v5155 = vunpack.c.l.b16 %v2387
    %v5156 = vunpack.c.l.b16 %v2388
    %v5157 = vunpack.c.l.b16 %v2389
    %v5158 = vunpack.c.l.b16 %v2390
    %v5159 = vunpack.c.l.b16 %v2391
    %v5160 = vunpack.c.l.b16 %v2392
    %v5161 = vunpack.c.l.b16 %v2393
    %v5162 = vunpack.c.l.b16 %v2394
    %v5163 = vunpack.c.l.b16 %v2395
    %v5164 = vunpack.c.l.b16 %v2396
    %v5165 = vunpack.c.l.b16 %v2397
    %v5166 = vunpack.c.l.b16 %v2398
    %v5167 = vunpack.c.l.b16 %v2399
    %v5168 = vunpack.c.l.b16 %v2400
    %v5169 = vunpack.c.l.b16 %v2401
    %v5170 = vunpack.c.l.b16 %v2402
    %v5171 = vunpack.c.l.b16 %v2403
    %v5172 = vunpack.c.l.b16 %v2404
    %v5173 = vunpack.c.l.b16 %v2405
    %v5174 = vunpack.c.l.b16 %v2406
    %v5175 = vunpack.c.l.b16 %v2407
    %v5176 = vunpack.c.l.b16 %v2408
    %v5177 = vunpack.c.l.b16 %v2409
    %v5178 = vunpack.c.l.b16 %v2410
    %v5179 = vunpack.c.l.b16 %v2411
    %v5180 = vunpack.c.l.b16 %v2412
    %v5181 = vunpack.c.l.b16 %v2413
    %v5182 = vunpack.c.l.b16 %v2414
    %v5183 = vunpack.c.l.b16 %v2415
    %v5184 = vunpack.c.l.b16 %v2416
    %v5185 = vunpack.c.l.b16 %v2417
    %v5186 = vunpack.c.l.b16 %v2418
    %v5187 = vunpack.c.l.b16 %v2419
    %v5188 = vunpack.c.l.b16 %v2420
    %v5189 = vunpack.c.l.b16 %v2421
    %v5190 = vunpack.c.l.b16 %v2422
    %v5191 = vunpack.c.l.b16 %v2423
    %v5192 = vunpack.c.l.b16 %v2424
    %v5193 = vunpack.c.l.b16 %v2425
    %v5194 = vunpack.c.l.b16 %v2426
    %v5195 = vunpack.c.l.b16 %v2427
    %v5196 = vunpack.c.l.b16 %v2428
    %v5197 = vunpack.c.l.b16 %v2429
    %v5198 = vunpack.c.l.b16 %v2430
    %v5199 = vunpack.c.l.b16 %v2431
    %v5200 = vunpack.c.l.b16 %v2432
    %v5201 = vunpack.c.l.b16 %v2433
    %v5202 = vunpack.c.l.b16 %v2434
    %v5203 = vunpack.c.l.b16 %v2435
    %v5204 = vunpack.c.l.b16 %v2436
    %v5205 = vunpack.c.l.b16 %v2437
    %v5206 = vunpack.c.l.b16 %v2438
    %v5207 = vunpack.c.l.b16 %v2439
    %v5208 = vunpack.c.l.b16 %v2440
    %v5209 = vunpack.c.l.b16 %v2441
    %v5210 = vunpack.c.l.b16 %v2442
    %v5211 = vunpack.c.l.b16 %v2443
    %v5212 = vunpack.c.l.b16 %v2444
    %v5213 = vunpack.c.l.b16 %v2445
    %v5214 = vunpack.c.l.b16 %v2446
    %v5215 = vunpack.c.l.b16 %v2447
    %v5216 = vunpack.c.l.b16 %v2448
    %v5217 = vunpack.c.l.b16 %v2449
    %v5218 = vunpack.c.l.b16 %v2450
    %v5219 = vunpack.c.l.b16 %v2451
    %v5220 = vunpack.c.l.b16 %v2452
    %v5221 = vunpack.c.l.b16 %v2453
    %v5222 = vunpack.c.l.b16 %v2454
    %v5223 = vunpack.c.l.b16 %v2455
    %v5224 = vunpack.c.l.b16 %v2456
    %v5225 = vunpack.c.l.b16 %v2457
    %v5226 = vunpack.c.l.b16 %v2458
    %v5227 = vunpack.c.l.b16 %v2459
    %v5228 = vunpack.c.l.b16 %v2460
    %v5229 = vunpack.c.l.b16 %v2461
    %v5230 = vunpack.c.l.b16 %v2462
    %v5231 = vunpack.c.l.b16 %v2463
    %v5232 = vunpack.c.l.b16 %v2464
    %v5233 = vunpack.c.l.b16 %v2465
    %v5234 = vunpack.c.l.b16 %v2466
    %v5235 = vunpack.c.l.b16 %v2467
    %v5236 = vunpack.c.l.b16 %v2468
    %v5237 = vunpack.c.l.b16 %v2469
    %v5238 = vunpack.c.l.b16 %v2470
    %v5239 = vunpack.c.l.b16 %v2471
    %v5240 = vunpack.c.l.b16 %v2472
    %v5241 = vunpack.c.l.b16 %v2473
    %v5242 = vunpack.c.l.b16 %v2474
    %v5243 = vunpack.c.l.b16 %v2475
    %v5244 = vunpack.c.l.b16 %v2476
    %v5245 = vunpack.c.l.b16 %v2477
    %v5246 = vunpack.c.l.b16 %v2478
    %v5247 = vunpack.c.l.b16 %v2479
    %v5248 = vunpack.c.l.b16 %v2480
    %v5249 = vunpack.c.l.b16 %v2481
    %v5250 = vunpack.c.l.b16 %v2482
    %v5251 = vunpack.c.l.b16 %v2483
    %v5252 = vunpack.c.l.b16 %v2484
    %v5253 = vunpack.c.l.b16 %v2485
    %v5254 = vunpack.c.l.b16 %v2486
    %v5255 = vunpack.c.l.b16 %v2487
    %v5256 = vunpack.c.l.b16 %v2488
    %v5257 = vunpack.c.l.b16 %v2489
    %v5258 = vunpack.c.l.b16 %v2490
    %v5259 = vunpack.c.l.b16 %v2491
    %v5260 = vunpack.c.l.b16 %v2492
    %v5261 = vunpack.c.l.b16 %v2493
    %v5262 = vunpack.c.l.b16 %v2494
    %v5263 = vunpack.c.l.b16 %v2495
    %v5264 = vunpack.c.l.b16 %v2496
    %v5265 = vunpack.c.l.b16 %v2497
    %v5266 = vunpack.c.l.b16 %v2498
    %v5267 = vunpack.c.l.b16 %v2499
    %v5268 = vunpack.c.l.b16 %v2500
    %v5269 = vunpack.c.l.b16 %v2501
    %v5270 = vunpack.c.l.b16 %v2502
    %v5271 = vunpack.c.l.b16 %v2503
    %v5272 = vunpack.c.l.b16 %v2504
    %v5273 = vunpack.c.l.b16 %v2505
    %v5274 = vunpack.c.l.b16 %v2506
    %v5275 = vunpack.c.l.b16 %v2507
    %v5276 = vunpack.c.l.b16 %v2508
    %v5277 = vunpack.c.l.b16 %v2509
    %v5278 = vunpack.c.l.b16 %v2510
    %v5279 = vunpack.c.l.b16 %v2511
    %v5280 = vunpack.c.l.b16 %v2512
    %v5281 = vunpack.c.l.b16 %v2513
    %v5282 = vunpack.c.l.b16 %v2514
    %v5283 = vunpack.c.l.b16 %v2515
    %v5284 = vunpack.c.l.b16 %v2516
    %v5285 = vunpack.c.l.b16 %v2517
    %v5286 = vunpack.c.l.b16 %v2518
    %v5287 = vunpack.c.l.b16 %v2519
    %v5288 = vunpack.c.l.b16 %v2520
    %v5289 = vunpack.c.l.b16 %v2521
    %v5290 = vunpack.c.l.b16 %v2522
    %v5291 = vunpack.c.l.b16 %v2523
    %v5292 = vunpack.c.l.b16 %v2524
    %v5293 = vunpack.c.l.b16 %v2525
    %v5294 = vunpack.c.l.b16 %v2526
    %v5295 = vunpack.c.l.b16 %v2527
    %v5296 = vunpack.c.l.b16 %v2528
    %v5297 = vunpack.c.l.b16 %v2529
    %v5298 = vunpack.c.l.b16 %v2530
    %v5299 = vunpack.c.l.b16 %v2531
    %v5300 = vunpack.c.l.b16 %v2532
    %v5301 = vunpack.c.l.b16 %v2533
    %v5302 = vunpack.c.l.b16 %v2534
    %v5303 = vunpack.c.l.b16 %v2535
    %v5304 = vunpack.c.l.b16 %v2536
    %v5305 = vunpack.c.l.b16 %v2537
    %v5306 = vunpack.c.l.b16 %v2538
    %v5307 = vunpack.c.l.b16 %v2539
    %v5308 = vunpack.c.l.b16 %v2540
    %v5309 = vunpack.c.l.b16 %v2541
    %v5310 = vunpack.c.l.b16 %v2542
    %v5311 = vunpack.c.l.b16 %v2543
    %v5312 = vunpack.c.l.b16 %v2544
    %v5313 = vunpack.c.l.b16 %v2545
    %v5314 = vunpack.c.l.b16 %v2546
    %v5315 = vunpack.c.l.b16 %v2547
    %v5316 = vunpack.c.l.b16 %v2548
    %v5317 = vunpack.c.l.b16 %v2549
    %v5318 = vunpack.c.l.b16 %v2550
    %v5319 = vunpack.c.l.b16 %v2551
    %v5320 = vunpack.c.l.b16 %v2552
    %v5321 = vunpack.c.l.b16 %v2553
    %v5322 = vunpack.c.l.b16 %v2554
    %v5323 = vunpack.c.l.b16 %v2555
    %v5324 = vunpack.c.l.b16 %v2556
    %v5325 = vunpack.c.l.b16 %v2557
    %v5326 = vunpack.c.l.b16 %v2558
    %v5327 = vunpack.c.l.b16 %v2559
    %v5328 = vunpack.c.l.b16 %v2560
    %v5329 = vunpack.c.l.b16 %v2561
    %v5330 = vunpack.c.l.b16 %v2562
    %v5331 = vunpack.c.l.b16 %v2563
    %v5332 = vunpack.c.l.b16 %v2564
    %v5333 = vunpack.c.l.b16 %v2565
    %v5334 = vunpack.c.l.b16 %v2566
    %v5335 = vunpack.c.l.b16 %v2567
    %v5336 = vunpack.c.l.b16 %v2568
    %v5337 = vunpack.c.l.b16 %v2569
    %v5338 = vunpack.c.l.b16 %v2570
    %v5339 = vunpack.c.l.b16 %v2571
    %v5340 = vunpack.c.l.b16 %v2572
    %v5341 = vunpack.c.l.b16 %v2573
    %v5342 = vunpack.c.l.b16 %v2574
    %v5343 = vunpack.c.l.b16 %v2575
    %v5344 = vunpack.c.l.b16 %v2576
    %v5345 = vunpack.c.l.b16 %v2577
    %v5346 = vunpack.c.l.b16 %v2578
    %v5347 = vunpack.c.l.b16 %v2579
    %v5348 = vunpack.c.l.b16 %v2580
    %v5349 = vunpack.c.l.b16 %v2581
    %v5350 = vunpack.c.l.b16 %v2582
    %v5351 = vunpack.c.l.b16 %v2583
    %v5352 = vunpack.c.l.b16 %v2584
    %v5353 = vunpack.c.l.b16 %v2585
    %v5354 = vunpack.c.l.b16 %v2586
    %v5355 = vunpack.c.l.b16 %v2587
    %v5356 = vunpack.c.l.b16 %v2588
    %v5357 = vunpack.c.l.b16 %v2589
    %v5358 = vunpack.c.l.b16 %v2590
    %v5359 = vunpack.c.l.b16 %v2591
    %v5360 = vunpack.c.l.b16 %v2592
    %v5361 = vunpack.c.l.b16 %v2593
    %v5362 = vunpack.c.l.b16 %v2594
    %v5363 = vunpack.c.l.b16 %v2595
    %v5364 = vunpack.c.l.b16 %v2596
    %v5365 = vunpack.c.l.b16 %v2597
    %v5366 = vunpack.c.l.b16 %v2598
    %v5367 = vunpack.c.l.b16 %v2599
    %v5368 = vunpack.c.l.b16 %v2600
    %v5369 = vunpack.c.l.b16 %v2601
    %v5370 = vunpack.c.l.b16 %v2602
    %v5371 = vunpack.c.l.b16 %v2603
    %v5372 = vunpack.c.l.b16 %v2604
    %v5373 = vunpack.c.l.b16 %v2605
    %v5374 = vunpack.c.l.b16 %v2606
    %v5375 = vunpack.c.l.b16 %v2607
    %v5376 = vunpack.c.l.b16 %v2608
    %v5377 = vunpack.c.l.b16 %v2609
    %v5378 = vunpack.c.l.b16 %v2610
    %v5379 = vunpack.c.l.b16 %v2611
    %v5380 = vunpack.c.l.b16 %v2612
    %v5381 = vunpack.c.l.b16 %v2613
    %v5382 = vunpack.c.l.b16 %v2614
    %v5383 = vunpack.c.l.b16 %v2615
    %v5384 = vunpack.c.l.b16 %v2616
    %v5385 = vunpack.c.l.b16 %v2617
    %v5386 = vunpack.c.l.b16 %v2618
    %v5387 = vunpack.c.l.b16 %v2619
    %v5388 = vunpack.c.l.b16 %v2620
    %v5389 = vunpack.c.l.b16 %v2621
    %v5390 = vunpack.c.l.b16 %v2622
    %v5391 = vunpack.c.l.b16 %v2623
    %v5392 = vunpack.c.l.b16 %v2624
    %v5393 = vunpack.c.l.b16 %v2625
    %v5394 = vunpack.c.l.b16 %v2626
    %v5395 = vunpack.c.l.b16 %v2627
    %v5396 = vunpack.c.l.b16 %v2628
    %v5397 = vunpack.c.l.b16 %v2629
    %v5398 = vunpack.c.l.b16 %v2630
    %v5399 = vunpack.c.l.b16 %v2631
    %v5400 = vunpack.c.l.b16 %v2632
    %v5401 = vunpack.c.l.b16 %v2633
    %v5402 = vunpack.c.l.b16 %v2634
    %v5403 = vunpack.c.l.b16 %v2635
    %v5404 = vunpack.c.l.b16 %v2636
    %v5405 = vunpack.c.l.b16 %v2637
    %v5406 = vunpack.c.l.b16 %v2638
    %v5407 = vunpack.c.l.b16 %v2639
    %v5408 = vunpack.c.l.b16 %v2640
    %v5409 = vunpack.c.l.b16 %v2641
    %v5410 = vunpack.c.l.b16 %v2642
    %v5411 = vunpack.c.l.b16 %v2643
    %v5412 = vunpack.c.l.b16 %v2644
    %v5413 = vunpack.c.l.b16 %v2645
    %v5414 = vunpack.c.l.b16 %v2646
    %v5415 = vunpack.c.l.b16 %v2647
    %v5416 = vunpack.c.l.b16 %v2648
    %v5417 = vunpack.c.l.b16 %v2649
    %v5418 = vunpack.c.l.b16 %v2650
    %v5419 = vunpack.c.l.b16 %v2651
    %v5420 = vunpack.c.l.b16 %v2652
    %v5421 = vunpack.c.l.b16 %v2653
    %v5422 = vunpack.c.l.b16 %v2654
    %v5423 = vunpack.c.l.b16 %v2655
    %v5424 = vunpack.c.l.b16 %v2656
    %v5425 = vunpack.c.l.b16 %v2657
    %v5426 = vunpack.c.l.b16 %v2658
    %v5427 = vunpack.c.l.b16 %v2659
    %v5428 = vunpack.c.l.b16 %v2660
    %v5429 = vunpack.c.l.b16 %v2661
    %v5430 = vunpack.c.l.b16 %v2662
    %v5431 = vunpack.c.l.b16 %v2663
    %v5432 = vunpack.c.l.b16 %v2664
    %v5433 = vunpack.c.l.b16 %v2665
    %v5434 = vunpack.c.l.b16 %v2666
    %v5435 = vunpack.c.l.b16 %v2667
    %v5436 = vunpack.c.l.b16 %v2668
    %v5437 = vunpack.c.l.b16 %v2669
    %v5438 = vunpack.c.l.b16 %v2670
    %v5439 = vunpack.c.l.b16 %v2671
    %v5440 = vunpack.c.l.b16 %v2672
    %v5441 = vunpack.c.l.b16 %v2673
    %v5442 = vunpack.c.l.b16 %v2674
    %v5443 = vunpack.c.l.b16 %v2675
    %v5444 = vunpack.c.l.b16 %v2676
    %v5445 = vunpack.c.l.b16 %v2677
    %v5446 = vunpack.c.l.b16 %v2678
    %v5447 = vunpack.c.l.b16 %v2679
    %v5448 = vunpack.c.l.b16 %v2680
    %v5449 = vunpack.c.l.b16 %v2681
    %v5450 = vunpack.c.l.b16 %v2682
    %v5451 = vunpack.c.l.b16 %v2683
    %v5452 = vunpack.c.l.b16 %v2684
    %v5453 = vunpack.c.l.b16 %v2685
    %v5454 = vunpack.c.l.b16 %v2686
    %v5455 = vunpack.c.l.b16 %v2687
    %v5456 = vunpack.c.l.b16 %v2688
    %v5457 = vunpack.c.l.b16 %v2689
    %v5458 = vunpack.c.l.b16 %v2690
    %v5459 = vunpack.c.l.b16 %v2691
    %v5460 = vunpack.c.l.b16 %v2692
    %v5461 = vunpack.c.l.b16 %v2693
    %v5462 = vunpack.c.l.b16 %v2694
    %v5463 = vunpack.c.l.b16 %v2695
    %v5464 = vunpack.c.l.b16 %v2696
    %v5465 = vunpack.c.l.b16 %v2697
    %v5466 = vunpack.c.l.b16 %v2698
    %v5467 = vunpack.c.l.b16 %v2699
    %v5468 = vunpack.c.l.b16 %v2700
    %v5469 = vunpack.c.l.b16 %v2701
    %v5470 = vunpack.c.l.b16 %v2702
    %v5471 = vunpack.c.l.b16 %v2703
    %v5472 = vunpack.c.l.b16 %v2704
    %v5473 = vunpack.c.l.b16 %v2705
    %v5474 = vunpack.c.l.b16 %v2706
    %v5475 = vunpack.c.l.b16 %v2707
    %v5476 = vunpack.c.l.b16 %v2708
    %v5477 = vunpack.c.l.b16 %v2709
    %v5478 = vunpack.c.l.b16 %v2710
    %v5479 = vunpack.c.l.b16 %v2711
    %v5480 = vunpack.c.l.b16 %v2712
    %v5481 = vunpack.c.l.b16 %v2713
    %v5482 = vunpack.c.l.b16 %v2714
    %v5483 = vunpack.c.l.b16 %v2715
    %v5484 = vunpack.c.l.b16 %v2716
    %v5485 = vunpack.c.l.b16 %v2717
    %v5486 = vunpack.c.l.b16 %v2718
    %v5487 = vunpack.c.l.b16 %v2719
    %v5488 = vunpack.c.l.b16 %v2720
    %v5489 = vunpack.c.l.b16 %v2721
    %v5490 = vunpack.c.l.b16 %v2722
    %v5491 = vunpack.c.l.b16 %v2723
    %v5492 = vunpack.c.l.b16 %v2724
    %v5493 = vunpack.c.l.b16 %v2725
    %v5494 = vunpack.c.l.b16 %v2726
    %v5495 = vunpack.c.l.b16 %v2727
    %v5496 = vunpack.c.l.b16 %v2728
    %v5497 = vunpack.c.l.b16 %v2729
    %v5498 = vunpack.c.l.b16 %v2730
    %v5499 = vunpack.c.l.b16 %v2731
    %v5500 = vunpack.c.l.b16 %v2732
    %v5501 = vunpack.c.l.b16 %v2733
    %v5502 = vunpack.c.l.b16 %v2734
    %v5503 = vunpack.c.l.b16 %v2735
    %v5504 = vunpack.c.l.b16 %v2736
    %v5505 = vunpack.c.l.b16 %v2737
    %v5506 = vunpack.c.l.b16 %v2738
    %v5507 = vunpack.c.l.b16 %v2739
    %v5508 = vunpack.c.l.b16 %v2740
    %v5509 = vunpack.c.l.b16 %v2741
    %v5510 = vunpack.c.l.b16 %v2742
    %v5511 = vunpack.c.l.b16 %v2743
    %v5512 = vunpack.c.l.b16 %v2744
    %v5513 = vunpack.c.l.b16 %v2745
    %v5514 = vunpack.c.l.b16 %v2746
    %v5515 = vunpack.c.l.b16 %v2747
    %v5516 = vunpack.c.l.b16 %v2748
    %v5517 = vunpack.c.l.b16 %v2749
    %v5518 = vunpack.c.l.b16 %v2750
    %v5519 = vunpack.c.l.b16 %v2751
    %v5520 = vunpack.c.l.b16 %v2752
    %v5521 = vunpack.c.l.b16 %v2753
    %v5522 = vunpack.c.l.b16 %v2754
    %v5523 = vunpack.c.l.b16 %v2755
    %v5524 = vunpack.c.l.b16 %v2756
    %v5525 = vunpack.c.l.b16 %v2757
    %v5526 = vunpack.c.l.b16 %v2758
    %v5527 = vunpack.c.l.b16 %v2759
    %v5528 = vunpack.c.l.b16 %v2760
    %v5529 = vunpack.c.l.b16 %v2761
    %v5530 = vunpack.c.l.b16 %v2762
    %v5531 = vunpack.c.l.b16 %v2763
    %v5532 = vunpack.c.l.b16 %v2764
    %v5533 = vunpack.c.l.b16 %v2765
    %v5534 = vunpack.c.l.b16 %v2766
    %v5535 = vunpack.c.l.b16 %v2767
    %v5536 = vunpack.c.l.b16 %v2768
    %v5537 = vunpack.c.l.b16 %v2769
    %v5538 = vunpack.c.l.b16 %v2770
    %v5539 = vunpack.c.l.b16 %v2771
    %v5540 = vunpack.c.l.b16 %v2772
    %v5541 = vunpack.c.l.b16 %v2773
    %v5542 = vunpack.c.l.b16 %v2774
    %v5543 = vunpack.c.l.b16 %v2775
    %v5544 = vunpack.c.l.b16 %v2776
    %v5545 = vunpack.c.l.b16 %v2777
    %v5546 = vunpack.c.l.b16 %v2778
    %v5547 = vunpack.c.l.b16 %v2779
    %v5548 = vunpack.c.l.b16 %v2780
    %v5549 = vunpack.c.l.b16 %v2781
    %v5550 = vunpack.c.l.b16 %v2782
    %v5551 = vunpack.c.l.b16 %v2783
    %v5552 = vunpack.c.l.b16 %v2784
    %v5553 = vunpack.c.l.b16 %v2785
    %v5554 = vunpack.c.l.b16 %v2786
    %v5555 = vunpack.c.l.b16 %v2787
    %v5556 = vunpack.c.l.b16 %v2788
    %v5557 = vunpack.c.l.b16 %v2789
    %v5558 = vunpack.c.l.b16 %v2790
    %v5559 = vunpack.c.l.b16 %v2791
    %v5560 = vunpack.c.l.b16 %v2792
    %v5561 = vunpack.c.l.b16 %v2793
    %v5562 = vunpack.c.l.b16 %v2794
    %v5563 = vunpack.c.l.b16 %v2795
    %v5564 = vunpack.c.l.b16 %v2796
    %v5565 = vunpack.c.l.b16 %v2797
    %v5566 = vunpack.c.l.b16 %v2798
    %v5567 = vunpack.c.l.b16 %v2799
    %v5568 = vunpack.c.l.b16 %v2800
    %v5569 = vunpack.c.l.b16 %v2801
    %v5570 = vunpack.c.l.b16 %v2802
    %v5571 = vunpack.c.l.b16 %v2803
    %v5572 = vunpack.c.l.b16 %v2804
    %v5573 = vunpack.c.l.b16 %v2805
    %v5574 = vunpack.c.l.b16 %v2806
    %v5575 = vunpack.c.l.b16 %v2807
    %v5576 = vunpack.c.l.b16 %v2808
    %v5577 = vunpack.c.l.b16 %v2809
    %v5578 = vunpack.c.l.b16 %v2810
    %v5579 = vunpack.c.l.b16 %v2811
    %v5580 = vunpack.c.l.b16 %v2812
    %v5581 = vunpack.c.l.b16 %v2813
    %v5582 = vunpack.c.l.b16 %v2814
    %v5583 = vunpack.c.l.b16 %v2815
    %v5584 = vunpack.c.l.b16 %v2816
    %v5585 = vunpack.c.l.b16 %v2817
    %v5586 = vunpack.c.l.b16 %v2818
    %v5587 = vunpack.c.l.b16 %v2819
    %v5588 = vunpack.c.l.b16 %v2820
    %v5589 = vunpack.c.l.b16 %v2821
    %v5590 = vpack.c.b16 %v5079, %v5078
    %v5591 = vpack.c.b16 %v5081, %v5080
    %v5592 = vpack.c.b16 %v5083, %v5082
    %v5593 = vpack.c.b16 %v5085, %v5084
    %v5594 = vpack.c.b16 %v5087, %v5086
    %v5595 = vpack.c.b16 %v5089, %v5088
    %v5596 = vpack.c.b16 %v5091, %v5090
    %v5597 = vpack.c.b16 %v5093, %v5092
    %v5598 = vpack.c.b16 %v5095, %v5094
    %v5599 = vpack.c.b16 %v5097, %v5096
    %v5600 = vpack.c.b16 %v5099, %v5098
    %v5601 = vpack.c.b16 %v5101, %v5100
    %v5602 = vpack.c.b16 %v5103, %v5102
    %v5603 = vpack.c.b16 %v5105, %v5104
    %v5604 = vpack.c.b16 %v5107, %v5106
    %v5605 = vpack.c.b16 %v5109, %v5108
    %v5606 = vpack.c.b16 %v5111, %v5110
    %v5607 = vpack.c.b16 %v5113, %v5112
    %v5608 = vpack.c.b16 %v5115, %v5114
    %v5609 = vpack.c.b16 %v5117, %v5116
    %v5610 = vpack.c.b16 %v5119, %v5118
    %v5611 = vpack.c.b16 %v5121, %v5120
    %v5612 = vpack.c.b16 %v5123, %v5122
    %v5613 = vpack.c.b16 %v5125, %v5124
    %v5614 = vpack.c.b16 %v5127, %v5126
    %v5615 = vpack.c.b16 %v5129, %v5128
    %v5616 = vpack.c.b16 %v5131, %v5130
    %v5617 = vpack.c.b16 %v5133, %v5132
    %v5618 = vpack.c.b16 %v5135, %v5134
    %v5619 = vpack.c.b16 %v5137, %v5136
    %v5620 = vpack.c.b16 %v5139, %v5138
    %v5621 = vpack.c.b16 %v5141, %v5140
    %v5622 = vpack.c.b16 %v5143, %v5142
    %v5623 = vpack.c.b16 %v5145, %v5144
    %v5624 = vpack.c.b16 %v5147, %v5146
    %v5625 = vpack.c.b16 %v5149, %v5148
    %v5626 = vpack.c.b16 %v5151, %v5150
    %v5627 = vpack.c.b16 %v5153, %v5152
    %v5628 = vpack.c.b16 %v5155, %v5154
    %v5629 = vpack.c.b16 %v5157, %v5156
    %v5630 = vpack.c.b16 %v5159, %v5158
    %v5631 = vpack.c.b16 %v5161, %v5160
    %v5632 = vpack.c.b16 %v5163, %v5162
    %v5633 = vpack.c.b16 %v5165, %v5164
    %v5634 = vpack.c.b16 %v5167, %v5166
    %v5635 = vpack.c.b16 %v5169, %v5168
    %v5636 = vpack.c.b16 %v5171, %v5170
    %v5637 = vpack.c.b16 %v5173, %v5172
    %v5638 = vpack.c.b16 %v5175, %v5174
    %v5639 = vpack.c.b16 %v5177, %v5176
    %v5640 = vpack.c.b16 %v5179, %v5178
    %v5641 = vpack.c.b16 %v5181, %v5180
    %v5642 = vpack.c.b16 %v5183, %v5182
    %v5643 = vpack.c.b16 %v5185, %v5184
    %v5644 = vpack.c.b16 %v5187, %v5186
    %v5645 = vpack.c.b16 %v5189, %v5188
    %v5646 = vpack.c.b16 %v5191, %v5190
    %v5647 = vpack.c.b16 %v5193, %v5192
    %v5648 = vpack.c.b16 %v5195, %v5194
    %v5649 = vpack.c.b16 %v5197, %v5196
    %v5650 = vpack.c.b16 %v5199, %v5198
    %v5651 = vpack.c.b16 %v5201, %v5200
    %v5652 = vpack.c.b16 %v5203, %v5202
    %v5653 = vpack.c.b16 %v5205, %v5204
    %v5654 = vpack.c.b16 %v5207, %v5206
    %v5655 = vpack.c.b16 %v5209, %v5208
    %v5656 = vpack.c.b16 %v5211, %v5210
    %v5657 = vpack.c.b16 %v5213, %v5212
    %v5658 = vpack.c.b16 %v5215, %v5214
    %v5659 = vpack.c.b16 %v5217, %v5216
    %v5660 = vpack.c.b16 %v5219, %v5218
    %v5661 = vpack.c.b16 %v5221, %v5220
    %v5662 = vpack.c.b16 %v5223, %v5222
    %v5663 = vpack.c.b16 %v5225, %v5224
    %v5664 = vpack.c.b16 %v5227, %v5226
    %v5665 = vpack.c.b16 %v5229, %v5228
    %v5666 = vpack.c.b16 %v5231, %v5230
    %v5667 = vpack.c.b16 %v5233, %v5232
    %v5668 = vpack.c.b16 %v5235, %v5234
    %v5669 = vpack.c.b16 %v5237, %v5236
    %v5670 = vpack.c.b16 %v5239, %v5238
    %v5671 = vpack.c.b16 %v5241, %v5240
    %v5672 = vpack.c.b16 %v5243, %v5242
    %v5673 = vpack.c.b16 %v5245, %v5244
    %v5674 = vpack.c.b16 %v5247, %v5246
    %v5675 = vpack.c.b16 %v5249, %v5248
    %v5676 = vpack.c.b16 %v5251, %v5250
    %v5677 = vpack.c.b16 %v5253, %v5252
    %v5678 = vpack.c.b16 %v5255, %v5254
    %v5679 = vpack.c.b16 %v5257, %v5256
    %v5680 = vpack.c.b16 %v5259, %v5258
    %v5681 = vpack.c.b16 %v5261, %v5260
    %v5682 = vpack.c.b16 %v5263, %v5262
    %v5683 = vpack.c.b16 %v5265, %v5264
    %v5684 = vpack.c.b16 %v5267, %v5266
    %v5685 = vpack.c.b16 %v5269, %v5268
    %v5686 = vpack.c.b16 %v5271, %v5270
    %v5687 = vpack.c.b16 %v5273, %v5272
    %v5688 = vpack.c.b16 %v5275, %v5274
    %v5689 = vpack.c.b16 %v5277, %v5276
    %v5690 = vpack.c.b16 %v5279, %v5278
    %v5691 = vpack.c.b16 %v5281, %v5280
    %v5692 = vpack.c.b16 %v5283, %v5282
    %v5693 = vpack.c.b16 %v5285, %v5284
    %v5694 = vpack.c.b16 %v5287, %v5286
    %v5695 = vpack.c.b16 %v5289, %v5288
    %v5696 = vpack.c.b16 %v5291, %v5290
    %v5697 = vpack.c.b16 %v5293, %v5292
    %v5698 = vpack.c.b16 %v5295, %v5294
    %v5699 = vpack.c.b16 %v5297, %v5296
    %v5700 = vpack.c.b16 %v5299, %v5298
    %v5701 = vpack.c.b16 %v5301, %v5300
    %v5702 = vpack.c.b16 %v5303, %v5302
    %v5703 = vpack.c.b16 %v5305, %v5304
    %v5704 = vpack.c.b16 %v5307, %v5306
    %v5705 = vpack.c.b16 %v5309, %v5308
    %v5706 = vpack.c.b16 %v5311, %v5310
    %v5707 = vpack.c.b16 %v5313, %v5312
    %v5708 = vpack.c.b16 %v5315, %v5314
    %v5709 = vpack.c.b16 %v5317, %v5316
    %v5710 = vpack.c.b16 %v5319, %v5318
    %v5711 = vpack.c.b16 %v5321, %v5320
    %v5712 = vpack.c.b16 %v5323, %v5322
    %v5713 = vpack.c.b16 %v5325, %v5324
    %v5714 = vpack.c.b16 %v5327, %v5326
    %v5715 = vpack.c.b16 %v5329, %v5328
    %v5716 = vpack.c.b16 %v5331, %v5330
    %v5717 = vpack.c.b16 %v5333, %v5332
    %v5718 = vpack.c.b16 %v5335, %v5334
    %v5719 = vpack.c.b16 %v5337, %v5336
    %v5720 = vpack.c.b16 %v5339, %v5338
    %v5721 = vpack.c.b16 %v5341, %v5340
    %v5722 = vpack.c.b16 %v5343, %v5342
    %v5723 = vpack.c.b16 %v5345, %v5344
    %v5724 = vpack.c.b16 %v5347, %v5346
    %v5725 = vpack.c.b16 %v5349, %v5348
    %v5726 = vpack.c.b16 %v5351, %v5350
    %v5727 = vpack.c.b16 %v5353, %v5352
    %v5728 = vpack.c.b16 %v5355, %v5354
    %v5729 = vpack.c.b16 %v5357, %v5356
    %v5730 = vpack.c.b16 %v5359, %v5358
    %v5731 = vpack.c.b16 %v5361, %v5360
    %v5732 = vpack.c.b16 %v5363, %v5362
    %v5733 = vpack.c.b16 %v5365, %v5364
    %v5734 = vpack.c.b16 %v5367, %v5366
    %v5735 = vpack.c.b16 %v5369, %v5368
    %v5736 = vpack.c.b16 %v5371, %v5370
    %v5737 = vpack.c.b16 %v5373, %v5372
    %v5738 = vpack.c.b16 %v5375, %v5374
    %v5739 = vpack.c.b16 %v5377, %v5376
    %v5740 = vpack.c.b16 %v5379, %v5378
    %v5741 = vpack.c.b16 %v5381, %v5380
    %v5742 = vpack.c.b16 %v5383, %v5382
    %v5743 = vpack.c.b16 %v5385, %v5384
    %v5744 = vpack.c.b16 %v5387, %v5386
    %v5745 = vpack.c.b16 %v5389, %v5388
    %v5746 = vpack.c.b16 %v5391, %v5390
    %v5747 = vpack.c.b16 %v5393, %v5392
    %v5748 = vpack.c.b16 %v5395, %v5394
    %v5749 = vpack.c.b16 %v5397, %v5396
    %v5750 = vpack.c.b16 %v5399, %v5398
    %v5751 = vpack.c.b16 %v5401, %v5400
    %v5752 = vpack.c.b16 %v5403, %v5402
    %v5753 = vpack.c.b16 %v5405, %v5404
    %v5754 = vpack.c.b16 %v5407, %v5406
    %v5755 = vpack.c.b16 %v5409, %v5408
    %v5756 = vpack.c.b16 %v5411, %v5410
    %v5757 = vpack.c.b16 %v5413, %v5412
    %v5758 = vpack.c.b16 %v5415, %v5414
    %v5759 = vpack.c.b16 %v5417, %v5416
    %v5760 = vpack.c.b16 %v5419, %v5418
    %v5761 = vpack.c.b16 %v5421, %v5420
    %v5762 = vpack.c.b16 %v5423, %v5422
    %v5763 = vpack.c.b16 %v5425, %v5424
    %v5764 = vpack.c.b16 %v5427, %v5426
    %v5765 = vpack.c.b16 %v5429, %v5428
    %v5766 = vpack.c.b16 %v5431, %v5430
    %v5767 = vpack.c.b16 %v5433, %v5432
    %v5768 = vpack.c.b16 %v5435, %v5434
    %v5769 = vpack.c.b16 %v5437, %v5436
    %v5770 = vpack.c.b16 %v5439, %v5438
    %v5771 = vpack.c.b16 %v5441, %v5440
    %v5772 = vpack.c.b16 %v5443, %v5442
    %v5773 = vpack.c.b16 %v5445, %v5444
    %v5774 = vpack.c.b16 %v5447, %v5446
    %v5775 = vpack.c.b16 %v5449, %v5448
    %v5776 = vpack.c.b16 %v5451, %v5450
    %v5777 = vpack.c.b16 %v5453, %v5452
    %v5778 = vpack.c.b16 %v5455, %v5454
    %v5779 = vpack.c.b16 %v5457, %v5456
    %v5780 = vpack.c.b16 %v5459, %v5458
    %v5781 = vpack.c.b16 %v5461, %v5460
    %v5782 = vpack.c.b16 %v5463, %v5462
    %v5783 = vpack.c.b16 %v5465, %v5464
    %v5784 = vpack.c.b16 %v5467, %v5466
    %v5785 = vpack.c.b16 %v5469, %v5468
    %v5786 = vpack.c.b16 %v5471, %v5470
    %v5787 = vpack.c.b16 %v5473, %v5472
    %v5788 = vpack.c.b16 %v5475, %v5474
    %v5789 = vpack.c.b16 %v5477, %v5476
    %v5790 = vpack.c.b16 %v5479, %v5478
    %v5791 = vpack.c.b16 %v5481, %v5480
    %v5792 = vpack.c.b16 %v5483, %v5482
    %v5793 = vpack.c.b16 %v5485, %v5484
    %v5794 = vpack.c.b16 %v5487, %v5486
    %v5795 = vpack.c.b16 %v5489, %v5488
    %v5796 = vpack.c.b16 %v5491, %v5490
    %v5797 = vpack.c.b16 %v5493, %v5492
    %v5798 = vpack.c.b16 %v5495, %v5494
    %v5799 = vpack.c.b16 %v5497, %v5496
    %v5800 = vpack.c.b16 %v5499, %v5498
    %v5801 = vpack.c.b16 %v5501, %v5500
    %v5802 = vpack.c.b16 %v5503, %v5502
    %v5803 = vpack.c.b16 %v5505, %v5504
    %v5804 = vpack.c.b16 %v5507, %v5506
    %v5805 = vpack.c.b16 %v5509, %v5508
    %v5806 = vpack.c.b16 %v5511, %v5510
    %v5807 = vpack.c.b16 %v5513, %v5512
    %v5808 = vpack.c.b16 %v5515, %v5514
    %v5809 = vpack.c.b16 %v5517, %v5516
    %v5810 = vpack.c.b16 %v5519, %v5518
    %v5811 = vpack.c.b16 %v5521, %v5520
    %v5812 = vpack.c.b16 %v5523, %v5522
    %v5813 = vpack.c.b16 %v5525, %v5524
    %v5814 = vpack.c.b16 %v5527, %v5526
    %v5815 = vpack.c.b16 %v5529, %v5528
    %v5816 = vpack.c.b16 %v5531, %v5530
    %v5817 = vpack.c.b16 %v5533, %v5532
    %v5818 = vpack.c.b16 %v5535, %v5534
    %v5819 = vpack.c.b16 %v5537, %v5536
    %v5820 = vpack.c.b16 %v5539, %v5538
    %v5821 = vpack.c.b16 %v5541, %v5540
    %v5822 = vpack.c.b16 %v5543, %v5542
    %v5823 = vpack.c.b16 %v5545, %v5544
    %v5824 = vpack.c.b16 %v5547, %v5546
    %v5825 = vpack.c.b16 %v5549, %v5548
    %v5826 = vpack.c.b16 %v5551, %v5550
    %v5827 = vpack.c.b16 %v5553, %v5552
    %v5828 = vpack.c.b16 %v5555, %v5554
    %v5829 = vpack.c.b16 %v5557, %v5556
    %v5830 = vpack.c.b16 %v5559, %v5558
    %v5831 = vpack.c.b16 %v5561, %v5560
    %v5832 = vpack.c.b16 %v5563, %v5562
    %v5833 = vpack.c.b16 %v5565, %v5564
    %v5834 = vpack.c.b16 %v5567, %v5566
    %v5835 = vpack.c.b16 %v5569, %v5568
    %v5836 = vpack.c.b16 %v5571, %v5570
    %v5837 = vpack.c.b16 %v5573, %v5572
    %v5838 = vpack.c.b16 %v5575, %v5574
    %v5839 = vpack.c.b16 %v5577, %v5576
    %v5840 = vpack.c.b16 %v5579, %v5578
    %v5841 = vpack.c.b16 %v5581, %v5580
    %v5842 = vpack.c.b16 %v5583, %v5582
    %v5843 = vpack.c.b16 %v5585, %v5584
    %v5844 = vpack.c.b16 %v5587, %v5586
    %v5845 = vpack.c.b16 %v5589, %v5588
    %6102 = vmatprep.subr.bf16.mxu0 0
    %6103 = vmatpush1.bf16.msra.mxu0 %v5590
    %6104 = vmatprep.subr.bf16.mxu0 0
    %6105 = vmatpush1.bf16.msra.mxu0 %v5591
    %6106 = vmatprep.subr.bf16.mxu0 0
    %6107 = vmatpush1.bf16.msra.mxu0 %v5592
    %6108 = vmatprep.subr.bf16.mxu0 0
    %6109 = vmatpush1.bf16.msra.mxu0 %v5593
    %6110 = vmatprep.subr.bf16.mxu0 0
    %6111 = vmatpush1.bf16.msra.mxu0 %v5594
    %6112 = vmatprep.subr.bf16.mxu0 0
    %6113 = vmatpush1.bf16.msra.mxu0 %v5595
    %6114 = vmatprep.subr.bf16.mxu0 0
    %6115 = vmatpush1.bf16.msra.mxu0 %v5596
    %6116 = vmatprep.subr.bf16.mxu0 0
    %6117 = vmatpush1.bf16.msra.mxu0 %v5597
    %6118 = vmatprep.subr.bf16.mxu0 0
    %6119 = vmatpush1.bf16.msra.mxu0 %v5598
    %6120 = vmatprep.subr.bf16.mxu0 0
    %6121 = vmatpush1.bf16.msra.mxu0 %v5599
    %6122 = vmatprep.subr.bf16.mxu0 0
    %6123 = vmatpush1.bf16.msra.mxu0 %v5600
    %6124 = vmatprep.subr.bf16.mxu0 0
    %6125 = vmatpush1.bf16.msra.mxu0 %v5601
    %6126 = vmatprep.subr.bf16.mxu0 0
    %6127 = vmatpush1.bf16.msra.mxu0 %v5602
    %6128 = vmatprep.subr.bf16.mxu0 0
    %6129 = vmatpush1.bf16.msra.mxu0 %v5603
    %6130 = vmatprep.subr.bf16.mxu0 0
    %6131 = vmatpush1.bf16.msra.mxu0 %v5604
    %6132 = vmatprep.subr.bf16.mxu0 0
    %6133 = vmatpush1.bf16.msra.mxu0 %v5605
    %6134 = vmatprep.mubr.bf16.mxu0 %v4503
    %6135 = vmatmul.mubr.bf16.gmra.mrb[0].mxu0 %v4502
    %v6136 = vpop.f32.mrb[0].mxu0
    %v6137 = vadd.f32 0.0, %v6136
    %v6138 = vpop.f32.mrb[0].mxu0
    %v6139 = vpop.f32.mrb[0].mxu0
    %v6140 = vadd.f32 0.0, %v6139
    %v6141 = vpop.f32.mrb[0].mxu0
    %6142 = vmatprep.mubr.bf16.mxu0 %v4535
    %6143 = vmatmul.mubr.bf16.gmra.mrb[0].mxu0 %v4534
    %v6144 = vpop.f32.mrb[0].mxu0
    %v6145 = vadd.f32 0.0, %v6144
    %v6146 = vpop.f32.mrb[0].mxu0
    %v6147 = vpop.f32.mrb[0].mxu0
    %v6148 = vpop.f32.mrb[0].mxu0
    %6149 = vdwg.mxu0
    %6150 = vmatprep.subr.bf16.mxu0 0
    %6151 = vmatpush1.bf16.msra.mxu0 %v5606
    %6152 = vmatprep.subr.bf16.mxu0 0
    %6153 = vmatpush1.bf16.msra.mxu0 %v5607
    %6154 = vmatprep.subr.bf16.mxu0 0
    %6155 = vmatpush1.bf16.msra.mxu0 %v5608
    %6156 = vmatprep.subr.bf16.mxu0 0
    %6157 = vmatpush1.bf16.msra.mxu0 %v5609
    %6158 = vmatprep.subr.bf16.mxu0 0
    %6159 = vmatpush1.bf16.msra.mxu0 %v5610
    %6160 = vmatprep.subr.bf16.mxu0 0
    %6161 = vmatpush1.bf16.msra.mxu0 %v5611
    %6162 = vmatprep.subr.bf16.mxu0 0
    %6163 = vmatpush1.bf16.msra.mxu0 %v5612
    %6164 = vmatprep.subr.bf16.mxu0 0
    %6165 = vmatpush1.bf16.msra.mxu0 %v5613
    %6166 = vmatprep.subr.bf16.mxu0 0
    %6167 = vmatpush1.bf16.msra.mxu0 %v5614
    %6168 = vmatprep.subr.bf16.mxu0 0
    %6169 = vmatpush1.bf16.msra.mxu0 %v5615
    %6170 = vmatprep.subr.bf16.mxu0 0
    %6171 = vmatpush1.bf16.msra.mxu0 %v5616
    %6172 = vmatprep.subr.bf16.mxu0 0
    %6173 = vmatpush1.bf16.msra.mxu0 %v5617
    %6174 = vmatprep.subr.bf16.mxu0 0
    %6175 = vmatpush1.bf16.msra.mxu0 %v5618
    %6176 = vmatprep.subr.bf16.mxu0 0
    %6177 = vmatpush1.bf16.msra.mxu0 %v5619
    %6178 = vmatprep.subr.bf16.mxu0 0
    %6179 = vmatpush1.bf16.msra.mxu0 %v5620
    %6180 = vmatprep.subr.bf16.mxu0 0
    %6181 = vmatpush1.bf16.msra.mxu0 %v5621
    %6182 = vmatprep.mubr.bf16.mxu0 %v4505
    %6183 = vmatmul.mubr.bf16.gmra.mrb[0].mxu0 %v4504
    %v6184 = vpop.f32.mrb[0].mxu0
    %v6185 = vadd.f32 %v6137, %v6184
    %v6186 = vpop.f32.mrb[0].mxu0
    %v6187 = vpop.f32.mrb[0].mxu0
    %v6188 = vadd.f32 %v6140, %v6187
    %v6189 = vpop.f32.mrb[0].mxu0
    %6190 = vmatprep.mubr.bf16.mxu0 %v4537
    %6191 = vmatmul.mubr.bf16.gmra.mrb[0].mxu0 %v4536
    %v6192 = vpop.f32.mrb[0].mxu0
    %v6193 = vadd.f32 %v6145, %v6192
    %v6194 = vpop.f32.mrb[0].mxu0
    %v6195 = vpop.f32.mrb[0].mxu0
    %v6196 = vpop.f32.mrb[0].mxu0
    %6197 = vdwg.mxu0
    %6198 = vmatprep.subr.bf16.mxu0 0
    %6199 = vmatpush1.bf16.msra.mxu0 %v5622
    %6200 = vmatprep.subr.bf16.mxu0 0
    %6201 = vmatpush1.bf16.msra.mxu0 %v5623
    %6202 = vmatprep.subr.bf16.mxu0 0
    %6203 = vmatpush1.bf16.msra.mxu0 %v5624
    %6204 = vmatprep.subr.bf16.mxu0 0
    %6205 = vmatpush1.bf16.msra.mxu0 %v5625
    %6206 = vmatprep.subr.bf16.mxu0 0
    %6207 = vmatpush1.bf16.msra.mxu0 %v5626
    %6208 = vmatprep.subr.bf16.mxu0 0
    %6209 = vmatpush1.bf16.msra.mxu0 %v5627
    %6210 = vmatprep.subr.bf16.mxu0 0
    %6211 = vmatpush1.bf16.msra.mxu0 %v5628
    %6212 = vmatprep.subr.bf16.mxu0 0
    %6213 = vmatpush1.bf16.msra.mxu0 %v5629
    %6214 = vmatprep.subr.bf16.mxu0 0
    %6215 = vmatpush1.bf16.msra.mxu0 %v5630
    %6216 = vmatprep.subr.bf16.mxu0 0
    %6217 = vmatpush1.bf16.msra.mxu0 %v5631
    %6218 = vmatprep.subr.bf16.mxu0 0
    %6219 = vmatpush1.bf16.msra.mxu0 %v5632
    %6220 = vmatprep.subr.bf16.mxu0 0
    %6221 = vmatpush1.bf16.msra.mxu0 %v5633
    %6222 = vmatprep.subr.bf16.mxu0 0
    %6223 = vmatpush1.bf16.msra.mxu0 %v5634
    %6224 = vmatprep.subr.bf16.mxu0 0
    %6225 = vmatpush1.bf16.msra.mxu0 %v5635
    %6226 = vmatprep.subr.bf16.mxu0 0
    %6227 = vmatpush1.bf16.msra.mxu0 %v5636
    %6228 = vmatprep.subr.bf16.mxu0 0
    %6229 = vmatpush1.bf16.msra.mxu0 %v5637
    %6230 = vmatprep.mubr.bf16.mxu0 %v4507
    %6231 = vmatmul.mubr.bf16.gmra.mrb[0].mxu0 %v4506
    %v6232 = vpop.f32.mrb[0].mxu0
    %v6233 = vadd.f32 %v6185, %v6232
    %v6234 = vpop.f32.mrb[0].mxu0
    %v6235 = vpop.f32.mrb[0].mxu0
    %v6236 = vadd.f32 %v6188, %v6235
    %v6237 = vpop.f32.mrb[0].mxu0
    %6238 = vmatprep.mubr.bf16.mxu0 %v4539
    %6239 = vmatmul.mubr.bf16.gmra.mrb[0].mxu0 %v4538
    %v6240 = vpop.f32.mrb[0].mxu0
    %v6241 = vadd.f32 %v6193, %v6240
    %v6242 = vpop.f32.mrb[0].mxu0
    %v6243 = vpop.f32.mrb[0].mxu0
    %v6244 = vpop.f32.mrb[0].mxu0
    %6245 = vdwg.mxu0
    %6246 = vmatprep.subr.bf16.mxu0 0
    %6247 = vmatpush1.bf16.msra.mxu0 %v5638
    %6248 = vmatprep.subr.bf16.mxu0 0
    %6249 = vmatpush1.bf16.msra.mxu0 %v5639
    %6250 = vmatprep.subr.bf16.mxu0 0
    %6251 = vmatpush1.bf16.msra.mxu0 %v5640
    %6252 = vmatprep.subr.bf16.mxu0 0
    %6253 = vmatpush1.bf16.msra.mxu0 %v5641
    %6254 = vmatprep.subr.bf16.mxu0 0
    %6255 = vmatpush1.bf16.msra.mxu0 %v5642
    %6256 = vmatprep.subr.bf16.mxu0 0
    %6257 = vmatpush1.bf16.msra.mxu0 %v5643
    %6258 = vmatprep.subr.bf16.mxu0 0
    %6259 = vmatpush1.bf16.msra.mxu0 %v5644
    %6260 = vmatprep.subr.bf16.mxu0 0
    %6261 = vmatpush1.bf16.msra.mxu0 %v5645
    %6262 = vmatprep.subr.bf16.mxu0 0
    %6263 = vmatpush1.bf16.msra.mxu0 %v5646
    %6264 = vmatprep.subr.bf16.mxu0 0
    %6265 = vmatpush1.bf16.msra.mxu0 %v5647
    %6266 = vmatprep.subr.bf16.mxu0 0
    %6267 = vmatpush1.bf16.msra.mxu0 %v5648
    %6268 = vmatprep.subr.bf16.mxu0 0
    %6269 = vmatpush1.bf16.msra.mxu0 %v5649
    %6270 = vmatprep.subr.bf16.mxu0 0
    %6271 = vmatpush1.bf16.msra.mxu0 %v5650
    %6272 = vmatprep.subr.bf16.mxu0 0
    %6273 = vmatpush1.bf16.msra.mxu0 %v5651
    %6274 = vmatprep.subr.bf16.mxu0 0
    %6275 = vmatpush1.bf16.msra.mxu0 %v5652
    %6276 = vmatprep.subr.bf16.mxu0 0
    %6277 = vmatpush1.bf16.msra.mxu0 %v5653
    %6278 = vmatprep.mubr.bf16.mxu0 %v4509
    %6279 = vmatmul.mubr.bf16.gmra.mrb[0].mxu0 %v4508
    %v6280 = vpop.f32.mrb[0].mxu0
    %v6281 = vadd.f32 %v6233, %v6280
    %v6282 = vpop.f32.mrb[0].mxu0
    %v6283 = vpop.f32.mrb[0].mxu0
    %v6284 = vadd.f32 %v6236, %v6283
    %v6285 = vpop.f32.mrb[0].mxu0
    %6286 = vmatprep.mubr.bf16.mxu0 %v4541
    %6287 = vmatmul.mubr.bf16.gmra.mrb[0].mxu0 %v4540
    %v6288 = vpop.f32.mrb[0].mxu0
    %v6289 = vadd.f32 %v6241, %v6288
    %v6290 = vpop.f32.mrb[0].mxu0
    %v6291 = vpop.f32.mrb[0].mxu0
    %v6292 = vpop.f32.mrb[0].mxu0
    %6293 = vdwg.mxu0
    %6294 = vmatprep.subr.bf16.mxu0 0
    %6295 = vmatpush1.bf16.msra.mxu0 %v5654
    %6296 = vmatprep.subr.bf16.mxu0 0
    %6297 = vmatpush1.bf16.msra.mxu0 %v5655
    %6298 = vmatprep.subr.bf16.mxu0 0
    %6299 = vmatpush1.bf16.msra.mxu0 %v5656
    %6300 = vmatprep.subr.bf16.mxu0 0
    %6301 = vmatpush1.bf16.msra.mxu0 %v5657
    %6302 = vmatprep.subr.bf16.mxu0 0
    %6303 = vmatpush1.bf16.msra.mxu0 %v5658
    %6304 = vmatprep.subr.bf16.mxu0 0
    %6305 = vmatpush1.bf16.msra.mxu0 %v5659
    %6306 = vmatprep.subr.bf16.mxu0 0
    %6307 = vmatpush1.bf16.msra.mxu0 %v5660
    %6308 = vmatprep.subr.bf16.mxu0 0
    %6309 = vmatpush1.bf16.msra.mxu0 %v5661
    %6310 = vmatprep.subr.bf16.mxu0 0
    %6311 = vmatpush1.bf16.msra.mxu0 %v5662
    %6312 = vmatprep.subr.bf16.mxu0 0
    %6313 = vmatpush1.bf16.msra.mxu0 %v5663
    %6314 = vmatprep.subr.bf16.mxu0 0
    %6315 = vmatpush1.bf16.msra.mxu0 %v5664
    %6316 = vmatprep.subr.bf16.mxu0 0
    %6317 = vmatpush1.bf16.msra.mxu0 %v5665
    %6318 = vmatprep.subr.bf16.mxu0 0
    %6319 = vmatpush1.bf16.msra.mxu0 %v5666
    %6320 = vmatprep.subr.bf16.mxu0 0
    %6321 = vmatpush1.bf16.msra.mxu0 %v5667
    %6322 = vmatprep.subr.bf16.mxu0 0
    %6323 = vmatpush1.bf16.msra.mxu0 %v5668
    %6324 = vmatprep.subr.bf16.mxu0 0
    %6325 = vmatpush1.bf16.msra.mxu0 %v5669
    %6326 = vmatprep.mubr.bf16.mxu0 %v4511
    %6327 = vmatmul.mubr.bf16.gmra.mrb[0].mxu0 %v4510
    %v6328 = vpop.f32.mrb[0].mxu0
    %v6329 = vadd.f32 %v6281, %v6328
    %v6330 = vpop.f32.mrb[0].mxu0
    %v6331 = vpop.f32.mrb[0].mxu0
    %v6332 = vadd.f32 %v6284, %v6331
    %v6333 = vpop.f32.mrb[0].mxu0
    %6334 = vmatprep.mubr.bf16.mxu0 %v4543
    %6335 = vmatmul.mubr.bf16.gmra.mrb[0].mxu0 %v4542
    %v6336 = vpop.f32.mrb[0].mxu0
    %v6337 = vadd.f32 %v6289, %v6336
    %v6338 = vpop.f32.mrb[0].mxu0
    %v6339 = vpop.f32.mrb[0].mxu0
    %v6340 = vpop.f32.mrb[0].mxu0
    %6341 = vdwg.mxu0
    %6342 = vmatprep.subr.bf16.mxu0 0
    %6343 = vmatpush1.bf16.msra.mxu0 %v5670
    %6344 = vmatprep.subr.bf16.mxu0 0
    %6345 = vmatpush1.bf16.msra.mxu0 %v5671
    %6346 = vmatprep.subr.bf16.mxu0 0
    %6347 = vmatpush1.bf16.msra.mxu0 %v5672
    %6348 = vmatprep.subr.bf16.mxu0 0
    %6349 = vmatpush1.bf16.msra.mxu0 %v5673
    %6350 = vmatprep.subr.bf16.mxu0 0
    %6351 = vmatpush1.bf16.msra.mxu0 %v5674
    %6352 = vmatprep.subr.bf16.mxu0 0
    %6353 = vmatpush1.bf16.msra.mxu0 %v5675
    %6354 = vmatprep.subr.bf16.mxu0 0
    %6355 = vmatpush1.bf16.msra.mxu0 %v5676
    %6356 = vmatprep.subr.bf16.mxu0 0
    %6357 = vmatpush1.bf16.msra.mxu0 %v5677
    %6358 = vmatprep.subr.bf16.mxu0 0
    %6359 = vmatpush1.bf16.msra.mxu0 %v5678
    %6360 = vmatprep.subr.bf16.mxu0 0
    %6361 = vmatpush1.bf16.msra.mxu0 %v5679
    %6362 = vmatprep.subr.bf16.mxu0 0
    %6363 = vmatpush1.bf16.msra.mxu0 %v5680
    %6364 = vmatprep.subr.bf16.mxu0 0
    %6365 = vmatpush1.bf16.msra.mxu0 %v5681
    %6366 = vmatprep.subr.bf16.mxu0 0
    %6367 = vmatpush1.bf16.msra.mxu0 %v5682
    %6368 = vmatprep.subr.bf16.mxu0 0
    %6369 = vmatpush1.bf16.msra.mxu0 %v5683
    %6370 = vmatprep.subr.bf16.mxu0 0
    %6371 = vmatpush1.bf16.msra.mxu0 %v5684
    %6372 = vmatprep.subr.bf16.mxu0 0
    %6373 = vmatpush1.bf16.msra.mxu0 %v5685
    %6374 = vmatprep.mubr.bf16.mxu0 %v4513
    %6375 = vmatmul.mubr.bf16.gmra.mrb[0].mxu0 %v4512
    %v6376 = vpop.f32.mrb[0].mxu0
    %v6377 = vadd.f32 %v6329, %v6376
    %v6378 = vpop.f32.mrb[0].mxu0
    %v6379 = vpop.f32.mrb[0].mxu0
    %v6380 = vadd.f32 %v6332, %v6379
    %v6381 = vpop.f32.mrb[0].mxu0
    %6382 = vmatprep.mubr.bf16.mxu0 %v4545
    %6383 = vmatmul.mubr.bf16.gmra.mrb[0].mxu0 %v4544
    %v6384 = vpop.f32.mrb[0].mxu0
    %v6385 = vadd.f32 %v6337, %v6384
    %v6386 = vpop.f32.mrb[0].mxu0
    %v6387 = vpop.f32.mrb[0].mxu0
    %v6388 = vpop.f32.mrb[0].mxu0
    %6389 = vdwg.mxu0
    %6390 = vmatprep.subr.bf16.mxu0 0
    %6391 = vmatpush1.bf16.msra.mxu0 %v5686
    %6392 = vmatprep.subr.bf16.mxu0 0
    %6393 = vmatpush1.bf16.msra.mxu0 %v5687
    %6394 = vmatprep.subr.bf16.mxu0 0
    %6395 = vmatpush1.bf16.msra.mxu0 %v5688
    %6396 = vmatprep.subr.bf16.mxu0 0
    %6397 = vmatpush1.bf16.msra.mxu0 %v5689
    %6398 = vmatprep.subr.bf16.mxu0 0
    %6399 = vmatpush1.bf16.msra.mxu0 %v5690
    %6400 = vmatprep.subr.bf16.mxu0 0
    %6401 = vmatpush1.bf16.msra.mxu0 %v5691
    %6402 = vmatprep.subr.bf16.mxu0 0
    %6403 = vmatpush1.bf16.msra.mxu0 %v5692
    %6404 = vmatprep.subr.bf16.mxu0 0
    %6405 = vmatpush1.bf16.msra.mxu0 %v5693
    %6406 = vmatprep.subr.bf16.mxu0 0
    %6407 = vmatpush1.bf16.msra.mxu0 %v5694
    %6408 = vmatprep.subr.bf16.mxu0 0
    %6409 = vmatpush1.bf16.msra.mxu0 %v5695
    %6410 = vmatprep.subr.bf16.mxu0 0
    %6411 = vmatpush1.bf16.msra.mxu0 %v5696
    %6412 = vmatprep.subr.bf16.mxu0 0
    %6413 = vmatpush1.bf16.msra.mxu0 %v5697
    %6414 = vmatprep.subr.bf16.mxu0 0
    %6415 = vmatpush1.bf16.msra.mxu0 %v5698
    %6416 = vmatprep.subr.bf16.mxu0 0
    %6417 = vmatpush1.bf16.msra.mxu0 %v5699
    %6418 = vmatprep.subr.bf16.mxu0 0
    %6419 = vmatpush1.bf16.msra.mxu0 %v5700
    %6420 = vmatprep.subr.bf16.mxu0 0
    %6421 = vmatpush1.bf16.msra.mxu0 %v5701
    %6422 = vmatprep.mubr.bf16.mxu0 %v4515
    %6423 = vmatmul.mubr.bf16.gmra.mrb[0].mxu0 %v4514
    %v6424 = vpop.f32.mrb[0].mxu0
    %v6425 = vadd.f32 %v6377, %v6424
    %v6426 = vpop.f32.mrb[0].mxu0
    %v6427 = vpop.f32.mrb[0].mxu0
    %v6428 = vadd.f32 %v6380, %v6427
    %v6429 = vpop.f32.mrb[0].mxu0
    %6430 = vmatprep.mubr.bf16.mxu0 %v4547
    %6431 = vmatmul.mubr.bf16.gmra.mrb[0].mxu0 %v4546
    %v6432 = vpop.f32.mrb[0].mxu0
    %v6433 = vadd.f32 %v6385, %v6432
    %v6434 = vpop.f32.mrb[0].mxu0
    %v6435 = vpop.f32.mrb[0].mxu0
    %v6436 = vpop.f32.mrb[0].mxu0
    %6437 = vdwg.mxu0
    %6438 = vmatprep.subr.bf16.mxu0 0
    %6439 = vmatpush1.bf16.msra.mxu0 %v5702
    %6440 = vmatprep.subr.bf16.mxu0 0
    %6441 = vmatpush1.bf16.msra.mxu0 %v5703
    %6442 = vmatprep.subr.bf16.mxu0 0
    %6443 = vmatpush1.bf16.msra.mxu0 %v5704
    %6444 = vmatprep.subr.bf16.mxu0 0
    %6445 = vmatpush1.bf16.msra.mxu0 %v5705
    %6446 = vmatprep.subr.bf16.mxu0 0
    %6447 = vmatpush1.bf16.msra.mxu0 %v5706
    %6448 = vmatprep.subr.bf16.mxu0 0
    %6449 = vmatpush1.bf16.msra.mxu0 %v5707
    %6450 = vmatprep.subr.bf16.mxu0 0
    %6451 = vmatpush1.bf16.msra.mxu0 %v5708
    %6452 = vmatprep.subr.bf16.mxu0 0
    %6453 = vmatpush1.bf16.msra.mxu0 %v5709
    %6454 = vmatprep.subr.bf16.mxu0 0
    %6455 = vmatpush1.bf16.msra.mxu0 %v5710
    %6456 = vmatprep.subr.bf16.mxu0 0
    %6457 = vmatpush1.bf16.msra.mxu0 %v5711
    %6458 = vmatprep.subr.bf16.mxu0 0
    %6459 = vmatpush1.bf16.msra.mxu0 %v5712
    %6460 = vmatprep.subr.bf16.mxu0 0
    %6461 = vmatpush1.bf16.msra.mxu0 %v5713
    %6462 = vmatprep.subr.bf16.mxu0 0
    %6463 = vmatpush1.bf16.msra.mxu0 %v5714
    %6464 = vmatprep.subr.bf16.mxu0 0
    %6465 = vmatpush1.bf16.msra.mxu0 %v5715
    %6466 = vmatprep.subr.bf16.mxu0 0
    %6467 = vmatpush1.bf16.msra.mxu0 %v5716
    %6468 = vmatprep.subr.bf16.mxu0 0
    %6469 = vmatpush1.bf16.msra.mxu0 %v5717
    %6470 = vmatprep.mubr.bf16.mxu0 %v4517
    %6471 = vmatmul.mubr.bf16.gmra.mrb[0].mxu0 %v4516
    %v6472 = vpop.f32.mrb[0].mxu0
    %v6473 = vadd.f32 %v6425, %v6472
    %v6474 = vpop.f32.mrb[0].mxu0
    %v6475 = vpop.f32.mrb[0].mxu0
    %v6476 = vadd.f32 %v6428, %v6475
    %v6477 = vpop.f32.mrb[0].mxu0
    %6478 = vmatprep.mubr.bf16.mxu0 %v4549
    %6479 = vmatmul.mubr.bf16.gmra.mrb[0].mxu0 %v4548
    %v6480 = vpop.f32.mrb[0].mxu0
    %v6481 = vadd.f32 %v6433, %v6480
    %v6482 = vpop.f32.mrb[0].mxu0
    %v6483 = vpop.f32.mrb[0].mxu0
    %v6484 = vpop.f32.mrb[0].mxu0
    %6485 = vdwg.mxu0
    %6486 = vmatprep.subr.bf16.mxu0 0
    %6487 = vmatpush1.bf16.msra.mxu0 %v5718
    %6488 = vmatprep.subr.bf16.mxu0 0
    %6489 = vmatpush1.bf16.msra.mxu0 %v5719
    %6490 = vmatprep.subr.bf16.mxu0 0
    %6491 = vmatpush1.bf16.msra.mxu0 %v5720
    %6492 = vmatprep.subr.bf16.mxu0 0
    %6493 = vmatpush1.bf16.msra.mxu0 %v5721
    %6494 = vmatprep.subr.bf16.mxu0 0
    %6495 = vmatpush1.bf16.msra.mxu0 %v5722
    %6496 = vmatprep.subr.bf16.mxu0 0
    %6497 = vmatpush1.bf16.msra.mxu0 %v5723
    %6498 = vmatprep.subr.bf16.mxu0 0
    %6499 = vmatpush1.bf16.msra.mxu0 %v5724
    %6500 = vmatprep.subr.bf16.mxu0 0
    %6501 = vmatpush1.bf16.msra.mxu0 %v5725
    %6502 = vmatprep.subr.bf16.mxu0 0
    %6503 = vmatpush1.bf16.msra.mxu0 %v5726
    %6504 = vmatprep.subr.bf16.mxu0 0
    %6505 = vmatpush1.bf16.msra.mxu0 %v5727
    %6506 = vmatprep.subr.bf16.mxu0 0
    %6507 = vmatpush1.bf16.msra.mxu0 %v5728
    %6508 = vmatprep.subr.bf16.mxu0 0
    %6509 = vmatpush1.bf16.msra.mxu0 %v5729
    %6510 = vmatprep.subr.bf16.mxu0 0
    %6511 = vmatpush1.bf16.msra.mxu0 %v5730
    %6512 = vmatprep.subr.bf16.mxu0 0
    %6513 = vmatpush1.bf16.msra.mxu0 %v5731
    %6514 = vmatprep.subr.bf16.mxu0 0
    %6515 = vmatpush1.bf16.msra.mxu0 %v5732
    %6516 = vmatprep.subr.bf16.mxu0 0
    %6517 = vmatpush1.bf16.msra.mxu0 %v5733
    %6518 = vmatprep.mubr.bf16.mxu0 %v4519
    %6519 = vmatmul.mubr.bf16.gmra.mrb[0].mxu0 %v4518
    %v6520 = vpop.f32.mrb[0].mxu0
    %v6521 = vadd.f32 %v6473, %v6520
    %v6522 = vpop.f32.mrb[0].mxu0
    %v6523 = vpop.f32.mrb[0].mxu0
    %v6524 = vadd.f32 %v6476, %v6523
    %v6525 = vpop.f32.mrb[0].mxu0
    %6526 = vmatprep.mubr.bf16.mxu0 %v4551
    %6527 = vmatmul.mubr.bf16.gmra.mrb[0].mxu0 %v4550
    %v6528 = vpop.f32.mrb[0].mxu0
    %v6529 = vadd.f32 %v6481, %v6528
    %v6530 = vpop.f32.mrb[0].mxu0
    %v6531 = vpop.f32.mrb[0].mxu0
    %v6532 = vpop.f32.mrb[0].mxu0
    %6533 = vdwg.mxu0
    %6534 = vmatprep.subr.bf16.mxu0 0
    %6535 = vmatpush1.bf16.msra.mxu0 %v5734
    %6536 = vmatprep.subr.bf16.mxu0 0
    %6537 = vmatpush1.bf16.msra.mxu0 %v5735
    %6538 = vmatprep.subr.bf16.mxu0 0
    %6539 = vmatpush1.bf16.msra.mxu0 %v5736
    %6540 = vmatprep.subr.bf16.mxu0 0
    %6541 = vmatpush1.bf16.msra.mxu0 %v5737
    %6542 = vmatprep.subr.bf16.mxu0 0
    %6543 = vmatpush1.bf16.msra.mxu0 %v5738
    %6544 = vmatprep.subr.bf16.mxu0 0
    %6545 = vmatpush1.bf16.msra.mxu0 %v5739
    %6546 = vmatprep.subr.bf16.mxu0 0
    %6547 = vmatpush1.bf16.msra.mxu0 %v5740
    %6548 = vmatprep.subr.bf16.mxu0 0
    %6549 = vmatpush1.bf16.msra.mxu0 %v5741
    %6550 = vmatprep.subr.bf16.mxu0 0
    %6551 = vmatpush1.bf16.msra.mxu0 %v5742
    %6552 = vmatprep.subr.bf16.mxu0 0
    %6553 = vmatpush1.bf16.msra.mxu0 %v5743
    %6554 = vmatprep.subr.bf16.mxu0 0
    %6555 = vmatpush1.bf16.msra.mxu0 %v5744
    %6556 = vmatprep.subr.bf16.mxu0 0
    %6557 = vmatpush1.bf16.msra.mxu0 %v5745
    %6558 = vmatprep.subr.bf16.mxu0 0
    %6559 = vmatpush1.bf16.msra.mxu0 %v5746
    %6560 = vmatprep.subr.bf16.mxu0 0
    %6561 = vmatpush1.bf16.msra.mxu0 %v5747
    %6562 = vmatprep.subr.bf16.mxu0 0
    %6563 = vmatpush1.bf16.msra.mxu0 %v5748
    %6564 = vmatprep.subr.bf16.mxu0 0
    %6565 = vmatpush1.bf16.msra.mxu0 %v5749
    %6566 = vmatprep.mubr.bf16.mxu0 %v4521
    %6567 = vmatmul.mubr.bf16.gmra.mrb[0].mxu0 %v4520
    %v6568 = vpop.f32.mrb[0].mxu0
    %v6569 = vadd.f32 %v6521, %v6568
    %v6570 = vpop.f32.mrb[0].mxu0
    %v6571 = vpop.f32.mrb[0].mxu0
    %v6572 = vadd.f32 %v6524, %v6571
    %v6573 = vpop.f32.mrb[0].mxu0
    %6574 = vmatprep.mubr.bf16.mxu0 %v4553
    %6575 = vmatmul.mubr.bf16.gmra.mrb[0].mxu0 %v4552
    %v6576 = vpop.f32.mrb[0].mxu0
    %v6577 = vadd.f32 %v6529, %v6576
    %v6578 = vpop.f32.mrb[0].mxu0
    %v6579 = vpop.f32.mrb[0].mxu0
    %v6580 = vpop.f32.mrb[0].mxu0
    %6581 = vdwg.mxu0
    %6582 = vmatprep.subr.bf16.mxu0 0
    %6583 = vmatpush1.bf16.msra.mxu0 %v5750
    %6584 = vmatprep.subr.bf16.mxu0 0
    %6585 = vmatpush1.bf16.msra.mxu0 %v5751
    %6586 = vmatprep.subr.bf16.mxu0 0
    %6587 = vmatpush1.bf16.msra.mxu0 %v5752
    %6588 = vmatprep.subr.bf16.mxu0 0
    %6589 = vmatpush1.bf16.msra.mxu0 %v5753
    %6590 = vmatprep.subr.bf16.mxu0 0
    %6591 = vmatpush1.bf16.msra.mxu0 %v5754
    %6592 = vmatprep.subr.bf16.mxu0 0
    %6593 = vmatpush1.bf16.msra.mxu0 %v5755
    %6594 = vmatprep.subr.bf16.mxu0 0
    %6595 = vmatpush1.bf16.msra.mxu0 %v5756
    %6596 = vmatprep.subr.bf16.mxu0 0
    %6597 = vmatpush1.bf16.msra.mxu0 %v5757
    %6598 = vmatprep.subr.bf16.mxu0 0
    %6599 = vmatpush1.bf16.msra.mxu0 %v5758
    %6600 = vmatprep.subr.bf16.mxu0 0
    %6601 = vmatpush1.bf16.msra.mxu0 %v5759
    %6602 = vmatprep.subr.bf16.mxu0 0
    %6603 = vmatpush1.bf16.msra.mxu0 %v5760
    %6604 = vmatprep.subr.bf16.mxu0 0
    %6605 = vmatpush1.bf16.msra.mxu0 %v5761
    %6606 = vmatprep.subr.bf16.mxu0 0
    %6607 = vmatpush1.bf16.msra.mxu0 %v5762
    %6608 = vmatprep.subr.bf16.mxu0 0
    %6609 = vmatpush1.bf16.msra.mxu0 %v5763
    %6610 = vmatprep.subr.bf16.mxu0 0
    %6611 = vmatpush1.bf16.msra.mxu0 %v5764
    %6612 = vmatprep.subr.bf16.mxu0 0
    %6613 = vmatpush1.bf16.msra.mxu0 %v5765
    %6614 = vmatprep.mubr.bf16.mxu0 %v4523
    %6615 = vmatmul.mubr.bf16.gmra.mrb[0].mxu0 %v4522
    %v6616 = vpop.f32.mrb[0].mxu0
    %v6617 = vadd.f32 %v6569, %v6616
    %v6618 = vpop.f32.mrb[0].mxu0
    %v6619 = vpop.f32.mrb[0].mxu0
    %v6620 = vadd.f32 %v6572, %v6619
    %v6621 = vpop.f32.mrb[0].mxu0
    %6622 = vmatprep.mubr.bf16.mxu0 %v4555
    %6623 = vmatmul.mubr.bf16.gmra.mrb[0].mxu0 %v4554
    %v6624 = vpop.f32.mrb[0].mxu0
    %v6625 = vadd.f32 %v6577, %v6624
    %v6626 = vpop.f32.mrb[0].mxu0
    %v6627 = vpop.f32.mrb[0].mxu0
    %v6628 = vpop.f32.mrb[0].mxu0
    %6629 = vdwg.mxu0
    %6630 = vmatprep.subr.bf16.mxu0 0
    %6631 = vmatpush1.bf16.msra.mxu0 %v5766
    %6632 = vmatprep.subr.bf16.mxu0 0
    %6633 = vmatpush1.bf16.msra.mxu0 %v5767
    %6634 = vmatprep.subr.bf16.mxu0 0
    %6635 = vmatpush1.bf16.msra.mxu0 %v5768
    %6636 = vmatprep.subr.bf16.mxu0 0
    %6637 = vmatpush1.bf16.msra.mxu0 %v5769
    %6638 = vmatprep.subr.bf16.mxu0 0
    %6639 = vmatpush1.bf16.msra.mxu0 %v5770
    %6640 = vmatprep.subr.bf16.mxu0 0
    %6641 = vmatpush1.bf16.msra.mxu0 %v5771
    %6642 = vmatprep.subr.bf16.mxu0 0
    %6643 = vmatpush1.bf16.msra.mxu0 %v5772
    %6644 = vmatprep.subr.bf16.mxu0 0
    %6645 = vmatpush1.bf16.msra.mxu0 %v5773
    %6646 = vmatprep.subr.bf16.mxu0 0
    %6647 = vmatpush1.bf16.msra.mxu0 %v5774
    %6648 = vmatprep.subr.bf16.mxu0 0
    %6649 = vmatpush1.bf16.msra.mxu0 %v5775
    %6650 = vmatprep.subr.bf16.mxu0 0
    %6651 = vmatpush1.bf16.msra.mxu0 %v5776
    %6652 = vmatprep.subr.bf16.mxu0 0
    %6653 = vmatpush1.bf16.msra.mxu0 %v5777
    %6654 = vmatprep.subr.bf16.mxu0 0
    %6655 = vmatpush1.bf16.msra.mxu0 %v5778
    %6656 = vmatprep.subr.bf16.mxu0 0
    %6657 = vmatpush1.bf16.msra.mxu0 %v5779
    %6658 = vmatprep.subr.bf16.mxu0 0
    %6659 = vmatpush1.bf16.msra.mxu0 %v5780
    %6660 = vmatprep.subr.bf16.mxu0 0
    %6661 = vmatpush1.bf16.msra.mxu0 %v5781
    %6662 = vmatprep.mubr.bf16.mxu0 %v4525
    %6663 = vmatmul.mubr.bf16.gmra.mrb[0].mxu0 %v4524
    %v6664 = vpop.f32.mrb[0].mxu0
    %v6665 = vadd.f32 %v6617, %v6664
    %v6666 = vpop.f32.mrb[0].mxu0
    %v6667 = vpop.f32.mrb[0].mxu0
    %v6668 = vadd.f32 %v6620, %v6667
    %v6669 = vpop.f32.mrb[0].mxu0
    %6670 = vmatprep.mubr.bf16.mxu0 %v4557
    %6671 = vmatmul.mubr.bf16.gmra.mrb[0].mxu0 %v4556
    %v6672 = vpop.f32.mrb[0].mxu0
    %v6673 = vadd.f32 %v6625, %v6672
    %v6674 = vpop.f32.mrb[0].mxu0
    %v6675 = vpop.f32.mrb[0].mxu0
    %v6676 = vpop.f32.mrb[0].mxu0
    %6677 = vdwg.mxu0
    %6678 = vmatprep.subr.bf16.mxu0 0
    %6679 = vmatpush1.bf16.msra.mxu0 %v5782
    %6680 = vmatprep.subr.bf16.mxu0 0
    %6681 = vmatpush1.bf16.msra.mxu0 %v5783
    %6682 = vmatprep.subr.bf16.mxu0 0
    %6683 = vmatpush1.bf16.msra.mxu0 %v5784
    %6684 = vmatprep.subr.bf16.mxu0 0
    %6685 = vmatpush1.bf16.msra.mxu0 %v5785
    %6686 = vmatprep.subr.bf16.mxu0 0
    %6687 = vmatpush1.bf16.msra.mxu0 %v5786
    %6688 = vmatprep.subr.bf16.mxu0 0
    %6689 = vmatpush1.bf16.msra.mxu0 %v5787
    %6690 = vmatprep.subr.bf16.mxu0 0
    %6691 = vmatpush1.bf16.msra.mxu0 %v5788
    %6692 = vmatprep.subr.bf16.mxu0 0
    %6693 = vmatpush1.bf16.msra.mxu0 %v5789
    %6694 = vmatprep.subr.bf16.mxu0 0
    %6695 = vmatpush1.bf16.msra.mxu0 %v5790
    %6696 = vmatprep.subr.bf16.mxu0 0
    %6697 = vmatpush1.bf16.msra.mxu0 %v5791
    %6698 = vmatprep.subr.bf16.mxu0 0
    %6699 = vmatpush1.bf16.msra.mxu0 %v5792
    %6700 = vmatprep.subr.bf16.mxu0 0
    %6701 = vmatpush1.bf16.msra.mxu0 %v5793
    %6702 = vmatprep.subr.bf16.mxu0 0
    %6703 = vmatpush1.bf16.msra.mxu0 %v5794
    %6704 = vmatprep.subr.bf16.mxu0 0
    %6705 = vmatpush1.bf16.msra.mxu0 %v5795
    %6706 = vmatprep.subr.bf16.mxu0 0
    %6707 = vmatpush1.bf16.msra.mxu0 %v5796
    %6708 = vmatprep.subr.bf16.mxu0 0
    %6709 = vmatpush1.bf16.msra.mxu0 %v5797
    %6710 = vmatprep.mubr.bf16.mxu0 %v4527
    %6711 = vmatmul.mubr.bf16.gmra.mrb[0].mxu0 %v4526
    %v6712 = vpop.f32.mrb[0].mxu0
    %v6713 = vadd.f32 %v6665, %v6712
    %v6714 = vpop.f32.mrb[0].mxu0
    %v6715 = vpop.f32.mrb[0].mxu0
    %v6716 = vadd.f32 %v6668, %v6715
    %v6717 = vpop.f32.mrb[0].mxu0
    %6718 = vmatprep.mubr.bf16.mxu0 %v4559
    %6719 = vmatmul.mubr.bf16.gmra.mrb[0].mxu0 %v4558
    %v6720 = vpop.f32.mrb[0].mxu0
    %v6721 = vadd.f32 %v6673, %v6720
    %v6722 = vpop.f32.mrb[0].mxu0
    %v6723 = vpop.f32.mrb[0].mxu0
    %v6724 = vpop.f32.mrb[0].mxu0
    %6725 = vdwg.mxu0
    %6726 = vmatprep.subr.bf16.mxu0 0
    %6727 = vmatpush1.bf16.msra.mxu0 %v5798
    %6728 = vmatprep.subr.bf16.mxu0 0
    %6729 = vmatpush1.bf16.msra.mxu0 %v5799
    %6730 = vmatprep.subr.bf16.mxu0 0
    %6731 = vmatpush1.bf16.msra.mxu0 %v5800
    %6732 = vmatprep.subr.bf16.mxu0 0
    %6733 = vmatpush1.bf16.msra.mxu0 %v5801
    %6734 = vmatprep.subr.bf16.mxu0 0
    %6735 = vmatpush1.bf16.msra.mxu0 %v5802
    %6736 = vmatprep.subr.bf16.mxu0 0
    %6737 = vmatpush1.bf16.msra.mxu0 %v5803
    %6738 = vmatprep.subr.bf16.mxu0 0
    %6739 = vmatpush1.bf16.msra.mxu0 %v5804
    %6740 = vmatprep.subr.bf16.mxu0 0
    %6741 = vmatpush1.bf16.msra.mxu0 %v5805
    %6742 = vmatprep.subr.bf16.mxu0 0
    %6743 = vmatpush1.bf16.msra.mxu0 %v5806
    %6744 = vmatprep.subr.bf16.mxu0 0
    %6745 = vmatpush1.bf16.msra.mxu0 %v5807
    %6746 = vmatprep.subr.bf16.mxu0 0
    %6747 = vmatpush1.bf16.msra.mxu0 %v5808
    %6748 = vmatprep.subr.bf16.mxu0 0
    %6749 = vmatpush1.bf16.msra.mxu0 %v5809
    %6750 = vmatprep.subr.bf16.mxu0 0
    %6751 = vmatpush1.bf16.msra.mxu0 %v5810
    %6752 = vmatprep.subr.bf16.mxu0 0
    %6753 = vmatpush1.bf16.msra.mxu0 %v5811
    %6754 = vmatprep.subr.bf16.mxu0 0
    %6755 = vmatpush1.bf16.msra.mxu0 %v5812
    %6756 = vmatprep.subr.bf16.mxu0 0
    %6757 = vmatpush1.bf16.msra.mxu0 %v5813
    %6758 = vmatprep.mubr.bf16.mxu0 %v4529
    %6759 = vmatmul.mubr.bf16.gmra.mrb[0].mxu0 %v4528
    %v6760 = vpop.f32.mrb[0].mxu0
    %v6761 = vadd.f32 %v6713, %v6760
    %v6762 = vpop.f32.mrb[0].mxu0
    %v6763 = vpop.f32.mrb[0].mxu0
    %v6764 = vadd.f32 %v6716, %v6763
    %v6765 = vpop.f32.mrb[0].mxu0
    %6766 = vmatprep.mubr.bf16.mxu0 %v4561
    %6767 = vmatmul.mubr.bf16.gmra.mrb[0].mxu0 %v4560
    %v6768 = vpop.f32.mrb[0].mxu0
    %v6769 = vadd.f32 %v6721, %v6768
    %v6770 = vpop.f32.mrb[0].mxu0
    %v6771 = vpop.f32.mrb[0].mxu0
    %v6772 = vpop.f32.mrb[0].mxu0
    %6773 = vdwg.mxu0
    %6774 = vmatprep.subr.bf16.mxu0 0
    %6775 = vmatpush1.bf16.msra.mxu0 %v5814
    %6776 = vmatprep.subr.bf16.mxu0 0
    %6777 = vmatpush1.bf16.msra.mxu0 %v5815
    %6778 = vmatprep.subr.bf16.mxu0 0
    %6779 = vmatpush1.bf16.msra.mxu0 %v5816
    %6780 = vmatprep.subr.bf16.mxu0 0
    %6781 = vmatpush1.bf16.msra.mxu0 %v5817
    %6782 = vmatprep.subr.bf16.mxu0 0
    %6783 = vmatpush1.bf16.msra.mxu0 %v5818
    %6784 = vmatprep.subr.bf16.mxu0 0
    %6785 = vmatpush1.bf16.msra.mxu0 %v5819
    %6786 = vmatprep.subr.bf16.mxu0 0
    %6787 = vmatpush1.bf16.msra.mxu0 %v5820
    %6788 = vmatprep.subr.bf16.mxu0 0
    %6789 = vmatpush1.bf16.msra.mxu0 %v5821
    %6790 = vmatprep.subr.bf16.mxu0 0
    %6791 = vmatpush1.bf16.msra.mxu0 %v5822
    %6792 = vmatprep.subr.bf16.mxu0 0
    %6793 = vmatpush1.bf16.msra.mxu0 %v5823
    %6794 = vmatprep.subr.bf16.mxu0 0
    %6795 = vmatpush1.bf16.msra.mxu0 %v5824
    %6796 = vmatprep.subr.bf16.mxu0 0
    %6797 = vmatpush1.bf16.msra.mxu0 %v5825
    %6798 = vmatprep.subr.bf16.mxu0 0
    %6799 = vmatpush1.bf16.msra.mxu0 %v5826
    %6800 = vmatprep.subr.bf16.mxu0 0
    %6801 = vmatpush1.bf16.msra.mxu0 %v5827
    %6802 = vmatprep.subr.bf16.mxu0 0
    %6803 = vmatpush1.bf16.msra.mxu0 %v5828
    %6804 = vmatprep.subr.bf16.mxu0 0
    %6805 = vmatpush1.bf16.msra.mxu0 %v5829
    %6806 = vmatprep.mubr.bf16.mxu0 %v4531
    %6807 = vmatmul.mubr.bf16.gmra.mrb[0].mxu0 %v4530
    %v6808 = vpop.f32.mrb[0].mxu0
    %v6809 = vadd.f32 %v6761, %v6808
    %v6810 = vpop.f32.mrb[0].mxu0
    %v6811 = vpop.f32.mrb[0].mxu0
    %v6812 = vadd.f32 %v6764, %v6811
    %v6813 = vpop.f32.mrb[0].mxu0
    %6814 = vmatprep.mubr.bf16.mxu0 %v4563
    %6815 = vmatmul.mubr.bf16.gmra.mrb[0].mxu0 %v4562
    %v6816 = vpop.f32.mrb[0].mxu0
    %v6817 = vadd.f32 %v6769, %v6816
    %v6818 = vpop.f32.mrb[0].mxu0
    %v6819 = vpop.f32.mrb[0].mxu0
    %v6820 = vpop.f32.mrb[0].mxu0
    %6821 = vdwg.mxu0
    %6822 = vmatprep.subr.bf16.mxu0 0
    %6823 = vmatpush1.bf16.msra.mxu0 %v5830
    %6824 = vmatprep.subr.bf16.mxu0 0
    %6825 = vmatpush1.bf16.msra.mxu0 %v5831
    %6826 = vmatprep.subr.bf16.mxu0 0
    %6827 = vmatpush1.bf16.msra.mxu0 %v5832
    %6828 = vmatprep.subr.bf16.mxu0 0
    %6829 = vmatpush1.bf16.msra.mxu0 %v5833
    %6830 = vmatprep.subr.bf16.mxu0 0
    %6831 = vmatpush1.bf16.msra.mxu0 %v5834
    %6832 = vmatprep.subr.bf16.mxu0 0
    %6833 = vmatpush1.bf16.msra.mxu0 %v5835
    %6834 = vmatprep.subr.bf16.mxu0 0
    %6835 = vmatpush1.bf16.msra.mxu0 %v5836
    %6836 = vmatprep.subr.bf16.mxu0 0
    %6837 = vmatpush1.bf16.msra.mxu0 %v5837
    %6838 = vmatprep.subr.bf16.mxu0 0
    %6839 = vmatpush1.bf16.msra.mxu0 %v5838
    %6840 = vmatprep.subr.bf16.mxu0 0
    %6841 = vmatpush1.bf16.msra.mxu0 %v5839
    %6842 = vmatprep.subr.bf16.mxu0 0
    %6843 = vmatpush1.bf16.msra.mxu0 %v5840
    %6844 = vmatprep.subr.bf16.mxu0 0
    %6845 = vmatpush1.bf16.msra.mxu0 %v5841
    %6846 = vmatprep.subr.bf16.mxu0 0
    %6847 = vmatpush1.bf16.msra.mxu0 %v5842
    %6848 = vmatprep.subr.bf16.mxu0 0
    %6849 = vmatpush1.bf16.msra.mxu0 %v5843
    %6850 = vmatprep.subr.bf16.mxu0 0
    %6851 = vmatpush1.bf16.msra.mxu0 %v5844
    %6852 = vmatprep.subr.bf16.mxu0 0
    %6853 = vmatpush1.bf16.msra.mxu0 %v5845
    %6854 = vmatprep.mubr.bf16.mxu0 %v4533
    %6855 = vmatmul.mubr.bf16.gmra.mrb[0].mxu0 %v4532
    %v6856 = vpop.f32.mrb[0].mxu0
    %v6857 = vadd.f32 %v6809, %v6856
    %v6858 = vpop.f32.mrb[0].mxu0
    %v6859 = vpop.f32.mrb[0].mxu0
    %v6860 = vadd.f32 %v6812, %v6859
    %v6861 = vpop.f32.mrb[0].mxu0
    %6862 = vmatprep.mubr.bf16.mxu0 %v4565
    %6863 = vmatmul.mubr.bf16.gmra.mrb[0].mxu0 %v4564
    %v6864 = vpop.f32.mrb[0].mxu0
    %v6865 = vadd.f32 %v6817, %v6864
    %v6866 = vpop.f32.mrb[0].mxu0
    %v6867 = vpop.f32.mrb[0].mxu0
    %v6868 = vpop.f32.mrb[0].mxu0
    %6869 = vdwg.mxu0
    %v6870 = vpack.c.bf16 %v6860, %v6857
    %v6871 = vpack.c.bf16 %v6865, %v6865
    %v6872 = vpack.c.bf16 %v2828, %v2827
    %v6873 = vpack.c.bf16 %v2830, %v2829
    %v6874 = vpack.c.bf16 %v2832, %v2831
    %v6875 = vpack.c.bf16 %v2834, %v2833
    %v6876 = vsel %vm3583, %v2870, 0
    %6878 = vmatprep.subr.bf16.mxu0 0
    %6879 = vmatpush1.bf16.msra.mxu0 %v6872
    %6880 = vmatprep.subr.bf16.mxu0 0
    %6881 = vmatpush1.bf16.msra.mxu0 %v6873
    %6882 = vmatprep.subr.bf16.mxu0 0
    %6883 = vmatpush1.bf16.msra.mxu0 %v6874
    %6884 = vmatprep.subr.bf16.mxu0 0
    %6885 = vmatpush1.bf16.msra.mxu0 %v6875
    %6886 = vmatprep.subr.bf16.mxu0 0
    %6887 = vmatpush1.bf16.msra.mxu0 0
    %6888 = vmatprep.subr.bf16.mxu0 0
    %6889 = vmatpush1.bf16.msra.mxu0 0
    %6890 = vmatprep.subr.bf16.mxu0 0
    %6891 = vmatpush1.bf16.msra.mxu0 0
    %6892 = vmatprep.subr.bf16.mxu0 0
    %6893 = vmatpush1.bf16.msra.mxu0 0
    %6894 = vmatprep.subr.bf16.mxu0 0
    %6895 = vmatpush1.bf16.msra.mxu0 0
    %6896 = vmatprep.subr.bf16.mxu0 0
    %6897 = vmatpush1.bf16.msra.mxu0 0
    %6898 = vmatprep.subr.bf16.mxu0 0
    %6899 = vmatpush1.bf16.msra.mxu0 0
    %6900 = vmatprep.subr.bf16.mxu0 0
    %6901 = vmatpush1.bf16.msra.mxu0 0
    %6902 = vmatprep.subr.bf16.mxu0 0
    %6903 = vmatpush1.bf16.msra.mxu0 0
    %6904 = vmatprep.subr.bf16.mxu0 0
    %6905 = vmatpush1.bf16.msra.mxu0 0
    %6906 = vmatprep.subr.bf16.mxu0 0
    %6907 = vmatpush1.bf16.msra.mxu0 0
    %6908 = vmatprep.subr.bf16.mxu0 0
    %6909 = vmatpush1.bf16.msra.mxu0 0
    %6910 = vmatprep.mubr.bf16.mxu0 0
    %6911 = vmatmul.mubr.bf16.gmra.mrb[0].mxu0 %v6876
    %v6912 = vpop.f32.mrb[0].mxu0
    %v6913 = vadd.f32 0.0, %v6912
    %v6914 = vpop.f32.mrb[0].mxu0
    %v6915 = vpop.f32.mrb[0].mxu0
    %v6916 = vadd.f32 0.0, %v6915
    %v6917 = vpop.f32.mrb[0].mxu0
    %6918 = vdwg.mxu0
    %v6921 = vunpack.c.l.b16 %v2825
    %v6922 = vunpack.c.l.b16 %v2826
    %v6923 = vpack.c.b16 %v6922, %v6921
    %vm6924 = vcmask 179200
    %v6926 = vsel %vm6924, %v6923, 0
    %v6929 = vsel %vm304, %v6871, 0
    %6931 = vmatprep.subr.bf16.mxu0 0
    %6932 = vmatpush1.bf16.msra.mxu0 %v6870
    %6933 = vmatprep.subr.bf16.mxu0 0
    %6934 = vmatpush1.bf16.msra.mxu0 %v6929
    %6935 = vmatprep.subr.bf16.mxu0 0
    %6936 = vmatpush1.bf16.msra.mxu0 0
    %6937 = vmatprep.subr.bf16.mxu0 0
    %6938 = vmatpush1.bf16.msra.mxu0 0
    %6939 = vmatprep.subr.bf16.mxu0 0
    %6940 = vmatpush1.bf16.msra.mxu0 0
    %6941 = vmatprep.subr.bf16.mxu0 0
    %6942 = vmatpush1.bf16.msra.mxu0 0
    %6943 = vmatprep.subr.bf16.mxu0 0
    %6944 = vmatpush1.bf16.msra.mxu0 0
    %6945 = vmatprep.subr.bf16.mxu0 0
    %6946 = vmatpush1.bf16.msra.mxu0 0
    %6947 = vmatprep.subr.bf16.mxu0 0
    %6948 = vmatpush1.bf16.msra.mxu0 0
    %6949 = vmatprep.subr.bf16.mxu0 0
    %6950 = vmatpush1.bf16.msra.mxu0 0
    %6951 = vmatprep.subr.bf16.mxu0 0
    %6952 = vmatpush1.bf16.msra.mxu0 0
    %6953 = vmatprep.subr.bf16.mxu0 0
    %6954 = vmatpush1.bf16.msra.mxu0 0
    %6955 = vmatprep.subr.bf16.mxu0 0
    %6956 = vmatpush1.bf16.msra.mxu0 0
    %6957 = vmatprep.subr.bf16.mxu0 0
    %6958 = vmatpush1.bf16.msra.mxu0 0
    %6959 = vmatprep.subr.bf16.mxu0 0
    %6960 = vmatpush1.bf16.msra.mxu0 0
    %6961 = vmatprep.subr.bf16.mxu0 0
    %6962 = vmatpush1.bf16.msra.mxu0 0
    %6963 = vmatprep.mubr.bf16.mxu0 0
    %6964 = vmatmul.mubr.bf16.gmra.mrb[0].mxu0 %v6926
    %v6965 = vpop.f32.mrb[0].mxu0
    %v6966 = vadd.f32 %v6913, %v6965
    %v6967 = vpop.f32.mrb[0].mxu0
    %v6968 = vpop.f32.mrb[0].mxu0
    %v6969 = vadd.f32 %v6916, %v6968
    %v6970 = vpop.f32.mrb[0].mxu0
    %6971 = vdwg.mxu0
    %v6973 = vlaneseq
    %v6974 = vshrl.u32 %v6973, 7
    %v6975 = vsub.s32 0, %v6974
    %v6976 = vrot.slane %v2835, %v6975
    %v6978 = vadd.f32 %v6966, %v6976
    %v6979 = vadd.f32 %v6969, %v6976
    %v6980 = vmax.f32 %v6978, 0.0
    %v6981 = vmax.f32 %v6979, 0.0
    %v6982 = vpack.c.bf16 %v6981, %v6980
    %v6983 = vpack.c.bf16 %v2838, %v2836
    %v6984 = vpack.c.bf16 %v2839, %v2837
    %v6985 = vpack.c.bf16 %v2842, %v2840
    %v6986 = vpack.c.bf16 %v2843, %v2841
    %v6987 = vpack.c.bf16 %v2846, %v2844
    %v6988 = vpack.c.bf16 %v2847, %v2845
    %v6989 = vpack.c.bf16 %v2850, %v2848
    %v6990 = vpack.c.bf16 %v2851, %v2849
    %v6992 = vlaneseq
    %v6993 = vshrl.u32 %v6992, 7
    %v6994 = vsub.s32 0, %v6993
    %v6995 = vrot.slane %v2868, %v6994
    %v6996 = vlaneseq
    %v6997 = vshrl.u32 %v6996, 7
    %v6998 = vsub.s32 1, %v6997
    %v6999 = vrot.slane %v2868, %v6998
    %v7003 = vsel %vm3583, %v6982, 0
    %7005 = vmatprep.subr.bf16.mxu0 %v6984
    %7006 = vmatpush1.bf16.msra.mxu0 %v6983
    %7007 = vmatprep.subr.bf16.mxu0 %v6986
    %7008 = vmatpush1.bf16.msra.mxu0 %v6985
    %7009 = vmatprep.subr.bf16.mxu0 %v6988
    %7010 = vmatpush1.bf16.msra.mxu0 %v6987
    %7011 = vmatprep.subr.bf16.mxu0 %v6990
    %7012 = vmatpush1.bf16.msra.mxu0 %v6989
    %7013 = vmatprep.subr.bf16.mxu0 0
    %7014 = vmatpush1.bf16.msra.mxu0 0
    %7015 = vmatprep.subr.bf16.mxu0 0
    %7016 = vmatpush1.bf16.msra.mxu0 0
    %7017 = vmatprep.subr.bf16.mxu0 0
    %7018 = vmatpush1.bf16.msra.mxu0 0
    %7019 = vmatprep.subr.bf16.mxu0 0
    %7020 = vmatpush1.bf16.msra.mxu0 0
    %7021 = vmatprep.subr.bf16.mxu0 0
    %7022 = vmatpush1.bf16.msra.mxu0 0
    %7023 = vmatprep.subr.bf16.mxu0 0
    %7024 = vmatpush1.bf16.msra.mxu0 0
    %7025 = vmatprep.subr.bf16.mxu0 0
    %7026 = vmatpush1.bf16.msra.mxu0 0
    %7027 = vmatprep.subr.bf16.mxu0 0
    %7028 = vmatpush1.bf16.msra.mxu0 0
    %7029 = vmatprep.subr.bf16.mxu0 0
    %7030 = vmatpush1.bf16.msra.mxu0 0
    %7031 = vmatprep.subr.bf16.mxu0 0
    %7032 = vmatpush1.bf16.msra.mxu0 0
    %7033 = vmatprep.subr.bf16.mxu0 0
    %7034 = vmatpush1.bf16.msra.mxu0 0
    %7035 = vmatprep.subr.bf16.mxu0 0
    %7036 = vmatpush1.bf16.msra.mxu0 0
    %7037 = vmatprep.mubr.bf16.mxu0 0
    %7038 = vmatmul.mubr.bf16.gmra.mrb[0].mxu0 %v7003
    %v7039 = vpop.f32.mrb[0].mxu0
    %v7040 = vadd.f32 %v6995, %v7039
    %v7041 = vpop.f32.mrb[0].mxu0
    %v7042 = vadd.f32 %v6999, %v7041
    %v7043 = vpop.f32.mrb[0].mxu0
    %v7044 = vadd.f32 %v6995, %v7043
    %v7045 = vpop.f32.mrb[0].mxu0
    %v7046 = vadd.f32 %v6999, %v7045
    %7047 = vdwg.mxu0
    %v7048 = vpack.c.bf16 %v2854, %v2852
    %v7049 = vpack.c.bf16 %v2855, %v2853
    %v7050 = vpack.c.bf16 %v2858, %v2856
    %v7051 = vpack.c.bf16 %v2859, %v2857
    %v7052 = vpack.c.bf16 %v2862, %v2860
    %v7053 = vpack.c.bf16 %v2863, %v2861
    %v7054 = vpack.c.bf16 %v2866, %v2864
    %v7055 = vpack.c.bf16 %v2867, %v2865
    %v7057 = vlaneseq
    %v7058 = vshrl.u32 %v7057, 7
    %v7059 = vsub.s32 0, %v7058
    %v7060 = vrot.slane %v2869, %v7059
    %v7061 = vlaneseq
    %v7062 = vshrl.u32 %v7061, 7
    %v7063 = vsub.s32 1, %v7062
    %v7064 = vrot.slane %v2869, %v7063
    %7067 = vmatprep.subr.bf16.mxu0 %v7049
    %7068 = vmatpush1.bf16.msra.mxu0 %v7048
    %7069 = vmatprep.subr.bf16.mxu0 %v7051
    %7070 = vmatpush1.bf16.msra.mxu0 %v7050
    %7071 = vmatprep.subr.bf16.mxu0 %v7053
    %7072 = vmatpush1.bf16.msra.mxu0 %v7052
    %7073 = vmatprep.subr.bf16.mxu0 %v7055
    %7074 = vmatpush1.bf16.msra.mxu0 %v7054
    %7075 = vmatprep.subr.bf16.mxu0 0
    %7076 = vmatpush1.bf16.msra.mxu0 0
    %7077 = vmatprep.subr.bf16.mxu0 0
    %7078 = vmatpush1.bf16.msra.mxu0 0
    %7079 = vmatprep.subr.bf16.mxu0 0
    %7080 = vmatpush1.bf16.msra.mxu0 0
    %7081 = vmatprep.subr.bf16.mxu0 0
    %7082 = vmatpush1.bf16.msra.mxu0 0
    %7083 = vmatprep.subr.bf16.mxu0 0
    %7084 = vmatpush1.bf16.msra.mxu0 0
    %7085 = vmatprep.subr.bf16.mxu0 0
    %7086 = vmatpush1.bf16.msra.mxu0 0
    %7087 = vmatprep.subr.bf16.mxu0 0
    %7088 = vmatpush1.bf16.msra.mxu0 0
    %7089 = vmatprep.subr.bf16.mxu0 0
    %7090 = vmatpush1.bf16.msra.mxu0 0
    %7091 = vmatprep.subr.bf16.mxu0 0
    %7092 = vmatpush1.bf16.msra.mxu0 0
    %7093 = vmatprep.subr.bf16.mxu0 0
    %7094 = vmatpush1.bf16.msra.mxu0 0
    %7095 = vmatprep.subr.bf16.mxu0 0
    %7096 = vmatpush1.bf16.msra.mxu0 0
    %7097 = vmatprep.subr.bf16.mxu0 0
    %7098 = vmatpush1.bf16.msra.mxu0 0
    %7099 = vmatprep.mubr.bf16.mxu0 0
    %7100 = vmatmul.mubr.bf16.gmra.mrb[0].mxu0 %v6876
    %v7101 = vpop.f32.mrb[0].mxu0
    %v7102 = vadd.f32 %v7060, %v7101
    %v7103 = vpop.f32.mrb[0].mxu0
    %v7104 = vadd.f32 %v7064, %v7103
    %v7105 = vpop.f32.mrb[0].mxu0
    %v7106 = vadd.f32 %v7060, %v7105
    %v7107 = vpop.f32.mrb[0].mxu0
    %v7108 = vadd.f32 %v7064, %v7107
    %7109 = vdwg.mxu0
    %v7110 = vadd.f32 %v7040, %v7102
    %v7111 = vadd.f32 %v7044, %v7106
    %v7112 = vxor.u32 %v7110, 2147483648
    %v7113 = vxor.u32 %v7111, 2147483648
    %v7114 = vmul.f32 %v7112, 1.442695
    %v7115 = vpow.pop %v7114
    %v7116 = vmul.f32 %v7113, 1.442695
    %v7117 = vpow.pop %v7116
    %v7118 = vadd.f32 %v7115, 1.0
    %v7119 = vadd.f32 %v7117, 1.0
    %v7120 = vrcp.pop %v7118
    %v7121 = vmul.f32 1.0, %v7120
    %v7122 = vrcp.pop %v7119
    %v7123 = vmul.f32 1.0, %v7122
    %v7124 = vmul.f32 %v7121, %v7104
    %v7125 = vmul.f32 %v7123, %v7108
    %v7126 = vadd.f32 %v7042, %v7124
    %v7127 = vadd.f32 %v7046, %v7125
    %v7128 = vtanh.pop %v7126
    %v7129 = vtanh.pop %v7127
    %v7130 = vsub.f32 1.0, %v7121
    %v7131 = vsub.f32 1.0, %v7123
    %7134 = vrot.lane.b32.xlu0 %v7128, 64
    %v7135 = vpop.permute.xlu0 %7134
    %7136 = vrot.lane.b32.xlu0 %v7129, 64
    %v7137 = vpop.permute.xlu0 %7136
    %v7140 = vmul.f32 %v7130, %v7135
    %v7141 = vmul.f32 %v7131, %v7137
    %7144 = vrot.lane.b32.xlu0 %v351, 64
    %v7145 = vpop.permute.xlu0 %7144
    %7146 = vrot.lane.b32.xlu0 %v352, 64
    %v7147 = vpop.permute.xlu0 %7146
    %v7150 = vmul.f32 %v7121, %v7145
    %v7151 = vmul.f32 %v7123, %v7147
    %v7152 = vadd.f32 %v7140, %v7150
    %v7153 = vadd.f32 %v7141, %v7151
    %v7154 = vpack.c.bf16 %v7153, %v7152
    %7156 = vrot.lane.b32.xlu0 %v7154, 64
    %v7157 = vpop.permute.xlu0 %7156
    %v7159 = vand.u32 %v7157, %v2889
    %7161 = vmatprep.subr.bf16.mxu0 0
    %7162 = vmatpush1.bf16.msra.mxu0 %v7159
    %7163 = vmatprep.subr.bf16.mxu0 0
    %7164 = vmatpush1.bf16.msra.mxu0 0
    %7165 = vmatprep.subr.bf16.mxu0 0
    %7166 = vmatpush1.bf16.msra.mxu0 0
    %7167 = vmatprep.subr.bf16.mxu0 0
    %7168 = vmatpush1.bf16.msra.mxu0 0
    %7169 = vmatprep.subr.bf16.mxu0 0
    %7170 = vmatpush1.bf16.msra.mxu0 0
    %7171 = vmatprep.subr.bf16.mxu0 0
    %7172 = vmatpush1.bf16.msra.mxu0 0
    %7173 = vmatprep.subr.bf16.mxu0 0
    %7174 = vmatpush1.bf16.msra.mxu0 0
    %7175 = vmatprep.subr.bf16.mxu0 0
    %7176 = vmatpush1.bf16.msra.mxu0 0
    %7177 = vmatprep.subr.bf16.mxu0 0
    %7178 = vmatpush1.bf16.msra.mxu0 0
    %7179 = vmatprep.subr.bf16.mxu0 0
    %7180 = vmatpush1.bf16.msra.mxu0 0
    %7181 = vmatprep.subr.bf16.mxu0 0
    %7182 = vmatpush1.bf16.msra.mxu0 0
    %7183 = vmatprep.subr.bf16.mxu0 0
    %7184 = vmatpush1.bf16.msra.mxu0 0
    %7185 = vmatprep.subr.bf16.mxu0 0
    %7186 = vmatpush1.bf16.msra.mxu0 0
    %7187 = vmatprep.subr.bf16.mxu0 0
    %7188 = vmatpush1.bf16.msra.mxu0 0
    %7189 = vmatprep.subr.bf16.mxu0 0
    %7190 = vmatpush1.bf16.msra.mxu0 0
    %7191 = vmatprep.subr.bf16.mxu0 0
    %7192 = vmatpush1.bf16.msra.mxu0 0
    %7193 = vmatprep.mubr.bf16.mxu0 0
    %7194 = vmatmul.mubr.bf16.gmra.mrb[0].mxu0 %v2881
    %v7195 = vpop.f32.mrb[0].mxu0
    %v7196 = vadd.f32 0.0, %v7195
    %v7197 = vpop.f32.mrb[0].mxu0
    %v7198 = vpop.f32.mrb[0].mxu0
    %v7199 = vadd.f32 0.0, %v7198
    %v7200 = vpop.f32.mrb[0].mxu0
    %7201 = vmatprep.mubr.bf16.mxu0 0
    %7202 = vmatmul.mubr.bf16.gmra.mrb[0].mxu0 %v2884
    %v7203 = vpop.f32.mrb[0].mxu0
    %v7204 = vadd.f32 0.0, %v7203
    %v7205 = vpop.f32.mrb[0].mxu0
    %v7206 = vpop.f32.mrb[0].mxu0
    %v7207 = vpop.f32.mrb[0].mxu0
    %7208 = vdwg.mxu0
    %v7209 = vpack.c.bf16 %v7199, %v7196
    %v7210 = vpack.c.bf16 %v7204, %v7204
    %v7212 = vsel %vm3583, %v7209, 0
    %v7215 = vsel %vm3583, %v7210, 0
    %7217 = vmatprep.subr.bf16.mxu0 %v3328
    %7218 = vmatpush1.bf16.msra.mxu0 %v3327
    %7219 = vmatprep.subr.bf16.mxu0 %v3360
    %7220 = vmatpush1.bf16.msra.mxu0 %v3359
    %7221 = vmatprep.subr.bf16.mxu0 %v3392
    %7222 = vmatpush1.bf16.msra.mxu0 %v3391
    %7223 = vmatprep.subr.bf16.mxu0 %v3424
    %7224 = vmatpush1.bf16.msra.mxu0 %v3423
    %7225 = vmatprep.subr.bf16.mxu0 0
    %7226 = vmatpush1.bf16.msra.mxu0 0
    %7227 = vmatprep.subr.bf16.mxu0 0
    %7228 = vmatpush1.bf16.msra.mxu0 0
    %7229 = vmatprep.subr.bf16.mxu0 0
    %7230 = vmatpush1.bf16.msra.mxu0 0
    %7231 = vmatprep.subr.bf16.mxu0 0
    %7232 = vmatpush1.bf16.msra.mxu0 0
    %7233 = vmatprep.subr.bf16.mxu0 0
    %7234 = vmatpush1.bf16.msra.mxu0 0
    %7235 = vmatprep.subr.bf16.mxu0 0
    %7236 = vmatpush1.bf16.msra.mxu0 0
    %7237 = vmatprep.subr.bf16.mxu0 0
    %7238 = vmatpush1.bf16.msra.mxu0 0
    %7239 = vmatprep.subr.bf16.mxu0 0
    %7240 = vmatpush1.bf16.msra.mxu0 0
    %7241 = vmatprep.subr.bf16.mxu0 0
    %7242 = vmatpush1.bf16.msra.mxu0 0
    %7243 = vmatprep.subr.bf16.mxu0 0
    %7244 = vmatpush1.bf16.msra.mxu0 0
    %7245 = vmatprep.subr.bf16.mxu0 0
    %7246 = vmatpush1.bf16.msra.mxu0 0
    %7247 = vmatprep.subr.bf16.mxu0 0
    %7248 = vmatpush1.bf16.msra.mxu0 0
    %7249 = vmatprep.mubr.bf16.mxu0 0
    %7250 = vmatmul.mubr.bf16.gmra.mrb[0].mxu0 %v7212
    %v7251 = vpop.f32.mrb[0].mxu0
    %v7252 = vadd.f32 0.0, %v7251
    %v7253 = vpop.f32.mrb[0].mxu0
    %v7254 = vadd.f32 0.0, %v7253
    %v7255 = vpop.f32.mrb[0].mxu0
    %v7256 = vadd.f32 0.0, %v7255
    %v7257 = vpop.f32.mrb[0].mxu0
    %v7258 = vadd.f32 0.0, %v7257
    %7259 = vmatprep.mubr.bf16.mxu0 0
    %7260 = vmatmul.mubr.bf16.gmra.mrb[0].mxu0 %v7215
    %v7261 = vpop.f32.mrb[0].mxu0
    %v7262 = vadd.f32 0.0, %v7261
    %v7263 = vpop.f32.mrb[0].mxu0
    %v7264 = vadd.f32 0.0, %v7263
    %v7265 = vpop.f32.mrb[0].mxu0
    %v7266 = vpop.f32.mrb[0].mxu0
    %7267 = vdwg.mxu0
    %7268 = vmatprep.subr.bf16.mxu0 %v3330
    %7269 = vmatpush1.bf16.msra.mxu0 %v3329
    %7270 = vmatprep.subr.bf16.mxu0 %v3362
    %7271 = vmatpush1.bf16.msra.mxu0 %v3361
    %7272 = vmatprep.subr.bf16.mxu0 %v3394
    %7273 = vmatpush1.bf16.msra.mxu0 %v3393
    %7274 = vmatprep.subr.bf16.mxu0 %v3426
    %7275 = vmatpush1.bf16.msra.mxu0 %v3425
    %7276 = vmatprep.subr.bf16.mxu0 0
    %7277 = vmatpush1.bf16.msra.mxu0 0
    %7278 = vmatprep.subr.bf16.mxu0 0
    %7279 = vmatpush1.bf16.msra.mxu0 0
    %7280 = vmatprep.subr.bf16.mxu0 0
    %7281 = vmatpush1.bf16.msra.mxu0 0
    %7282 = vmatprep.subr.bf16.mxu0 0
    %7283 = vmatpush1.bf16.msra.mxu0 0
    %7284 = vmatprep.subr.bf16.mxu0 0
    %7285 = vmatpush1.bf16.msra.mxu0 0
    %7286 = vmatprep.subr.bf16.mxu0 0
    %7287 = vmatpush1.bf16.msra.mxu0 0
    %7288 = vmatprep.subr.bf16.mxu0 0
    %7289 = vmatpush1.bf16.msra.mxu0 0
    %7290 = vmatprep.subr.bf16.mxu0 0
    %7291 = vmatpush1.bf16.msra.mxu0 0
    %7292 = vmatprep.subr.bf16.mxu0 0
    %7293 = vmatpush1.bf16.msra.mxu0 0
    %7294 = vmatprep.subr.bf16.mxu0 0
    %7295 = vmatpush1.bf16.msra.mxu0 0
    %7296 = vmatprep.subr.bf16.mxu0 0
    %7297 = vmatpush1.bf16.msra.mxu0 0
    %7298 = vmatprep.subr.bf16.mxu0 0
    %7299 = vmatpush1.bf16.msra.mxu0 0
    %7300 = vmatprep.mubr.bf16.mxu0 0
    %7301 = vmatmul.mubr.bf16.gmra.mrb[0].mxu0 %v7212
    %v7302 = vpop.f32.mrb[0].mxu0
    %v7303 = vadd.f32 0.0, %v7302
    %v7304 = vpop.f32.mrb[0].mxu0
    %v7305 = vadd.f32 0.0, %v7304
    %v7306 = vpop.f32.mrb[0].mxu0
    %v7307 = vadd.f32 0.0, %v7306
    %v7308 = vpop.f32.mrb[0].mxu0
    %v7309 = vadd.f32 0.0, %v7308
    %7310 = vmatprep.mubr.bf16.mxu0 0
    %7311 = vmatmul.mubr.bf16.gmra.mrb[0].mxu0 %v7215
    %v7312 = vpop.f32.mrb[0].mxu0
    %v7313 = vadd.f32 0.0, %v7312
    %v7314 = vpop.f32.mrb[0].mxu0
    %v7315 = vadd.f32 0.0, %v7314
    %v7316 = vpop.f32.mrb[0].mxu0
    %v7317 = vpop.f32.mrb[0].mxu0
    %7318 = vdwg.mxu0
    %7319 = vmatprep.subr.bf16.mxu0 %v3332
    %7320 = vmatpush1.bf16.msra.mxu0 %v3331
    %7321 = vmatprep.subr.bf16.mxu0 %v3364
    %7322 = vmatpush1.bf16.msra.mxu0 %v3363
    %7323 = vmatprep.subr.bf16.mxu0 %v3396
    %7324 = vmatpush1.bf16.msra.mxu0 %v3395
    %7325 = vmatprep.subr.bf16.mxu0 %v3428
    %7326 = vmatpush1.bf16.msra.mxu0 %v3427
    %7327 = vmatprep.subr.bf16.mxu0 0
    %7328 = vmatpush1.bf16.msra.mxu0 0
    %7329 = vmatprep.subr.bf16.mxu0 0
    %7330 = vmatpush1.bf16.msra.mxu0 0
    %7331 = vmatprep.subr.bf16.mxu0 0
    %7332 = vmatpush1.bf16.msra.mxu0 0
    %7333 = vmatprep.subr.bf16.mxu0 0
    %7334 = vmatpush1.bf16.msra.mxu0 0
    %7335 = vmatprep.subr.bf16.mxu0 0
    %7336 = vmatpush1.bf16.msra.mxu0 0
    %7337 = vmatprep.subr.bf16.mxu0 0
    %7338 = vmatpush1.bf16.msra.mxu0 0
    %7339 = vmatprep.subr.bf16.mxu0 0
    %7340 = vmatpush1.bf16.msra.mxu0 0
    %7341 = vmatprep.subr.bf16.mxu0 0
    %7342 = vmatpush1.bf16.msra.mxu0 0
    %7343 = vmatprep.subr.bf16.mxu0 0
    %7344 = vmatpush1.bf16.msra.mxu0 0
    %7345 = vmatprep.subr.bf16.mxu0 0
    %7346 = vmatpush1.bf16.msra.mxu0 0
    %7347 = vmatprep.subr.bf16.mxu0 0
    %7348 = vmatpush1.bf16.msra.mxu0 0
    %7349 = vmatprep.subr.bf16.mxu0 0
    %7350 = vmatpush1.bf16.msra.mxu0 0
    %7351 = vmatprep.mubr.bf16.mxu0 0
    %7352 = vmatmul.mubr.bf16.gmra.mrb[0].mxu0 %v7212
    %v7353 = vpop.f32.mrb[0].mxu0
    %v7354 = vadd.f32 0.0, %v7353
    %v7355 = vpop.f32.mrb[0].mxu0
    %v7356 = vadd.f32 0.0, %v7355
    %v7357 = vpop.f32.mrb[0].mxu0
    %v7358 = vadd.f32 0.0, %v7357
    %v7359 = vpop.f32.mrb[0].mxu0
    %v7360 = vadd.f32 0.0, %v7359
    %7361 = vmatprep.mubr.bf16.mxu0 0
    %7362 = vmatmul.mubr.bf16.gmra.mrb[0].mxu0 %v7215
    %v7363 = vpop.f32.mrb[0].mxu0
    %v7364 = vadd.f32 0.0, %v7363
    %v7365 = vpop.f32.mrb[0].mxu0
    %v7366 = vadd.f32 0.0, %v7365
    %v7367 = vpop.f32.mrb[0].mxu0
    %v7368 = vpop.f32.mrb[0].mxu0
    %7369 = vdwg.mxu0
    %7370 = vmatprep.subr.bf16.mxu0 %v3334
    %7371 = vmatpush1.bf16.msra.mxu0 %v3333
    %7372 = vmatprep.subr.bf16.mxu0 %v3366
    %7373 = vmatpush1.bf16.msra.mxu0 %v3365
    %7374 = vmatprep.subr.bf16.mxu0 %v3398
    %7375 = vmatpush1.bf16.msra.mxu0 %v3397
    %7376 = vmatprep.subr.bf16.mxu0 %v3430
    %7377 = vmatpush1.bf16.msra.mxu0 %v3429
    %7378 = vmatprep.subr.bf16.mxu0 0
    %7379 = vmatpush1.bf16.msra.mxu0 0
    %7380 = vmatprep.subr.bf16.mxu0 0
    %7381 = vmatpush1.bf16.msra.mxu0 0
    %7382 = vmatprep.subr.bf16.mxu0 0
    %7383 = vmatpush1.bf16.msra.mxu0 0
    %7384 = vmatprep.subr.bf16.mxu0 0
    %7385 = vmatpush1.bf16.msra.mxu0 0
    %7386 = vmatprep.subr.bf16.mxu0 0
    %7387 = vmatpush1.bf16.msra.mxu0 0
    %7388 = vmatprep.subr.bf16.mxu0 0
    %7389 = vmatpush1.bf16.msra.mxu0 0
    %7390 = vmatprep.subr.bf16.mxu0 0
    %7391 = vmatpush1.bf16.msra.mxu0 0
    %7392 = vmatprep.subr.bf16.mxu0 0
    %7393 = vmatpush1.bf16.msra.mxu0 0
    %7394 = vmatprep.subr.bf16.mxu0 0
    %7395 = vmatpush1.bf16.msra.mxu0 0
    %7396 = vmatprep.subr.bf16.mxu0 0
    %7397 = vmatpush1.bf16.msra.mxu0 0
    %7398 = vmatprep.subr.bf16.mxu0 0
    %7399 = vmatpush1.bf16.msra.mxu0 0
    %7400 = vmatprep.subr.bf16.mxu0 0
    %7401 = vmatpush1.bf16.msra.mxu0 0
    %7402 = vmatprep.mubr.bf16.mxu0 0
    %7403 = vmatmul.mubr.bf16.gmra.mrb[0].mxu0 %v7212
    %v7404 = vpop.f32.mrb[0].mxu0
    %v7405 = vadd.f32 0.0, %v7404
    %v7406 = vpop.f32.mrb[0].mxu0
    %v7407 = vadd.f32 0.0, %v7406
    %v7408 = vpop.f32.mrb[0].mxu0
    %v7409 = vadd.f32 0.0, %v7408
    %v7410 = vpop.f32.mrb[0].mxu0
    %v7411 = vadd.f32 0.0, %v7410
    %7412 = vmatprep.mubr.bf16.mxu0 0
    %7413 = vmatmul.mubr.bf16.gmra.mrb[0].mxu0 %v7215
    %v7414 = vpop.f32.mrb[0].mxu0
    %v7415 = vadd.f32 0.0, %v7414
    %v7416 = vpop.f32.mrb[0].mxu0
    %v7417 = vadd.f32 0.0, %v7416
    %v7418 = vpop.f32.mrb[0].mxu0
    %v7419 = vpop.f32.mrb[0].mxu0
    %7420 = vdwg.mxu0
    %7421 = vmatprep.subr.bf16.mxu0 %v3336
    %7422 = vmatpush1.bf16.msra.mxu0 %v3335
    %7423 = vmatprep.subr.bf16.mxu0 %v3368
    %7424 = vmatpush1.bf16.msra.mxu0 %v3367
    %7425 = vmatprep.subr.bf16.mxu0 %v3400
    %7426 = vmatpush1.bf16.msra.mxu0 %v3399
    %7427 = vmatprep.subr.bf16.mxu0 %v3432
    %7428 = vmatpush1.bf16.msra.mxu0 %v3431
    %7429 = vmatprep.subr.bf16.mxu0 0
    %7430 = vmatpush1.bf16.msra.mxu0 0
    %7431 = vmatprep.subr.bf16.mxu0 0
    %7432 = vmatpush1.bf16.msra.mxu0 0
    %7433 = vmatprep.subr.bf16.mxu0 0
    %7434 = vmatpush1.bf16.msra.mxu0 0
    %7435 = vmatprep.subr.bf16.mxu0 0
    %7436 = vmatpush1.bf16.msra.mxu0 0
    %7437 = vmatprep.subr.bf16.mxu0 0
    %7438 = vmatpush1.bf16.msra.mxu0 0
    %7439 = vmatprep.subr.bf16.mxu0 0
    %7440 = vmatpush1.bf16.msra.mxu0 0
    %7441 = vmatprep.subr.bf16.mxu0 0
    %7442 = vmatpush1.bf16.msra.mxu0 0
    %7443 = vmatprep.subr.bf16.mxu0 0
    %7444 = vmatpush1.bf16.msra.mxu0 0
    %7445 = vmatprep.subr.bf16.mxu0 0
    %7446 = vmatpush1.bf16.msra.mxu0 0
    %7447 = vmatprep.subr.bf16.mxu0 0
    %7448 = vmatpush1.bf16.msra.mxu0 0
    %7449 = vmatprep.subr.bf16.mxu0 0
    %7450 = vmatpush1.bf16.msra.mxu0 0
    %7451 = vmatprep.subr.bf16.mxu0 0
    %7452 = vmatpush1.bf16.msra.mxu0 0
    %7453 = vmatprep.mubr.bf16.mxu0 0
    %7454 = vmatmul.mubr.bf16.gmra.mrb[0].mxu0 %v7212
    %v7455 = vpop.f32.mrb[0].mxu0
    %v7456 = vadd.f32 0.0, %v7455
    %v7457 = vpop.f32.mrb[0].mxu0
    %v7458 = vadd.f32 0.0, %v7457
    %v7459 = vpop.f32.mrb[0].mxu0
    %v7460 = vadd.f32 0.0, %v7459
    %v7461 = vpop.f32.mrb[0].mxu0
    %v7462 = vadd.f32 0.0, %v7461
    %7463 = vmatprep.mubr.bf16.mxu0 0
    %7464 = vmatmul.mubr.bf16.gmra.mrb[0].mxu0 %v7215
    %v7465 = vpop.f32.mrb[0].mxu0
    %v7466 = vadd.f32 0.0, %v7465
    %v7467 = vpop.f32.mrb[0].mxu0
    %v7468 = vadd.f32 0.0, %v7467
    %v7469 = vpop.f32.mrb[0].mxu0
    %v7470 = vpop.f32.mrb[0].mxu0
    %7471 = vdwg.mxu0
    %7472 = vmatprep.subr.bf16.mxu0 %v3338
    %7473 = vmatpush1.bf16.msra.mxu0 %v3337
    %7474 = vmatprep.subr.bf16.mxu0 %v3370
    %7475 = vmatpush1.bf16.msra.mxu0 %v3369
    %7476 = vmatprep.subr.bf16.mxu0 %v3402
    %7477 = vmatpush1.bf16.msra.mxu0 %v3401
    %7478 = vmatprep.subr.bf16.mxu0 %v3434
    %7479 = vmatpush1.bf16.msra.mxu0 %v3433
    %7480 = vmatprep.subr.bf16.mxu0 0
    %7481 = vmatpush1.bf16.msra.mxu0 0
    %7482 = vmatprep.subr.bf16.mxu0 0
    %7483 = vmatpush1.bf16.msra.mxu0 0
    %7484 = vmatprep.subr.bf16.mxu0 0
    %7485 = vmatpush1.bf16.msra.mxu0 0
    %7486 = vmatprep.subr.bf16.mxu0 0
    %7487 = vmatpush1.bf16.msra.mxu0 0
    %7488 = vmatprep.subr.bf16.mxu0 0
    %7489 = vmatpush1.bf16.msra.mxu0 0
    %7490 = vmatprep.subr.bf16.mxu0 0
    %7491 = vmatpush1.bf16.msra.mxu0 0
    %7492 = vmatprep.subr.bf16.mxu0 0
    %7493 = vmatpush1.bf16.msra.mxu0 0
    %7494 = vmatprep.subr.bf16.mxu0 0
    %7495 = vmatpush1.bf16.msra.mxu0 0
    %7496 = vmatprep.subr.bf16.mxu0 0
    %7497 = vmatpush1.bf16.msra.mxu0 0
    %7498 = vmatprep.subr.bf16.mxu0 0
    %7499 = vmatpush1.bf16.msra.mxu0 0
    %7500 = vmatprep.subr.bf16.mxu0 0
    %7501 = vmatpush1.bf16.msra.mxu0 0
    %7502 = vmatprep.subr.bf16.mxu0 0
    %7503 = vmatpush1.bf16.msra.mxu0 0
    %7504 = vmatprep.mubr.bf16.mxu0 0
    %7505 = vmatmul.mubr.bf16.gmra.mrb[0].mxu0 %v7212
    %v7506 = vpop.f32.mrb[0].mxu0
    %v7507 = vadd.f32 0.0, %v7506
    %v7508 = vpop.f32.mrb[0].mxu0
    %v7509 = vadd.f32 0.0, %v7508
    %v7510 = vpop.f32.mrb[0].mxu0
    %v7511 = vadd.f32 0.0, %v7510
    %v7512 = vpop.f32.mrb[0].mxu0
    %v7513 = vadd.f32 0.0, %v7512
    %7514 = vmatprep.mubr.bf16.mxu0 0
    %7515 = vmatmul.mubr.bf16.gmra.mrb[0].mxu0 %v7215
    %v7516 = vpop.f32.mrb[0].mxu0
    %v7517 = vadd.f32 0.0, %v7516
    %v7518 = vpop.f32.mrb[0].mxu0
    %v7519 = vadd.f32 0.0, %v7518
    %v7520 = vpop.f32.mrb[0].mxu0
    %v7521 = vpop.f32.mrb[0].mxu0
    %7522 = vdwg.mxu0
    %7523 = vmatprep.subr.bf16.mxu0 %v3340
    %7524 = vmatpush1.bf16.msra.mxu0 %v3339
    %7525 = vmatprep.subr.bf16.mxu0 %v3372
    %7526 = vmatpush1.bf16.msra.mxu0 %v3371
    %7527 = vmatprep.subr.bf16.mxu0 %v3404
    %7528 = vmatpush1.bf16.msra.mxu0 %v3403
    %7529 = vmatprep.subr.bf16.mxu0 %v3436
    %7530 = vmatpush1.bf16.msra.mxu0 %v3435
    %7531 = vmatprep.subr.bf16.mxu0 0
    %7532 = vmatpush1.bf16.msra.mxu0 0
    %7533 = vmatprep.subr.bf16.mxu0 0
    %7534 = vmatpush1.bf16.msra.mxu0 0
    %7535 = vmatprep.subr.bf16.mxu0 0
    %7536 = vmatpush1.bf16.msra.mxu0 0
    %7537 = vmatprep.subr.bf16.mxu0 0
    %7538 = vmatpush1.bf16.msra.mxu0 0
    %7539 = vmatprep.subr.bf16.mxu0 0
    %7540 = vmatpush1.bf16.msra.mxu0 0
    %7541 = vmatprep.subr.bf16.mxu0 0
    %7542 = vmatpush1.bf16.msra.mxu0 0
    %7543 = vmatprep.subr.bf16.mxu0 0
    %7544 = vmatpush1.bf16.msra.mxu0 0
    %7545 = vmatprep.subr.bf16.mxu0 0
    %7546 = vmatpush1.bf16.msra.mxu0 0
    %7547 = vmatprep.subr.bf16.mxu0 0
    %7548 = vmatpush1.bf16.msra.mxu0 0
    %7549 = vmatprep.subr.bf16.mxu0 0
    %7550 = vmatpush1.bf16.msra.mxu0 0
    %7551 = vmatprep.subr.bf16.mxu0 0
    %7552 = vmatpush1.bf16.msra.mxu0 0
    %7553 = vmatprep.subr.bf16.mxu0 0
    %7554 = vmatpush1.bf16.msra.mxu0 0
    %7555 = vmatprep.mubr.bf16.mxu0 0
    %7556 = vmatmul.mubr.bf16.gmra.mrb[0].mxu0 %v7212
    %v7557 = vpop.f32.mrb[0].mxu0
    %v7558 = vadd.f32 0.0, %v7557
    %v7559 = vpop.f32.mrb[0].mxu0
    %v7560 = vadd.f32 0.0, %v7559
    %v7561 = vpop.f32.mrb[0].mxu0
    %v7562 = vadd.f32 0.0, %v7561
    %v7563 = vpop.f32.mrb[0].mxu0
    %v7564 = vadd.f32 0.0, %v7563
    %7565 = vmatprep.mubr.bf16.mxu0 0
    %7566 = vmatmul.mubr.bf16.gmra.mrb[0].mxu0 %v7215
    %v7567 = vpop.f32.mrb[0].mxu0
    %v7568 = vadd.f32 0.0, %v7567
    %v7569 = vpop.f32.mrb[0].mxu0
    %v7570 = vadd.f32 0.0, %v7569
    %v7571 = vpop.f32.mrb[0].mxu0
    %v7572 = vpop.f32.mrb[0].mxu0
    %7573 = vdwg.mxu0
    %7574 = vmatprep.subr.bf16.mxu0 %v3342
    %7575 = vmatpush1.bf16.msra.mxu0 %v3341
    %7576 = vmatprep.subr.bf16.mxu0 %v3374
    %7577 = vmatpush1.bf16.msra.mxu0 %v3373
    %7578 = vmatprep.subr.bf16.mxu0 %v3406
    %7579 = vmatpush1.bf16.msra.mxu0 %v3405
    %7580 = vmatprep.subr.bf16.mxu0 %v3438
    %7581 = vmatpush1.bf16.msra.mxu0 %v3437
    %7582 = vmatprep.subr.bf16.mxu0 0
    %7583 = vmatpush1.bf16.msra.mxu0 0
    %7584 = vmatprep.subr.bf16.mxu0 0
    %7585 = vmatpush1.bf16.msra.mxu0 0
    %7586 = vmatprep.subr.bf16.mxu0 0
    %7587 = vmatpush1.bf16.msra.mxu0 0
    %7588 = vmatprep.subr.bf16.mxu0 0
    %7589 = vmatpush1.bf16.msra.mxu0 0
    %7590 = vmatprep.subr.bf16.mxu0 0
    %7591 = vmatpush1.bf16.msra.mxu0 0
    %7592 = vmatprep.subr.bf16.mxu0 0
    %7593 = vmatpush1.bf16.msra.mxu0 0
    %7594 = vmatprep.subr.bf16.mxu0 0
    %7595 = vmatpush1.bf16.msra.mxu0 0
    %7596 = vmatprep.subr.bf16.mxu0 0
    %7597 = vmatpush1.bf16.msra.mxu0 0
    %7598 = vmatprep.subr.bf16.mxu0 0
    %7599 = vmatpush1.bf16.msra.mxu0 0
    %7600 = vmatprep.subr.bf16.mxu0 0
    %7601 = vmatpush1.bf16.msra.mxu0 0
    %7602 = vmatprep.subr.bf16.mxu0 0
    %7603 = vmatpush1.bf16.msra.mxu0 0
    %7604 = vmatprep.subr.bf16.mxu0 0
    %7605 = vmatpush1.bf16.msra.mxu0 0
    %7606 = vmatprep.mubr.bf16.mxu0 0
    %7607 = vmatmul.mubr.bf16.gmra.mrb[0].mxu0 %v7212
    %v7608 = vpop.f32.mrb[0].mxu0
    %v7609 = vadd.f32 0.0, %v7608
    %v7610 = vpop.f32.mrb[0].mxu0
    %v7611 = vadd.f32 0.0, %v7610
    %v7612 = vpop.f32.mrb[0].mxu0
    %v7613 = vadd.f32 0.0, %v7612
    %v7614 = vpop.f32.mrb[0].mxu0
    %v7615 = vadd.f32 0.0, %v7614
    %7616 = vmatprep.mubr.bf16.mxu0 0
    %7617 = vmatmul.mubr.bf16.gmra.mrb[0].mxu0 %v7215
    %v7618 = vpop.f32.mrb[0].mxu0
    %v7619 = vadd.f32 0.0, %v7618
    %v7620 = vpop.f32.mrb[0].mxu0
    %v7621 = vadd.f32 0.0, %v7620
    %v7622 = vpop.f32.mrb[0].mxu0
    %v7623 = vpop.f32.mrb[0].mxu0
    %7624 = vdwg.mxu0
    %7625 = vmatprep.subr.bf16.mxu0 %v3344
    %7626 = vmatpush1.bf16.msra.mxu0 %v3343
    %7627 = vmatprep.subr.bf16.mxu0 %v3376
    %7628 = vmatpush1.bf16.msra.mxu0 %v3375
    %7629 = vmatprep.subr.bf16.mxu0 %v3408
    %7630 = vmatpush1.bf16.msra.mxu0 %v3407
    %7631 = vmatprep.subr.bf16.mxu0 %v3440
    %7632 = vmatpush1.bf16.msra.mxu0 %v3439
    %7633 = vmatprep.subr.bf16.mxu0 0
    %7634 = vmatpush1.bf16.msra.mxu0 0
    %7635 = vmatprep.subr.bf16.mxu0 0
    %7636 = vmatpush1.bf16.msra.mxu0 0
    %7637 = vmatprep.subr.bf16.mxu0 0
    %7638 = vmatpush1.bf16.msra.mxu0 0
    %7639 = vmatprep.subr.bf16.mxu0 0
    %7640 = vmatpush1.bf16.msra.mxu0 0
    %7641 = vmatprep.subr.bf16.mxu0 0
    %7642 = vmatpush1.bf16.msra.mxu0 0
    %7643 = vmatprep.subr.bf16.mxu0 0
    %7644 = vmatpush1.bf16.msra.mxu0 0
    %7645 = vmatprep.subr.bf16.mxu0 0
    %7646 = vmatpush1.bf16.msra.mxu0 0
    %7647 = vmatprep.subr.bf16.mxu0 0
    %7648 = vmatpush1.bf16.msra.mxu0 0
    %7649 = vmatprep.subr.bf16.mxu0 0
    %7650 = vmatpush1.bf16.msra.mxu0 0
    %7651 = vmatprep.subr.bf16.mxu0 0
    %7652 = vmatpush1.bf16.msra.mxu0 0
    %7653 = vmatprep.subr.bf16.mxu0 0
    %7654 = vmatpush1.bf16.msra.mxu0 0
    %7655 = vmatprep.subr.bf16.mxu0 0
    %7656 = vmatpush1.bf16.msra.mxu0 0
    %7657 = vmatprep.mubr.bf16.mxu0 0
    %7658 = vmatmul.mubr.bf16.gmra.mrb[0].mxu0 %v7212
    %v7659 = vpop.f32.mrb[0].mxu0
    %v7660 = vadd.f32 0.0, %v7659
    %v7661 = vpop.f32.mrb[0].mxu0
    %v7662 = vadd.f32 0.0, %v7661
    %v7663 = vpop.f32.mrb[0].mxu0
    %v7664 = vadd.f32 0.0, %v7663
    %v7665 = vpop.f32.mrb[0].mxu0
    %v7666 = vadd.f32 0.0, %v7665
    %7667 = vmatprep.mubr.bf16.mxu0 0
    %7668 = vmatmul.mubr.bf16.gmra.mrb[0].mxu0 %v7215
    %v7669 = vpop.f32.mrb[0].mxu0
    %v7670 = vadd.f32 0.0, %v7669
    %v7671 = vpop.f32.mrb[0].mxu0
    %v7672 = vadd.f32 0.0, %v7671
    %v7673 = vpop.f32.mrb[0].mxu0
    %v7674 = vpop.f32.mrb[0].mxu0
    %7675 = vdwg.mxu0
    %7676 = vmatprep.subr.bf16.mxu0 %v3346
    %7677 = vmatpush1.bf16.msra.mxu0 %v3345
    %7678 = vmatprep.subr.bf16.mxu0 %v3378
    %7679 = vmatpush1.bf16.msra.mxu0 %v3377
    %7680 = vmatprep.subr.bf16.mxu0 %v3410
    %7681 = vmatpush1.bf16.msra.mxu0 %v3409
    %7682 = vmatprep.subr.bf16.mxu0 %v3442
    %7683 = vmatpush1.bf16.msra.mxu0 %v3441
    %7684 = vmatprep.subr.bf16.mxu0 0
    %7685 = vmatpush1.bf16.msra.mxu0 0
    %7686 = vmatprep.subr.bf16.mxu0 0
    %7687 = vmatpush1.bf16.msra.mxu0 0
    %7688 = vmatprep.subr.bf16.mxu0 0
    %7689 = vmatpush1.bf16.msra.mxu0 0
    %7690 = vmatprep.subr.bf16.mxu0 0
    %7691 = vmatpush1.bf16.msra.mxu0 0
    %7692 = vmatprep.subr.bf16.mxu0 0
    %7693 = vmatpush1.bf16.msra.mxu0 0
    %7694 = vmatprep.subr.bf16.mxu0 0
    %7695 = vmatpush1.bf16.msra.mxu0 0
    %7696 = vmatprep.subr.bf16.mxu0 0
    %7697 = vmatpush1.bf16.msra.mxu0 0
    %7698 = vmatprep.subr.bf16.mxu0 0
    %7699 = vmatpush1.bf16.msra.mxu0 0
    %7700 = vmatprep.subr.bf16.mxu0 0
    %7701 = vmatpush1.bf16.msra.mxu0 0
    %7702 = vmatprep.subr.bf16.mxu0 0
    %7703 = vmatpush1.bf16.msra.mxu0 0
    %7704 = vmatprep.subr.bf16.mxu0 0
    %7705 = vmatpush1.bf16.msra.mxu0 0
    %7706 = vmatprep.subr.bf16.mxu0 0
    %7707 = vmatpush1.bf16.msra.mxu0 0
    %7708 = vmatprep.mubr.bf16.mxu0 0
    %7709 = vmatmul.mubr.bf16.gmra.mrb[0].mxu0 %v7212
    %v7710 = vpop.f32.mrb[0].mxu0
    %v7711 = vadd.f32 0.0, %v7710
    %v7712 = vpop.f32.mrb[0].mxu0
    %v7713 = vadd.f32 0.0, %v7712
    %v7714 = vpop.f32.mrb[0].mxu0
    %v7715 = vadd.f32 0.0, %v7714
    %v7716 = vpop.f32.mrb[0].mxu0
    %v7717 = vadd.f32 0.0, %v7716
    %7718 = vmatprep.mubr.bf16.mxu0 0
    %7719 = vmatmul.mubr.bf16.gmra.mrb[0].mxu0 %v7215
    %v7720 = vpop.f32.mrb[0].mxu0
    %v7721 = vadd.f32 0.0, %v7720
    %v7722 = vpop.f32.mrb[0].mxu0
    %v7723 = vadd.f32 0.0, %v7722
    %v7724 = vpop.f32.mrb[0].mxu0
    %v7725 = vpop.f32.mrb[0].mxu0
    %7726 = vdwg.mxu0
    %7727 = vmatprep.subr.bf16.mxu0 %v3348
    %7728 = vmatpush1.bf16.msra.mxu0 %v3347
    %7729 = vmatprep.subr.bf16.mxu0 %v3380
    %7730 = vmatpush1.bf16.msra.mxu0 %v3379
    %7731 = vmatprep.subr.bf16.mxu0 %v3412
    %7732 = vmatpush1.bf16.msra.mxu0 %v3411
    %7733 = vmatprep.subr.bf16.mxu0 %v3444
    %7734 = vmatpush1.bf16.msra.mxu0 %v3443
    %7735 = vmatprep.subr.bf16.mxu0 0
    %7736 = vmatpush1.bf16.msra.mxu0 0
    %7737 = vmatprep.subr.bf16.mxu0 0
    %7738 = vmatpush1.bf16.msra.mxu0 0
    %7739 = vmatprep.subr.bf16.mxu0 0
    %7740 = vmatpush1.bf16.msra.mxu0 0
    %7741 = vmatprep.subr.bf16.mxu0 0
    %7742 = vmatpush1.bf16.msra.mxu0 0
    %7743 = vmatprep.subr.bf16.mxu0 0
    %7744 = vmatpush1.bf16.msra.mxu0 0
    %7745 = vmatprep.subr.bf16.mxu0 0
    %7746 = vmatpush1.bf16.msra.mxu0 0
    %7747 = vmatprep.subr.bf16.mxu0 0
    %7748 = vmatpush1.bf16.msra.mxu0 0
    %7749 = vmatprep.subr.bf16.mxu0 0
    %7750 = vmatpush1.bf16.msra.mxu0 0
    %7751 = vmatprep.subr.bf16.mxu0 0
    %7752 = vmatpush1.bf16.msra.mxu0 0
    %7753 = vmatprep.subr.bf16.mxu0 0
    %7754 = vmatpush1.bf16.msra.mxu0 0
    %7755 = vmatprep.subr.bf16.mxu0 0
    %7756 = vmatpush1.bf16.msra.mxu0 0
    %7757 = vmatprep.subr.bf16.mxu0 0
    %7758 = vmatpush1.bf16.msra.mxu0 0
    %7759 = vmatprep.mubr.bf16.mxu0 0
    %7760 = vmatmul.mubr.bf16.gmra.mrb[0].mxu0 %v7212
    %v7761 = vpop.f32.mrb[0].mxu0
    %v7762 = vadd.f32 0.0, %v7761
    %v7763 = vpop.f32.mrb[0].mxu0
    %v7764 = vadd.f32 0.0, %v7763
    %v7765 = vpop.f32.mrb[0].mxu0
    %v7766 = vadd.f32 0.0, %v7765
    %v7767 = vpop.f32.mrb[0].mxu0
    %v7768 = vadd.f32 0.0, %v7767
    %7769 = vmatprep.mubr.bf16.mxu0 0
    %7770 = vmatmul.mubr.bf16.gmra.mrb[0].mxu0 %v7215
    %v7771 = vpop.f32.mrb[0].mxu0
    %v7772 = vadd.f32 0.0, %v7771
    %v7773 = vpop.f32.mrb[0].mxu0
    %v7774 = vadd.f32 0.0, %v7773
    %v7775 = vpop.f32.mrb[0].mxu0
    %v7776 = vpop.f32.mrb[0].mxu0
    %7777 = vdwg.mxu0
    %7778 = vmatprep.subr.bf16.mxu0 %v3350
    %7779 = vmatpush1.bf16.msra.mxu0 %v3349
    %7780 = vmatprep.subr.bf16.mxu0 %v3382
    %7781 = vmatpush1.bf16.msra.mxu0 %v3381
    %7782 = vmatprep.subr.bf16.mxu0 %v3414
    %7783 = vmatpush1.bf16.msra.mxu0 %v3413
    %7784 = vmatprep.subr.bf16.mxu0 %v3446
    %7785 = vmatpush1.bf16.msra.mxu0 %v3445
    %7786 = vmatprep.subr.bf16.mxu0 0
    %7787 = vmatpush1.bf16.msra.mxu0 0
    %7788 = vmatprep.subr.bf16.mxu0 0
    %7789 = vmatpush1.bf16.msra.mxu0 0
    %7790 = vmatprep.subr.bf16.mxu0 0
    %7791 = vmatpush1.bf16.msra.mxu0 0
    %7792 = vmatprep.subr.bf16.mxu0 0
    %7793 = vmatpush1.bf16.msra.mxu0 0
    %7794 = vmatprep.subr.bf16.mxu0 0
    %7795 = vmatpush1.bf16.msra.mxu0 0
    %7796 = vmatprep.subr.bf16.mxu0 0
    %7797 = vmatpush1.bf16.msra.mxu0 0
    %7798 = vmatprep.subr.bf16.mxu0 0
    %7799 = vmatpush1.bf16.msra.mxu0 0
    %7800 = vmatprep.subr.bf16.mxu0 0
    %7801 = vmatpush1.bf16.msra.mxu0 0
    %7802 = vmatprep.subr.bf16.mxu0 0
    %7803 = vmatpush1.bf16.msra.mxu0 0
    %7804 = vmatprep.subr.bf16.mxu0 0
    %7805 = vmatpush1.bf16.msra.mxu0 0
    %7806 = vmatprep.subr.bf16.mxu0 0
    %7807 = vmatpush1.bf16.msra.mxu0 0
    %7808 = vmatprep.subr.bf16.mxu0 0
    %7809 = vmatpush1.bf16.msra.mxu0 0
    %7810 = vmatprep.mubr.bf16.mxu0 0
    %7811 = vmatmul.mubr.bf16.gmra.mrb[0].mxu0 %v7212
    %v7812 = vpop.f32.mrb[0].mxu0
    %v7813 = vadd.f32 0.0, %v7812
    %v7814 = vpop.f32.mrb[0].mxu0
    %v7815 = vadd.f32 0.0, %v7814
    %v7816 = vpop.f32.mrb[0].mxu0
    %v7817 = vadd.f32 0.0, %v7816
    %v7818 = vpop.f32.mrb[0].mxu0
    %v7819 = vadd.f32 0.0, %v7818
    %7820 = vmatprep.mubr.bf16.mxu0 0
    %7821 = vmatmul.mubr.bf16.gmra.mrb[0].mxu0 %v7215
    %v7822 = vpop.f32.mrb[0].mxu0
    %v7823 = vadd.f32 0.0, %v7822
    %v7824 = vpop.f32.mrb[0].mxu0
    %v7825 = vadd.f32 0.0, %v7824
    %v7826 = vpop.f32.mrb[0].mxu0
    %v7827 = vpop.f32.mrb[0].mxu0
    %7828 = vdwg.mxu0
    %7829 = vmatprep.subr.bf16.mxu0 %v3352
    %7830 = vmatpush1.bf16.msra.mxu0 %v3351
    %7831 = vmatprep.subr.bf16.mxu0 %v3384
    %7832 = vmatpush1.bf16.msra.mxu0 %v3383
    %7833 = vmatprep.subr.bf16.mxu0 %v3416
    %7834 = vmatpush1.bf16.msra.mxu0 %v3415
    %7835 = vmatprep.subr.bf16.mxu0 %v3448
    %7836 = vmatpush1.bf16.msra.mxu0 %v3447
    %7837 = vmatprep.subr.bf16.mxu0 0
    %7838 = vmatpush1.bf16.msra.mxu0 0
    %7839 = vmatprep.subr.bf16.mxu0 0
    %7840 = vmatpush1.bf16.msra.mxu0 0
    %7841 = vmatprep.subr.bf16.mxu0 0
    %7842 = vmatpush1.bf16.msra.mxu0 0
    %7843 = vmatprep.subr.bf16.mxu0 0
    %7844 = vmatpush1.bf16.msra.mxu0 0
    %7845 = vmatprep.subr.bf16.mxu0 0
    %7846 = vmatpush1.bf16.msra.mxu0 0
    %7847 = vmatprep.subr.bf16.mxu0 0
    %7848 = vmatpush1.bf16.msra.mxu0 0
    %7849 = vmatprep.subr.bf16.mxu0 0
    %7850 = vmatpush1.bf16.msra.mxu0 0
    %7851 = vmatprep.subr.bf16.mxu0 0
    %7852 = vmatpush1.bf16.msra.mxu0 0
    %7853 = vmatprep.subr.bf16.mxu0 0
    %7854 = vmatpush1.bf16.msra.mxu0 0
    %7855 = vmatprep.subr.bf16.mxu0 0
    %7856 = vmatpush1.bf16.msra.mxu0 0
    %7857 = vmatprep.subr.bf16.mxu0 0
    %7858 = vmatpush1.bf16.msra.mxu0 0
    %7859 = vmatprep.subr.bf16.mxu0 0
    %7860 = vmatpush1.bf16.msra.mxu0 0
    %7861 = vmatprep.mubr.bf16.mxu0 0
    %7862 = vmatmul.mubr.bf16.gmra.mrb[0].mxu0 %v7212
    %v7863 = vpop.f32.mrb[0].mxu0
    %v7864 = vadd.f32 0.0, %v7863
    %v7865 = vpop.f32.mrb[0].mxu0
    %v7866 = vadd.f32 0.0, %v7865
    %v7867 = vpop.f32.mrb[0].mxu0
    %v7868 = vadd.f32 0.0, %v7867
    %v7869 = vpop.f32.mrb[0].mxu0
    %v7870 = vadd.f32 0.0, %v7869
    %7871 = vmatprep.mubr.bf16.mxu0 0
    %7872 = vmatmul.mubr.bf16.gmra.mrb[0].mxu0 %v7215
    %v7873 = vpop.f32.mrb[0].mxu0
    %v7874 = vadd.f32 0.0, %v7873
    %v7875 = vpop.f32.mrb[0].mxu0
    %v7876 = vadd.f32 0.0, %v7875
    %v7877 = vpop.f32.mrb[0].mxu0
    %v7878 = vpop.f32.mrb[0].mxu0
    %7879 = vdwg.mxu0
    %7880 = vmatprep.subr.bf16.mxu0 %v3354
    %7881 = vmatpush1.bf16.msra.mxu0 %v3353
    %7882 = vmatprep.subr.bf16.mxu0 %v3386
    %7883 = vmatpush1.bf16.msra.mxu0 %v3385
    %7884 = vmatprep.subr.bf16.mxu0 %v3418
    %7885 = vmatpush1.bf16.msra.mxu0 %v3417
    %7886 = vmatprep.subr.bf16.mxu0 %v3450
    %7887 = vmatpush1.bf16.msra.mxu0 %v3449
    %7888 = vmatprep.subr.bf16.mxu0 0
    %7889 = vmatpush1.bf16.msra.mxu0 0
    %7890 = vmatprep.subr.bf16.mxu0 0
    %7891 = vmatpush1.bf16.msra.mxu0 0
    %7892 = vmatprep.subr.bf16.mxu0 0
    %7893 = vmatpush1.bf16.msra.mxu0 0
    %7894 = vmatprep.subr.bf16.mxu0 0
    %7895 = vmatpush1.bf16.msra.mxu0 0
    %7896 = vmatprep.subr.bf16.mxu0 0
    %7897 = vmatpush1.bf16.msra.mxu0 0
    %7898 = vmatprep.subr.bf16.mxu0 0
    %7899 = vmatpush1.bf16.msra.mxu0 0
    %7900 = vmatprep.subr.bf16.mxu0 0
    %7901 = vmatpush1.bf16.msra.mxu0 0
    %7902 = vmatprep.subr.bf16.mxu0 0
    %7903 = vmatpush1.bf16.msra.mxu0 0
    %7904 = vmatprep.subr.bf16.mxu0 0
    %7905 = vmatpush1.bf16.msra.mxu0 0
    %7906 = vmatprep.subr.bf16.mxu0 0
    %7907 = vmatpush1.bf16.msra.mxu0 0
    %7908 = vmatprep.subr.bf16.mxu0 0
    %7909 = vmatpush1.bf16.msra.mxu0 0
    %7910 = vmatprep.subr.bf16.mxu0 0
    %7911 = vmatpush1.bf16.msra.mxu0 0
    %7912 = vmatprep.mubr.bf16.mxu0 0
    %7913 = vmatmul.mubr.bf16.gmra.mrb[0].mxu0 %v7212
    %v7914 = vpop.f32.mrb[0].mxu0
    %v7915 = vadd.f32 0.0, %v7914
    %v7916 = vpop.f32.mrb[0].mxu0
    %v7917 = vadd.f32 0.0, %v7916
    %v7918 = vpop.f32.mrb[0].mxu0
    %v7919 = vadd.f32 0.0, %v7918
    %v7920 = vpop.f32.mrb[0].mxu0
    %v7921 = vadd.f32 0.0, %v7920
    %7922 = vmatprep.mubr.bf16.mxu0 0
    %7923 = vmatmul.mubr.bf16.gmra.mrb[0].mxu0 %v7215
    %v7924 = vpop.f32.mrb[0].mxu0
    %v7925 = vadd.f32 0.0, %v7924
    %v7926 = vpop.f32.mrb[0].mxu0
    %v7927 = vadd.f32 0.0, %v7926
    %v7928 = vpop.f32.mrb[0].mxu0
    %v7929 = vpop.f32.mrb[0].mxu0
    %7930 = vdwg.mxu0
    %7931 = vmatprep.subr.bf16.mxu0 %v3356
    %7932 = vmatpush1.bf16.msra.mxu0 %v3355
    %7933 = vmatprep.subr.bf16.mxu0 %v3388
    %7934 = vmatpush1.bf16.msra.mxu0 %v3387
    %7935 = vmatprep.subr.bf16.mxu0 %v3420
    %7936 = vmatpush1.bf16.msra.mxu0 %v3419
    %7937 = vmatprep.subr.bf16.mxu0 %v3452
    %7938 = vmatpush1.bf16.msra.mxu0 %v3451
    %7939 = vmatprep.subr.bf16.mxu0 0
    %7940 = vmatpush1.bf16.msra.mxu0 0
    %7941 = vmatprep.subr.bf16.mxu0 0
    %7942 = vmatpush1.bf16.msra.mxu0 0
    %7943 = vmatprep.subr.bf16.mxu0 0
    %7944 = vmatpush1.bf16.msra.mxu0 0
    %7945 = vmatprep.subr.bf16.mxu0 0
    %7946 = vmatpush1.bf16.msra.mxu0 0
    %7947 = vmatprep.subr.bf16.mxu0 0
    %7948 = vmatpush1.bf16.msra.mxu0 0
    %7949 = vmatprep.subr.bf16.mxu0 0
    %7950 = vmatpush1.bf16.msra.mxu0 0
    %7951 = vmatprep.subr.bf16.mxu0 0
    %7952 = vmatpush1.bf16.msra.mxu0 0
    %7953 = vmatprep.subr.bf16.mxu0 0
    %7954 = vmatpush1.bf16.msra.mxu0 0
    %7955 = vmatprep.subr.bf16.mxu0 0
    %7956 = vmatpush1.bf16.msra.mxu0 0
    %7957 = vmatprep.subr.bf16.mxu0 0
    %7958 = vmatpush1.bf16.msra.mxu0 0
    %7959 = vmatprep.subr.bf16.mxu0 0
    %7960 = vmatpush1.bf16.msra.mxu0 0
    %7961 = vmatprep.subr.bf16.mxu0 0
    %7962 = vmatpush1.bf16.msra.mxu0 0
    %7963 = vmatprep.mubr.bf16.mxu0 0
    %7964 = vmatmul.mubr.bf16.gmra.mrb[0].mxu0 %v7212
    %v7965 = vpop.f32.mrb[0].mxu0
    %v7966 = vadd.f32 0.0, %v7965
    %v7967 = vpop.f32.mrb[0].mxu0
    %v7968 = vadd.f32 0.0, %v7967
    %v7969 = vpop.f32.mrb[0].mxu0
    %v7970 = vadd.f32 0.0, %v7969
    %v7971 = vpop.f32.mrb[0].mxu0
    %v7972 = vadd.f32 0.0, %v7971
    %7973 = vmatprep.mubr.bf16.mxu0 0
    %7974 = vmatmul.mubr.bf16.gmra.mrb[0].mxu0 %v7215
    %v7975 = vpop.f32.mrb[0].mxu0
    %v7976 = vadd.f32 0.0, %v7975
    %v7977 = vpop.f32.mrb[0].mxu0
    %v7978 = vadd.f32 0.0, %v7977
    %v7979 = vpop.f32.mrb[0].mxu0
    %v7980 = vpop.f32.mrb[0].mxu0
    %7981 = vdwg.mxu0
    %7982 = vmatprep.subr.bf16.mxu0 %v3358
    %7983 = vmatpush1.bf16.msra.mxu0 %v3357
    %7984 = vmatprep.subr.bf16.mxu0 %v3390
    %7985 = vmatpush1.bf16.msra.mxu0 %v3389
    %7986 = vmatprep.subr.bf16.mxu0 %v3422
    %7987 = vmatpush1.bf16.msra.mxu0 %v3421
    %7988 = vmatprep.subr.bf16.mxu0 %v3454
    %7989 = vmatpush1.bf16.msra.mxu0 %v3453
    %7990 = vmatprep.subr.bf16.mxu0 0
    %7991 = vmatpush1.bf16.msra.mxu0 0
    %7992 = vmatprep.subr.bf16.mxu0 0
    %7993 = vmatpush1.bf16.msra.mxu0 0
    %7994 = vmatprep.subr.bf16.mxu0 0
    %7995 = vmatpush1.bf16.msra.mxu0 0
    %7996 = vmatprep.subr.bf16.mxu0 0
    %7997 = vmatpush1.bf16.msra.mxu0 0
    %7998 = vmatprep.subr.bf16.mxu0 0
    %7999 = vmatpush1.bf16.msra.mxu0 0
    %8000 = vmatprep.subr.bf16.mxu0 0
    %8001 = vmatpush1.bf16.msra.mxu0 0
    %8002 = vmatprep.subr.bf16.mxu0 0
    %8003 = vmatpush1.bf16.msra.mxu0 0
    %8004 = vmatprep.subr.bf16.mxu0 0
    %8005 = vmatpush1.bf16.msra.mxu0 0
    %8006 = vmatprep.subr.bf16.mxu0 0
    %8007 = vmatpush1.bf16.msra.mxu0 0
    %8008 = vmatprep.subr.bf16.mxu0 0
    %8009 = vmatpush1.bf16.msra.mxu0 0
    %8010 = vmatprep.subr.bf16.mxu0 0
    %8011 = vmatpush1.bf16.msra.mxu0 0
    %8012 = vmatprep.subr.bf16.mxu0 0
    %8013 = vmatpush1.bf16.msra.mxu0 0
    %8014 = vmatprep.mubr.bf16.mxu0 0
    %8015 = vmatmul.mubr.bf16.gmra.mrb[0].mxu0 %v7212
    %v8016 = vpop.f32.mrb[0].mxu0
    %v8017 = vadd.f32 0.0, %v8016
    %v8018 = vpop.f32.mrb[0].mxu0
    %v8019 = vadd.f32 0.0, %v8018
    %v8020 = vpop.f32.mrb[0].mxu0
    %v8021 = vadd.f32 0.0, %v8020
    %v8022 = vpop.f32.mrb[0].mxu0
    %v8023 = vadd.f32 0.0, %v8022
    %8024 = vmatprep.mubr.bf16.mxu0 0
    %8025 = vmatmul.mubr.bf16.gmra.mrb[0].mxu0 %v7215
    %v8026 = vpop.f32.mrb[0].mxu0
    %v8027 = vadd.f32 0.0, %v8026
    %v8028 = vpop.f32.mrb[0].mxu0
    %v8029 = vadd.f32 0.0, %v8028
    %v8030 = vpop.f32.mrb[0].mxu0
    %v8031 = vpop.f32.mrb[0].mxu0
    %8032 = vdwg.mxu0
    %v8033 = vmul.f32 %v7252, %v1401
    %v8034 = vmul.f32 %v7254, %v1403
    %v8035 = vmul.f32 %v7303, %v1452
    %v8036 = vmul.f32 %v7305, %v1454
    %v8037 = vmul.f32 %v7354, %v1503
    %v8038 = vmul.f32 %v7356, %v1505
    %v8039 = vmul.f32 %v7405, %v1554
    %v8040 = vmul.f32 %v7407, %v1556
    %v8041 = vmul.f32 %v7456, %v1605
    %v8042 = vmul.f32 %v7458, %v1607
    %v8043 = vmul.f32 %v7507, %v1656
    %v8044 = vmul.f32 %v7509, %v1658
    %v8045 = vmul.f32 %v7558, %v1707
    %v8046 = vmul.f32 %v7560, %v1709
    %v8047 = vmul.f32 %v7609, %v1758
    %v8048 = vmul.f32 %v7611, %v1760
    %v8049 = vmul.f32 %v7660, %v1809
    %v8050 = vmul.f32 %v7662, %v1811
    %v8051 = vmul.f32 %v7711, %v1860
    %v8052 = vmul.f32 %v7713, %v1862
    %v8053 = vmul.f32 %v7762, %v1911
    %v8054 = vmul.f32 %v7764, %v1913
    %v8055 = vmul.f32 %v7813, %v1962
    %v8056 = vmul.f32 %v7815, %v1964
    %v8057 = vmul.f32 %v7864, %v2013
    %v8058 = vmul.f32 %v7866, %v2015
    %v8059 = vmul.f32 %v7915, %v2064
    %v8060 = vmul.f32 %v7917, %v2066
    %v8061 = vmul.f32 %v7966, %v2115
    %v8062 = vmul.f32 %v7968, %v2117
    %v8063 = vmul.f32 %v8017, %v2166
    %v8064 = vmul.f32 %v8019, %v2168
    %v8065 = vmul.f32 %v7256, %v1405
    %v8066 = vmul.f32 %v7258, %v1407
    %v8067 = vmul.f32 %v7307, %v1456
    %v8068 = vmul.f32 %v7309, %v1458
    %v8069 = vmul.f32 %v7358, %v1507
    %v8070 = vmul.f32 %v7360, %v1509
    %v8071 = vmul.f32 %v7409, %v1558
    %v8072 = vmul.f32 %v7411, %v1560
    %v8073 = vmul.f32 %v7460, %v1609
    %v8074 = vmul.f32 %v7462, %v1611
    %v8075 = vmul.f32 %v7511, %v1660
    %v8076 = vmul.f32 %v7513, %v1662
    %v8077 = vmul.f32 %v7562, %v1711
    %v8078 = vmul.f32 %v7564, %v1713
    %v8079 = vmul.f32 %v7613, %v1762
    %v8080 = vmul.f32 %v7615, %v1764
    %v8081 = vmul.f32 %v7664, %v1813
    %v8082 = vmul.f32 %v7666, %v1815
    %v8083 = vmul.f32 %v7715, %v1864
    %v8084 = vmul.f32 %v7717, %v1866
    %v8085 = vmul.f32 %v7766, %v1915
    %v8086 = vmul.f32 %v7768, %v1917
    %v8087 = vmul.f32 %v7817, %v1966
    %v8088 = vmul.f32 %v7819, %v1968
    %v8089 = vmul.f32 %v7868, %v2017
    %v8090 = vmul.f32 %v7870, %v2019
    %v8091 = vmul.f32 %v7919, %v2068
    %v8092 = vmul.f32 %v7921, %v2070
    %v8093 = vmul.f32 %v7970, %v2119
    %v8094 = vmul.f32 %v7972, %v2121
    %v8095 = vmul.f32 %v8021, %v2170
    %v8096 = vmul.f32 %v8023, %v2172
    %v8097 = vmul.f32 %v7262, %v1411
    %v8098 = vmul.f32 %v7264, %v1413
    %v8099 = vmul.f32 %v7313, %v1462
    %v8100 = vmul.f32 %v7315, %v1464
    %v8101 = vmul.f32 %v7364, %v1513
    %v8102 = vmul.f32 %v7366, %v1515
    %v8103 = vmul.f32 %v7415, %v1564
    %v8104 = vmul.f32 %v7417, %v1566
    %v8105 = vmul.f32 %v7466, %v1615
    %v8106 = vmul.f32 %v7468, %v1617
    %v8107 = vmul.f32 %v7517, %v1666
    %v8108 = vmul.f32 %v7519, %v1668
    %v8109 = vmul.f32 %v7568, %v1717
    %v8110 = vmul.f32 %v7570, %v1719
    %v8111 = vmul.f32 %v7619, %v1768
    %v8112 = vmul.f32 %v7621, %v1770
    %v8113 = vmul.f32 %v7670, %v1819
    %v8114 = vmul.f32 %v7672, %v1821
    %v8115 = vmul.f32 %v7721, %v1870
    %v8116 = vmul.f32 %v7723, %v1872
    %v8117 = vmul.f32 %v7772, %v1921
    %v8118 = vmul.f32 %v7774, %v1923
    %v8119 = vmul.f32 %v7823, %v1972
    %v8120 = vmul.f32 %v7825, %v1974
    %v8121 = vmul.f32 %v7874, %v2023
    %v8122 = vmul.f32 %v7876, %v2025
    %v8123 = vmul.f32 %v7925, %v2074
    %v8124 = vmul.f32 %v7927, %v2076
    %v8125 = vmul.f32 %v7976, %v2125
    %v8126 = vmul.f32 %v7978, %v2127
    %v8127 = vmul.f32 %v8027, %v2176
    %v8128 = vmul.f32 %v8029, %v2178
    %v8129 = vpack.c.bf16 %v8065, %v8033
    %v8130 = vpack.c.bf16 %v8066, %v8034
    %v8131 = vpack.c.bf16 %v8067, %v8035
    %v8132 = vpack.c.bf16 %v8068, %v8036
    %v8133 = vpack.c.bf16 %v8069, %v8037
    %v8134 = vpack.c.bf16 %v8070, %v8038
    %v8135 = vpack.c.bf16 %v8071, %v8039
    %v8136 = vpack.c.bf16 %v8072, %v8040
    %v8137 = vpack.c.bf16 %v8073, %v8041
    %v8138 = vpack.c.bf16 %v8074, %v8042
    %v8139 = vpack.c.bf16 %v8075, %v8043
    %v8140 = vpack.c.bf16 %v8076, %v8044
    %v8141 = vpack.c.bf16 %v8077, %v8045
    %v8142 = vpack.c.bf16 %v8078, %v8046
    %v8143 = vpack.c.bf16 %v8079, %v8047
    %v8144 = vpack.c.bf16 %v8080, %v8048
    %v8145 = vpack.c.bf16 %v8081, %v8049
    %v8146 = vpack.c.bf16 %v8082, %v8050
    %v8147 = vpack.c.bf16 %v8083, %v8051
    %v8148 = vpack.c.bf16 %v8084, %v8052
    %v8149 = vpack.c.bf16 %v8085, %v8053
    %v8150 = vpack.c.bf16 %v8086, %v8054
    %v8151 = vpack.c.bf16 %v8087, %v8055
    %v8152 = vpack.c.bf16 %v8088, %v8056
    %v8153 = vpack.c.bf16 %v8089, %v8057
    %v8154 = vpack.c.bf16 %v8090, %v8058
    %v8155 = vpack.c.bf16 %v8091, %v8059
    %v8156 = vpack.c.bf16 %v8092, %v8060
    %v8157 = vpack.c.bf16 %v8093, %v8061
    %v8158 = vpack.c.bf16 %v8094, %v8062
    %v8159 = vpack.c.bf16 %v8095, %v8063
    %v8160 = vpack.c.bf16 %v8096, %v8064
    %v8161 = vpack.c.bf16 %v8097, %v8097
    %v8162 = vpack.c.bf16 %v8098, %v8098
    %v8163 = vpack.c.bf16 %v8099, %v8099
    %v8164 = vpack.c.bf16 %v8100, %v8100
    %v8165 = vpack.c.bf16 %v8101, %v8101
    %v8166 = vpack.c.bf16 %v8102, %v8102
    %v8167 = vpack.c.bf16 %v8103, %v8103
    %v8168 = vpack.c.bf16 %v8104, %v8104
    %v8169 = vpack.c.bf16 %v8105, %v8105
    %v8170 = vpack.c.bf16 %v8106, %v8106
    %v8171 = vpack.c.bf16 %v8107, %v8107
    %v8172 = vpack.c.bf16 %v8108, %v8108
    %v8173 = vpack.c.bf16 %v8109, %v8109
    %v8174 = vpack.c.bf16 %v8110, %v8110
    %v8175 = vpack.c.bf16 %v8111, %v8111
    %v8176 = vpack.c.bf16 %v8112, %v8112
    %v8177 = vpack.c.bf16 %v8113, %v8113
    %v8178 = vpack.c.bf16 %v8114, %v8114
    %v8179 = vpack.c.bf16 %v8115, %v8115
    %v8180 = vpack.c.bf16 %v8116, %v8116
    %v8181 = vpack.c.bf16 %v8117, %v8117
    %v8182 = vpack.c.bf16 %v8118, %v8118
    %v8183 = vpack.c.bf16 %v8119, %v8119
    %v8184 = vpack.c.bf16 %v8120, %v8120
    %v8185 = vpack.c.bf16 %v8121, %v8121
    %v8186 = vpack.c.bf16 %v8122, %v8122
    %v8187 = vpack.c.bf16 %v8123, %v8123
    %v8188 = vpack.c.bf16 %v8124, %v8124
    %v8189 = vpack.c.bf16 %v8125, %v8125
    %v8190 = vpack.c.bf16 %v8126, %v8126
    %v8191 = vpack.c.bf16 %v8127, %v8127
    %v8192 = vpack.c.bf16 %v8128, %v8128
    %8193 = vmatprep.subr.bf16.mxu0 0
    %8194 = vmatpush1.bf16.msra.mxu0 %v5590
    %8195 = vmatprep.subr.bf16.mxu0 0
    %8196 = vmatpush1.bf16.msra.mxu0 %v5591
    %8197 = vmatprep.subr.bf16.mxu0 0
    %8198 = vmatpush1.bf16.msra.mxu0 %v5592
    %8199 = vmatprep.subr.bf16.mxu0 0
    %8200 = vmatpush1.bf16.msra.mxu0 %v5593
    %8201 = vmatprep.subr.bf16.mxu0 0
    %8202 = vmatpush1.bf16.msra.mxu0 %v5594
    %8203 = vmatprep.subr.bf16.mxu0 0
    %8204 = vmatpush1.bf16.msra.mxu0 %v5595
    %8205 = vmatprep.subr.bf16.mxu0 0
    %8206 = vmatpush1.bf16.msra.mxu0 %v5596
    %8207 = vmatprep.subr.bf16.mxu0 0
    %8208 = vmatpush1.bf16.msra.mxu0 %v5597
    %8209 = vmatprep.subr.bf16.mxu0 0
    %8210 = vmatpush1.bf16.msra.mxu0 %v5598
    %8211 = vmatprep.subr.bf16.mxu0 0
    %8212 = vmatpush1.bf16.msra.mxu0 %v5599
    %8213 = vmatprep.subr.bf16.mxu0 0
    %8214 = vmatpush1.bf16.msra.mxu0 %v5600
    %8215 = vmatprep.subr.bf16.mxu0 0
    %8216 = vmatpush1.bf16.msra.mxu0 %v5601
    %8217 = vmatprep.subr.bf16.mxu0 0
    %8218 = vmatpush1.bf16.msra.mxu0 %v5602
    %8219 = vmatprep.subr.bf16.mxu0 0
    %8220 = vmatpush1.bf16.msra.mxu0 %v5603
    %8221 = vmatprep.subr.bf16.mxu0 0
    %8222 = vmatpush1.bf16.msra.mxu0 %v5604
    %8223 = vmatprep.subr.bf16.mxu0 0
    %8224 = vmatpush1.bf16.msra.mxu0 %v5605
    %8225 = vmatprep.mubr.bf16.mxu0 %v8130
    %8226 = vmatmul.mubr.bf16.gmra.mrb[0].mxu0 %v8129
    %v8227 = vpop.f32.mrb[0].mxu0
    %v8228 = vadd.f32 0.0, %v8227
    %v8229 = vpop.f32.mrb[0].mxu0
    %v8230 = vpop.f32.mrb[0].mxu0
    %v8231 = vadd.f32 0.0, %v8230
    %v8232 = vpop.f32.mrb[0].mxu0
    %8233 = vmatprep.mubr.bf16.mxu0 %v8162
    %8234 = vmatmul.mubr.bf16.gmra.mrb[0].mxu0 %v8161
    %v8235 = vpop.f32.mrb[0].mxu0
    %v8236 = vadd.f32 0.0, %v8235
    %v8237 = vpop.f32.mrb[0].mxu0
    %v8238 = vpop.f32.mrb[0].mxu0
    %v8239 = vpop.f32.mrb[0].mxu0
    %8240 = vdwg.mxu0
    %8241 = vmatprep.subr.bf16.mxu0 0
    %8242 = vmatpush1.bf16.msra.mxu0 %v5606
    %8243 = vmatprep.subr.bf16.mxu0 0
    %8244 = vmatpush1.bf16.msra.mxu0 %v5607
    %8245 = vmatprep.subr.bf16.mxu0 0
    %8246 = vmatpush1.bf16.msra.mxu0 %v5608
    %8247 = vmatprep.subr.bf16.mxu0 0
    %8248 = vmatpush1.bf16.msra.mxu0 %v5609
    %8249 = vmatprep.subr.bf16.mxu0 0
    %8250 = vmatpush1.bf16.msra.mxu0 %v5610
    %8251 = vmatprep.subr.bf16.mxu0 0
    %8252 = vmatpush1.bf16.msra.mxu0 %v5611
    %8253 = vmatprep.subr.bf16.mxu0 0
    %8254 = vmatpush1.bf16.msra.mxu0 %v5612
    %8255 = vmatprep.subr.bf16.mxu0 0
    %8256 = vmatpush1.bf16.msra.mxu0 %v5613
    %8257 = vmatprep.subr.bf16.mxu0 0
    %8258 = vmatpush1.bf16.msra.mxu0 %v5614
    %8259 = vmatprep.subr.bf16.mxu0 0
    %8260 = vmatpush1.bf16.msra.mxu0 %v5615
    %8261 = vmatprep.subr.bf16.mxu0 0
    %8262 = vmatpush1.bf16.msra.mxu0 %v5616
    %8263 = vmatprep.subr.bf16.mxu0 0
    %8264 = vmatpush1.bf16.msra.mxu0 %v5617
    %8265 = vmatprep.subr.bf16.mxu0 0
    %8266 = vmatpush1.bf16.msra.mxu0 %v5618
    %8267 = vmatprep.subr.bf16.mxu0 0
    %8268 = vmatpush1.bf16.msra.mxu0 %v5619
    %8269 = vmatprep.subr.bf16.mxu0 0
    %8270 = vmatpush1.bf16.msra.mxu0 %v5620
    %8271 = vmatprep.subr.bf16.mxu0 0
    %8272 = vmatpush1.bf16.msra.mxu0 %v5621
    %8273 = vmatprep.mubr.bf16.mxu0 %v8132
    %8274 = vmatmul.mubr.bf16.gmra.mrb[0].mxu0 %v8131
    %v8275 = vpop.f32.mrb[0].mxu0
    %v8276 = vadd.f32 %v8228, %v8275
    %v8277 = vpop.f32.mrb[0].mxu0
    %v8278 = vpop.f32.mrb[0].mxu0
    %v8279 = vadd.f32 %v8231, %v8278
    %v8280 = vpop.f32.mrb[0].mxu0
    %8281 = vmatprep.mubr.bf16.mxu0 %v8164
    %8282 = vmatmul.mubr.bf16.gmra.mrb[0].mxu0 %v8163
    %v8283 = vpop.f32.mrb[0].mxu0
    %v8284 = vadd.f32 %v8236, %v8283
    %v8285 = vpop.f32.mrb[0].mxu0
    %v8286 = vpop.f32.mrb[0].mxu0
    %v8287 = vpop.f32.mrb[0].mxu0
    %8288 = vdwg.mxu0
    %8289 = vmatprep.subr.bf16.mxu0 0
    %8290 = vmatpush1.bf16.msra.mxu0 %v5622
    %8291 = vmatprep.subr.bf16.mxu0 0
    %8292 = vmatpush1.bf16.msra.mxu0 %v5623
    %8293 = vmatprep.subr.bf16.mxu0 0
    %8294 = vmatpush1.bf16.msra.mxu0 %v5624
    %8295 = vmatprep.subr.bf16.mxu0 0
    %8296 = vmatpush1.bf16.msra.mxu0 %v5625
    %8297 = vmatprep.subr.bf16.mxu0 0
    %8298 = vmatpush1.bf16.msra.mxu0 %v5626
    %8299 = vmatprep.subr.bf16.mxu0 0
    %8300 = vmatpush1.bf16.msra.mxu0 %v5627
    %8301 = vmatprep.subr.bf16.mxu0 0
    %8302 = vmatpush1.bf16.msra.mxu0 %v5628
    %8303 = vmatprep.subr.bf16.mxu0 0
    %8304 = vmatpush1.bf16.msra.mxu0 %v5629
    %8305 = vmatprep.subr.bf16.mxu0 0
    %8306 = vmatpush1.bf16.msra.mxu0 %v5630
    %8307 = vmatprep.subr.bf16.mxu0 0
    %8308 = vmatpush1.bf16.msra.mxu0 %v5631
    %8309 = vmatprep.subr.bf16.mxu0 0
    %8310 = vmatpush1.bf16.msra.mxu0 %v5632
    %8311 = vmatprep.subr.bf16.mxu0 0
    %8312 = vmatpush1.bf16.msra.mxu0 %v5633
    %8313 = vmatprep.subr.bf16.mxu0 0
    %8314 = vmatpush1.bf16.msra.mxu0 %v5634
    %8315 = vmatprep.subr.bf16.mxu0 0
    %8316 = vmatpush1.bf16.msra.mxu0 %v5635
    %8317 = vmatprep.subr.bf16.mxu0 0
    %8318 = vmatpush1.bf16.msra.mxu0 %v5636
    %8319 = vmatprep.subr.bf16.mxu0 0
    %8320 = vmatpush1.bf16.msra.mxu0 %v5637
    %8321 = vmatprep.mubr.bf16.mxu0 %v8134
    %8322 = vmatmul.mubr.bf16.gmra.mrb[0].mxu0 %v8133
    %v8323 = vpop.f32.mrb[0].mxu0
    %v8324 = vadd.f32 %v8276, %v8323
    %v8325 = vpop.f32.mrb[0].mxu0
    %v8326 = vpop.f32.mrb[0].mxu0
    %v8327 = vadd.f32 %v8279, %v8326
    %v8328 = vpop.f32.mrb[0].mxu0
    %8329 = vmatprep.mubr.bf16.mxu0 %v8166
    %8330 = vmatmul.mubr.bf16.gmra.mrb[0].mxu0 %v8165
    %v8331 = vpop.f32.mrb[0].mxu0
    %v8332 = vadd.f32 %v8284, %v8331
    %v8333 = vpop.f32.mrb[0].mxu0
    %v8334 = vpop.f32.mrb[0].mxu0
    %v8335 = vpop.f32.mrb[0].mxu0
    %8336 = vdwg.mxu0
    %8337 = vmatprep.subr.bf16.mxu0 0
    %8338 = vmatpush1.bf16.msra.mxu0 %v5638
    %8339 = vmatprep.subr.bf16.mxu0 0
    %8340 = vmatpush1.bf16.msra.mxu0 %v5639
    %8341 = vmatprep.subr.bf16.mxu0 0
    %8342 = vmatpush1.bf16.msra.mxu0 %v5640
    %8343 = vmatprep.subr.bf16.mxu0 0
    %8344 = vmatpush1.bf16.msra.mxu0 %v5641
    %8345 = vmatprep.subr.bf16.mxu0 0
    %8346 = vmatpush1.bf16.msra.mxu0 %v5642
    %8347 = vmatprep.subr.bf16.mxu0 0
    %8348 = vmatpush1.bf16.msra.mxu0 %v5643
    %8349 = vmatprep.subr.bf16.mxu0 0
    %8350 = vmatpush1.bf16.msra.mxu0 %v5644
    %8351 = vmatprep.subr.bf16.mxu0 0
    %8352 = vmatpush1.bf16.msra.mxu0 %v5645
    %8353 = vmatprep.subr.bf16.mxu0 0
    %8354 = vmatpush1.bf16.msra.mxu0 %v5646
    %8355 = vmatprep.subr.bf16.mxu0 0
    %8356 = vmatpush1.bf16.msra.mxu0 %v5647
    %8357 = vmatprep.subr.bf16.mxu0 0
    %8358 = vmatpush1.bf16.msra.mxu0 %v5648
    %8359 = vmatprep.subr.bf16.mxu0 0
    %8360 = vmatpush1.bf16.msra.mxu0 %v5649
    %8361 = vmatprep.subr.bf16.mxu0 0
    %8362 = vmatpush1.bf16.msra.mxu0 %v5650
    %8363 = vmatprep.subr.bf16.mxu0 0
    %8364 = vmatpush1.bf16.msra.mxu0 %v5651
    %8365 = vmatprep.subr.bf16.mxu0 0
    %8366 = vmatpush1.bf16.msra.mxu0 %v5652
    %8367 = vmatprep.subr.bf16.mxu0 0
    %8368 = vmatpush1.bf16.msra.mxu0 %v5653
    %8369 = vmatprep.mubr.bf16.mxu0 %v8136
    %8370 = vmatmul.mubr.bf16.gmra.mrb[0].mxu0 %v8135
    %v8371 = vpop.f32.mrb[0].mxu0
    %v8372 = vadd.f32 %v8324, %v8371
    %v8373 = vpop.f32.mrb[0].mxu0
    %v8374 = vpop.f32.mrb[0].mxu0
    %v8375 = vadd.f32 %v8327, %v8374
    %v8376 = vpop.f32.mrb[0].mxu0
    %8377 = vmatprep.mubr.bf16.mxu0 %v8168
    %8378 = vmatmul.mubr.bf16.gmra.mrb[0].mxu0 %v8167
    %v8379 = vpop.f32.mrb[0].mxu0
    %v8380 = vadd.f32 %v8332, %v8379
    %v8381 = vpop.f32.mrb[0].mxu0
    %v8382 = vpop.f32.mrb[0].mxu0
    %v8383 = vpop.f32.mrb[0].mxu0
    %8384 = vdwg.mxu0
    %8385 = vmatprep.subr.bf16.mxu0 0
    %8386 = vmatpush1.bf16.msra.mxu0 %v5654
    %8387 = vmatprep.subr.bf16.mxu0 0
    %8388 = vmatpush1.bf16.msra.mxu0 %v5655
    %8389 = vmatprep.subr.bf16.mxu0 0
    %8390 = vmatpush1.bf16.msra.mxu0 %v5656
    %8391 = vmatprep.subr.bf16.mxu0 0
    %8392 = vmatpush1.bf16.msra.mxu0 %v5657
    %8393 = vmatprep.subr.bf16.mxu0 0
    %8394 = vmatpush1.bf16.msra.mxu0 %v5658
    %8395 = vmatprep.subr.bf16.mxu0 0
    %8396 = vmatpush1.bf16.msra.mxu0 %v5659
    %8397 = vmatprep.subr.bf16.mxu0 0
    %8398 = vmatpush1.bf16.msra.mxu0 %v5660
    %8399 = vmatprep.subr.bf16.mxu0 0
    %8400 = vmatpush1.bf16.msra.mxu0 %v5661
    %8401 = vmatprep.subr.bf16.mxu0 0
    %8402 = vmatpush1.bf16.msra.mxu0 %v5662
    %8403 = vmatprep.subr.bf16.mxu0 0
    %8404 = vmatpush1.bf16.msra.mxu0 %v5663
    %8405 = vmatprep.subr.bf16.mxu0 0
    %8406 = vmatpush1.bf16.msra.mxu0 %v5664
    %8407 = vmatprep.subr.bf16.mxu0 0
    %8408 = vmatpush1.bf16.msra.mxu0 %v5665
    %8409 = vmatprep.subr.bf16.mxu0 0
    %8410 = vmatpush1.bf16.msra.mxu0 %v5666
    %8411 = vmatprep.subr.bf16.mxu0 0
    %8412 = vmatpush1.bf16.msra.mxu0 %v5667
    %8413 = vmatprep.subr.bf16.mxu0 0
    %8414 = vmatpush1.bf16.msra.mxu0 %v5668
    %8415 = vmatprep.subr.bf16.mxu0 0
    %8416 = vmatpush1.bf16.msra.mxu0 %v5669
    %8417 = vmatprep.mubr.bf16.mxu0 %v8138
    %8418 = vmatmul.mubr.bf16.gmra.mrb[0].mxu0 %v8137
    %v8419 = vpop.f32.mrb[0].mxu0
    %v8420 = vadd.f32 %v8372, %v8419
    %v8421 = vpop.f32.mrb[0].mxu0
    %v8422 = vpop.f32.mrb[0].mxu0
    %v8423 = vadd.f32 %v8375, %v8422
    %v8424 = vpop.f32.mrb[0].mxu0
    %8425 = vmatprep.mubr.bf16.mxu0 %v8170
    %8426 = vmatmul.mubr.bf16.gmra.mrb[0].mxu0 %v8169
    %v8427 = vpop.f32.mrb[0].mxu0
    %v8428 = vadd.f32 %v8380, %v8427
    %v8429 = vpop.f32.mrb[0].mxu0
    %v8430 = vpop.f32.mrb[0].mxu0
    %v8431 = vpop.f32.mrb[0].mxu0
    %8432 = vdwg.mxu0
    %8433 = vmatprep.subr.bf16.mxu0 0
    %8434 = vmatpush1.bf16.msra.mxu0 %v5670
    %8435 = vmatprep.subr.bf16.mxu0 0
    %8436 = vmatpush1.bf16.msra.mxu0 %v5671
    %8437 = vmatprep.subr.bf16.mxu0 0
    %8438 = vmatpush1.bf16.msra.mxu0 %v5672
    %8439 = vmatprep.subr.bf16.mxu0 0
    %8440 = vmatpush1.bf16.msra.mxu0 %v5673
    %8441 = vmatprep.subr.bf16.mxu0 0
    %8442 = vmatpush1.bf16.msra.mxu0 %v5674
    %8443 = vmatprep.subr.bf16.mxu0 0
    %8444 = vmatpush1.bf16.msra.mxu0 %v5675
    %8445 = vmatprep.subr.bf16.mxu0 0
    %8446 = vmatpush1.bf16.msra.mxu0 %v5676
    %8447 = vmatprep.subr.bf16.mxu0 0
    %8448 = vmatpush1.bf16.msra.mxu0 %v5677
    %8449 = vmatprep.subr.bf16.mxu0 0
    %8450 = vmatpush1.bf16.msra.mxu0 %v5678
    %8451 = vmatprep.subr.bf16.mxu0 0
    %8452 = vmatpush1.bf16.msra.mxu0 %v5679
    %8453 = vmatprep.subr.bf16.mxu0 0
    %8454 = vmatpush1.bf16.msra.mxu0 %v5680
    %8455 = vmatprep.subr.bf16.mxu0 0
    %8456 = vmatpush1.bf16.msra.mxu0 %v5681
    %8457 = vmatprep.subr.bf16.mxu0 0
    %8458 = vmatpush1.bf16.msra.mxu0 %v5682
    %8459 = vmatprep.subr.bf16.mxu0 0
    %8460 = vmatpush1.bf16.msra.mxu0 %v5683
    %8461 = vmatprep.subr.bf16.mxu0 0
    %8462 = vmatpush1.bf16.msra.mxu0 %v5684
    %8463 = vmatprep.subr.bf16.mxu0 0
    %8464 = vmatpush1.bf16.msra.mxu0 %v5685
    %8465 = vmatprep.mubr.bf16.mxu0 %v8140
    %8466 = vmatmul.mubr.bf16.gmra.mrb[0].mxu0 %v8139
    %v8467 = vpop.f32.mrb[0].mxu0
    %v8468 = vadd.f32 %v8420, %v8467
    %v8469 = vpop.f32.mrb[0].mxu0
    %v8470 = vpop.f32.mrb[0].mxu0
    %v8471 = vadd.f32 %v8423, %v8470
    %v8472 = vpop.f32.mrb[0].mxu0
    %8473 = vmatprep.mubr.bf16.mxu0 %v8172
    %8474 = vmatmul.mubr.bf16.gmra.mrb[0].mxu0 %v8171
    %v8475 = vpop.f32.mrb[0].mxu0
    %v8476 = vadd.f32 %v8428, %v8475
    %v8477 = vpop.f32.mrb[0].mxu0
    %v8478 = vpop.f32.mrb[0].mxu0
    %v8479 = vpop.f32.mrb[0].mxu0
    %8480 = vdwg.mxu0
    %8481 = vmatprep.subr.bf16.mxu0 0
    %8482 = vmatpush1.bf16.msra.mxu0 %v5686
    %8483 = vmatprep.subr.bf16.mxu0 0
    %8484 = vmatpush1.bf16.msra.mxu0 %v5687
    %8485 = vmatprep.subr.bf16.mxu0 0
    %8486 = vmatpush1.bf16.msra.mxu0 %v5688
    %8487 = vmatprep.subr.bf16.mxu0 0
    %8488 = vmatpush1.bf16.msra.mxu0 %v5689
    %8489 = vmatprep.subr.bf16.mxu0 0
    %8490 = vmatpush1.bf16.msra.mxu0 %v5690
    %8491 = vmatprep.subr.bf16.mxu0 0
    %8492 = vmatpush1.bf16.msra.mxu0 %v5691
    %8493 = vmatprep.subr.bf16.mxu0 0
    %8494 = vmatpush1.bf16.msra.mxu0 %v5692
    %8495 = vmatprep.subr.bf16.mxu0 0
    %8496 = vmatpush1.bf16.msra.mxu0 %v5693
    %8497 = vmatprep.subr.bf16.mxu0 0
    %8498 = vmatpush1.bf16.msra.mxu0 %v5694
    %8499 = vmatprep.subr.bf16.mxu0 0
    %8500 = vmatpush1.bf16.msra.mxu0 %v5695
    %8501 = vmatprep.subr.bf16.mxu0 0
    %8502 = vmatpush1.bf16.msra.mxu0 %v5696
    %8503 = vmatprep.subr.bf16.mxu0 0
    %8504 = vmatpush1.bf16.msra.mxu0 %v5697
    %8505 = vmatprep.subr.bf16.mxu0 0
    %8506 = vmatpush1.bf16.msra.mxu0 %v5698
    %8507 = vmatprep.subr.bf16.mxu0 0
    %8508 = vmatpush1.bf16.msra.mxu0 %v5699
    %8509 = vmatprep.subr.bf16.mxu0 0
    %8510 = vmatpush1.bf16.msra.mxu0 %v5700
    %8511 = vmatprep.subr.bf16.mxu0 0
    %8512 = vmatpush1.bf16.msra.mxu0 %v5701
    %8513 = vmatprep.mubr.bf16.mxu0 %v8142
    %8514 = vmatmul.mubr.bf16.gmra.mrb[0].mxu0 %v8141
    %v8515 = vpop.f32.mrb[0].mxu0
    %v8516 = vadd.f32 %v8468, %v8515
    %v8517 = vpop.f32.mrb[0].mxu0
    %v8518 = vpop.f32.mrb[0].mxu0
    %v8519 = vadd.f32 %v8471, %v8518
    %v8520 = vpop.f32.mrb[0].mxu0
    %8521 = vmatprep.mubr.bf16.mxu0 %v8174
    %8522 = vmatmul.mubr.bf16.gmra.mrb[0].mxu0 %v8173
    %v8523 = vpop.f32.mrb[0].mxu0
    %v8524 = vadd.f32 %v8476, %v8523
    %v8525 = vpop.f32.mrb[0].mxu0
    %v8526 = vpop.f32.mrb[0].mxu0
    %v8527 = vpop.f32.mrb[0].mxu0
    %8528 = vdwg.mxu0
    %8529 = vmatprep.subr.bf16.mxu0 0
    %8530 = vmatpush1.bf16.msra.mxu0 %v5702
    %8531 = vmatprep.subr.bf16.mxu0 0
    %8532 = vmatpush1.bf16.msra.mxu0 %v5703
    %8533 = vmatprep.subr.bf16.mxu0 0
    %8534 = vmatpush1.bf16.msra.mxu0 %v5704
    %8535 = vmatprep.subr.bf16.mxu0 0
    %8536 = vmatpush1.bf16.msra.mxu0 %v5705
    %8537 = vmatprep.subr.bf16.mxu0 0
    %8538 = vmatpush1.bf16.msra.mxu0 %v5706
    %8539 = vmatprep.subr.bf16.mxu0 0
    %8540 = vmatpush1.bf16.msra.mxu0 %v5707
    %8541 = vmatprep.subr.bf16.mxu0 0
    %8542 = vmatpush1.bf16.msra.mxu0 %v5708
    %8543 = vmatprep.subr.bf16.mxu0 0
    %8544 = vmatpush1.bf16.msra.mxu0 %v5709
    %8545 = vmatprep.subr.bf16.mxu0 0
    %8546 = vmatpush1.bf16.msra.mxu0 %v5710
    %8547 = vmatprep.subr.bf16.mxu0 0
    %8548 = vmatpush1.bf16.msra.mxu0 %v5711
    %8549 = vmatprep.subr.bf16.mxu0 0
    %8550 = vmatpush1.bf16.msra.mxu0 %v5712
    %8551 = vmatprep.subr.bf16.mxu0 0
    %8552 = vmatpush1.bf16.msra.mxu0 %v5713
    %8553 = vmatprep.subr.bf16.mxu0 0
    %8554 = vmatpush1.bf16.msra.mxu0 %v5714
    %8555 = vmatprep.subr.bf16.mxu0 0
    %8556 = vmatpush1.bf16.msra.mxu0 %v5715
    %8557 = vmatprep.subr.bf16.mxu0 0
    %8558 = vmatpush1.bf16.msra.mxu0 %v5716
    %8559 = vmatprep.subr.bf16.mxu0 0
    %8560 = vmatpush1.bf16.msra.mxu0 %v5717
    %8561 = vmatprep.mubr.bf16.mxu0 %v8144
    %8562 = vmatmul.mubr.bf16.gmra.mrb[0].mxu0 %v8143
    %v8563 = vpop.f32.mrb[0].mxu0
    %v8564 = vadd.f32 %v8516, %v8563
    %v8565 = vpop.f32.mrb[0].mxu0
    %v8566 = vpop.f32.mrb[0].mxu0
    %v8567 = vadd.f32 %v8519, %v8566
    %v8568 = vpop.f32.mrb[0].mxu0
    %8569 = vmatprep.mubr.bf16.mxu0 %v8176
    %8570 = vmatmul.mubr.bf16.gmra.mrb[0].mxu0 %v8175
    %v8571 = vpop.f32.mrb[0].mxu0
    %v8572 = vadd.f32 %v8524, %v8571
    %v8573 = vpop.f32.mrb[0].mxu0
    %v8574 = vpop.f32.mrb[0].mxu0
    %v8575 = vpop.f32.mrb[0].mxu0
    %8576 = vdwg.mxu0
    %8577 = vmatprep.subr.bf16.mxu0 0
    %8578 = vmatpush1.bf16.msra.mxu0 %v5718
    %8579 = vmatprep.subr.bf16.mxu0 0
    %8580 = vmatpush1.bf16.msra.mxu0 %v5719
    %8581 = vmatprep.subr.bf16.mxu0 0
    %8582 = vmatpush1.bf16.msra.mxu0 %v5720
    %8583 = vmatprep.subr.bf16.mxu0 0
    %8584 = vmatpush1.bf16.msra.mxu0 %v5721
    %8585 = vmatprep.subr.bf16.mxu0 0
    %8586 = vmatpush1.bf16.msra.mxu0 %v5722
    %8587 = vmatprep.subr.bf16.mxu0 0
    %8588 = vmatpush1.bf16.msra.mxu0 %v5723
    %8589 = vmatprep.subr.bf16.mxu0 0
    %8590 = vmatpush1.bf16.msra.mxu0 %v5724
    %8591 = vmatprep.subr.bf16.mxu0 0
    %8592 = vmatpush1.bf16.msra.mxu0 %v5725
    %8593 = vmatprep.subr.bf16.mxu0 0
    %8594 = vmatpush1.bf16.msra.mxu0 %v5726
    %8595 = vmatprep.subr.bf16.mxu0 0
    %8596 = vmatpush1.bf16.msra.mxu0 %v5727
    %8597 = vmatprep.subr.bf16.mxu0 0
    %8598 = vmatpush1.bf16.msra.mxu0 %v5728
    %8599 = vmatprep.subr.bf16.mxu0 0
    %8600 = vmatpush1.bf16.msra.mxu0 %v5729
    %8601 = vmatprep.subr.bf16.mxu0 0
    %8602 = vmatpush1.bf16.msra.mxu0 %v5730
    %8603 = vmatprep.subr.bf16.mxu0 0
    %8604 = vmatpush1.bf16.msra.mxu0 %v5731
    %8605 = vmatprep.subr.bf16.mxu0 0
    %8606 = vmatpush1.bf16.msra.mxu0 %v5732
    %8607 = vmatprep.subr.bf16.mxu0 0
    %8608 = vmatpush1.bf16.msra.mxu0 %v5733
    %8609 = vmatprep.mubr.bf16.mxu0 %v8146
    %8610 = vmatmul.mubr.bf16.gmra.mrb[0].mxu0 %v8145
    %v8611 = vpop.f32.mrb[0].mxu0
    %v8612 = vadd.f32 %v8564, %v8611
    %v8613 = vpop.f32.mrb[0].mxu0
    %v8614 = vpop.f32.mrb[0].mxu0
    %v8615 = vadd.f32 %v8567, %v8614
    %v8616 = vpop.f32.mrb[0].mxu0
    %8617 = vmatprep.mubr.bf16.mxu0 %v8178
    %8618 = vmatmul.mubr.bf16.gmra.mrb[0].mxu0 %v8177
    %v8619 = vpop.f32.mrb[0].mxu0
    %v8620 = vadd.f32 %v8572, %v8619
    %v8621 = vpop.f32.mrb[0].mxu0
    %v8622 = vpop.f32.mrb[0].mxu0
    %v8623 = vpop.f32.mrb[0].mxu0
    %8624 = vdwg.mxu0
    %8625 = vmatprep.subr.bf16.mxu0 0
    %8626 = vmatpush1.bf16.msra.mxu0 %v5734
    %8627 = vmatprep.subr.bf16.mxu0 0
    %8628 = vmatpush1.bf16.msra.mxu0 %v5735
    %8629 = vmatprep.subr.bf16.mxu0 0
    %8630 = vmatpush1.bf16.msra.mxu0 %v5736
    %8631 = vmatprep.subr.bf16.mxu0 0
    %8632 = vmatpush1.bf16.msra.mxu0 %v5737
    %8633 = vmatprep.subr.bf16.mxu0 0
    %8634 = vmatpush1.bf16.msra.mxu0 %v5738
    %8635 = vmatprep.subr.bf16.mxu0 0
    %8636 = vmatpush1.bf16.msra.mxu0 %v5739
    %8637 = vmatprep.subr.bf16.mxu0 0
    %8638 = vmatpush1.bf16.msra.mxu0 %v5740
    %8639 = vmatprep.subr.bf16.mxu0 0
    %8640 = vmatpush1.bf16.msra.mxu0 %v5741
    %8641 = vmatprep.subr.bf16.mxu0 0
    %8642 = vmatpush1.bf16.msra.mxu0 %v5742
    %8643 = vmatprep.subr.bf16.mxu0 0
    %8644 = vmatpush1.bf16.msra.mxu0 %v5743
    %8645 = vmatprep.subr.bf16.mxu0 0
    %8646 = vmatpush1.bf16.msra.mxu0 %v5744
    %8647 = vmatprep.subr.bf16.mxu0 0
    %8648 = vmatpush1.bf16.msra.mxu0 %v5745
    %8649 = vmatprep.subr.bf16.mxu0 0
    %8650 = vmatpush1.bf16.msra.mxu0 %v5746
    %8651 = vmatprep.subr.bf16.mxu0 0
    %8652 = vmatpush1.bf16.msra.mxu0 %v5747
    %8653 = vmatprep.subr.bf16.mxu0 0
    %8654 = vmatpush1.bf16.msra.mxu0 %v5748
    %8655 = vmatprep.subr.bf16.mxu0 0
    %8656 = vmatpush1.bf16.msra.mxu0 %v5749
    %8657 = vmatprep.mubr.bf16.mxu0 %v8148
    %8658 = vmatmul.mubr.bf16.gmra.mrb[0].mxu0 %v8147
    %v8659 = vpop.f32.mrb[0].mxu0
    %v8660 = vadd.f32 %v8612, %v8659
    %v8661 = vpop.f32.mrb[0].mxu0
    %v8662 = vpop.f32.mrb[0].mxu0
    %v8663 = vadd.f32 %v8615, %v8662
    %v8664 = vpop.f32.mrb[0].mxu0
    %8665 = vmatprep.mubr.bf16.mxu0 %v8180
    %8666 = vmatmul.mubr.bf16.gmra.mrb[0].mxu0 %v8179
    %v8667 = vpop.f32.mrb[0].mxu0
    %v8668 = vadd.f32 %v8620, %v8667
    %v8669 = vpop.f32.mrb[0].mxu0
    %v8670 = vpop.f32.mrb[0].mxu0
    %v8671 = vpop.f32.mrb[0].mxu0
    %8672 = vdwg.mxu0
    %8673 = vmatprep.subr.bf16.mxu0 0
    %8674 = vmatpush1.bf16.msra.mxu0 %v5750
    %8675 = vmatprep.subr.bf16.mxu0 0
    %8676 = vmatpush1.bf16.msra.mxu0 %v5751
    %8677 = vmatprep.subr.bf16.mxu0 0
    %8678 = vmatpush1.bf16.msra.mxu0 %v5752
    %8679 = vmatprep.subr.bf16.mxu0 0
    %8680 = vmatpush1.bf16.msra.mxu0 %v5753
    %8681 = vmatprep.subr.bf16.mxu0 0
    %8682 = vmatpush1.bf16.msra.mxu0 %v5754
    %8683 = vmatprep.subr.bf16.mxu0 0
    %8684 = vmatpush1.bf16.msra.mxu0 %v5755
    %8685 = vmatprep.subr.bf16.mxu0 0
    %8686 = vmatpush1.bf16.msra.mxu0 %v5756
    %8687 = vmatprep.subr.bf16.mxu0 0
    %8688 = vmatpush1.bf16.msra.mxu0 %v5757
    %8689 = vmatprep.subr.bf16.mxu0 0
    %8690 = vmatpush1.bf16.msra.mxu0 %v5758
    %8691 = vmatprep.subr.bf16.mxu0 0
    %8692 = vmatpush1.bf16.msra.mxu0 %v5759
    %8693 = vmatprep.subr.bf16.mxu0 0
    %8694 = vmatpush1.bf16.msra.mxu0 %v5760
    %8695 = vmatprep.subr.bf16.mxu0 0
    %8696 = vmatpush1.bf16.msra.mxu0 %v5761
    %8697 = vmatprep.subr.bf16.mxu0 0
    %8698 = vmatpush1.bf16.msra.mxu0 %v5762
    %8699 = vmatprep.subr.bf16.mxu0 0
    %8700 = vmatpush1.bf16.msra.mxu0 %v5763
    %8701 = vmatprep.subr.bf16.mxu0 0
    %8702 = vmatpush1.bf16.msra.mxu0 %v5764
    %8703 = vmatprep.subr.bf16.mxu0 0
    %8704 = vmatpush1.bf16.msra.mxu0 %v5765
    %8705 = vmatprep.mubr.bf16.mxu0 %v8150
    %8706 = vmatmul.mubr.bf16.gmra.mrb[0].mxu0 %v8149
    %v8707 = vpop.f32.mrb[0].mxu0
    %v8708 = vadd.f32 %v8660, %v8707
    %v8709 = vpop.f32.mrb[0].mxu0
    %v8710 = vpop.f32.mrb[0].mxu0
    %v8711 = vadd.f32 %v8663, %v8710
    %v8712 = vpop.f32.mrb[0].mxu0
    %8713 = vmatprep.mubr.bf16.mxu0 %v8182
    %8714 = vmatmul.mubr.bf16.gmra.mrb[0].mxu0 %v8181
    %v8715 = vpop.f32.mrb[0].mxu0
    %v8716 = vadd.f32 %v8668, %v8715
    %v8717 = vpop.f32.mrb[0].mxu0
    %v8718 = vpop.f32.mrb[0].mxu0
    %v8719 = vpop.f32.mrb[0].mxu0
    %8720 = vdwg.mxu0
    %8721 = vmatprep.subr.bf16.mxu0 0
    %8722 = vmatpush1.bf16.msra.mxu0 %v5766
    %8723 = vmatprep.subr.bf16.mxu0 0
    %8724 = vmatpush1.bf16.msra.mxu0 %v5767
    %8725 = vmatprep.subr.bf16.mxu0 0
    %8726 = vmatpush1.bf16.msra.mxu0 %v5768
    %8727 = vmatprep.subr.bf16.mxu0 0
    %8728 = vmatpush1.bf16.msra.mxu0 %v5769
    %8729 = vmatprep.subr.bf16.mxu0 0
    %8730 = vmatpush1.bf16.msra.mxu0 %v5770
    %8731 = vmatprep.subr.bf16.mxu0 0
    %8732 = vmatpush1.bf16.msra.mxu0 %v5771
    %8733 = vmatprep.subr.bf16.mxu0 0
    %8734 = vmatpush1.bf16.msra.mxu0 %v5772
    %8735 = vmatprep.subr.bf16.mxu0 0
    %8736 = vmatpush1.bf16.msra.mxu0 %v5773
    %8737 = vmatprep.subr.bf16.mxu0 0
    %8738 = vmatpush1.bf16.msra.mxu0 %v5774
    %8739 = vmatprep.subr.bf16.mxu0 0
    %8740 = vmatpush1.bf16.msra.mxu0 %v5775
    %8741 = vmatprep.subr.bf16.mxu0 0
    %8742 = vmatpush1.bf16.msra.mxu0 %v5776
    %8743 = vmatprep.subr.bf16.mxu0 0
    %8744 = vmatpush1.bf16.msra.mxu0 %v5777
    %8745 = vmatprep.subr.bf16.mxu0 0
    %8746 = vmatpush1.bf16.msra.mxu0 %v5778
    %8747 = vmatprep.subr.bf16.mxu0 0
    %8748 = vmatpush1.bf16.msra.mxu0 %v5779
    %8749 = vmatprep.subr.bf16.mxu0 0
    %8750 = vmatpush1.bf16.msra.mxu0 %v5780
    %8751 = vmatprep.subr.bf16.mxu0 0
    %8752 = vmatpush1.bf16.msra.mxu0 %v5781
    %8753 = vmatprep.mubr.bf16.mxu0 %v8152
    %8754 = vmatmul.mubr.bf16.gmra.mrb[0].mxu0 %v8151
    %v8755 = vpop.f32.mrb[0].mxu0
    %v8756 = vadd.f32 %v8708, %v8755
    %v8757 = vpop.f32.mrb[0].mxu0
    %v8758 = vpop.f32.mrb[0].mxu0
    %v8759 = vadd.f32 %v8711, %v8758
    %v8760 = vpop.f32.mrb[0].mxu0
    %8761 = vmatprep.mubr.bf16.mxu0 %v8184
    %8762 = vmatmul.mubr.bf16.gmra.mrb[0].mxu0 %v8183
    %v8763 = vpop.f32.mrb[0].mxu0
    %v8764 = vadd.f32 %v8716, %v8763
    %v8765 = vpop.f32.mrb[0].mxu0
    %v8766 = vpop.f32.mrb[0].mxu0
    %v8767 = vpop.f32.mrb[0].mxu0
    %8768 = vdwg.mxu0
    %8769 = vmatprep.subr.bf16.mxu0 0
    %8770 = vmatpush1.bf16.msra.mxu0 %v5782
    %8771 = vmatprep.subr.bf16.mxu0 0
    %8772 = vmatpush1.bf16.msra.mxu0 %v5783
    %8773 = vmatprep.subr.bf16.mxu0 0
    %8774 = vmatpush1.bf16.msra.mxu0 %v5784
    %8775 = vmatprep.subr.bf16.mxu0 0
    %8776 = vmatpush1.bf16.msra.mxu0 %v5785
    %8777 = vmatprep.subr.bf16.mxu0 0
    %8778 = vmatpush1.bf16.msra.mxu0 %v5786
    %8779 = vmatprep.subr.bf16.mxu0 0
    %8780 = vmatpush1.bf16.msra.mxu0 %v5787
    %8781 = vmatprep.subr.bf16.mxu0 0
    %8782 = vmatpush1.bf16.msra.mxu0 %v5788
    %8783 = vmatprep.subr.bf16.mxu0 0
    %8784 = vmatpush1.bf16.msra.mxu0 %v5789
    %8785 = vmatprep.subr.bf16.mxu0 0
    %8786 = vmatpush1.bf16.msra.mxu0 %v5790
    %8787 = vmatprep.subr.bf16.mxu0 0
    %8788 = vmatpush1.bf16.msra.mxu0 %v5791
    %8789 = vmatprep.subr.bf16.mxu0 0
    %8790 = vmatpush1.bf16.msra.mxu0 %v5792
    %8791 = vmatprep.subr.bf16.mxu0 0
    %8792 = vmatpush1.bf16.msra.mxu0 %v5793
    %8793 = vmatprep.subr.bf16.mxu0 0
    %8794 = vmatpush1.bf16.msra.mxu0 %v5794
    %8795 = vmatprep.subr.bf16.mxu0 0
    %8796 = vmatpush1.bf16.msra.mxu0 %v5795
    %8797 = vmatprep.subr.bf16.mxu0 0
    %8798 = vmatpush1.bf16.msra.mxu0 %v5796
    %8799 = vmatprep.subr.bf16.mxu0 0
    %8800 = vmatpush1.bf16.msra.mxu0 %v5797
    %8801 = vmatprep.mubr.bf16.mxu0 %v8154
    %8802 = vmatmul.mubr.bf16.gmra.mrb[0].mxu0 %v8153
    %v8803 = vpop.f32.mrb[0].mxu0
    %v8804 = vadd.f32 %v8756, %v8803
    %v8805 = vpop.f32.mrb[0].mxu0
    %v8806 = vpop.f32.mrb[0].mxu0
    %v8807 = vadd.f32 %v8759, %v8806
    %v8808 = vpop.f32.mrb[0].mxu0
    %8809 = vmatprep.mubr.bf16.mxu0 %v8186
    %8810 = vmatmul.mubr.bf16.gmra.mrb[0].mxu0 %v8185
    %v8811 = vpop.f32.mrb[0].mxu0
    %v8812 = vadd.f32 %v8764, %v8811
    %v8813 = vpop.f32.mrb[0].mxu0
    %v8814 = vpop.f32.mrb[0].mxu0
    %v8815 = vpop.f32.mrb[0].mxu0
    %8816 = vdwg.mxu0
    %8817 = vmatprep.subr.bf16.mxu0 0
    %8818 = vmatpush1.bf16.msra.mxu0 %v5798
    %8819 = vmatprep.subr.bf16.mxu0 0
    %8820 = vmatpush1.bf16.msra.mxu0 %v5799
    %8821 = vmatprep.subr.bf16.mxu0 0
    %8822 = vmatpush1.bf16.msra.mxu0 %v5800
    %8823 = vmatprep.subr.bf16.mxu0 0
    %8824 = vmatpush1.bf16.msra.mxu0 %v5801
    %8825 = vmatprep.subr.bf16.mxu0 0
    %8826 = vmatpush1.bf16.msra.mxu0 %v5802
    %8827 = vmatprep.subr.bf16.mxu0 0
    %8828 = vmatpush1.bf16.msra.mxu0 %v5803
    %8829 = vmatprep.subr.bf16.mxu0 0
    %8830 = vmatpush1.bf16.msra.mxu0 %v5804
    %8831 = vmatprep.subr.bf16.mxu0 0
    %8832 = vmatpush1.bf16.msra.mxu0 %v5805
    %8833 = vmatprep.subr.bf16.mxu0 0
    %8834 = vmatpush1.bf16.msra.mxu0 %v5806
    %8835 = vmatprep.subr.bf16.mxu0 0
    %8836 = vmatpush1.bf16.msra.mxu0 %v5807
    %8837 = vmatprep.subr.bf16.mxu0 0
    %8838 = vmatpush1.bf16.msra.mxu0 %v5808
    %8839 = vmatprep.subr.bf16.mxu0 0
    %8840 = vmatpush1.bf16.msra.mxu0 %v5809
    %8841 = vmatprep.subr.bf16.mxu0 0
    %8842 = vmatpush1.bf16.msra.mxu0 %v5810
    %8843 = vmatprep.subr.bf16.mxu0 0
    %8844 = vmatpush1.bf16.msra.mxu0 %v5811
    %8845 = vmatprep.subr.bf16.mxu0 0
    %8846 = vmatpush1.bf16.msra.mxu0 %v5812
    %8847 = vmatprep.subr.bf16.mxu0 0
    %8848 = vmatpush1.bf16.msra.mxu0 %v5813
    %8849 = vmatprep.mubr.bf16.mxu0 %v8156
    %8850 = vmatmul.mubr.bf16.gmra.mrb[0].mxu0 %v8155
    %v8851 = vpop.f32.mrb[0].mxu0
    %v8852 = vadd.f32 %v8804, %v8851
    %v8853 = vpop.f32.mrb[0].mxu0
    %v8854 = vpop.f32.mrb[0].mxu0
    %v8855 = vadd.f32 %v8807, %v8854
    %v8856 = vpop.f32.mrb[0].mxu0
    %8857 = vmatprep.mubr.bf16.mxu0 %v8188
    %8858 = vmatmul.mubr.bf16.gmra.mrb[0].mxu0 %v8187
    %v8859 = vpop.f32.mrb[0].mxu0
    %v8860 = vadd.f32 %v8812, %v8859
    %v8861 = vpop.f32.mrb[0].mxu0
    %v8862 = vpop.f32.mrb[0].mxu0
    %v8863 = vpop.f32.mrb[0].mxu0
    %8864 = vdwg.mxu0
    %8865 = vmatprep.subr.bf16.mxu0 0
    %8866 = vmatpush1.bf16.msra.mxu0 %v5814
    %8867 = vmatprep.subr.bf16.mxu0 0
    %8868 = vmatpush1.bf16.msra.mxu0 %v5815
    %8869 = vmatprep.subr.bf16.mxu0 0
    %8870 = vmatpush1.bf16.msra.mxu0 %v5816
    %8871 = vmatprep.subr.bf16.mxu0 0
    %8872 = vmatpush1.bf16.msra.mxu0 %v5817
    %8873 = vmatprep.subr.bf16.mxu0 0
    %8874 = vmatpush1.bf16.msra.mxu0 %v5818
    %8875 = vmatprep.subr.bf16.mxu0 0
    %8876 = vmatpush1.bf16.msra.mxu0 %v5819
    %8877 = vmatprep.subr.bf16.mxu0 0
    %8878 = vmatpush1.bf16.msra.mxu0 %v5820
    %8879 = vmatprep.subr.bf16.mxu0 0
    %8880 = vmatpush1.bf16.msra.mxu0 %v5821
    %8881 = vmatprep.subr.bf16.mxu0 0
    %8882 = vmatpush1.bf16.msra.mxu0 %v5822
    %8883 = vmatprep.subr.bf16.mxu0 0
    %8884 = vmatpush1.bf16.msra.mxu0 %v5823
    %8885 = vmatprep.subr.bf16.mxu0 0
    %8886 = vmatpush1.bf16.msra.mxu0 %v5824
    %8887 = vmatprep.subr.bf16.mxu0 0
    %8888 = vmatpush1.bf16.msra.mxu0 %v5825
    %8889 = vmatprep.subr.bf16.mxu0 0
    %8890 = vmatpush1.bf16.msra.mxu0 %v5826
    %8891 = vmatprep.subr.bf16.mxu0 0
    %8892 = vmatpush1.bf16.msra.mxu0 %v5827
    %8893 = vmatprep.subr.bf16.mxu0 0
    %8894 = vmatpush1.bf16.msra.mxu0 %v5828
    %8895 = vmatprep.subr.bf16.mxu0 0
    %8896 = vmatpush1.bf16.msra.mxu0 %v5829
    %8897 = vmatprep.mubr.bf16.mxu0 %v8158
    %8898 = vmatmul.mubr.bf16.gmra.mrb[0].mxu0 %v8157
    %v8899 = vpop.f32.mrb[0].mxu0
    %v8900 = vadd.f32 %v8852, %v8899
    %v8901 = vpop.f32.mrb[0].mxu0
    %v8902 = vpop.f32.mrb[0].mxu0
    %v8903 = vadd.f32 %v8855, %v8902
    %v8904 = vpop.f32.mrb[0].mxu0
    %8905 = vmatprep.mubr.bf16.mxu0 %v8190
    %8906 = vmatmul.mubr.bf16.gmra.mrb[0].mxu0 %v8189
    %v8907 = vpop.f32.mrb[0].mxu0
    %v8908 = vadd.f32 %v8860, %v8907
    %v8909 = vpop.f32.mrb[0].mxu0
    %v8910 = vpop.f32.mrb[0].mxu0
    %v8911 = vpop.f32.mrb[0].mxu0
    %8912 = vdwg.mxu0
    %8913 = vmatprep.subr.bf16.mxu0 0
    %8914 = vmatpush1.bf16.msra.mxu0 %v5830
    %8915 = vmatprep.subr.bf16.mxu0 0
    %8916 = vmatpush1.bf16.msra.mxu0 %v5831
    %8917 = vmatprep.subr.bf16.mxu0 0
    %8918 = vmatpush1.bf16.msra.mxu0 %v5832
    %8919 = vmatprep.subr.bf16.mxu0 0
    %8920 = vmatpush1.bf16.msra.mxu0 %v5833
    %8921 = vmatprep.subr.bf16.mxu0 0
    %8922 = vmatpush1.bf16.msra.mxu0 %v5834
    %8923 = vmatprep.subr.bf16.mxu0 0
    %8924 = vmatpush1.bf16.msra.mxu0 %v5835
    %8925 = vmatprep.subr.bf16.mxu0 0
    %8926 = vmatpush1.bf16.msra.mxu0 %v5836
    %8927 = vmatprep.subr.bf16.mxu0 0
    %8928 = vmatpush1.bf16.msra.mxu0 %v5837
    %8929 = vmatprep.subr.bf16.mxu0 0
    %8930 = vmatpush1.bf16.msra.mxu0 %v5838
    %8931 = vmatprep.subr.bf16.mxu0 0
    %8932 = vmatpush1.bf16.msra.mxu0 %v5839
    %8933 = vmatprep.subr.bf16.mxu0 0
    %8934 = vmatpush1.bf16.msra.mxu0 %v5840
    %8935 = vmatprep.subr.bf16.mxu0 0
    %8936 = vmatpush1.bf16.msra.mxu0 %v5841
    %8937 = vmatprep.subr.bf16.mxu0 0
    %8938 = vmatpush1.bf16.msra.mxu0 %v5842
    %8939 = vmatprep.subr.bf16.mxu0 0
    %8940 = vmatpush1.bf16.msra.mxu0 %v5843
    %8941 = vmatprep.subr.bf16.mxu0 0
    %8942 = vmatpush1.bf16.msra.mxu0 %v5844
    %8943 = vmatprep.subr.bf16.mxu0 0
    %8944 = vmatpush1.bf16.msra.mxu0 %v5845
    %8945 = vmatprep.mubr.bf16.mxu0 %v8160
    %8946 = vmatmul.mubr.bf16.gmra.mrb[0].mxu0 %v8159
    %v8947 = vpop.f32.mrb[0].mxu0
    %v8948 = vadd.f32 %v8900, %v8947
    %v8949 = vpop.f32.mrb[0].mxu0
    %v8950 = vpop.f32.mrb[0].mxu0
    %v8951 = vadd.f32 %v8903, %v8950
    %v8952 = vpop.f32.mrb[0].mxu0
    %8953 = vmatprep.mubr.bf16.mxu0 %v8192
    %8954 = vmatmul.mubr.bf16.gmra.mrb[0].mxu0 %v8191
    %v8955 = vpop.f32.mrb[0].mxu0
    %v8956 = vadd.f32 %v8908, %v8955
    %v8957 = vpop.f32.mrb[0].mxu0
    %v8958 = vpop.f32.mrb[0].mxu0
    %v8959 = vpop.f32.mrb[0].mxu0
    %8960 = vdwg.mxu0
    %v8961 = vpack.c.bf16 %v8951, %v8948
    %v8962 = vpack.c.bf16 %v8956, %v8956
    %v8963 = vsel %vm3583, %v7157, 0
    %8965 = vmatprep.subr.bf16.mxu0 0
    %8966 = vmatpush1.bf16.msra.mxu0 %v6872
    %8967 = vmatprep.subr.bf16.mxu0 0
    %8968 = vmatpush1.bf16.msra.mxu0 %v6873
    %8969 = vmatprep.subr.bf16.mxu0 0
    %8970 = vmatpush1.bf16.msra.mxu0 %v6874
    %8971 = vmatprep.subr.bf16.mxu0 0
    %8972 = vmatpush1.bf16.msra.mxu0 %v6875
    %8973 = vmatprep.subr.bf16.mxu0 0
    %8974 = vmatpush1.bf16.msra.mxu0 0
    %8975 = vmatprep.subr.bf16.mxu0 0
    %8976 = vmatpush1.bf16.msra.mxu0 0
    %8977 = vmatprep.subr.bf16.mxu0 0
    %8978 = vmatpush1.bf16.msra.mxu0 0
    %8979 = vmatprep.subr.bf16.mxu0 0
    %8980 = vmatpush1.bf16.msra.mxu0 0
    %8981 = vmatprep.subr.bf16.mxu0 0
    %8982 = vmatpush1.bf16.msra.mxu0 0
    %8983 = vmatprep.subr.bf16.mxu0 0
    %8984 = vmatpush1.bf16.msra.mxu0 0
    %8985 = vmatprep.subr.bf16.mxu0 0
    %8986 = vmatpush1.bf16.msra.mxu0 0
    %8987 = vmatprep.subr.bf16.mxu0 0
    %8988 = vmatpush1.bf16.msra.mxu0 0
    %8989 = vmatprep.subr.bf16.mxu0 0
    %8990 = vmatpush1.bf16.msra.mxu0 0
    %8991 = vmatprep.subr.bf16.mxu0 0
    %8992 = vmatpush1.bf16.msra.mxu0 0
    %8993 = vmatprep.subr.bf16.mxu0 0
    %8994 = vmatpush1.bf16.msra.mxu0 0
    %8995 = vmatprep.subr.bf16.mxu0 0
    %8996 = vmatpush1.bf16.msra.mxu0 0
    %8997 = vmatprep.mubr.bf16.mxu0 0
    %8998 = vmatmul.mubr.bf16.gmra.mrb[0].mxu0 %v8963
    %v8999 = vpop.f32.mrb[0].mxu0
    %v9000 = vadd.f32 0.0, %v8999
    %v9001 = vpop.f32.mrb[0].mxu0
    %v9002 = vpop.f32.mrb[0].mxu0
    %v9003 = vadd.f32 0.0, %v9002
    %v9004 = vpop.f32.mrb[0].mxu0
    %9005 = vdwg.mxu0
    %v9007 = vsel %vm304, %v8962, 0
    %9009 = vmatprep.subr.bf16.mxu0 0
    %9010 = vmatpush1.bf16.msra.mxu0 %v8961
    %9011 = vmatprep.subr.bf16.mxu0 0
    %9012 = vmatpush1.bf16.msra.mxu0 %v9007
    %9013 = vmatprep.subr.bf16.mxu0 0
    %9014 = vmatpush1.bf16.msra.mxu0 0
    %9015 = vmatprep.subr.bf16.mxu0 0
    %9016 = vmatpush1.bf16.msra.mxu0 0
    %9017 = vmatprep.subr.bf16.mxu0 0
    %9018 = vmatpush1.bf16.msra.mxu0 0
    %9019 = vmatprep.subr.bf16.mxu0 0
    %9020 = vmatpush1.bf16.msra.mxu0 0
    %9021 = vmatprep.subr.bf16.mxu0 0
    %9022 = vmatpush1.bf16.msra.mxu0 0
    %9023 = vmatprep.subr.bf16.mxu0 0
    %9024 = vmatpush1.bf16.msra.mxu0 0
    %9025 = vmatprep.subr.bf16.mxu0 0
    %9026 = vmatpush1.bf16.msra.mxu0 0
    %9027 = vmatprep.subr.bf16.mxu0 0
    %9028 = vmatpush1.bf16.msra.mxu0 0
    %9029 = vmatprep.subr.bf16.mxu0 0
    %9030 = vmatpush1.bf16.msra.mxu0 0
    %9031 = vmatprep.subr.bf16.mxu0 0
    %9032 = vmatpush1.bf16.msra.mxu0 0
    %9033 = vmatprep.subr.bf16.mxu0 0
    %9034 = vmatpush1.bf16.msra.mxu0 0
    %9035 = vmatprep.subr.bf16.mxu0 0
    %9036 = vmatpush1.bf16.msra.mxu0 0
    %9037 = vmatprep.subr.bf16.mxu0 0
    %9038 = vmatpush1.bf16.msra.mxu0 0
    %9039 = vmatprep.subr.bf16.mxu0 0
    %9040 = vmatpush1.bf16.msra.mxu0 0
    %9041 = vmatprep.mubr.bf16.mxu0 0
    %9042 = vmatmul.mubr.bf16.gmra.mrb[0].mxu0 %v6926
    %v9043 = vpop.f32.mrb[0].mxu0
    %v9044 = vadd.f32 %v9000, %v9043
    %v9045 = vpop.f32.mrb[0].mxu0
    %v9046 = vpop.f32.mrb[0].mxu0
    %v9047 = vadd.f32 %v9003, %v9046
    %v9048 = vpop.f32.mrb[0].mxu0
    %9049 = vdwg.mxu0
    %v9050 = vadd.f32 %v9044, %v6976
    %v9051 = vadd.f32 %v9047, %v6976
    %v9052 = vmax.f32 %v9050, 0.0
    %v9053 = vmax.f32 %v9051, 0.0
    %v9054 = vpack.c.bf16 %v9053, %v9052
    %v9056 = vsel %vm3583, %v9054, 0
    %9058 = vmatprep.subr.bf16.mxu0 %v6984
    %9059 = vmatpush1.bf16.msra.mxu0 %v6983
    %9060 = vmatprep.subr.bf16.mxu0 %v6986
    %9061 = vmatpush1.bf16.msra.mxu0 %v6985
    %9062 = vmatprep.subr.bf16.mxu0 %v6988
    %9063 = vmatpush1.bf16.msra.mxu0 %v6987
    %9064 = vmatprep.subr.bf16.mxu0 %v6990
    %9065 = vmatpush1.bf16.msra.mxu0 %v6989
    %9066 = vmatprep.subr.bf16.mxu0 0
    %9067 = vmatpush1.bf16.msra.mxu0 0
    %9068 = vmatprep.subr.bf16.mxu0 0
    %9069 = vmatpush1.bf16.msra.mxu0 0
    %9070 = vmatprep.subr.bf16.mxu0 0
    %9071 = vmatpush1.bf16.msra.mxu0 0
    %9072 = vmatprep.subr.bf16.mxu0 0
    %9073 = vmatpush1.bf16.msra.mxu0 0
    %9074 = vmatprep.subr.bf16.mxu0 0
    %9075 = vmatpush1.bf16.msra.mxu0 0
    %9076 = vmatprep.subr.bf16.mxu0 0
    %9077 = vmatpush1.bf16.msra.mxu0 0
    %9078 = vmatprep.subr.bf16.mxu0 0
    %9079 = vmatpush1.bf16.msra.mxu0 0
    %9080 = vmatprep.subr.bf16.mxu0 0
    %9081 = vmatpush1.bf16.msra.mxu0 0
    %9082 = vmatprep.subr.bf16.mxu0 0
    %9083 = vmatpush1.bf16.msra.mxu0 0
    %9084 = vmatprep.subr.bf16.mxu0 0
    %9085 = vmatpush1.bf16.msra.mxu0 0
    %9086 = vmatprep.subr.bf16.mxu0 0
    %9087 = vmatpush1.bf16.msra.mxu0 0
    %9088 = vmatprep.subr.bf16.mxu0 0
    %9089 = vmatpush1.bf16.msra.mxu0 0
    %9090 = vmatprep.mubr.bf16.mxu0 0
    %9091 = vmatmul.mubr.bf16.gmra.mrb[0].mxu0 %v9056
    %v9092 = vpop.f32.mrb[0].mxu0
    %v9093 = vadd.f32 %v6995, %v9092
    %v9094 = vpop.f32.mrb[0].mxu0
    %v9095 = vadd.f32 %v6999, %v9094
    %v9096 = vpop.f32.mrb[0].mxu0
    %v9097 = vadd.f32 %v6995, %v9096
    %v9098 = vpop.f32.mrb[0].mxu0
    %v9099 = vadd.f32 %v6999, %v9098
    %9100 = vdwg.mxu0
    %9101 = vmatprep.subr.bf16.mxu0 %v7049
    %9102 = vmatpush1.bf16.msra.mxu0 %v7048
    %9103 = vmatprep.subr.bf16.mxu0 %v7051
    %9104 = vmatpush1.bf16.msra.mxu0 %v7050
    %9105 = vmatprep.subr.bf16.mxu0 %v7053
    %9106 = vmatpush1.bf16.msra.mxu0 %v7052
    %9107 = vmatprep.subr.bf16.mxu0 %v7055
    %9108 = vmatpush1.bf16.msra.mxu0 %v7054
    %9109 = vmatprep.subr.bf16.mxu0 0
    %9110 = vmatpush1.bf16.msra.mxu0 0
    %9111 = vmatprep.subr.bf16.mxu0 0
    %9112 = vmatpush1.bf16.msra.mxu0 0
    %9113 = vmatprep.subr.bf16.mxu0 0
    %9114 = vmatpush1.bf16.msra.mxu0 0
    %9115 = vmatprep.subr.bf16.mxu0 0
    %9116 = vmatpush1.bf16.msra.mxu0 0
    %9117 = vmatprep.subr.bf16.mxu0 0
    %9118 = vmatpush1.bf16.msra.mxu0 0
    %9119 = vmatprep.subr.bf16.mxu0 0
    %9120 = vmatpush1.bf16.msra.mxu0 0
    %9121 = vmatprep.subr.bf16.mxu0 0
    %9122 = vmatpush1.bf16.msra.mxu0 0
    %9123 = vmatprep.subr.bf16.mxu0 0
    %9124 = vmatpush1.bf16.msra.mxu0 0
    %9125 = vmatprep.subr.bf16.mxu0 0
    %9126 = vmatpush1.bf16.msra.mxu0 0
    %9127 = vmatprep.subr.bf16.mxu0 0
    %9128 = vmatpush1.bf16.msra.mxu0 0
    %9129 = vmatprep.subr.bf16.mxu0 0
    %9130 = vmatpush1.bf16.msra.mxu0 0
    %9131 = vmatprep.subr.bf16.mxu0 0
    %9132 = vmatpush1.bf16.msra.mxu0 0
    %9133 = vmatprep.mubr.bf16.mxu0 0
    %9134 = vmatmul.mubr.bf16.gmra.mrb[0].mxu0 %v8963
    %v9135 = vpop.f32.mrb[0].mxu0
    %v9136 = vadd.f32 %v7060, %v9135
    %v9137 = vpop.f32.mrb[0].mxu0
    %v9138 = vadd.f32 %v7064, %v9137
    %v9139 = vpop.f32.mrb[0].mxu0
    %v9140 = vadd.f32 %v7060, %v9139
    %v9141 = vpop.f32.mrb[0].mxu0
    %v9142 = vadd.f32 %v7064, %v9141
    %9143 = vdwg.mxu0
    %v9144 = vadd.f32 %v9093, %v9136
    %v9145 = vadd.f32 %v9097, %v9140
    %v9146 = vxor.u32 %v9144, 2147483648
    %v9147 = vxor.u32 %v9145, 2147483648
    %v9148 = vmul.f32 %v9146, 1.442695
    %v9149 = vpow.pop %v9148
    %v9150 = vmul.f32 %v9147, 1.442695
    %v9151 = vpow.pop %v9150
    %v9152 = vadd.f32 %v9149, 1.0
    %v9153 = vadd.f32 %v9151, 1.0
    %v9154 = vrcp.pop %v9152
    %v9155 = vmul.f32 1.0, %v9154
    %v9156 = vrcp.pop %v9153
    %v9157 = vmul.f32 1.0, %v9156
    %v9158 = vmul.f32 %v9155, %v9138
    %v9159 = vmul.f32 %v9157, %v9142
    %v9160 = vadd.f32 %v9095, %v9158
    %v9161 = vadd.f32 %v9099, %v9159
    %v9162 = vtanh.pop %v9160
    %v9163 = vtanh.pop %v9161
    %v9164 = vsub.f32 1.0, %v9155
    %v9165 = vsub.f32 1.0, %v9157
    %9168 = vrot.lane.b32.xlu0 %v9162, 64
    %v9169 = vpop.permute.xlu0 %9168
    %9170 = vrot.lane.b32.xlu0 %v9163, 64
    %v9171 = vpop.permute.xlu0 %9170
    %v9174 = vmul.f32 %v9164, %v9169
    %v9175 = vmul.f32 %v9165, %v9171
    %v9176 = vmul.f32 %v9155, %v7152
    %v9177 = vmul.f32 %v9157, %v7153
    %v9178 = vadd.f32 %v9174, %v9176
    %v9179 = vadd.f32 %v9175, %v9177
    %v9180 = vpack.c.bf16 %v9179, %v9178
    %9182 = vrot.lane.b32.xlu0 %v9180, 64
    %v9183 = vpop.permute.xlu0 %9182
    %v9185 = vand.u32 %v9183, %v2889
    %9187 = vmatprep.subr.bf16.mxu0 0
    %9188 = vmatpush1.bf16.msra.mxu0 %v9185
    %9189 = vmatprep.subr.bf16.mxu0 0
    %9190 = vmatpush1.bf16.msra.mxu0 0
    %9191 = vmatprep.subr.bf16.mxu0 0
    %9192 = vmatpush1.bf16.msra.mxu0 0
    %9193 = vmatprep.subr.bf16.mxu0 0
    %9194 = vmatpush1.bf16.msra.mxu0 0
    %9195 = vmatprep.subr.bf16.mxu0 0
    %9196 = vmatpush1.bf16.msra.mxu0 0
    %9197 = vmatprep.subr.bf16.mxu0 0
    %9198 = vmatpush1.bf16.msra.mxu0 0
    %9199 = vmatprep.subr.bf16.mxu0 0
    %9200 = vmatpush1.bf16.msra.mxu0 0
    %9201 = vmatprep.subr.bf16.mxu0 0
    %9202 = vmatpush1.bf16.msra.mxu0 0
    %9203 = vmatprep.subr.bf16.mxu0 0
    %9204 = vmatpush1.bf16.msra.mxu0 0
    %9205 = vmatprep.subr.bf16.mxu0 0
    %9206 = vmatpush1.bf16.msra.mxu0 0
    %9207 = vmatprep.subr.bf16.mxu0 0
    %9208 = vmatpush1.bf16.msra.mxu0 0
    %9209 = vmatprep.subr.bf16.mxu0 0
    %9210 = vmatpush1.bf16.msra.mxu0 0
    %9211 = vmatprep.subr.bf16.mxu0 0
    %9212 = vmatpush1.bf16.msra.mxu0 0
    %9213 = vmatprep.subr.bf16.mxu0 0
    %9214 = vmatpush1.bf16.msra.mxu0 0
    %9215 = vmatprep.subr.bf16.mxu0 0
    %9216 = vmatpush1.bf16.msra.mxu0 0
    %9217 = vmatprep.subr.bf16.mxu0 0
    %9218 = vmatpush1.bf16.msra.mxu0 0
    %9219 = vmatprep.mubr.bf16.mxu0 0
    %9220 = vmatmul.mubr.bf16.gmra.mrb[0].mxu0 %v2881
    %v9221 = vpop.f32.mrb[0].mxu0
    %v9222 = vadd.f32 0.0, %v9221
    %v9223 = vpop.f32.mrb[0].mxu0
    %v9224 = vpop.f32.mrb[0].mxu0
    %v9225 = vadd.f32 0.0, %v9224
    %v9226 = vpop.f32.mrb[0].mxu0
    %9227 = vmatprep.mubr.bf16.mxu0 0
    %9228 = vmatmul.mubr.bf16.gmra.mrb[0].mxu0 %v2884
    %v9229 = vpop.f32.mrb[0].mxu0
    %v9230 = vadd.f32 0.0, %v9229
    %v9231 = vpop.f32.mrb[0].mxu0
    %v9232 = vpop.f32.mrb[0].mxu0
    %v9233 = vpop.f32.mrb[0].mxu0
    %9234 = vdwg.mxu0
    %v9235 = vpack.c.bf16 %v9225, %v9222
    %v9236 = vpack.c.bf16 %v9230, %v9230
    %v9238 = vsel %vm3583, %v9235, 0
    %v9241 = vsel %vm3583, %v9236, 0
    %9243 = vmatprep.subr.bf16.mxu0 %v3328
    %9244 = vmatpush1.bf16.msra.mxu0 %v3327
    %9245 = vmatprep.subr.bf16.mxu0 %v3360
    %9246 = vmatpush1.bf16.msra.mxu0 %v3359
    %9247 = vmatprep.subr.bf16.mxu0 %v3392
    %9248 = vmatpush1.bf16.msra.mxu0 %v3391
    %9249 = vmatprep.subr.bf16.mxu0 %v3424
    %9250 = vmatpush1.bf16.msra.mxu0 %v3423
    %9251 = vmatprep.subr.bf16.mxu0 0
    %9252 = vmatpush1.bf16.msra.mxu0 0
    %9253 = vmatprep.subr.bf16.mxu0 0
    %9254 = vmatpush1.bf16.msra.mxu0 0
    %9255 = vmatprep.subr.bf16.mxu0 0
    %9256 = vmatpush1.bf16.msra.mxu0 0
    %9257 = vmatprep.subr.bf16.mxu0 0
    %9258 = vmatpush1.bf16.msra.mxu0 0
    %9259 = vmatprep.subr.bf16.mxu0 0
    %9260 = vmatpush1.bf16.msra.mxu0 0
    %9261 = vmatprep.subr.bf16.mxu0 0
    %9262 = vmatpush1.bf16.msra.mxu0 0
    %9263 = vmatprep.subr.bf16.mxu0 0
    %9264 = vmatpush1.bf16.msra.mxu0 0
    %9265 = vmatprep.subr.bf16.mxu0 0
    %9266 = vmatpush1.bf16.msra.mxu0 0
    %9267 = vmatprep.subr.bf16.mxu0 0
    %9268 = vmatpush1.bf16.msra.mxu0 0
    %9269 = vmatprep.subr.bf16.mxu0 0
    %9270 = vmatpush1.bf16.msra.mxu0 0
    %9271 = vmatprep.subr.bf16.mxu0 0
    %9272 = vmatpush1.bf16.msra.mxu0 0
    %9273 = vmatprep.subr.bf16.mxu0 0
    %9274 = vmatpush1.bf16.msra.mxu0 0
    %9275 = vmatprep.mubr.bf16.mxu0 0
    %9276 = vmatmul.mubr.bf16.gmra.mrb[0].mxu0 %v9238
    %v9277 = vpop.f32.mrb[0].mxu0
    %v9278 = vadd.f32 0.0, %v9277
    %v9279 = vpop.f32.mrb[0].mxu0
    %v9280 = vadd.f32 0.0, %v9279
    %v9281 = vpop.f32.mrb[0].mxu0
    %v9282 = vadd.f32 0.0, %v9281
    %v9283 = vpop.f32.mrb[0].mxu0
    %v9284 = vadd.f32 0.0, %v9283
    %9285 = vmatprep.mubr.bf16.mxu0 0
    %9286 = vmatmul.mubr.bf16.gmra.mrb[0].mxu0 %v9241
    %v9287 = vpop.f32.mrb[0].mxu0
    %v9288 = vadd.f32 0.0, %v9287
    %v9289 = vpop.f32.mrb[0].mxu0
    %v9290 = vadd.f32 0.0, %v9289
    %v9291 = vpop.f32.mrb[0].mxu0
    %v9292 = vpop.f32.mrb[0].mxu0
    %9293 = vdwg.mxu0
    %9294 = vmatprep.subr.bf16.mxu0 %v3330
    %9295 = vmatpush1.bf16.msra.mxu0 %v3329
    %9296 = vmatprep.subr.bf16.mxu0 %v3362
    %9297 = vmatpush1.bf16.msra.mxu0 %v3361
    %9298 = vmatprep.subr.bf16.mxu0 %v3394
    %9299 = vmatpush1.bf16.msra.mxu0 %v3393
    %9300 = vmatprep.subr.bf16.mxu0 %v3426
    %9301 = vmatpush1.bf16.msra.mxu0 %v3425
    %9302 = vmatprep.subr.bf16.mxu0 0
    %9303 = vmatpush1.bf16.msra.mxu0 0
    %9304 = vmatprep.subr.bf16.mxu0 0
    %9305 = vmatpush1.bf16.msra.mxu0 0
    %9306 = vmatprep.subr.bf16.mxu0 0
    %9307 = vmatpush1.bf16.msra.mxu0 0
    %9308 = vmatprep.subr.bf16.mxu0 0
    %9309 = vmatpush1.bf16.msra.mxu0 0
    %9310 = vmatprep.subr.bf16.mxu0 0
    %9311 = vmatpush1.bf16.msra.mxu0 0
    %9312 = vmatprep.subr.bf16.mxu0 0
    %9313 = vmatpush1.bf16.msra.mxu0 0
    %9314 = vmatprep.subr.bf16.mxu0 0
    %9315 = vmatpush1.bf16.msra.mxu0 0
    %9316 = vmatprep.subr.bf16.mxu0 0
    %9317 = vmatpush1.bf16.msra.mxu0 0
    %9318 = vmatprep.subr.bf16.mxu0 0
    %9319 = vmatpush1.bf16.msra.mxu0 0
    %9320 = vmatprep.subr.bf16.mxu0 0
    %9321 = vmatpush1.bf16.msra.mxu0 0
    %9322 = vmatprep.subr.bf16.mxu0 0
    %9323 = vmatpush1.bf16.msra.mxu0 0
    %9324 = vmatprep.subr.bf16.mxu0 0
    %9325 = vmatpush1.bf16.msra.mxu0 0
    %9326 = vmatprep.mubr.bf16.mxu0 0
    %9327 = vmatmul.mubr.bf16.gmra.mrb[0].mxu0 %v9238
    %v9328 = vpop.f32.mrb[0].mxu0
    %v9329 = vadd.f32 0.0, %v9328
    %v9330 = vpop.f32.mrb[0].mxu0
    %v9331 = vadd.f32 0.0, %v9330
    %v9332 = vpop.f32.mrb[0].mxu0
    %v9333 = vadd.f32 0.0, %v9332
    %v9334 = vpop.f32.mrb[0].mxu0
    %v9335 = vadd.f32 0.0, %v9334
    %9336 = vmatprep.mubr.bf16.mxu0 0
    %9337 = vmatmul.mubr.bf16.gmra.mrb[0].mxu0 %v9241
    %v9338 = vpop.f32.mrb[0].mxu0
    %v9339 = vadd.f32 0.0, %v9338
    %v9340 = vpop.f32.mrb[0].mxu0
    %v9341 = vadd.f32 0.0, %v9340
    %v9342 = vpop.f32.mrb[0].mxu0
    %v9343 = vpop.f32.mrb[0].mxu0
    %9344 = vdwg.mxu0
    %9345 = vmatprep.subr.bf16.mxu0 %v3332
    %9346 = vmatpush1.bf16.msra.mxu0 %v3331
    %9347 = vmatprep.subr.bf16.mxu0 %v3364
    %9348 = vmatpush1.bf16.msra.mxu0 %v3363
    %9349 = vmatprep.subr.bf16.mxu0 %v3396
    %9350 = vmatpush1.bf16.msra.mxu0 %v3395
    %9351 = vmatprep.subr.bf16.mxu0 %v3428
    %9352 = vmatpush1.bf16.msra.mxu0 %v3427
    %9353 = vmatprep.subr.bf16.mxu0 0
    %9354 = vmatpush1.bf16.msra.mxu0 0
    %9355 = vmatprep.subr.bf16.mxu0 0
    %9356 = vmatpush1.bf16.msra.mxu0 0
    %9357 = vmatprep.subr.bf16.mxu0 0
    %9358 = vmatpush1.bf16.msra.mxu0 0
    %9359 = vmatprep.subr.bf16.mxu0 0
    %9360 = vmatpush1.bf16.msra.mxu0 0
    %9361 = vmatprep.subr.bf16.mxu0 0
    %9362 = vmatpush1.bf16.msra.mxu0 0
    %9363 = vmatprep.subr.bf16.mxu0 0
    %9364 = vmatpush1.bf16.msra.mxu0 0
    %9365 = vmatprep.subr.bf16.mxu0 0
    %9366 = vmatpush1.bf16.msra.mxu0 0
    %9367 = vmatprep.subr.bf16.mxu0 0
    %9368 = vmatpush1.bf16.msra.mxu0 0
    %9369 = vmatprep.subr.bf16.mxu0 0
    %9370 = vmatpush1.bf16.msra.mxu0 0
    %9371 = vmatprep.subr.bf16.mxu0 0
    %9372 = vmatpush1.bf16.msra.mxu0 0
    %9373 = vmatprep.subr.bf16.mxu0 0
    %9374 = vmatpush1.bf16.msra.mxu0 0
    %9375 = vmatprep.subr.bf16.mxu0 0
    %9376 = vmatpush1.bf16.msra.mxu0 0
    %9377 = vmatprep.mubr.bf16.mxu0 0
    %9378 = vmatmul.mubr.bf16.gmra.mrb[0].mxu0 %v9238
    %v9379 = vpop.f32.mrb[0].mxu0
    %v9380 = vadd.f32 0.0, %v9379
    %v9381 = vpop.f32.mrb[0].mxu0
    %v9382 = vadd.f32 0.0, %v9381
    %v9383 = vpop.f32.mrb[0].mxu0
    %v9384 = vadd.f32 0.0, %v9383
    %v9385 = vpop.f32.mrb[0].mxu0
    %v9386 = vadd.f32 0.0, %v9385
    %9387 = vmatprep.mubr.bf16.mxu0 0
    %9388 = vmatmul.mubr.bf16.gmra.mrb[0].mxu0 %v9241
    %v9389 = vpop.f32.mrb[0].mxu0
    %v9390 = vadd.f32 0.0, %v9389
    %v9391 = vpop.f32.mrb[0].mxu0
    %v9392 = vadd.f32 0.0, %v9391
    %v9393 = vpop.f32.mrb[0].mxu0
    %v9394 = vpop.f32.mrb[0].mxu0
    %9395 = vdwg.mxu0
    %9396 = vmatprep.subr.bf16.mxu0 %v3334
    %9397 = vmatpush1.bf16.msra.mxu0 %v3333
    %9398 = vmatprep.subr.bf16.mxu0 %v3366
    %9399 = vmatpush1.bf16.msra.mxu0 %v3365
    %9400 = vmatprep.subr.bf16.mxu0 %v3398
    %9401 = vmatpush1.bf16.msra.mxu0 %v3397
    %9402 = vmatprep.subr.bf16.mxu0 %v3430
    %9403 = vmatpush1.bf16.msra.mxu0 %v3429
    %9404 = vmatprep.subr.bf16.mxu0 0
    %9405 = vmatpush1.bf16.msra.mxu0 0
    %9406 = vmatprep.subr.bf16.mxu0 0
    %9407 = vmatpush1.bf16.msra.mxu0 0
    %9408 = vmatprep.subr.bf16.mxu0 0
    %9409 = vmatpush1.bf16.msra.mxu0 0
    %9410 = vmatprep.subr.bf16.mxu0 0
    %9411 = vmatpush1.bf16.msra.mxu0 0
    %9412 = vmatprep.subr.bf16.mxu0 0
    %9413 = vmatpush1.bf16.msra.mxu0 0
    %9414 = vmatprep.subr.bf16.mxu0 0
    %9415 = vmatpush1.bf16.msra.mxu0 0
    %9416 = vmatprep.subr.bf16.mxu0 0
    %9417 = vmatpush1.bf16.msra.mxu0 0
    %9418 = vmatprep.subr.bf16.mxu0 0
    %9419 = vmatpush1.bf16.msra.mxu0 0
    %9420 = vmatprep.subr.bf16.mxu0 0
    %9421 = vmatpush1.bf16.msra.mxu0 0
    %9422 = vmatprep.subr.bf16.mxu0 0
    %9423 = vmatpush1.bf16.msra.mxu0 0
    %9424 = vmatprep.subr.bf16.mxu0 0
    %9425 = vmatpush1.bf16.msra.mxu0 0
    %9426 = vmatprep.subr.bf16.mxu0 0
    %9427 = vmatpush1.bf16.msra.mxu0 0
    %9428 = vmatprep.mubr.bf16.mxu0 0
    %9429 = vmatmul.mubr.bf16.gmra.mrb[0].mxu0 %v9238
    %v9430 = vpop.f32.mrb[0].mxu0
    %v9431 = vadd.f32 0.0, %v9430
    %v9432 = vpop.f32.mrb[0].mxu0
    %v9433 = vadd.f32 0.0, %v9432
    %v9434 = vpop.f32.mrb[0].mxu0
    %v9435 = vadd.f32 0.0, %v9434
    %v9436 = vpop.f32.mrb[0].mxu0
    %v9437 = vadd.f32 0.0, %v9436
    %9438 = vmatprep.mubr.bf16.mxu0 0
    %9439 = vmatmul.mubr.bf16.gmra.mrb[0].mxu0 %v9241
    %v9440 = vpop.f32.mrb[0].mxu0
    %v9441 = vadd.f32 0.0, %v9440
    %v9442 = vpop.f32.mrb[0].mxu0
    %v9443 = vadd.f32 0.0, %v9442
    %v9444 = vpop.f32.mrb[0].mxu0
    %v9445 = vpop.f32.mrb[0].mxu0
    %9446 = vdwg.mxu0
    %9447 = vmatprep.subr.bf16.mxu0 %v3336
    %9448 = vmatpush1.bf16.msra.mxu0 %v3335
    %9449 = vmatprep.subr.bf16.mxu0 %v3368
    %9450 = vmatpush1.bf16.msra.mxu0 %v3367
    %9451 = vmatprep.subr.bf16.mxu0 %v3400
    %9452 = vmatpush1.bf16.msra.mxu0 %v3399
    %9453 = vmatprep.subr.bf16.mxu0 %v3432
    %9454 = vmatpush1.bf16.msra.mxu0 %v3431
    %9455 = vmatprep.subr.bf16.mxu0 0
    %9456 = vmatpush1.bf16.msra.mxu0 0
    %9457 = vmatprep.subr.bf16.mxu0 0
    %9458 = vmatpush1.bf16.msra.mxu0 0
    %9459 = vmatprep.subr.bf16.mxu0 0
    %9460 = vmatpush1.bf16.msra.mxu0 0
    %9461 = vmatprep.subr.bf16.mxu0 0
    %9462 = vmatpush1.bf16.msra.mxu0 0
    %9463 = vmatprep.subr.bf16.mxu0 0
    %9464 = vmatpush1.bf16.msra.mxu0 0
    %9465 = vmatprep.subr.bf16.mxu0 0
    %9466 = vmatpush1.bf16.msra.mxu0 0
    %9467 = vmatprep.subr.bf16.mxu0 0
    %9468 = vmatpush1.bf16.msra.mxu0 0
    %9469 = vmatprep.subr.bf16.mxu0 0
    %9470 = vmatpush1.bf16.msra.mxu0 0
    %9471 = vmatprep.subr.bf16.mxu0 0
    %9472 = vmatpush1.bf16.msra.mxu0 0
    %9473 = vmatprep.subr.bf16.mxu0 0
    %9474 = vmatpush1.bf16.msra.mxu0 0
    %9475 = vmatprep.subr.bf16.mxu0 0
    %9476 = vmatpush1.bf16.msra.mxu0 0
    %9477 = vmatprep.subr.bf16.mxu0 0
    %9478 = vmatpush1.bf16.msra.mxu0 0
    %9479 = vmatprep.mubr.bf16.mxu0 0
    %9480 = vmatmul.mubr.bf16.gmra.mrb[0].mxu0 %v9238
    %v9481 = vpop.f32.mrb[0].mxu0
    %v9482 = vadd.f32 0.0, %v9481
    %v9483 = vpop.f32.mrb[0].mxu0
    %v9484 = vadd.f32 0.0, %v9483
    %v9485 = vpop.f32.mrb[0].mxu0
    %v9486 = vadd.f32 0.0, %v9485
    %v9487 = vpop.f32.mrb[0].mxu0
    %v9488 = vadd.f32 0.0, %v9487
    %9489 = vmatprep.mubr.bf16.mxu0 0
    %9490 = vmatmul.mubr.bf16.gmra.mrb[0].mxu0 %v9241
    %v9491 = vpop.f32.mrb[0].mxu0
    %v9492 = vadd.f32 0.0, %v9491
    %v9493 = vpop.f32.mrb[0].mxu0
    %v9494 = vadd.f32 0.0, %v9493
    %v9495 = vpop.f32.mrb[0].mxu0
    %v9496 = vpop.f32.mrb[0].mxu0
    %9497 = vdwg.mxu0
    %9498 = vmatprep.subr.bf16.mxu0 %v3338
    %9499 = vmatpush1.bf16.msra.mxu0 %v3337
    %9500 = vmatprep.subr.bf16.mxu0 %v3370
    %9501 = vmatpush1.bf16.msra.mxu0 %v3369
    %9502 = vmatprep.subr.bf16.mxu0 %v3402
    %9503 = vmatpush1.bf16.msra.mxu0 %v3401
    %9504 = vmatprep.subr.bf16.mxu0 %v3434
    %9505 = vmatpush1.bf16.msra.mxu0 %v3433
    %9506 = vmatprep.subr.bf16.mxu0 0
    %9507 = vmatpush1.bf16.msra.mxu0 0
    %9508 = vmatprep.subr.bf16.mxu0 0
    %9509 = vmatpush1.bf16.msra.mxu0 0
    %9510 = vmatprep.subr.bf16.mxu0 0
    %9511 = vmatpush1.bf16.msra.mxu0 0
    %9512 = vmatprep.subr.bf16.mxu0 0
    %9513 = vmatpush1.bf16.msra.mxu0 0
    %9514 = vmatprep.subr.bf16.mxu0 0
    %9515 = vmatpush1.bf16.msra.mxu0 0
    %9516 = vmatprep.subr.bf16.mxu0 0
    %9517 = vmatpush1.bf16.msra.mxu0 0
    %9518 = vmatprep.subr.bf16.mxu0 0
    %9519 = vmatpush1.bf16.msra.mxu0 0
    %9520 = vmatprep.subr.bf16.mxu0 0
    %9521 = vmatpush1.bf16.msra.mxu0 0
    %9522 = vmatprep.subr.bf16.mxu0 0
    %9523 = vmatpush1.bf16.msra.mxu0 0
    %9524 = vmatprep.subr.bf16.mxu0 0
    %9525 = vmatpush1.bf16.msra.mxu0 0
    %9526 = vmatprep.subr.bf16.mxu0 0
    %9527 = vmatpush1.bf16.msra.mxu0 0
    %9528 = vmatprep.subr.bf16.mxu0 0
    %9529 = vmatpush1.bf16.msra.mxu0 0
    %9530 = vmatprep.mubr.bf16.mxu0 0
    %9531 = vmatmul.mubr.bf16.gmra.mrb[0].mxu0 %v9238
    %v9532 = vpop.f32.mrb[0].mxu0
    %v9533 = vadd.f32 0.0, %v9532
    %v9534 = vpop.f32.mrb[0].mxu0
    %v9535 = vadd.f32 0.0, %v9534
    %v9536 = vpop.f32.mrb[0].mxu0
    %v9537 = vadd.f32 0.0, %v9536
    %v9538 = vpop.f32.mrb[0].mxu0
    %v9539 = vadd.f32 0.0, %v9538
    %9540 = vmatprep.mubr.bf16.mxu0 0
    %9541 = vmatmul.mubr.bf16.gmra.mrb[0].mxu0 %v9241
    %v9542 = vpop.f32.mrb[0].mxu0
    %v9543 = vadd.f32 0.0, %v9542
    %v9544 = vpop.f32.mrb[0].mxu0
    %v9545 = vadd.f32 0.0, %v9544
    %v9546 = vpop.f32.mrb[0].mxu0
    %v9547 = vpop.f32.mrb[0].mxu0
    %9548 = vdwg.mxu0
    %9549 = vmatprep.subr.bf16.mxu0 %v3340
    %9550 = vmatpush1.bf16.msra.mxu0 %v3339
    %9551 = vmatprep.subr.bf16.mxu0 %v3372
    %9552 = vmatpush1.bf16.msra.mxu0 %v3371
    %9553 = vmatprep.subr.bf16.mxu0 %v3404
    %9554 = vmatpush1.bf16.msra.mxu0 %v3403
    %9555 = vmatprep.subr.bf16.mxu0 %v3436
    %9556 = vmatpush1.bf16.msra.mxu0 %v3435
    %9557 = vmatprep.subr.bf16.mxu0 0
    %9558 = vmatpush1.bf16.msra.mxu0 0
    %9559 = vmatprep.subr.bf16.mxu0 0
    %9560 = vmatpush1.bf16.msra.mxu0 0
    %9561 = vmatprep.subr.bf16.mxu0 0
    %9562 = vmatpush1.bf16.msra.mxu0 0
    %9563 = vmatprep.subr.bf16.mxu0 0
    %9564 = vmatpush1.bf16.msra.mxu0 0
    %9565 = vmatprep.subr.bf16.mxu0 0
    %9566 = vmatpush1.bf16.msra.mxu0 0
    %9567 = vmatprep.subr.bf16.mxu0 0
    %9568 = vmatpush1.bf16.msra.mxu0 0
    %9569 = vmatprep.subr.bf16.mxu0 0
    %9570 = vmatpush1.bf16.msra.mxu0 0
    %9571 = vmatprep.subr.bf16.mxu0 0
    %9572 = vmatpush1.bf16.msra.mxu0 0
    %9573 = vmatprep.subr.bf16.mxu0 0
    %9574 = vmatpush1.bf16.msra.mxu0 0
    %9575 = vmatprep.subr.bf16.mxu0 0
    %9576 = vmatpush1.bf16.msra.mxu0 0
    %9577 = vmatprep.subr.bf16.mxu0 0
    %9578 = vmatpush1.bf16.msra.mxu0 0
    %9579 = vmatprep.subr.bf16.mxu0 0
    %9580 = vmatpush1.bf16.msra.mxu0 0
    %9581 = vmatprep.mubr.bf16.mxu0 0
    %9582 = vmatmul.mubr.bf16.gmra.mrb[0].mxu0 %v9238
    %v9583 = vpop.f32.mrb[0].mxu0
    %v9584 = vadd.f32 0.0, %v9583
    %v9585 = vpop.f32.mrb[0].mxu0
    %v9586 = vadd.f32 0.0, %v9585
    %v9587 = vpop.f32.mrb[0].mxu0
    %v9588 = vadd.f32 0.0, %v9587
    %v9589 = vpop.f32.mrb[0].mxu0
    %v9590 = vadd.f32 0.0, %v9589
    %9591 = vmatprep.mubr.bf16.mxu0 0
    %9592 = vmatmul.mubr.bf16.gmra.mrb[0].mxu0 %v9241
    %v9593 = vpop.f32.mrb[0].mxu0
    %v9594 = vadd.f32 0.0, %v9593
    %v9595 = vpop.f32.mrb[0].mxu0
    %v9596 = vadd.f32 0.0, %v9595
    %v9597 = vpop.f32.mrb[0].mxu0
    %v9598 = vpop.f32.mrb[0].mxu0
    %9599 = vdwg.mxu0
    %9600 = vmatprep.subr.bf16.mxu0 %v3342
    %9601 = vmatpush1.bf16.msra.mxu0 %v3341
    %9602 = vmatprep.subr.bf16.mxu0 %v3374
    %9603 = vmatpush1.bf16.msra.mxu0 %v3373
    %9604 = vmatprep.subr.bf16.mxu0 %v3406
    %9605 = vmatpush1.bf16.msra.mxu0 %v3405
    %9606 = vmatprep.subr.bf16.mxu0 %v3438
    %9607 = vmatpush1.bf16.msra.mxu0 %v3437
    %9608 = vmatprep.subr.bf16.mxu0 0
    %9609 = vmatpush1.bf16.msra.mxu0 0
    %9610 = vmatprep.subr.bf16.mxu0 0
    %9611 = vmatpush1.bf16.msra.mxu0 0
    %9612 = vmatprep.subr.bf16.mxu0 0
    %9613 = vmatpush1.bf16.msra.mxu0 0
    %9614 = vmatprep.subr.bf16.mxu0 0
    %9615 = vmatpush1.bf16.msra.mxu0 0
    %9616 = vmatprep.subr.bf16.mxu0 0
    %9617 = vmatpush1.bf16.msra.mxu0 0
    %9618 = vmatprep.subr.bf16.mxu0 0
    %9619 = vmatpush1.bf16.msra.mxu0 0
    %9620 = vmatprep.subr.bf16.mxu0 0
    %9621 = vmatpush1.bf16.msra.mxu0 0
    %9622 = vmatprep.subr.bf16.mxu0 0
    %9623 = vmatpush1.bf16.msra.mxu0 0
    %9624 = vmatprep.subr.bf16.mxu0 0
    %9625 = vmatpush1.bf16.msra.mxu0 0
    %9626 = vmatprep.subr.bf16.mxu0 0
    %9627 = vmatpush1.bf16.msra.mxu0 0
    %9628 = vmatprep.subr.bf16.mxu0 0
    %9629 = vmatpush1.bf16.msra.mxu0 0
    %9630 = vmatprep.subr.bf16.mxu0 0
    %9631 = vmatpush1.bf16.msra.mxu0 0
    %9632 = vmatprep.mubr.bf16.mxu0 0
    %9633 = vmatmul.mubr.bf16.gmra.mrb[0].mxu0 %v9238
    %v9634 = vpop.f32.mrb[0].mxu0
    %v9635 = vadd.f32 0.0, %v9634
    %v9636 = vpop.f32.mrb[0].mxu0
    %v9637 = vadd.f32 0.0, %v9636
    %v9638 = vpop.f32.mrb[0].mxu0
    %v9639 = vadd.f32 0.0, %v9638
    %v9640 = vpop.f32.mrb[0].mxu0
    %v9641 = vadd.f32 0.0, %v9640
    %9642 = vmatprep.mubr.bf16.mxu0 0
    %9643 = vmatmul.mubr.bf16.gmra.mrb[0].mxu0 %v9241
    %v9644 = vpop.f32.mrb[0].mxu0
    %v9645 = vadd.f32 0.0, %v9644
    %v9646 = vpop.f32.mrb[0].mxu0
    %v9647 = vadd.f32 0.0, %v9646
    %v9648 = vpop.f32.mrb[0].mxu0
    %v9649 = vpop.f32.mrb[0].mxu0
    %9650 = vdwg.mxu0
    %9651 = vmatprep.subr.bf16.mxu0 %v3344
    %9652 = vmatpush1.bf16.msra.mxu0 %v3343
    %9653 = vmatprep.subr.bf16.mxu0 %v3376
    %9654 = vmatpush1.bf16.msra.mxu0 %v3375
    %9655 = vmatprep.subr.bf16.mxu0 %v3408
    %9656 = vmatpush1.bf16.msra.mxu0 %v3407
    %9657 = vmatprep.subr.bf16.mxu0 %v3440
    %9658 = vmatpush1.bf16.msra.mxu0 %v3439
    %9659 = vmatprep.subr.bf16.mxu0 0
    %9660 = vmatpush1.bf16.msra.mxu0 0
    %9661 = vmatprep.subr.bf16.mxu0 0
    %9662 = vmatpush1.bf16.msra.mxu0 0
    %9663 = vmatprep.subr.bf16.mxu0 0
    %9664 = vmatpush1.bf16.msra.mxu0 0
    %9665 = vmatprep.subr.bf16.mxu0 0
    %9666 = vmatpush1.bf16.msra.mxu0 0
    %9667 = vmatprep.subr.bf16.mxu0 0
    %9668 = vmatpush1.bf16.msra.mxu0 0
    %9669 = vmatprep.subr.bf16.mxu0 0
    %9670 = vmatpush1.bf16.msra.mxu0 0
    %9671 = vmatprep.subr.bf16.mxu0 0
    %9672 = vmatpush1.bf16.msra.mxu0 0
    %9673 = vmatprep.subr.bf16.mxu0 0
    %9674 = vmatpush1.bf16.msra.mxu0 0
    %9675 = vmatprep.subr.bf16.mxu0 0
    %9676 = vmatpush1.bf16.msra.mxu0 0
    %9677 = vmatprep.subr.bf16.mxu0 0
    %9678 = vmatpush1.bf16.msra.mxu0 0
    %9679 = vmatprep.subr.bf16.mxu0 0
    %9680 = vmatpush1.bf16.msra.mxu0 0
    %9681 = vmatprep.subr.bf16.mxu0 0
    %9682 = vmatpush1.bf16.msra.mxu0 0
    %9683 = vmatprep.mubr.bf16.mxu0 0
    %9684 = vmatmul.mubr.bf16.gmra.mrb[0].mxu0 %v9238
    %v9685 = vpop.f32.mrb[0].mxu0
    %v9686 = vadd.f32 0.0, %v9685
    %v9687 = vpop.f32.mrb[0].mxu0
    %v9688 = vadd.f32 0.0, %v9687
    %v9689 = vpop.f32.mrb[0].mxu0
    %v9690 = vadd.f32 0.0, %v9689
    %v9691 = vpop.f32.mrb[0].mxu0
    %v9692 = vadd.f32 0.0, %v9691
    %9693 = vmatprep.mubr.bf16.mxu0 0
    %9694 = vmatmul.mubr.bf16.gmra.mrb[0].mxu0 %v9241
    %v9695 = vpop.f32.mrb[0].mxu0
    %v9696 = vadd.f32 0.0, %v9695
    %v9697 = vpop.f32.mrb[0].mxu0
    %v9698 = vadd.f32 0.0, %v9697
    %v9699 = vpop.f32.mrb[0].mxu0
    %v9700 = vpop.f32.mrb[0].mxu0
    %9701 = vdwg.mxu0
    %9702 = vmatprep.subr.bf16.mxu0 %v3346
    %9703 = vmatpush1.bf16.msra.mxu0 %v3345
    %9704 = vmatprep.subr.bf16.mxu0 %v3378
    %9705 = vmatpush1.bf16.msra.mxu0 %v3377
    %9706 = vmatprep.subr.bf16.mxu0 %v3410
    %9707 = vmatpush1.bf16.msra.mxu0 %v3409
    %9708 = vmatprep.subr.bf16.mxu0 %v3442
    %9709 = vmatpush1.bf16.msra.mxu0 %v3441
    %9710 = vmatprep.subr.bf16.mxu0 0
    %9711 = vmatpush1.bf16.msra.mxu0 0
    %9712 = vmatprep.subr.bf16.mxu0 0
    %9713 = vmatpush1.bf16.msra.mxu0 0
    %9714 = vmatprep.subr.bf16.mxu0 0
    %9715 = vmatpush1.bf16.msra.mxu0 0
    %9716 = vmatprep.subr.bf16.mxu0 0
    %9717 = vmatpush1.bf16.msra.mxu0 0
    %9718 = vmatprep.subr.bf16.mxu0 0
    %9719 = vmatpush1.bf16.msra.mxu0 0
    %9720 = vmatprep.subr.bf16.mxu0 0
    %9721 = vmatpush1.bf16.msra.mxu0 0
    %9722 = vmatprep.subr.bf16.mxu0 0
    %9723 = vmatpush1.bf16.msra.mxu0 0
    %9724 = vmatprep.subr.bf16.mxu0 0
    %9725 = vmatpush1.bf16.msra.mxu0 0
    %9726 = vmatprep.subr.bf16.mxu0 0
    %9727 = vmatpush1.bf16.msra.mxu0 0
    %9728 = vmatprep.subr.bf16.mxu0 0
    %9729 = vmatpush1.bf16.msra.mxu0 0
    %9730 = vmatprep.subr.bf16.mxu0 0
    %9731 = vmatpush1.bf16.msra.mxu0 0
    %9732 = vmatprep.subr.bf16.mxu0 0
    %9733 = vmatpush1.bf16.msra.mxu0 0
    %9734 = vmatprep.mubr.bf16.mxu0 0
    %9735 = vmatmul.mubr.bf16.gmra.mrb[0].mxu0 %v9238
    %v9736 = vpop.f32.mrb[0].mxu0
    %v9737 = vadd.f32 0.0, %v9736
    %v9738 = vpop.f32.mrb[0].mxu0
    %v9739 = vadd.f32 0.0, %v9738
    %v9740 = vpop.f32.mrb[0].mxu0
    %v9741 = vadd.f32 0.0, %v9740
    %v9742 = vpop.f32.mrb[0].mxu0
    %v9743 = vadd.f32 0.0, %v9742
    %9744 = vmatprep.mubr.bf16.mxu0 0
    %9745 = vmatmul.mubr.bf16.gmra.mrb[0].mxu0 %v9241
    %v9746 = vpop.f32.mrb[0].mxu0
    %v9747 = vadd.f32 0.0, %v9746
    %v9748 = vpop.f32.mrb[0].mxu0
    %v9749 = vadd.f32 0.0, %v9748
    %v9750 = vpop.f32.mrb[0].mxu0
    %v9751 = vpop.f32.mrb[0].mxu0
    %9752 = vdwg.mxu0
    %9753 = vmatprep.subr.bf16.mxu0 %v3348
    %9754 = vmatpush1.bf16.msra.mxu0 %v3347
    %9755 = vmatprep.subr.bf16.mxu0 %v3380
    %9756 = vmatpush1.bf16.msra.mxu0 %v3379
    %9757 = vmatprep.subr.bf16.mxu0 %v3412
    %9758 = vmatpush1.bf16.msra.mxu0 %v3411
    %9759 = vmatprep.subr.bf16.mxu0 %v3444
    %9760 = vmatpush1.bf16.msra.mxu0 %v3443
    %9761 = vmatprep.subr.bf16.mxu0 0
    %9762 = vmatpush1.bf16.msra.mxu0 0
    %9763 = vmatprep.subr.bf16.mxu0 0
    %9764 = vmatpush1.bf16.msra.mxu0 0
    %9765 = vmatprep.subr.bf16.mxu0 0
    %9766 = vmatpush1.bf16.msra.mxu0 0
    %9767 = vmatprep.subr.bf16.mxu0 0
    %9768 = vmatpush1.bf16.msra.mxu0 0
    %9769 = vmatprep.subr.bf16.mxu0 0
    %9770 = vmatpush1.bf16.msra.mxu0 0
    %9771 = vmatprep.subr.bf16.mxu0 0
    %9772 = vmatpush1.bf16.msra.mxu0 0
    %9773 = vmatprep.subr.bf16.mxu0 0
    %9774 = vmatpush1.bf16.msra.mxu0 0
    %9775 = vmatprep.subr.bf16.mxu0 0
    %9776 = vmatpush1.bf16.msra.mxu0 0
    %9777 = vmatprep.subr.bf16.mxu0 0
    %9778 = vmatpush1.bf16.msra.mxu0 0
    %9779 = vmatprep.subr.bf16.mxu0 0
    %9780 = vmatpush1.bf16.msra.mxu0 0
    %9781 = vmatprep.subr.bf16.mxu0 0
    %9782 = vmatpush1.bf16.msra.mxu0 0
    %9783 = vmatprep.subr.bf16.mxu0 0
    %9784 = vmatpush1.bf16.msra.mxu0 0
    %9785 = vmatprep.mubr.bf16.mxu0 0
    %9786 = vmatmul.mubr.bf16.gmra.mrb[0].mxu0 %v9238
    %v9787 = vpop.f32.mrb[0].mxu0
    %v9788 = vadd.f32 0.0, %v9787
    %v9789 = vpop.f32.mrb[0].mxu0
    %v9790 = vadd.f32 0.0, %v9789
    %v9791 = vpop.f32.mrb[0].mxu0
    %v9792 = vadd.f32 0.0, %v9791
    %v9793 = vpop.f32.mrb[0].mxu0
    %v9794 = vadd.f32 0.0, %v9793
    %9795 = vmatprep.mubr.bf16.mxu0 0
    %9796 = vmatmul.mubr.bf16.gmra.mrb[0].mxu0 %v9241
    %v9797 = vpop.f32.mrb[0].mxu0
    %v9798 = vadd.f32 0.0, %v9797
    %v9799 = vpop.f32.mrb[0].mxu0
    %v9800 = vadd.f32 0.0, %v9799
    %v9801 = vpop.f32.mrb[0].mxu0
    %v9802 = vpop.f32.mrb[0].mxu0
    %9803 = vdwg.mxu0
    %9804 = vmatprep.subr.bf16.mxu0 %v3350
    %9805 = vmatpush1.bf16.msra.mxu0 %v3349
    %9806 = vmatprep.subr.bf16.mxu0 %v3382
    %9807 = vmatpush1.bf16.msra.mxu0 %v3381
    %9808 = vmatprep.subr.bf16.mxu0 %v3414
    %9809 = vmatpush1.bf16.msra.mxu0 %v3413
    %9810 = vmatprep.subr.bf16.mxu0 %v3446
    %9811 = vmatpush1.bf16.msra.mxu0 %v3445
    %9812 = vmatprep.subr.bf16.mxu0 0
    %9813 = vmatpush1.bf16.msra.mxu0 0
    %9814 = vmatprep.subr.bf16.mxu0 0
    %9815 = vmatpush1.bf16.msra.mxu0 0
    %9816 = vmatprep.subr.bf16.mxu0 0
    %9817 = vmatpush1.bf16.msra.mxu0 0
    %9818 = vmatprep.subr.bf16.mxu0 0
    %9819 = vmatpush1.bf16.msra.mxu0 0
    %9820 = vmatprep.subr.bf16.mxu0 0
    %9821 = vmatpush1.bf16.msra.mxu0 0
    %9822 = vmatprep.subr.bf16.mxu0 0
    %9823 = vmatpush1.bf16.msra.mxu0 0
    %9824 = vmatprep.subr.bf16.mxu0 0
    %9825 = vmatpush1.bf16.msra.mxu0 0
    %9826 = vmatprep.subr.bf16.mxu0 0
    %9827 = vmatpush1.bf16.msra.mxu0 0
    %9828 = vmatprep.subr.bf16.mxu0 0
    %9829 = vmatpush1.bf16.msra.mxu0 0
    %9830 = vmatprep.subr.bf16.mxu0 0
    %9831 = vmatpush1.bf16.msra.mxu0 0
    %9832 = vmatprep.subr.bf16.mxu0 0
    %9833 = vmatpush1.bf16.msra.mxu0 0
    %9834 = vmatprep.subr.bf16.mxu0 0
    %9835 = vmatpush1.bf16.msra.mxu0 0
    %9836 = vmatprep.mubr.bf16.mxu0 0
    %9837 = vmatmul.mubr.bf16.gmra.mrb[0].mxu0 %v9238
    %v9838 = vpop.f32.mrb[0].mxu0
    %v9839 = vadd.f32 0.0, %v9838
    %v9840 = vpop.f32.mrb[0].mxu0
    %v9841 = vadd.f32 0.0, %v9840
    %v9842 = vpop.f32.mrb[0].mxu0
    %v9843 = vadd.f32 0.0, %v9842
    %v9844 = vpop.f32.mrb[0].mxu0
    %v9845 = vadd.f32 0.0, %v9844
    %9846 = vmatprep.mubr.bf16.mxu0 0
    %9847 = vmatmul.mubr.bf16.gmra.mrb[0].mxu0 %v9241
    %v9848 = vpop.f32.mrb[0].mxu0
    %v9849 = vadd.f32 0.0, %v9848
    %v9850 = vpop.f32.mrb[0].mxu0
    %v9851 = vadd.f32 0.0, %v9850
    %v9852 = vpop.f32.mrb[0].mxu0
    %v9853 = vpop.f32.mrb[0].mxu0
    %9854 = vdwg.mxu0
    %9855 = vmatprep.subr.bf16.mxu0 %v3352
    %9856 = vmatpush1.bf16.msra.mxu0 %v3351
    %9857 = vmatprep.subr.bf16.mxu0 %v3384
    %9858 = vmatpush1.bf16.msra.mxu0 %v3383
    %9859 = vmatprep.subr.bf16.mxu0 %v3416
    %9860 = vmatpush1.bf16.msra.mxu0 %v3415
    %9861 = vmatprep.subr.bf16.mxu0 %v3448
    %9862 = vmatpush1.bf16.msra.mxu0 %v3447
    %9863 = vmatprep.subr.bf16.mxu0 0
    %9864 = vmatpush1.bf16.msra.mxu0 0
    %9865 = vmatprep.subr.bf16.mxu0 0
    %9866 = vmatpush1.bf16.msra.mxu0 0
    %9867 = vmatprep.subr.bf16.mxu0 0
    %9868 = vmatpush1.bf16.msra.mxu0 0
    %9869 = vmatprep.subr.bf16.mxu0 0
    %9870 = vmatpush1.bf16.msra.mxu0 0
    %9871 = vmatprep.subr.bf16.mxu0 0
    %9872 = vmatpush1.bf16.msra.mxu0 0
    %9873 = vmatprep.subr.bf16.mxu0 0
    %9874 = vmatpush1.bf16.msra.mxu0 0
    %9875 = vmatprep.subr.bf16.mxu0 0
    %9876 = vmatpush1.bf16.msra.mxu0 0
    %9877 = vmatprep.subr.bf16.mxu0 0
    %9878 = vmatpush1.bf16.msra.mxu0 0
    %9879 = vmatprep.subr.bf16.mxu0 0
    %9880 = vmatpush1.bf16.msra.mxu0 0
    %9881 = vmatprep.subr.bf16.mxu0 0
    %9882 = vmatpush1.bf16.msra.mxu0 0
    %9883 = vmatprep.subr.bf16.mxu0 0
    %9884 = vmatpush1.bf16.msra.mxu0 0
    %9885 = vmatprep.subr.bf16.mxu0 0
    %9886 = vmatpush1.bf16.msra.mxu0 0
    %9887 = vmatprep.mubr.bf16.mxu0 0
    %9888 = vmatmul.mubr.bf16.gmra.mrb[0].mxu0 %v9238
    %v9889 = vpop.f32.mrb[0].mxu0
    %v9890 = vadd.f32 0.0, %v9889
    %v9891 = vpop.f32.mrb[0].mxu0
    %v9892 = vadd.f32 0.0, %v9891
    %v9893 = vpop.f32.mrb[0].mxu0
    %v9894 = vadd.f32 0.0, %v9893
    %v9895 = vpop.f32.mrb[0].mxu0
    %v9896 = vadd.f32 0.0, %v9895
    %9897 = vmatprep.mubr.bf16.mxu0 0
    %9898 = vmatmul.mubr.bf16.gmra.mrb[0].mxu0 %v9241
    %v9899 = vpop.f32.mrb[0].mxu0
    %v9900 = vadd.f32 0.0, %v9899
    %v9901 = vpop.f32.mrb[0].mxu0
    %v9902 = vadd.f32 0.0, %v9901
    %v9903 = vpop.f32.mrb[0].mxu0
    %v9904 = vpop.f32.mrb[0].mxu0
    %9905 = vdwg.mxu0
    %9906 = vmatprep.subr.bf16.mxu0 %v3354
    %9907 = vmatpush1.bf16.msra.mxu0 %v3353
    %9908 = vmatprep.subr.bf16.mxu0 %v3386
    %9909 = vmatpush1.bf16.msra.mxu0 %v3385
    %9910 = vmatprep.subr.bf16.mxu0 %v3418
    %9911 = vmatpush1.bf16.msra.mxu0 %v3417
    %9912 = vmatprep.subr.bf16.mxu0 %v3450
    %9913 = vmatpush1.bf16.msra.mxu0 %v3449
    %9914 = vmatprep.subr.bf16.mxu0 0
    %9915 = vmatpush1.bf16.msra.mxu0 0
    %9916 = vmatprep.subr.bf16.mxu0 0
    %9917 = vmatpush1.bf16.msra.mxu0 0
    %9918 = vmatprep.subr.bf16.mxu0 0
    %9919 = vmatpush1.bf16.msra.mxu0 0
    %9920 = vmatprep.subr.bf16.mxu0 0
    %9921 = vmatpush1.bf16.msra.mxu0 0
    %9922 = vmatprep.subr.bf16.mxu0 0
    %9923 = vmatpush1.bf16.msra.mxu0 0
    %9924 = vmatprep.subr.bf16.mxu0 0
    %9925 = vmatpush1.bf16.msra.mxu0 0
    %9926 = vmatprep.subr.bf16.mxu0 0
    %9927 = vmatpush1.bf16.msra.mxu0 0
    %9928 = vmatprep.subr.bf16.mxu0 0
    %9929 = vmatpush1.bf16.msra.mxu0 0
    %9930 = vmatprep.subr.bf16.mxu0 0
    %9931 = vmatpush1.bf16.msra.mxu0 0
    %9932 = vmatprep.subr.bf16.mxu0 0
    %9933 = vmatpush1.bf16.msra.mxu0 0
    %9934 = vmatprep.subr.bf16.mxu0 0
    %9935 = vmatpush1.bf16.msra.mxu0 0
    %9936 = vmatprep.subr.bf16.mxu0 0
    %9937 = vmatpush1.bf16.msra.mxu0 0
    %9938 = vmatprep.mubr.bf16.mxu0 0
    %9939 = vmatmul.mubr.bf16.gmra.mrb[0].mxu0 %v9238
    %v9940 = vpop.f32.mrb[0].mxu0
    %v9941 = vadd.f32 0.0, %v9940
    %v9942 = vpop.f32.mrb[0].mxu0
    %v9943 = vadd.f32 0.0, %v9942
    %v9944 = vpop.f32.mrb[0].mxu0
    %v9945 = vadd.f32 0.0, %v9944
    %v9946 = vpop.f32.mrb[0].mxu0
    %v9947 = vadd.f32 0.0, %v9946
    %9948 = vmatprep.mubr.bf16.mxu0 0
    %9949 = vmatmul.mubr.bf16.gmra.mrb[0].mxu0 %v9241
    %v9950 = vpop.f32.mrb[0].mxu0
    %v9951 = vadd.f32 0.0, %v9950
    %v9952 = vpop.f32.mrb[0].mxu0
    %v9953 = vadd.f32 0.0, %v9952
    %v9954 = vpop.f32.mrb[0].mxu0
    %v9955 = vpop.f32.mrb[0].mxu0
    %9956 = vdwg.mxu0
    %9957 = vmatprep.subr.bf16.mxu0 %v3356
    %9958 = vmatpush1.bf16.msra.mxu0 %v3355
    %9959 = vmatprep.subr.bf16.mxu0 %v3388
    %9960 = vmatpush1.bf16.msra.mxu0 %v3387
    %9961 = vmatprep.subr.bf16.mxu0 %v3420
    %9962 = vmatpush1.bf16.msra.mxu0 %v3419
    %9963 = vmatprep.subr.bf16.mxu0 %v3452
    %9964 = vmatpush1.bf16.msra.mxu0 %v3451
    %9965 = vmatprep.subr.bf16.mxu0 0
    %9966 = vmatpush1.bf16.msra.mxu0 0
    %9967 = vmatprep.subr.bf16.mxu0 0
    %9968 = vmatpush1.bf16.msra.mxu0 0
    %9969 = vmatprep.subr.bf16.mxu0 0
    %9970 = vmatpush1.bf16.msra.mxu0 0
    %9971 = vmatprep.subr.bf16.mxu0 0
    %9972 = vmatpush1.bf16.msra.mxu0 0
    %9973 = vmatprep.subr.bf16.mxu0 0
    %9974 = vmatpush1.bf16.msra.mxu0 0
    %9975 = vmatprep.subr.bf16.mxu0 0
    %9976 = vmatpush1.bf16.msra.mxu0 0
    %9977 = vmatprep.subr.bf16.mxu0 0
    %9978 = vmatpush1.bf16.msra.mxu0 0
    %9979 = vmatprep.subr.bf16.mxu0 0
    %9980 = vmatpush1.bf16.msra.mxu0 0
    %9981 = vmatprep.subr.bf16.mxu0 0
    %9982 = vmatpush1.bf16.msra.mxu0 0
    %9983 = vmatprep.subr.bf16.mxu0 0
    %9984 = vmatpush1.bf16.msra.mxu0 0
    %9985 = vmatprep.subr.bf16.mxu0 0
    %9986 = vmatpush1.bf16.msra.mxu0 0
    %9987 = vmatprep.subr.bf16.mxu0 0
    %9988 = vmatpush1.bf16.msra.mxu0 0
    %9989 = vmatprep.mubr.bf16.mxu0 0
    %9990 = vmatmul.mubr.bf16.gmra.mrb[0].mxu0 %v9238
    %v9991 = vpop.f32.mrb[0].mxu0
    %v9992 = vadd.f32 0.0, %v9991
    %v9993 = vpop.f32.mrb[0].mxu0
    %v9994 = vadd.f32 0.0, %v9993
    %v9995 = vpop.f32.mrb[0].mxu0
    %v9996 = vadd.f32 0.0, %v9995
    %v9997 = vpop.f32.mrb[0].mxu0
    %v9998 = vadd.f32 0.0, %v9997
    %9999 = vmatprep.mubr.bf16.mxu0 0
    %10000 = vmatmul.mubr.bf16.gmra.mrb[0].mxu0 %v9241
    %v10001 = vpop.f32.mrb[0].mxu0
    %v10002 = vadd.f32 0.0, %v10001
    %v10003 = vpop.f32.mrb[0].mxu0
    %v10004 = vadd.f32 0.0, %v10003
    %v10005 = vpop.f32.mrb[0].mxu0
    %v10006 = vpop.f32.mrb[0].mxu0
    %10007 = vdwg.mxu0
    %10008 = vmatprep.subr.bf16.mxu0 %v3358
    %10009 = vmatpush1.bf16.msra.mxu0 %v3357
    %10010 = vmatprep.subr.bf16.mxu0 %v3390
    %10011 = vmatpush1.bf16.msra.mxu0 %v3389
    %10012 = vmatprep.subr.bf16.mxu0 %v3422
    %10013 = vmatpush1.bf16.msra.mxu0 %v3421
    %10014 = vmatprep.subr.bf16.mxu0 %v3454
    %10015 = vmatpush1.bf16.msra.mxu0 %v3453
    %10016 = vmatprep.subr.bf16.mxu0 0
    %10017 = vmatpush1.bf16.msra.mxu0 0
    %10018 = vmatprep.subr.bf16.mxu0 0
    %10019 = vmatpush1.bf16.msra.mxu0 0
    %10020 = vmatprep.subr.bf16.mxu0 0
    %10021 = vmatpush1.bf16.msra.mxu0 0
    %10022 = vmatprep.subr.bf16.mxu0 0
    %10023 = vmatpush1.bf16.msra.mxu0 0
    %10024 = vmatprep.subr.bf16.mxu0 0
    %10025 = vmatpush1.bf16.msra.mxu0 0
    %10026 = vmatprep.subr.bf16.mxu0 0
    %10027 = vmatpush1.bf16.msra.mxu0 0
    %10028 = vmatprep.subr.bf16.mxu0 0
    %10029 = vmatpush1.bf16.msra.mxu0 0
    %10030 = vmatprep.subr.bf16.mxu0 0
    %10031 = vmatpush1.bf16.msra.mxu0 0
    %10032 = vmatprep.subr.bf16.mxu0 0
    %10033 = vmatpush1.bf16.msra.mxu0 0
    %10034 = vmatprep.subr.bf16.mxu0 0
    %10035 = vmatpush1.bf16.msra.mxu0 0
    %10036 = vmatprep.subr.bf16.mxu0 0
    %10037 = vmatpush1.bf16.msra.mxu0 0
    %10038 = vmatprep.subr.bf16.mxu0 0
    %10039 = vmatpush1.bf16.msra.mxu0 0
    %10040 = vmatprep.mubr.bf16.mxu0 0
    %10041 = vmatmul.mubr.bf16.gmra.mrb[0].mxu0 %v9238
    %v10042 = vpop.f32.mrb[0].mxu0
    %v10043 = vadd.f32 0.0, %v10042
    %v10044 = vpop.f32.mrb[0].mxu0
    %v10045 = vadd.f32 0.0, %v10044
    %v10046 = vpop.f32.mrb[0].mxu0
    %v10047 = vadd.f32 0.0, %v10046
    %v10048 = vpop.f32.mrb[0].mxu0
    %v10049 = vadd.f32 0.0, %v10048
    %10050 = vmatprep.mubr.bf16.mxu0 0
    %10051 = vmatmul.mubr.bf16.gmra.mrb[0].mxu0 %v9241
    %v10052 = vpop.f32.mrb[0].mxu0
    %v10053 = vadd.f32 0.0, %v10052
    %v10054 = vpop.f32.mrb[0].mxu0
    %v10055 = vadd.f32 0.0, %v10054
    %v10056 = vpop.f32.mrb[0].mxu0
    %v10057 = vpop.f32.mrb[0].mxu0
    %10058 = vdwg.mxu0
    %v10059 = vmul.f32 %v9278, %v1401
    %v10060 = vmul.f32 %v9280, %v1403
    %v10061 = vmul.f32 %v9329, %v1452
    %v10062 = vmul.f32 %v9331, %v1454
    %v10063 = vmul.f32 %v9380, %v1503
    %v10064 = vmul.f32 %v9382, %v1505
    %v10065 = vmul.f32 %v9431, %v1554
    %v10066 = vmul.f32 %v9433, %v1556
    %v10067 = vmul.f32 %v9482, %v1605
    %v10068 = vmul.f32 %v9484, %v1607
    %v10069 = vmul.f32 %v9533, %v1656
    %v10070 = vmul.f32 %v9535, %v1658
    %v10071 = vmul.f32 %v9584, %v1707
    %v10072 = vmul.f32 %v9586, %v1709
    %v10073 = vmul.f32 %v9635, %v1758
    %v10074 = vmul.f32 %v9637, %v1760
    %v10075 = vmul.f32 %v9686, %v1809
    %v10076 = vmul.f32 %v9688, %v1811
    %v10077 = vmul.f32 %v9737, %v1860
    %v10078 = vmul.f32 %v9739, %v1862
    %v10079 = vmul.f32 %v9788, %v1911
    %v10080 = vmul.f32 %v9790, %v1913
    %v10081 = vmul.f32 %v9839, %v1962
    %v10082 = vmul.f32 %v9841, %v1964
    %v10083 = vmul.f32 %v9890, %v2013
    %v10084 = vmul.f32 %v9892, %v2015
    %v10085 = vmul.f32 %v9941, %v2064
    %v10086 = vmul.f32 %v9943, %v2066
    %v10087 = vmul.f32 %v9992, %v2115
    %v10088 = vmul.f32 %v9994, %v2117
    %v10089 = vmul.f32 %v10043, %v2166
    %v10090 = vmul.f32 %v10045, %v2168
    %v10091 = vmul.f32 %v9282, %v1405
    %v10092 = vmul.f32 %v9284, %v1407
    %v10093 = vmul.f32 %v9333, %v1456
    %v10094 = vmul.f32 %v9335, %v1458
    %v10095 = vmul.f32 %v9384, %v1507
    %v10096 = vmul.f32 %v9386, %v1509
    %v10097 = vmul.f32 %v9435, %v1558
    %v10098 = vmul.f32 %v9437, %v1560
    %v10099 = vmul.f32 %v9486, %v1609
    %v10100 = vmul.f32 %v9488, %v1611
    %v10101 = vmul.f32 %v9537, %v1660
    %v10102 = vmul.f32 %v9539, %v1662
    %v10103 = vmul.f32 %v9588, %v1711
    %v10104 = vmul.f32 %v9590, %v1713
    %v10105 = vmul.f32 %v9639, %v1762
    %v10106 = vmul.f32 %v9641, %v1764
    %v10107 = vmul.f32 %v9690, %v1813
    %v10108 = vmul.f32 %v9692, %v1815
    %v10109 = vmul.f32 %v9741, %v1864
    %v10110 = vmul.f32 %v9743, %v1866
    %v10111 = vmul.f32 %v9792, %v1915
    %v10112 = vmul.f32 %v9794, %v1917
    %v10113 = vmul.f32 %v9843, %v1966
    %v10114 = vmul.f32 %v9845, %v1968
    %v10115 = vmul.f32 %v9894, %v2017
    %v10116 = vmul.f32 %v9896, %v2019
    %v10117 = vmul.f32 %v9945, %v2068
    %v10118 = vmul.f32 %v9947, %v2070
    %v10119 = vmul.f32 %v9996, %v2119
    %v10120 = vmul.f32 %v9998, %v2121
    %v10121 = vmul.f32 %v10047, %v2170
    %v10122 = vmul.f32 %v10049, %v2172
    %v10123 = vmul.f32 %v9288, %v1411
    %v10124 = vmul.f32 %v9290, %v1413
    %v10125 = vmul.f32 %v9339, %v1462
    %v10126 = vmul.f32 %v9341, %v1464
    %v10127 = vmul.f32 %v9390, %v1513
    %v10128 = vmul.f32 %v9392, %v1515
    %v10129 = vmul.f32 %v9441, %v1564
    %v10130 = vmul.f32 %v9443, %v1566
    %v10131 = vmul.f32 %v9492, %v1615
    %v10132 = vmul.f32 %v9494, %v1617
    %v10133 = vmul.f32 %v9543, %v1666
    %v10134 = vmul.f32 %v9545, %v1668
    %v10135 = vmul.f32 %v9594, %v1717
    %v10136 = vmul.f32 %v9596, %v1719
    %v10137 = vmul.f32 %v9645, %v1768
    %v10138 = vmul.f32 %v9647, %v1770
    %v10139 = vmul.f32 %v9696, %v1819
    %v10140 = vmul.f32 %v9698, %v1821
    %v10141 = vmul.f32 %v9747, %v1870
    %v10142 = vmul.f32 %v9749, %v1872
    %v10143 = vmul.f32 %v9798, %v1921
    %v10144 = vmul.f32 %v9800, %v1923
    %v10145 = vmul.f32 %v9849, %v1972
    %v10146 = vmul.f32 %v9851, %v1974
    %v10147 = vmul.f32 %v9900, %v2023
    %v10148 = vmul.f32 %v9902, %v2025
    %v10149 = vmul.f32 %v9951, %v2074
    %v10150 = vmul.f32 %v9953, %v2076
    %v10151 = vmul.f32 %v10002, %v2125
    %v10152 = vmul.f32 %v10004, %v2127
    %v10153 = vmul.f32 %v10053, %v2176
    %v10154 = vmul.f32 %v10055, %v2178
    %v10155 = vpack.c.bf16 %v10091, %v10059
    %v10156 = vpack.c.bf16 %v10092, %v10060
    %v10157 = vpack.c.bf16 %v10093, %v10061
    %v10158 = vpack.c.bf16 %v10094, %v10062
    %v10159 = vpack.c.bf16 %v10095, %v10063
    %v10160 = vpack.c.bf16 %v10096, %v10064
    %v10161 = vpack.c.bf16 %v10097, %v10065
    %v10162 = vpack.c.bf16 %v10098, %v10066
    %v10163 = vpack.c.bf16 %v10099, %v10067
    %v10164 = vpack.c.bf16 %v10100, %v10068
    %v10165 = vpack.c.bf16 %v10101, %v10069
    %v10166 = vpack.c.bf16 %v10102, %v10070
    %v10167 = vpack.c.bf16 %v10103, %v10071
    %v10168 = vpack.c.bf16 %v10104, %v10072
    %v10169 = vpack.c.bf16 %v10105, %v10073
    %v10170 = vpack.c.bf16 %v10106, %v10074
    %v10171 = vpack.c.bf16 %v10107, %v10075
    %v10172 = vpack.c.bf16 %v10108, %v10076
    %v10173 = vpack.c.bf16 %v10109, %v10077
    %v10174 = vpack.c.bf16 %v10110, %v10078
    %v10175 = vpack.c.bf16 %v10111, %v10079
    %v10176 = vpack.c.bf16 %v10112, %v10080
    %v10177 = vpack.c.bf16 %v10113, %v10081
    %v10178 = vpack.c.bf16 %v10114, %v10082
    %v10179 = vpack.c.bf16 %v10115, %v10083
    %v10180 = vpack.c.bf16 %v10116, %v10084
    %v10181 = vpack.c.bf16 %v10117, %v10085
    %v10182 = vpack.c.bf16 %v10118, %v10086
    %v10183 = vpack.c.bf16 %v10119, %v10087
    %v10184 = vpack.c.bf16 %v10120, %v10088
    %v10185 = vpack.c.bf16 %v10121, %v10089
    %v10186 = vpack.c.bf16 %v10122, %v10090
    %v10187 = vpack.c.bf16 %v10123, %v10123
    %v10188 = vpack.c.bf16 %v10124, %v10124
    %v10189 = vpack.c.bf16 %v10125, %v10125
    %v10190 = vpack.c.bf16 %v10126, %v10126
    %v10191 = vpack.c.bf16 %v10127, %v10127
    %v10192 = vpack.c.bf16 %v10128, %v10128
    %v10193 = vpack.c.bf16 %v10129, %v10129
    %v10194 = vpack.c.bf16 %v10130, %v10130
    %v10195 = vpack.c.bf16 %v10131, %v10131
    %v10196 = vpack.c.bf16 %v10132, %v10132
    %v10197 = vpack.c.bf16 %v10133, %v10133
    %v10198 = vpack.c.bf16 %v10134, %v10134
    %v10199 = vpack.c.bf16 %v10135, %v10135
    %v10200 = vpack.c.bf16 %v10136, %v10136
    %v10201 = vpack.c.bf16 %v10137, %v10137
    %v10202 = vpack.c.bf16 %v10138, %v10138
    %v10203 = vpack.c.bf16 %v10139, %v10139
    %v10204 = vpack.c.bf16 %v10140, %v10140
    %v10205 = vpack.c.bf16 %v10141, %v10141
    %v10206 = vpack.c.bf16 %v10142, %v10142
    %v10207 = vpack.c.bf16 %v10143, %v10143
    %v10208 = vpack.c.bf16 %v10144, %v10144
    %v10209 = vpack.c.bf16 %v10145, %v10145
    %v10210 = vpack.c.bf16 %v10146, %v10146
    %v10211 = vpack.c.bf16 %v10147, %v10147
    %v10212 = vpack.c.bf16 %v10148, %v10148
    %v10213 = vpack.c.bf16 %v10149, %v10149
    %v10214 = vpack.c.bf16 %v10150, %v10150
    %v10215 = vpack.c.bf16 %v10151, %v10151
    %v10216 = vpack.c.bf16 %v10152, %v10152
    %v10217 = vpack.c.bf16 %v10153, %v10153
    %v10218 = vpack.c.bf16 %v10154, %v10154
    %10219 = vmatprep.subr.bf16.mxu0 0
    %10220 = vmatpush1.bf16.msra.mxu0 %v5590
    %10221 = vmatprep.subr.bf16.mxu0 0
    %10222 = vmatpush1.bf16.msra.mxu0 %v5591
    %10223 = vmatprep.subr.bf16.mxu0 0
    %10224 = vmatpush1.bf16.msra.mxu0 %v5592
    %10225 = vmatprep.subr.bf16.mxu0 0
    %10226 = vmatpush1.bf16.msra.mxu0 %v5593
    %10227 = vmatprep.subr.bf16.mxu0 0
    %10228 = vmatpush1.bf16.msra.mxu0 %v5594
    %10229 = vmatprep.subr.bf16.mxu0 0
    %10230 = vmatpush1.bf16.msra.mxu0 %v5595
    %10231 = vmatprep.subr.bf16.mxu0 0
    %10232 = vmatpush1.bf16.msra.mxu0 %v5596
    %10233 = vmatprep.subr.bf16.mxu0 0
    %10234 = vmatpush1.bf16.msra.mxu0 %v5597
    %10235 = vmatprep.subr.bf16.mxu0 0
    %10236 = vmatpush1.bf16.msra.mxu0 %v5598
    %10237 = vmatprep.subr.bf16.mxu0 0
    %10238 = vmatpush1.bf16.msra.mxu0 %v5599
    %10239 = vmatprep.subr.bf16.mxu0 0
    %10240 = vmatpush1.bf16.msra.mxu0 %v5600
    %10241 = vmatprep.subr.bf16.mxu0 0
    %10242 = vmatpush1.bf16.msra.mxu0 %v5601
    %10243 = vmatprep.subr.bf16.mxu0 0
    %10244 = vmatpush1.bf16.msra.mxu0 %v5602
    %10245 = vmatprep.subr.bf16.mxu0 0
    %10246 = vmatpush1.bf16.msra.mxu0 %v5603
    %10247 = vmatprep.subr.bf16.mxu0 0
    %10248 = vmatpush1.bf16.msra.mxu0 %v5604
    %10249 = vmatprep.subr.bf16.mxu0 0
    %10250 = vmatpush1.bf16.msra.mxu0 %v5605
    %10251 = vmatprep.mubr.bf16.mxu0 %v10156
    %10252 = vmatmul.mubr.bf16.gmra.mrb[0].mxu0 %v10155
    %v10253 = vpop.f32.mrb[0].mxu0
    %v10254 = vadd.f32 0.0, %v10253
    %v10255 = vpop.f32.mrb[0].mxu0
    %v10256 = vpop.f32.mrb[0].mxu0
    %v10257 = vadd.f32 0.0, %v10256
    %v10258 = vpop.f32.mrb[0].mxu0
    %10259 = vmatprep.mubr.bf16.mxu0 %v10188
    %10260 = vmatmul.mubr.bf16.gmra.mrb[0].mxu0 %v10187
    %v10261 = vpop.f32.mrb[0].mxu0
    %v10262 = vadd.f32 0.0, %v10261
    %v10263 = vpop.f32.mrb[0].mxu0
    %v10264 = vpop.f32.mrb[0].mxu0
    %v10265 = vpop.f32.mrb[0].mxu0
    %10266 = vdwg.mxu0
    %10267 = vmatprep.subr.bf16.mxu0 0
    %10268 = vmatpush1.bf16.msra.mxu0 %v5606
    %10269 = vmatprep.subr.bf16.mxu0 0
    %10270 = vmatpush1.bf16.msra.mxu0 %v5607
    %10271 = vmatprep.subr.bf16.mxu0 0
    %10272 = vmatpush1.bf16.msra.mxu0 %v5608
    %10273 = vmatprep.subr.bf16.mxu0 0
    %10274 = vmatpush1.bf16.msra.mxu0 %v5609
    %10275 = vmatprep.subr.bf16.mxu0 0
    %10276 = vmatpush1.bf16.msra.mxu0 %v5610
    %10277 = vmatprep.subr.bf16.mxu0 0
    %10278 = vmatpush1.bf16.msra.mxu0 %v5611
    %10279 = vmatprep.subr.bf16.mxu0 0
    %10280 = vmatpush1.bf16.msra.mxu0 %v5612
    %10281 = vmatprep.subr.bf16.mxu0 0
    %10282 = vmatpush1.bf16.msra.mxu0 %v5613
    %10283 = vmatprep.subr.bf16.mxu0 0
    %10284 = vmatpush1.bf16.msra.mxu0 %v5614
    %10285 = vmatprep.subr.bf16.mxu0 0
    %10286 = vmatpush1.bf16.msra.mxu0 %v5615
    %10287 = vmatprep.subr.bf16.mxu0 0
    %10288 = vmatpush1.bf16.msra.mxu0 %v5616
    %10289 = vmatprep.subr.bf16.mxu0 0
    %10290 = vmatpush1.bf16.msra.mxu0 %v5617
    %10291 = vmatprep.subr.bf16.mxu0 0
    %10292 = vmatpush1.bf16.msra.mxu0 %v5618
    %10293 = vmatprep.subr.bf16.mxu0 0
    %10294 = vmatpush1.bf16.msra.mxu0 %v5619
    %10295 = vmatprep.subr.bf16.mxu0 0
    %10296 = vmatpush1.bf16.msra.mxu0 %v5620
    %10297 = vmatprep.subr.bf16.mxu0 0
    %10298 = vmatpush1.bf16.msra.mxu0 %v5621
    %10299 = vmatprep.mubr.bf16.mxu0 %v10158
    %10300 = vmatmul.mubr.bf16.gmra.mrb[0].mxu0 %v10157
    %v10301 = vpop.f32.mrb[0].mxu0
    %v10302 = vadd.f32 %v10254, %v10301
    %v10303 = vpop.f32.mrb[0].mxu0
    %v10304 = vpop.f32.mrb[0].mxu0
    %v10305 = vadd.f32 %v10257, %v10304
    %v10306 = vpop.f32.mrb[0].mxu0
    %10307 = vmatprep.mubr.bf16.mxu0 %v10190
    %10308 = vmatmul.mubr.bf16.gmra.mrb[0].mxu0 %v10189
    %v10309 = vpop.f32.mrb[0].mxu0
    %v10310 = vadd.f32 %v10262, %v10309
    %v10311 = vpop.f32.mrb[0].mxu0
    %v10312 = vpop.f32.mrb[0].mxu0
    %v10313 = vpop.f32.mrb[0].mxu0
    %10314 = vdwg.mxu0
    %10315 = vmatprep.subr.bf16.mxu0 0
    %10316 = vmatpush1.bf16.msra.mxu0 %v5622
    %10317 = vmatprep.subr.bf16.mxu0 0
    %10318 = vmatpush1.bf16.msra.mxu0 %v5623
    %10319 = vmatprep.subr.bf16.mxu0 0
    %10320 = vmatpush1.bf16.msra.mxu0 %v5624
    %10321 = vmatprep.subr.bf16.mxu0 0
    %10322 = vmatpush1.bf16.msra.mxu0 %v5625
    %10323 = vmatprep.subr.bf16.mxu0 0
    %10324 = vmatpush1.bf16.msra.mxu0 %v5626
    %10325 = vmatprep.subr.bf16.mxu0 0
    %10326 = vmatpush1.bf16.msra.mxu0 %v5627
    %10327 = vmatprep.subr.bf16.mxu0 0
    %10328 = vmatpush1.bf16.msra.mxu0 %v5628
    %10329 = vmatprep.subr.bf16.mxu0 0
    %10330 = vmatpush1.bf16.msra.mxu0 %v5629
    %10331 = vmatprep.subr.bf16.mxu0 0
    %10332 = vmatpush1.bf16.msra.mxu0 %v5630
    %10333 = vmatprep.subr.bf16.mxu0 0
    %10334 = vmatpush1.bf16.msra.mxu0 %v5631
    %10335 = vmatprep.subr.bf16.mxu0 0
    %10336 = vmatpush1.bf16.msra.mxu0 %v5632
    %10337 = vmatprep.subr.bf16.mxu0 0
    %10338 = vmatpush1.bf16.msra.mxu0 %v5633
    %10339 = vmatprep.subr.bf16.mxu0 0
    %10340 = vmatpush1.bf16.msra.mxu0 %v5634
    %10341 = vmatprep.subr.bf16.mxu0 0
    %10342 = vmatpush1.bf16.msra.mxu0 %v5635
    %10343 = vmatprep.subr.bf16.mxu0 0
    %10344 = vmatpush1.bf16.msra.mxu0 %v5636
    %10345 = vmatprep.subr.bf16.mxu0 0
    %10346 = vmatpush1.bf16.msra.mxu0 %v5637
    %10347 = vmatprep.mubr.bf16.mxu0 %v10160
    %10348 = vmatmul.mubr.bf16.gmra.mrb[0].mxu0 %v10159
    %v10349 = vpop.f32.mrb[0].mxu0
    %v10350 = vadd.f32 %v10302, %v10349
    %v10351 = vpop.f32.mrb[0].mxu0
    %v10352 = vpop.f32.mrb[0].mxu0
    %v10353 = vadd.f32 %v10305, %v10352
    %v10354 = vpop.f32.mrb[0].mxu0
    %10355 = vmatprep.mubr.bf16.mxu0 %v10192
    %10356 = vmatmul.mubr.bf16.gmra.mrb[0].mxu0 %v10191
    %v10357 = vpop.f32.mrb[0].mxu0
    %v10358 = vadd.f32 %v10310, %v10357
    %v10359 = vpop.f32.mrb[0].mxu0
    %v10360 = vpop.f32.mrb[0].mxu0
    %v10361 = vpop.f32.mrb[0].mxu0
    %10362 = vdwg.mxu0
    %10363 = vmatprep.subr.bf16.mxu0 0
    %10364 = vmatpush1.bf16.msra.mxu0 %v5638
    %10365 = vmatprep.subr.bf16.mxu0 0
    %10366 = vmatpush1.bf16.msra.mxu0 %v5639
    %10367 = vmatprep.subr.bf16.mxu0 0
    %10368 = vmatpush1.bf16.msra.mxu0 %v5640
    %10369 = vmatprep.subr.bf16.mxu0 0
    %10370 = vmatpush1.bf16.msra.mxu0 %v5641
    %10371 = vmatprep.subr.bf16.mxu0 0
    %10372 = vmatpush1.bf16.msra.mxu0 %v5642
    %10373 = vmatprep.subr.bf16.mxu0 0
    %10374 = vmatpush1.bf16.msra.mxu0 %v5643
    %10375 = vmatprep.subr.bf16.mxu0 0
    %10376 = vmatpush1.bf16.msra.mxu0 %v5644
    %10377 = vmatprep.subr.bf16.mxu0 0
    %10378 = vmatpush1.bf16.msra.mxu0 %v5645
    %10379 = vmatprep.subr.bf16.mxu0 0
    %10380 = vmatpush1.bf16.msra.mxu0 %v5646
    %10381 = vmatprep.subr.bf16.mxu0 0
    %10382 = vmatpush1.bf16.msra.mxu0 %v5647
    %10383 = vmatprep.subr.bf16.mxu0 0
    %10384 = vmatpush1.bf16.msra.mxu0 %v5648
    %10385 = vmatprep.subr.bf16.mxu0 0
    %10386 = vmatpush1.bf16.msra.mxu0 %v5649
    %10387 = vmatprep.subr.bf16.mxu0 0
    %10388 = vmatpush1.bf16.msra.mxu0 %v5650
    %10389 = vmatprep.subr.bf16.mxu0 0
    %10390 = vmatpush1.bf16.msra.mxu0 %v5651
    %10391 = vmatprep.subr.bf16.mxu0 0
    %10392 = vmatpush1.bf16.msra.mxu0 %v5652
    %10393 = vmatprep.subr.bf16.mxu0 0
    %10394 = vmatpush1.bf16.msra.mxu0 %v5653
    %10395 = vmatprep.mubr.bf16.mxu0 %v10162
    %10396 = vmatmul.mubr.bf16.gmra.mrb[0].mxu0 %v10161
    %v10397 = vpop.f32.mrb[0].mxu0
    %v10398 = vadd.f32 %v10350, %v10397
    %v10399 = vpop.f32.mrb[0].mxu0
    %v10400 = vpop.f32.mrb[0].mxu0
    %v10401 = vadd.f32 %v10353, %v10400
    %v10402 = vpop.f32.mrb[0].mxu0
    %10403 = vmatprep.mubr.bf16.mxu0 %v10194
    %10404 = vmatmul.mubr.bf16.gmra.mrb[0].mxu0 %v10193
    %v10405 = vpop.f32.mrb[0].mxu0
    %v10406 = vadd.f32 %v10358, %v10405
    %v10407 = vpop.f32.mrb[0].mxu0
    %v10408 = vpop.f32.mrb[0].mxu0
    %v10409 = vpop.f32.mrb[0].mxu0
    %10410 = vdwg.mxu0
    %10411 = vmatprep.subr.bf16.mxu0 0
    %10412 = vmatpush1.bf16.msra.mxu0 %v5654
    %10413 = vmatprep.subr.bf16.mxu0 0
    %10414 = vmatpush1.bf16.msra.mxu0 %v5655
    %10415 = vmatprep.subr.bf16.mxu0 0
    %10416 = vmatpush1.bf16.msra.mxu0 %v5656
    %10417 = vmatprep.subr.bf16.mxu0 0
    %10418 = vmatpush1.bf16.msra.mxu0 %v5657
    %10419 = vmatprep.subr.bf16.mxu0 0
    %10420 = vmatpush1.bf16.msra.mxu0 %v5658
    %10421 = vmatprep.subr.bf16.mxu0 0
    %10422 = vmatpush1.bf16.msra.mxu0 %v5659
    %10423 = vmatprep.subr.bf16.mxu0 0
    %10424 = vmatpush1.bf16.msra.mxu0 %v5660
    %10425 = vmatprep.subr.bf16.mxu0 0
    %10426 = vmatpush1.bf16.msra.mxu0 %v5661
    %10427 = vmatprep.subr.bf16.mxu0 0
    %10428 = vmatpush1.bf16.msra.mxu0 %v5662
    %10429 = vmatprep.subr.bf16.mxu0 0
    %10430 = vmatpush1.bf16.msra.mxu0 %v5663
    %10431 = vmatprep.subr.bf16.mxu0 0
    %10432 = vmatpush1.bf16.msra.mxu0 %v5664
    %10433 = vmatprep.subr.bf16.mxu0 0
    %10434 = vmatpush1.bf16.msra.mxu0 %v5665
    %10435 = vmatprep.subr.bf16.mxu0 0
    %10436 = vmatpush1.bf16.msra.mxu0 %v5666
    %10437 = vmatprep.subr.bf16.mxu0 0
    %10438 = vmatpush1.bf16.msra.mxu0 %v5667
    %10439 = vmatprep.subr.bf16.mxu0 0
    %10440 = vmatpush1.bf16.msra.mxu0 %v5668
    %10441 = vmatprep.subr.bf16.mxu0 0
    %10442 = vmatpush1.bf16.msra.mxu0 %v5669
    %10443 = vmatprep.mubr.bf16.mxu0 %v10164
    %10444 = vmatmul.mubr.bf16.gmra.mrb[0].mxu0 %v10163
    %v10445 = vpop.f32.mrb[0].mxu0
    %v10446 = vadd.f32 %v10398, %v10445
    %v10447 = vpop.f32.mrb[0].mxu0
    %v10448 = vpop.f32.mrb[0].mxu0
    %v10449 = vadd.f32 %v10401, %v10448
    %v10450 = vpop.f32.mrb[0].mxu0
    %10451 = vmatprep.mubr.bf16.mxu0 %v10196
    %10452 = vmatmul.mubr.bf16.gmra.mrb[0].mxu0 %v10195
    %v10453 = vpop.f32.mrb[0].mxu0
    %v10454 = vadd.f32 %v10406, %v10453
    %v10455 = vpop.f32.mrb[0].mxu0
    %v10456 = vpop.f32.mrb[0].mxu0
    %v10457 = vpop.f32.mrb[0].mxu0
    %10458 = vdwg.mxu0
    %10459 = vmatprep.subr.bf16.mxu0 0
    %10460 = vmatpush1.bf16.msra.mxu0 %v5670
    %10461 = vmatprep.subr.bf16.mxu0 0
    %10462 = vmatpush1.bf16.msra.mxu0 %v5671
    %10463 = vmatprep.subr.bf16.mxu0 0
    %10464 = vmatpush1.bf16.msra.mxu0 %v5672
    %10465 = vmatprep.subr.bf16.mxu0 0
    %10466 = vmatpush1.bf16.msra.mxu0 %v5673
    %10467 = vmatprep.subr.bf16.mxu0 0
    %10468 = vmatpush1.bf16.msra.mxu0 %v5674
    %10469 = vmatprep.subr.bf16.mxu0 0
    %10470 = vmatpush1.bf16.msra.mxu0 %v5675
    %10471 = vmatprep.subr.bf16.mxu0 0
    %10472 = vmatpush1.bf16.msra.mxu0 %v5676
    %10473 = vmatprep.subr.bf16.mxu0 0
    %10474 = vmatpush1.bf16.msra.mxu0 %v5677
    %10475 = vmatprep.subr.bf16.mxu0 0
    %10476 = vmatpush1.bf16.msra.mxu0 %v5678
    %10477 = vmatprep.subr.bf16.mxu0 0
    %10478 = vmatpush1.bf16.msra.mxu0 %v5679
    %10479 = vmatprep.subr.bf16.mxu0 0
    %10480 = vmatpush1.bf16.msra.mxu0 %v5680
    %10481 = vmatprep.subr.bf16.mxu0 0
    %10482 = vmatpush1.bf16.msra.mxu0 %v5681
    %10483 = vmatprep.subr.bf16.mxu0 0
    %10484 = vmatpush1.bf16.msra.mxu0 %v5682
    %10485 = vmatprep.subr.bf16.mxu0 0
    %10486 = vmatpush1.bf16.msra.mxu0 %v5683
    %10487 = vmatprep.subr.bf16.mxu0 0
    %10488 = vmatpush1.bf16.msra.mxu0 %v5684
    %10489 = vmatprep.subr.bf16.mxu0 0
    %10490 = vmatpush1.bf16.msra.mxu0 %v5685
    %10491 = vmatprep.mubr.bf16.mxu0 %v10166
    %10492 = vmatmul.mubr.bf16.gmra.mrb[0].mxu0 %v10165
    %v10493 = vpop.f32.mrb[0].mxu0
    %v10494 = vadd.f32 %v10446, %v10493
    %v10495 = vpop.f32.mrb[0].mxu0
    %v10496 = vpop.f32.mrb[0].mxu0
    %v10497 = vadd.f32 %v10449, %v10496
    %v10498 = vpop.f32.mrb[0].mxu0
    %10499 = vmatprep.mubr.bf16.mxu0 %v10198
    %10500 = vmatmul.mubr.bf16.gmra.mrb[0].mxu0 %v10197
    %v10501 = vpop.f32.mrb[0].mxu0
    %v10502 = vadd.f32 %v10454, %v10501
    %v10503 = vpop.f32.mrb[0].mxu0
    %v10504 = vpop.f32.mrb[0].mxu0
    %v10505 = vpop.f32.mrb[0].mxu0
    %10506 = vdwg.mxu0
    %10507 = vmatprep.subr.bf16.mxu0 0
    %10508 = vmatpush1.bf16.msra.mxu0 %v5686
    %10509 = vmatprep.subr.bf16.mxu0 0
    %10510 = vmatpush1.bf16.msra.mxu0 %v5687
    %10511 = vmatprep.subr.bf16.mxu0 0
    %10512 = vmatpush1.bf16.msra.mxu0 %v5688
    %10513 = vmatprep.subr.bf16.mxu0 0
    %10514 = vmatpush1.bf16.msra.mxu0 %v5689
    %10515 = vmatprep.subr.bf16.mxu0 0
    %10516 = vmatpush1.bf16.msra.mxu0 %v5690
    %10517 = vmatprep.subr.bf16.mxu0 0
    %10518 = vmatpush1.bf16.msra.mxu0 %v5691
    %10519 = vmatprep.subr.bf16.mxu0 0
    %10520 = vmatpush1.bf16.msra.mxu0 %v5692
    %10521 = vmatprep.subr.bf16.mxu0 0
    %10522 = vmatpush1.bf16.msra.mxu0 %v5693
    %10523 = vmatprep.subr.bf16.mxu0 0
    %10524 = vmatpush1.bf16.msra.mxu0 %v5694
    %10525 = vmatprep.subr.bf16.mxu0 0
    %10526 = vmatpush1.bf16.msra.mxu0 %v5695
    %10527 = vmatprep.subr.bf16.mxu0 0
    %10528 = vmatpush1.bf16.msra.mxu0 %v5696
    %10529 = vmatprep.subr.bf16.mxu0 0
    %10530 = vmatpush1.bf16.msra.mxu0 %v5697
    %10531 = vmatprep.subr.bf16.mxu0 0
    %10532 = vmatpush1.bf16.msra.mxu0 %v5698
    %10533 = vmatprep.subr.bf16.mxu0 0
    %10534 = vmatpush1.bf16.msra.mxu0 %v5699
    %10535 = vmatprep.subr.bf16.mxu0 0
    %10536 = vmatpush1.bf16.msra.mxu0 %v5700
    %10537 = vmatprep.subr.bf16.mxu0 0
    %10538 = vmatpush1.bf16.msra.mxu0 %v5701
    %10539 = vmatprep.mubr.bf16.mxu0 %v10168
    %10540 = vmatmul.mubr.bf16.gmra.mrb[0].mxu0 %v10167
    %v10541 = vpop.f32.mrb[0].mxu0
    %v10542 = vadd.f32 %v10494, %v10541
    %v10543 = vpop.f32.mrb[0].mxu0
    %v10544 = vpop.f32.mrb[0].mxu0
    %v10545 = vadd.f32 %v10497, %v10544
    %v10546 = vpop.f32.mrb[0].mxu0
    %10547 = vmatprep.mubr.bf16.mxu0 %v10200
    %10548 = vmatmul.mubr.bf16.gmra.mrb[0].mxu0 %v10199
    %v10549 = vpop.f32.mrb[0].mxu0
    %v10550 = vadd.f32 %v10502, %v10549
    %v10551 = vpop.f32.mrb[0].mxu0
    %v10552 = vpop.f32.mrb[0].mxu0
    %v10553 = vpop.f32.mrb[0].mxu0
    %10554 = vdwg.mxu0
    %10555 = vmatprep.subr.bf16.mxu0 0
    %10556 = vmatpush1.bf16.msra.mxu0 %v5702
    %10557 = vmatprep.subr.bf16.mxu0 0
    %10558 = vmatpush1.bf16.msra.mxu0 %v5703
    %10559 = vmatprep.subr.bf16.mxu0 0
    %10560 = vmatpush1.bf16.msra.mxu0 %v5704
    %10561 = vmatprep.subr.bf16.mxu0 0
    %10562 = vmatpush1.bf16.msra.mxu0 %v5705
    %10563 = vmatprep.subr.bf16.mxu0 0
    %10564 = vmatpush1.bf16.msra.mxu0 %v5706
    %10565 = vmatprep.subr.bf16.mxu0 0
    %10566 = vmatpush1.bf16.msra.mxu0 %v5707
    %10567 = vmatprep.subr.bf16.mxu0 0
    %10568 = vmatpush1.bf16.msra.mxu0 %v5708
    %10569 = vmatprep.subr.bf16.mxu0 0
    %10570 = vmatpush1.bf16.msra.mxu0 %v5709
    %10571 = vmatprep.subr.bf16.mxu0 0
    %10572 = vmatpush1.bf16.msra.mxu0 %v5710
    %10573 = vmatprep.subr.bf16.mxu0 0
    %10574 = vmatpush1.bf16.msra.mxu0 %v5711
    %10575 = vmatprep.subr.bf16.mxu0 0
    %10576 = vmatpush1.bf16.msra.mxu0 %v5712
    %10577 = vmatprep.subr.bf16.mxu0 0
    %10578 = vmatpush1.bf16.msra.mxu0 %v5713
    %10579 = vmatprep.subr.bf16.mxu0 0
    %10580 = vmatpush1.bf16.msra.mxu0 %v5714
    %10581 = vmatprep.subr.bf16.mxu0 0
    %10582 = vmatpush1.bf16.msra.mxu0 %v5715
    %10583 = vmatprep.subr.bf16.mxu0 0
    %10584 = vmatpush1.bf16.msra.mxu0 %v5716
    %10585 = vmatprep.subr.bf16.mxu0 0
    %10586 = vmatpush1.bf16.msra.mxu0 %v5717
    %10587 = vmatprep.mubr.bf16.mxu0 %v10170
    %10588 = vmatmul.mubr.bf16.gmra.mrb[0].mxu0 %v10169
    %v10589 = vpop.f32.mrb[0].mxu0
    %v10590 = vadd.f32 %v10542, %v10589
    %v10591 = vpop.f32.mrb[0].mxu0
    %v10592 = vpop.f32.mrb[0].mxu0
    %v10593 = vadd.f32 %v10545, %v10592
    %v10594 = vpop.f32.mrb[0].mxu0
    %10595 = vmatprep.mubr.bf16.mxu0 %v10202
    %10596 = vmatmul.mubr.bf16.gmra.mrb[0].mxu0 %v10201
    %v10597 = vpop.f32.mrb[0].mxu0
    %v10598 = vadd.f32 %v10550, %v10597
    %v10599 = vpop.f32.mrb[0].mxu0
    %v10600 = vpop.f32.mrb[0].mxu0
    %v10601 = vpop.f32.mrb[0].mxu0
    %10602 = vdwg.mxu0
    %10603 = vmatprep.subr.bf16.mxu0 0
    %10604 = vmatpush1.bf16.msra.mxu0 %v5718
    %10605 = vmatprep.subr.bf16.mxu0 0
    %10606 = vmatpush1.bf16.msra.mxu0 %v5719
    %10607 = vmatprep.subr.bf16.mxu0 0
    %10608 = vmatpush1.bf16.msra.mxu0 %v5720
    %10609 = vmatprep.subr.bf16.mxu0 0
    %10610 = vmatpush1.bf16.msra.mxu0 %v5721
    %10611 = vmatprep.subr.bf16.mxu0 0
    %10612 = vmatpush1.bf16.msra.mxu0 %v5722
    %10613 = vmatprep.subr.bf16.mxu0 0
    %10614 = vmatpush1.bf16.msra.mxu0 %v5723
    %10615 = vmatprep.subr.bf16.mxu0 0
    %10616 = vmatpush1.bf16.msra.mxu0 %v5724
    %10617 = vmatprep.subr.bf16.mxu0 0
    %10618 = vmatpush1.bf16.msra.mxu0 %v5725
    %10619 = vmatprep.subr.bf16.mxu0 0
    %10620 = vmatpush1.bf16.msra.mxu0 %v5726
    %10621 = vmatprep.subr.bf16.mxu0 0
    %10622 = vmatpush1.bf16.msra.mxu0 %v5727
    %10623 = vmatprep.subr.bf16.mxu0 0
    %10624 = vmatpush1.bf16.msra.mxu0 %v5728
    %10625 = vmatprep.subr.bf16.mxu0 0
    %10626 = vmatpush1.bf16.msra.mxu0 %v5729
    %10627 = vmatprep.subr.bf16.mxu0 0
    %10628 = vmatpush1.bf16.msra.mxu0 %v5730
    %10629 = vmatprep.subr.bf16.mxu0 0
    %10630 = vmatpush1.bf16.msra.mxu0 %v5731
    %10631 = vmatprep.subr.bf16.mxu0 0
    %10632 = vmatpush1.bf16.msra.mxu0 %v5732
    %10633 = vmatprep.subr.bf16.mxu0 0
    %10634 = vmatpush1.bf16.msra.mxu0 %v5733
    %10635 = vmatprep.mubr.bf16.mxu0 %v10172
    %10636 = vmatmul.mubr.bf16.gmra.mrb[0].mxu0 %v10171
    %v10637 = vpop.f32.mrb[0].mxu0
    %v10638 = vadd.f32 %v10590, %v10637
    %v10639 = vpop.f32.mrb[0].mxu0
    %v10640 = vpop.f32.mrb[0].mxu0
    %v10641 = vadd.f32 %v10593, %v10640
    %v10642 = vpop.f32.mrb[0].mxu0
    %10643 = vmatprep.mubr.bf16.mxu0 %v10204
    %10644 = vmatmul.mubr.bf16.gmra.mrb[0].mxu0 %v10203
    %v10645 = vpop.f32.mrb[0].mxu0
    %v10646 = vadd.f32 %v10598, %v10645
    %v10647 = vpop.f32.mrb[0].mxu0
    %v10648 = vpop.f32.mrb[0].mxu0
    %v10649 = vpop.f32.mrb[0].mxu0
    %10650 = vdwg.mxu0
    %10651 = vmatprep.subr.bf16.mxu0 0
    %10652 = vmatpush1.bf16.msra.mxu0 %v5734
    %10653 = vmatprep.subr.bf16.mxu0 0
    %10654 = vmatpush1.bf16.msra.mxu0 %v5735
    %10655 = vmatprep.subr.bf16.mxu0 0
    %10656 = vmatpush1.bf16.msra.mxu0 %v5736
    %10657 = vmatprep.subr.bf16.mxu0 0
    %10658 = vmatpush1.bf16.msra.mxu0 %v5737
    %10659 = vmatprep.subr.bf16.mxu0 0
    %10660 = vmatpush1.bf16.msra.mxu0 %v5738
    %10661 = vmatprep.subr.bf16.mxu0 0
    %10662 = vmatpush1.bf16.msra.mxu0 %v5739
    %10663 = vmatprep.subr.bf16.mxu0 0
    %10664 = vmatpush1.bf16.msra.mxu0 %v5740
    %10665 = vmatprep.subr.bf16.mxu0 0
    %10666 = vmatpush1.bf16.msra.mxu0 %v5741
    %10667 = vmatprep.subr.bf16.mxu0 0
    %10668 = vmatpush1.bf16.msra.mxu0 %v5742
    %10669 = vmatprep.subr.bf16.mxu0 0
    %10670 = vmatpush1.bf16.msra.mxu0 %v5743
    %10671 = vmatprep.subr.bf16.mxu0 0
    %10672 = vmatpush1.bf16.msra.mxu0 %v5744
    %10673 = vmatprep.subr.bf16.mxu0 0
    %10674 = vmatpush1.bf16.msra.mxu0 %v5745
    %10675 = vmatprep.subr.bf16.mxu0 0
    %10676 = vmatpush1.bf16.msra.mxu0 %v5746
    %10677 = vmatprep.subr.bf16.mxu0 0
    %10678 = vmatpush1.bf16.msra.mxu0 %v5747
    %10679 = vmatprep.subr.bf16.mxu0 0
    %10680 = vmatpush1.bf16.msra.mxu0 %v5748
    %10681 = vmatprep.subr.bf16.mxu0 0
    %10682 = vmatpush1.bf16.msra.mxu0 %v5749
    %10683 = vmatprep.mubr.bf16.mxu0 %v10174
    %10684 = vmatmul.mubr.bf16.gmra.mrb[0].mxu0 %v10173
    %v10685 = vpop.f32.mrb[0].mxu0
    %v10686 = vadd.f32 %v10638, %v10685
    %v10687 = vpop.f32.mrb[0].mxu0
    %v10688 = vpop.f32.mrb[0].mxu0
    %v10689 = vadd.f32 %v10641, %v10688
    %v10690 = vpop.f32.mrb[0].mxu0
    %10691 = vmatprep.mubr.bf16.mxu0 %v10206
    %10692 = vmatmul.mubr.bf16.gmra.mrb[0].mxu0 %v10205
    %v10693 = vpop.f32.mrb[0].mxu0
    %v10694 = vadd.f32 %v10646, %v10693
    %v10695 = vpop.f32.mrb[0].mxu0
    %v10696 = vpop.f32.mrb[0].mxu0
    %v10697 = vpop.f32.mrb[0].mxu0
    %10698 = vdwg.mxu0
    %10699 = vmatprep.subr.bf16.mxu0 0
    %10700 = vmatpush1.bf16.msra.mxu0 %v5750
    %10701 = vmatprep.subr.bf16.mxu0 0
    %10702 = vmatpush1.bf16.msra.mxu0 %v5751
    %10703 = vmatprep.subr.bf16.mxu0 0
    %10704 = vmatpush1.bf16.msra.mxu0 %v5752
    %10705 = vmatprep.subr.bf16.mxu0 0
    %10706 = vmatpush1.bf16.msra.mxu0 %v5753
    %10707 = vmatprep.subr.bf16.mxu0 0
    %10708 = vmatpush1.bf16.msra.mxu0 %v5754
    %10709 = vmatprep.subr.bf16.mxu0 0
    %10710 = vmatpush1.bf16.msra.mxu0 %v5755
    %10711 = vmatprep.subr.bf16.mxu0 0
    %10712 = vmatpush1.bf16.msra.mxu0 %v5756
    %10713 = vmatprep.subr.bf16.mxu0 0
    %10714 = vmatpush1.bf16.msra.mxu0 %v5757
    %10715 = vmatprep.subr.bf16.mxu0 0
    %10716 = vmatpush1.bf16.msra.mxu0 %v5758
    %10717 = vmatprep.subr.bf16.mxu0 0
    %10718 = vmatpush1.bf16.msra.mxu0 %v5759
    %10719 = vmatprep.subr.bf16.mxu0 0
    %10720 = vmatpush1.bf16.msra.mxu0 %v5760
    %10721 = vmatprep.subr.bf16.mxu0 0
    %10722 = vmatpush1.bf16.msra.mxu0 %v5761
    %10723 = vmatprep.subr.bf16.mxu0 0
    %10724 = vmatpush1.bf16.msra.mxu0 %v5762
    %10725 = vmatprep.subr.bf16.mxu0 0
    %10726 = vmatpush1.bf16.msra.mxu0 %v5763
    %10727 = vmatprep.subr.bf16.mxu0 0
    %10728 = vmatpush1.bf16.msra.mxu0 %v5764
    %10729 = vmatprep.subr.bf16.mxu0 0
    %10730 = vmatpush1.bf16.msra.mxu0 %v5765
    %10731 = vmatprep.mubr.bf16.mxu0 %v10176
    %10732 = vmatmul.mubr.bf16.gmra.mrb[0].mxu0 %v10175
    %v10733 = vpop.f32.mrb[0].mxu0
    %v10734 = vadd.f32 %v10686, %v10733
    %v10735 = vpop.f32.mrb[0].mxu0
    %v10736 = vpop.f32.mrb[0].mxu0
    %v10737 = vadd.f32 %v10689, %v10736
    %v10738 = vpop.f32.mrb[0].mxu0
    %10739 = vmatprep.mubr.bf16.mxu0 %v10208
    %10740 = vmatmul.mubr.bf16.gmra.mrb[0].mxu0 %v10207
    %v10741 = vpop.f32.mrb[0].mxu0
    %v10742 = vadd.f32 %v10694, %v10741
    %v10743 = vpop.f32.mrb[0].mxu0
    %v10744 = vpop.f32.mrb[0].mxu0
    %v10745 = vpop.f32.mrb[0].mxu0
    %10746 = vdwg.mxu0
    %10747 = vmatprep.subr.bf16.mxu0 0
    %10748 = vmatpush1.bf16.msra.mxu0 %v5766
    %10749 = vmatprep.subr.bf16.mxu0 0
    %10750 = vmatpush1.bf16.msra.mxu0 %v5767
    %10751 = vmatprep.subr.bf16.mxu0 0
    %10752 = vmatpush1.bf16.msra.mxu0 %v5768
    %10753 = vmatprep.subr.bf16.mxu0 0
    %10754 = vmatpush1.bf16.msra.mxu0 %v5769
    %10755 = vmatprep.subr.bf16.mxu0 0
    %10756 = vmatpush1.bf16.msra.mxu0 %v5770
    %10757 = vmatprep.subr.bf16.mxu0 0
    %10758 = vmatpush1.bf16.msra.mxu0 %v5771
    %10759 = vmatprep.subr.bf16.mxu0 0
    %10760 = vmatpush1.bf16.msra.mxu0 %v5772
    %10761 = vmatprep.subr.bf16.mxu0 0
    %10762 = vmatpush1.bf16.msra.mxu0 %v5773
    %10763 = vmatprep.subr.bf16.mxu0 0
    %10764 = vmatpush1.bf16.msra.mxu0 %v5774
    %10765 = vmatprep.subr.bf16.mxu0 0
    %10766 = vmatpush1.bf16.msra.mxu0 %v5775
    %10767 = vmatprep.subr.bf16.mxu0 0
    %10768 = vmatpush1.bf16.msra.mxu0 %v5776
    %10769 = vmatprep.subr.bf16.mxu0 0
    %10770 = vmatpush1.bf16.msra.mxu0 %v5777
    %10771 = vmatprep.subr.bf16.mxu0 0
    %10772 = vmatpush1.bf16.msra.mxu0 %v5778
    %10773 = vmatprep.subr.bf16.mxu0 0
    %10774 = vmatpush1.bf16.msra.mxu0 %v5779
    %10775 = vmatprep.subr.bf16.mxu0 0
    %10776 = vmatpush1.bf16.msra.mxu0 %v5780
    %10777 = vmatprep.subr.bf16.mxu0 0
    %10778 = vmatpush1.bf16.msra.mxu0 %v5781
    %10779 = vmatprep.mubr.bf16.mxu0 %v10178
    %10780 = vmatmul.mubr.bf16.gmra.mrb[0].mxu0 %v10177
    %v10781 = vpop.f32.mrb[0].mxu0
    %v10782 = vadd.f32 %v10734, %v10781
    %v10783 = vpop.f32.mrb[0].mxu0
    %v10784 = vpop.f32.mrb[0].mxu0
    %v10785 = vadd.f32 %v10737, %v10784
    %v10786 = vpop.f32.mrb[0].mxu0
    %10787 = vmatprep.mubr.bf16.mxu0 %v10210
    %10788 = vmatmul.mubr.bf16.gmra.mrb[0].mxu0 %v10209
    %v10789 = vpop.f32.mrb[0].mxu0
    %v10790 = vadd.f32 %v10742, %v10789
    %v10791 = vpop.f32.mrb[0].mxu0
    %v10792 = vpop.f32.mrb[0].mxu0
    %v10793 = vpop.f32.mrb[0].mxu0
    %10794 = vdwg.mxu0
    %10795 = vmatprep.subr.bf16.mxu0 0
    %10796 = vmatpush1.bf16.msra.mxu0 %v5782
    %10797 = vmatprep.subr.bf16.mxu0 0
    %10798 = vmatpush1.bf16.msra.mxu0 %v5783
    %10799 = vmatprep.subr.bf16.mxu0 0
    %10800 = vmatpush1.bf16.msra.mxu0 %v5784
    %10801 = vmatprep.subr.bf16.mxu0 0
    %10802 = vmatpush1.bf16.msra.mxu0 %v5785
    %10803 = vmatprep.subr.bf16.mxu0 0
    %10804 = vmatpush1.bf16.msra.mxu0 %v5786
    %10805 = vmatprep.subr.bf16.mxu0 0
    %10806 = vmatpush1.bf16.msra.mxu0 %v5787
    %10807 = vmatprep.subr.bf16.mxu0 0
    %10808 = vmatpush1.bf16.msra.mxu0 %v5788
    %10809 = vmatprep.subr.bf16.mxu0 0
    %10810 = vmatpush1.bf16.msra.mxu0 %v5789
    %10811 = vmatprep.subr.bf16.mxu0 0
    %10812 = vmatpush1.bf16.msra.mxu0 %v5790
    %10813 = vmatprep.subr.bf16.mxu0 0
    %10814 = vmatpush1.bf16.msra.mxu0 %v5791
    %10815 = vmatprep.subr.bf16.mxu0 0
    %10816 = vmatpush1.bf16.msra.mxu0 %v5792
    %10817 = vmatprep.subr.bf16.mxu0 0
    %10818 = vmatpush1.bf16.msra.mxu0 %v5793
    %10819 = vmatprep.subr.bf16.mxu0 0
    %10820 = vmatpush1.bf16.msra.mxu0 %v5794
    %10821 = vmatprep.subr.bf16.mxu0 0
    %10822 = vmatpush1.bf16.msra.mxu0 %v5795
    %10823 = vmatprep.subr.bf16.mxu0 0
    %10824 = vmatpush1.bf16.msra.mxu0 %v5796
    %10825 = vmatprep.subr.bf16.mxu0 0
    %10826 = vmatpush1.bf16.msra.mxu0 %v5797
    %10827 = vmatprep.mubr.bf16.mxu0 %v10180
    %10828 = vmatmul.mubr.bf16.gmra.mrb[0].mxu0 %v10179
    %v10829 = vpop.f32.mrb[0].mxu0
    %v10830 = vadd.f32 %v10782, %v10829
    %v10831 = vpop.f32.mrb[0].mxu0
    %v10832 = vpop.f32.mrb[0].mxu0
    %v10833 = vadd.f32 %v10785, %v10832
    %v10834 = vpop.f32.mrb[0].mxu0
    %10835 = vmatprep.mubr.bf16.mxu0 %v10212
    %10836 = vmatmul.mubr.bf16.gmra.mrb[0].mxu0 %v10211
    %v10837 = vpop.f32.mrb[0].mxu0
    %v10838 = vadd.f32 %v10790, %v10837
    %v10839 = vpop.f32.mrb[0].mxu0
    %v10840 = vpop.f32.mrb[0].mxu0
    %v10841 = vpop.f32.mrb[0].mxu0
    %10842 = vdwg.mxu0
    %10843 = vmatprep.subr.bf16.mxu0 0
    %10844 = vmatpush1.bf16.msra.mxu0 %v5798
    %10845 = vmatprep.subr.bf16.mxu0 0
    %10846 = vmatpush1.bf16.msra.mxu0 %v5799
    %10847 = vmatprep.subr.bf16.mxu0 0
    %10848 = vmatpush1.bf16.msra.mxu0 %v5800
    %10849 = vmatprep.subr.bf16.mxu0 0
    %10850 = vmatpush1.bf16.msra.mxu0 %v5801
    %10851 = vmatprep.subr.bf16.mxu0 0
    %10852 = vmatpush1.bf16.msra.mxu0 %v5802
    %10853 = vmatprep.subr.bf16.mxu0 0
    %10854 = vmatpush1.bf16.msra.mxu0 %v5803
    %10855 = vmatprep.subr.bf16.mxu0 0
    %10856 = vmatpush1.bf16.msra.mxu0 %v5804
    %10857 = vmatprep.subr.bf16.mxu0 0
    %10858 = vmatpush1.bf16.msra.mxu0 %v5805
    %10859 = vmatprep.subr.bf16.mxu0 0
    %10860 = vmatpush1.bf16.msra.mxu0 %v5806
    %10861 = vmatprep.subr.bf16.mxu0 0
    %10862 = vmatpush1.bf16.msra.mxu0 %v5807
    %10863 = vmatprep.subr.bf16.mxu0 0
    %10864 = vmatpush1.bf16.msra.mxu0 %v5808
    %10865 = vmatprep.subr.bf16.mxu0 0
    %10866 = vmatpush1.bf16.msra.mxu0 %v5809
    %10867 = vmatprep.subr.bf16.mxu0 0
    %10868 = vmatpush1.bf16.msra.mxu0 %v5810
    %10869 = vmatprep.subr.bf16.mxu0 0
    %10870 = vmatpush1.bf16.msra.mxu0 %v5811
    %10871 = vmatprep.subr.bf16.mxu0 0
    %10872 = vmatpush1.bf16.msra.mxu0 %v5812
    %10873 = vmatprep.subr.bf16.mxu0 0
    %10874 = vmatpush1.bf16.msra.mxu0 %v5813
    %10875 = vmatprep.mubr.bf16.mxu0 %v10182
    %10876 = vmatmul.mubr.bf16.gmra.mrb[0].mxu0 %v10181
    %v10877 = vpop.f32.mrb[0].mxu0
    %v10878 = vadd.f32 %v10830, %v10877
    %v10879 = vpop.f32.mrb[0].mxu0
    %v10880 = vpop.f32.mrb[0].mxu0
    %v10881 = vadd.f32 %v10833, %v10880
    %v10882 = vpop.f32.mrb[0].mxu0
    %10883 = vmatprep.mubr.bf16.mxu0 %v10214
    %10884 = vmatmul.mubr.bf16.gmra.mrb[0].mxu0 %v10213
    %v10885 = vpop.f32.mrb[0].mxu0
    %v10886 = vadd.f32 %v10838, %v10885
    %v10887 = vpop.f32.mrb[0].mxu0
    %v10888 = vpop.f32.mrb[0].mxu0
    %v10889 = vpop.f32.mrb[0].mxu0
    %10890 = vdwg.mxu0
    %10891 = vmatprep.subr.bf16.mxu0 0
    %10892 = vmatpush1.bf16.msra.mxu0 %v5814
    %10893 = vmatprep.subr.bf16.mxu0 0
    %10894 = vmatpush1.bf16.msra.mxu0 %v5815
    %10895 = vmatprep.subr.bf16.mxu0 0
    %10896 = vmatpush1.bf16.msra.mxu0 %v5816
    %10897 = vmatprep.subr.bf16.mxu0 0
    %10898 = vmatpush1.bf16.msra.mxu0 %v5817
    %10899 = vmatprep.subr.bf16.mxu0 0
    %10900 = vmatpush1.bf16.msra.mxu0 %v5818
    %10901 = vmatprep.subr.bf16.mxu0 0
    %10902 = vmatpush1.bf16.msra.mxu0 %v5819
    %10903 = vmatprep.subr.bf16.mxu0 0
    %10904 = vmatpush1.bf16.msra.mxu0 %v5820
    %10905 = vmatprep.subr.bf16.mxu0 0
    %10906 = vmatpush1.bf16.msra.mxu0 %v5821
    %10907 = vmatprep.subr.bf16.mxu0 0
    %10908 = vmatpush1.bf16.msra.mxu0 %v5822
    %10909 = vmatprep.subr.bf16.mxu0 0
    %10910 = vmatpush1.bf16.msra.mxu0 %v5823
    %10911 = vmatprep.subr.bf16.mxu0 0
    %10912 = vmatpush1.bf16.msra.mxu0 %v5824
    %10913 = vmatprep.subr.bf16.mxu0 0
    %10914 = vmatpush1.bf16.msra.mxu0 %v5825
    %10915 = vmatprep.subr.bf16.mxu0 0
    %10916 = vmatpush1.bf16.msra.mxu0 %v5826
    %10917 = vmatprep.subr.bf16.mxu0 0
    %10918 = vmatpush1.bf16.msra.mxu0 %v5827
    %10919 = vmatprep.subr.bf16.mxu0 0
    %10920 = vmatpush1.bf16.msra.mxu0 %v5828
    %10921 = vmatprep.subr.bf16.mxu0 0
    %10922 = vmatpush1.bf16.msra.mxu0 %v5829
    %10923 = vmatprep.mubr.bf16.mxu0 %v10184
    %10924 = vmatmul.mubr.bf16.gmra.mrb[0].mxu0 %v10183
    %v10925 = vpop.f32.mrb[0].mxu0
    %v10926 = vadd.f32 %v10878, %v10925
    %v10927 = vpop.f32.mrb[0].mxu0
    %v10928 = vpop.f32.mrb[0].mxu0
    %v10929 = vadd.f32 %v10881, %v10928
    %v10930 = vpop.f32.mrb[0].mxu0
    %10931 = vmatprep.mubr.bf16.mxu0 %v10216
    %10932 = vmatmul.mubr.bf16.gmra.mrb[0].mxu0 %v10215
    %v10933 = vpop.f32.mrb[0].mxu0
    %v10934 = vadd.f32 %v10886, %v10933
    %v10935 = vpop.f32.mrb[0].mxu0
    %v10936 = vpop.f32.mrb[0].mxu0
    %v10937 = vpop.f32.mrb[0].mxu0
    %10938 = vdwg.mxu0
    %10939 = vmatprep.subr.bf16.mxu0 0
    %10940 = vmatpush1.bf16.msra.mxu0 %v5830
    %10941 = vmatprep.subr.bf16.mxu0 0
    %10942 = vmatpush1.bf16.msra.mxu0 %v5831
    %10943 = vmatprep.subr.bf16.mxu0 0
    %10944 = vmatpush1.bf16.msra.mxu0 %v5832
    %10945 = vmatprep.subr.bf16.mxu0 0
    %10946 = vmatpush1.bf16.msra.mxu0 %v5833
    %10947 = vmatprep.subr.bf16.mxu0 0
    %10948 = vmatpush1.bf16.msra.mxu0 %v5834
    %10949 = vmatprep.subr.bf16.mxu0 0
    %10950 = vmatpush1.bf16.msra.mxu0 %v5835
    %10951 = vmatprep.subr.bf16.mxu0 0
    %10952 = vmatpush1.bf16.msra.mxu0 %v5836
    %10953 = vmatprep.subr.bf16.mxu0 0
    %10954 = vmatpush1.bf16.msra.mxu0 %v5837
    %10955 = vmatprep.subr.bf16.mxu0 0
    %10956 = vmatpush1.bf16.msra.mxu0 %v5838
    %10957 = vmatprep.subr.bf16.mxu0 0
    %10958 = vmatpush1.bf16.msra.mxu0 %v5839
    %10959 = vmatprep.subr.bf16.mxu0 0
    %10960 = vmatpush1.bf16.msra.mxu0 %v5840
    %10961 = vmatprep.subr.bf16.mxu0 0
    %10962 = vmatpush1.bf16.msra.mxu0 %v5841
    %10963 = vmatprep.subr.bf16.mxu0 0
    %10964 = vmatpush1.bf16.msra.mxu0 %v5842
    %10965 = vmatprep.subr.bf16.mxu0 0
    %10966 = vmatpush1.bf16.msra.mxu0 %v5843
    %10967 = vmatprep.subr.bf16.mxu0 0
    %10968 = vmatpush1.bf16.msra.mxu0 %v5844
    %10969 = vmatprep.subr.bf16.mxu0 0
    %10970 = vmatpush1.bf16.msra.mxu0 %v5845
    %10971 = vmatprep.mubr.bf16.mxu0 %v10186
    %10972 = vmatmul.mubr.bf16.gmra.mrb[0].mxu0 %v10185
    %v10973 = vpop.f32.mrb[0].mxu0
    %v10974 = vadd.f32 %v10926, %v10973
    %v10975 = vpop.f32.mrb[0].mxu0
    %v10976 = vpop.f32.mrb[0].mxu0
    %v10977 = vadd.f32 %v10929, %v10976
    %v10978 = vpop.f32.mrb[0].mxu0
    %10979 = vmatprep.mubr.bf16.mxu0 %v10218
    %10980 = vmatmul.mubr.bf16.gmra.mrb[0].mxu0 %v10217
    %v10981 = vpop.f32.mrb[0].mxu0
    %v10982 = vadd.f32 %v10934, %v10981
    %v10983 = vpop.f32.mrb[0].mxu0
    %v10984 = vpop.f32.mrb[0].mxu0
    %v10985 = vpop.f32.mrb[0].mxu0
    %10986 = vdwg.mxu0
    %v10987 = vpack.c.bf16 %v10977, %v10974
    %v10988 = vpack.c.bf16 %v10982, %v10982
    %v10989 = vsel %vm3583, %v9183, 0
    %10991 = vmatprep.subr.bf16.mxu0 0
    %10992 = vmatpush1.bf16.msra.mxu0 %v6872
    %10993 = vmatprep.subr.bf16.mxu0 0
    %10994 = vmatpush1.bf16.msra.mxu0 %v6873
    %10995 = vmatprep.subr.bf16.mxu0 0
    %10996 = vmatpush1.bf16.msra.mxu0 %v6874
    %10997 = vmatprep.subr.bf16.mxu0 0
    %10998 = vmatpush1.bf16.msra.mxu0 %v6875
    %10999 = vmatprep.subr.bf16.mxu0 0
    %11000 = vmatpush1.bf16.msra.mxu0 0
    %11001 = vmatprep.subr.bf16.mxu0 0
    %11002 = vmatpush1.bf16.msra.mxu0 0
    %11003 = vmatprep.subr.bf16.mxu0 0
    %11004 = vmatpush1.bf16.msra.mxu0 0
    %11005 = vmatprep.subr.bf16.mxu0 0
    %11006 = vmatpush1.bf16.msra.mxu0 0
    %11007 = vmatprep.subr.bf16.mxu0 0
    %11008 = vmatpush1.bf16.msra.mxu0 0
    %11009 = vmatprep.subr.bf16.mxu0 0
    %11010 = vmatpush1.bf16.msra.mxu0 0
    %11011 = vmatprep.subr.bf16.mxu0 0
    %11012 = vmatpush1.bf16.msra.mxu0 0
    %11013 = vmatprep.subr.bf16.mxu0 0
    %11014 = vmatpush1.bf16.msra.mxu0 0
    %11015 = vmatprep.subr.bf16.mxu0 0
    %11016 = vmatpush1.bf16.msra.mxu0 0
    %11017 = vmatprep.subr.bf16.mxu0 0
    %11018 = vmatpush1.bf16.msra.mxu0 0
    %11019 = vmatprep.subr.bf16.mxu0 0
    %11020 = vmatpush1.bf16.msra.mxu0 0
    %11021 = vmatprep.subr.bf16.mxu0 0
    %11022 = vmatpush1.bf16.msra.mxu0 0
    %11023 = vmatprep.mubr.bf16.mxu0 0
    %11024 = vmatmul.mubr.bf16.gmra.mrb[0].mxu0 %v10989
    %v11025 = vpop.f32.mrb[0].mxu0
    %v11026 = vadd.f32 0.0, %v11025
    %v11027 = vpop.f32.mrb[0].mxu0
    %v11028 = vpop.f32.mrb[0].mxu0
    %v11029 = vadd.f32 0.0, %v11028
    %v11030 = vpop.f32.mrb[0].mxu0
    %11031 = vdwg.mxu0
    %v11033 = vsel %vm304, %v10988, 0
    %11035 = vmatprep.subr.bf16.mxu0 0
    %11036 = vmatpush1.bf16.msra.mxu0 %v10987
    %11037 = vmatprep.subr.bf16.mxu0 0
    %11038 = vmatpush1.bf16.msra.mxu0 %v11033
    %11039 = vmatprep.subr.bf16.mxu0 0
    %11040 = vmatpush1.bf16.msra.mxu0 0
    %11041 = vmatprep.subr.bf16.mxu0 0
    %11042 = vmatpush1.bf16.msra.mxu0 0
    %11043 = vmatprep.subr.bf16.mxu0 0
    %11044 = vmatpush1.bf16.msra.mxu0 0
    %11045 = vmatprep.subr.bf16.mxu0 0
    %11046 = vmatpush1.bf16.msra.mxu0 0
    %11047 = vmatprep.subr.bf16.mxu0 0
    %11048 = vmatpush1.bf16.msra.mxu0 0
    %11049 = vmatprep.subr.bf16.mxu0 0
    %11050 = vmatpush1.bf16.msra.mxu0 0
    %11051 = vmatprep.subr.bf16.mxu0 0
    %11052 = vmatpush1.bf16.msra.mxu0 0
    %11053 = vmatprep.subr.bf16.mxu0 0
    %11054 = vmatpush1.bf16.msra.mxu0 0
    %11055 = vmatprep.subr.bf16.mxu0 0
    %11056 = vmatpush1.bf16.msra.mxu0 0
    %11057 = vmatprep.subr.bf16.mxu0 0
    %11058 = vmatpush1.bf16.msra.mxu0 0
    %11059 = vmatprep.subr.bf16.mxu0 0
    %11060 = vmatpush1.bf16.msra.mxu0 0
    %11061 = vmatprep.subr.bf16.mxu0 0
    %11062 = vmatpush1.bf16.msra.mxu0 0
    %11063 = vmatprep.subr.bf16.mxu0 0
    %11064 = vmatpush1.bf16.msra.mxu0 0
    %11065 = vmatprep.subr.bf16.mxu0 0
    %11066 = vmatpush1.bf16.msra.mxu0 0
    %11067 = vmatprep.mubr.bf16.mxu0 0
    %11068 = vmatmul.mubr.bf16.gmra.mrb[0].mxu0 %v6926
    %v11069 = vpop.f32.mrb[0].mxu0
    %v11070 = vadd.f32 %v11026, %v11069
    %v11071 = vpop.f32.mrb[0].mxu0
    %v11072 = vpop.f32.mrb[0].mxu0
    %v11073 = vadd.f32 %v11029, %v11072
    %v11074 = vpop.f32.mrb[0].mxu0
    %11075 = vdwg.mxu0
    %v11076 = vadd.f32 %v11070, %v6976
    %v11077 = vadd.f32 %v11073, %v6976
    %v11078 = vmax.f32 %v11076, 0.0
    %v11079 = vmax.f32 %v11077, 0.0
    %v11080 = vpack.c.bf16 %v11079, %v11078
    %v11082 = vsel %vm3583, %v11080, 0
    %11084 = vmatprep.subr.bf16.mxu0 %v6984
    %11085 = vmatpush1.bf16.msra.mxu0 %v6983
    %11086 = vmatprep.subr.bf16.mxu0 %v6986
    %11087 = vmatpush1.bf16.msra.mxu0 %v6985
    %11088 = vmatprep.subr.bf16.mxu0 %v6988
    %11089 = vmatpush1.bf16.msra.mxu0 %v6987
    %11090 = vmatprep.subr.bf16.mxu0 %v6990
    %11091 = vmatpush1.bf16.msra.mxu0 %v6989
    %11092 = vmatprep.subr.bf16.mxu0 0
    %11093 = vmatpush1.bf16.msra.mxu0 0
    %11094 = vmatprep.subr.bf16.mxu0 0
    %11095 = vmatpush1.bf16.msra.mxu0 0
    %11096 = vmatprep.subr.bf16.mxu0 0
    %11097 = vmatpush1.bf16.msra.mxu0 0
    %11098 = vmatprep.subr.bf16.mxu0 0
    %11099 = vmatpush1.bf16.msra.mxu0 0
    %11100 = vmatprep.subr.bf16.mxu0 0
    %11101 = vmatpush1.bf16.msra.mxu0 0
    %11102 = vmatprep.subr.bf16.mxu0 0
    %11103 = vmatpush1.bf16.msra.mxu0 0
    %11104 = vmatprep.subr.bf16.mxu0 0
    %11105 = vmatpush1.bf16.msra.mxu0 0
    %11106 = vmatprep.subr.bf16.mxu0 0
    %11107 = vmatpush1.bf16.msra.mxu0 0
    %11108 = vmatprep.subr.bf16.mxu0 0
    %11109 = vmatpush1.bf16.msra.mxu0 0
    %11110 = vmatprep.subr.bf16.mxu0 0
    %11111 = vmatpush1.bf16.msra.mxu0 0
    %11112 = vmatprep.subr.bf16.mxu0 0
    %11113 = vmatpush1.bf16.msra.mxu0 0
    %11114 = vmatprep.subr.bf16.mxu0 0
    %11115 = vmatpush1.bf16.msra.mxu0 0
    %11116 = vmatprep.mubr.bf16.mxu0 0
    %11117 = vmatmul.mubr.bf16.gmra.mrb[0].mxu0 %v11082
    %v11118 = vpop.f32.mrb[0].mxu0
    %v11119 = vadd.f32 %v6995, %v11118
    %v11120 = vpop.f32.mrb[0].mxu0
    %v11121 = vadd.f32 %v6999, %v11120
    %v11122 = vpop.f32.mrb[0].mxu0
    %v11123 = vadd.f32 %v6995, %v11122
    %v11124 = vpop.f32.mrb[0].mxu0
    %v11125 = vadd.f32 %v6999, %v11124
    %11126 = vdwg.mxu0
    %11127 = vmatprep.subr.bf16.mxu0 %v7049
    %11128 = vmatpush1.bf16.msra.mxu0 %v7048
    %11129 = vmatprep.subr.bf16.mxu0 %v7051
    %11130 = vmatpush1.bf16.msra.mxu0 %v7050
    %11131 = vmatprep.subr.bf16.mxu0 %v7053
    %11132 = vmatpush1.bf16.msra.mxu0 %v7052
    %11133 = vmatprep.subr.bf16.mxu0 %v7055
    %11134 = vmatpush1.bf16.msra.mxu0 %v7054
    %11135 = vmatprep.subr.bf16.mxu0 0
    %11136 = vmatpush1.bf16.msra.mxu0 0
    %11137 = vmatprep.subr.bf16.mxu0 0
    %11138 = vmatpush1.bf16.msra.mxu0 0
    %11139 = vmatprep.subr.bf16.mxu0 0
    %11140 = vmatpush1.bf16.msra.mxu0 0
    %11141 = vmatprep.subr.bf16.mxu0 0
    %11142 = vmatpush1.bf16.msra.mxu0 0
    %11143 = vmatprep.subr.bf16.mxu0 0
    %11144 = vmatpush1.bf16.msra.mxu0 0
    %11145 = vmatprep.subr.bf16.mxu0 0
    %11146 = vmatpush1.bf16.msra.mxu0 0
    %11147 = vmatprep.subr.bf16.mxu0 0
    %11148 = vmatpush1.bf16.msra.mxu0 0
    %11149 = vmatprep.subr.bf16.mxu0 0
    %11150 = vmatpush1.bf16.msra.mxu0 0
    %11151 = vmatprep.subr.bf16.mxu0 0
    %11152 = vmatpush1.bf16.msra.mxu0 0
    %11153 = vmatprep.subr.bf16.mxu0 0
    %11154 = vmatpush1.bf16.msra.mxu0 0
    %11155 = vmatprep.subr.bf16.mxu0 0
    %11156 = vmatpush1.bf16.msra.mxu0 0
    %11157 = vmatprep.subr.bf16.mxu0 0
    %11158 = vmatpush1.bf16.msra.mxu0 0
    %11159 = vmatprep.mubr.bf16.mxu0 0
    %11160 = vmatmul.mubr.bf16.gmra.mrb[0].mxu0 %v10989
    %v11161 = vpop.f32.mrb[0].mxu0
    %v11162 = vadd.f32 %v7060, %v11161
    %v11163 = vpop.f32.mrb[0].mxu0
    %v11164 = vadd.f32 %v7064, %v11163
    %v11165 = vpop.f32.mrb[0].mxu0
    %v11166 = vadd.f32 %v7060, %v11165
    %v11167 = vpop.f32.mrb[0].mxu0
    %v11168 = vadd.f32 %v7064, %v11167
    %11169 = vdwg.mxu0
    %v11170 = vadd.f32 %v11119, %v11162
    %v11171 = vadd.f32 %v11123, %v11166
    %v11172 = vxor.u32 %v11170, 2147483648
    %v11173 = vxor.u32 %v11171, 2147483648
    %v11174 = vmul.f32 %v11172, 1.442695
    %v11175 = vpow.pop %v11174
    %v11176 = vmul.f32 %v11173, 1.442695
    %v11177 = vpow.pop %v11176
    %v11178 = vadd.f32 %v11175, 1.0
    %v11179 = vadd.f32 %v11177, 1.0
    %v11180 = vrcp.pop %v11178
    %v11181 = vmul.f32 1.0, %v11180
    %v11182 = vrcp.pop %v11179
    %v11183 = vmul.f32 1.0, %v11182
    %v11184 = vmul.f32 %v11181, %v11164
    %v11185 = vmul.f32 %v11183, %v11168
    %v11186 = vadd.f32 %v11121, %v11184
    %v11187 = vadd.f32 %v11125, %v11185
    %v11188 = vtanh.pop %v11186
    %v11189 = vtanh.pop %v11187
    %v11190 = vsub.f32 1.0, %v11181
    %v11191 = vsub.f32 1.0, %v11183
    %11194 = vrot.lane.b32.xlu0 %v11188, 64
    %v11195 = vpop.permute.xlu0 %11194
    %11196 = vrot.lane.b32.xlu0 %v11189, 64
    %v11197 = vpop.permute.xlu0 %11196
    %v11200 = vmul.f32 %v11190, %v11195
    %v11201 = vmul.f32 %v11191, %v11197
    %v11202 = vmul.f32 %v11181, %v9178
    %v11203 = vmul.f32 %v11183, %v9179
    %v11204 = vadd.f32 %v11200, %v11202
    %v11205 = vadd.f32 %v11201, %v11203
    %v11206 = vld [vmem:[#allocation26] sm:$0xff]
    %v11207 = vld [vmem:[#allocation26 + $0x8] sm:$0xff]
    %v11208 = vld [vmem:[#allocation26 + $0x10] sm:$0xff]
    %v11209 = vld [vmem:[#allocation26 + $0x18] sm:$0xff]
    %v11210 = vld [vmem:[#allocation26 + $0x20] sm:$0xff]
    %v11211 = vld [vmem:[#allocation26 + $0x28] sm:$0xff]
    %v11212 = vld [vmem:[#allocation26 + $0x30] sm:$0xff]
    %v11213 = vld [vmem:[#allocation26 + $0x38] sm:$0xff]
    %v11214 = vpack.c.bf16 %v11205, %v11204
    %v11215 = vpack.c.bf16 %v11207, %v11206
    %v11216 = vpack.c.bf16 %v11209, %v11208
    %v11217 = vpack.c.bf16 %v11211, %v11210
    %v11218 = vpack.c.bf16 %v11213, %v11212
    %v11219 = vld [vmem:[#allocation28] sm:$0x1]
    %v11221 = vlaneseq
    %v11222 = vshrl.u32 %v11221, 7
    %v11223 = vsub.s32 0, %v11222
    %v11224 = vrot.slane %v11219, %v11223
    %11227 = vrot.lane.b32.xlu0 %v11214, 64
    %v11228 = vpop.permute.xlu0 %11227
    %v11230 = vsel %vm3583, %v11228, 0
    %11232 = vmatprep.subr.bf16.mxu0 0
    %11233 = vmatpush1.bf16.msra.mxu0 %v11215
    %11234 = vmatprep.subr.bf16.mxu0 0
    %11235 = vmatpush1.bf16.msra.mxu0 %v11216
    %11236 = vmatprep.subr.bf16.mxu0 0
    %11237 = vmatpush1.bf16.msra.mxu0 %v11217
    %11238 = vmatprep.subr.bf16.mxu0 0
    %11239 = vmatpush1.bf16.msra.mxu0 %v11218
    %11240 = vmatprep.subr.bf16.mxu0 0
    %11241 = vmatpush1.bf16.msra.mxu0 0
    %11242 = vmatprep.subr.bf16.mxu0 0
    %11243 = vmatpush1.bf16.msra.mxu0 0
    %11244 = vmatprep.subr.bf16.mxu0 0
    %11245 = vmatpush1.bf16.msra.mxu0 0
    %11246 = vmatprep.subr.bf16.mxu0 0
    %11247 = vmatpush1.bf16.msra.mxu0 0
    %11248 = vmatprep.subr.bf16.mxu0 0
    %11249 = vmatpush1.bf16.msra.mxu0 0
    %11250 = vmatprep.subr.bf16.mxu0 0
    %11251 = vmatpush1.bf16.msra.mxu0 0
    %11252 = vmatprep.subr.bf16.mxu0 0
    %11253 = vmatpush1.bf16.msra.mxu0 0
    %11254 = vmatprep.subr.bf16.mxu0 0
    %11255 = vmatpush1.bf16.msra.mxu0 0
    %11256 = vmatprep.subr.bf16.mxu0 0
    %11257 = vmatpush1.bf16.msra.mxu0 0
    %11258 = vmatprep.subr.bf16.mxu0 0
    %11259 = vmatpush1.bf16.msra.mxu0 0
    %11260 = vmatprep.subr.bf16.mxu0 0
    %11261 = vmatpush1.bf16.msra.mxu0 0
    %11262 = vmatprep.subr.bf16.mxu0 0
    %11263 = vmatpush1.bf16.msra.mxu0 0
    %11264 = vmatprep.mubr.bf16.mxu0 0
    %11265 = vmatmul.mubr.bf16.gmra.mrb[0].mxu0 %v11230
    %v11266 = vpop.f32.mrb[0].mxu0
    %v11267 = vadd.f32 %v11224, %v11266
    %v11268 = vpop.f32.mrb[0].mxu0
    %v11269 = vpop.f32.mrb[0].mxu0
    %v11270 = vadd.f32 %v11224, %v11269
    %v11271 = vpop.f32.mrb[0].mxu0
    %11272 = vdwg.mxu0
    %11273 = vst [vmem:[#allocation29] sm:$0xff] %v11267
    %11274 = vst [vmem:[#allocation29 + $0x8] sm:$0x1f] %v11270
    // Predicated region
    $region150: #{tpu_custom_call.1} parent=1 // pred_check
      _
    $region151: #{tpu_custom_call.1} parent=1 // pred_check_branch
      %11276 = sbr.rel (0) target = $region153
    $region152: #{tpu_custom_call.1} parent=1 // pred_region
      %s11278 = ssub.s32 256, 256
      %11279 = vsyncadd [#allocation4], %s11278
      %s11280 = sshll.u32 [#allocation29], 4
      %s11281 = int_to_ptr.vmem [resolvable:$true] %s11280
      %11286 = dma.vmem_to_hbm [thread:$0]  %s11281, 256, %s20, [#allocation4], 128, 128, 8
    $region153: #{tpu_custom_call.1} parent=1 // pred_fallthru
      _
    // Predicated region
    $region154: #{tpu_custom_call.1} parent=1 // pred_check
      _
    $region155: #{tpu_custom_call.1} parent=1 // pred_check_branch
      %11288 = sbr.rel (0) target = $region157
    $region156: #{tpu_custom_call.1} parent=1 // pred_region
      %11289 = dma.done [#allocation4], 256
    $region157: #{tpu_custom_call.1} parent=1 // pred_fallthru
      _
    %11290 = vsyncpa [#allocation3], 1
    %11291 = vsyncpa [#allocation6], 1
    %11292 = vsyncpa [#allocation9], 1
    %11293 = vsyncpa [#allocation12], 1
    %11294 = vsyncpa [#allocation15], 1
    %11295 = vsyncpa [#allocation18], 1
    %11296 = vsyncpa [#allocation21], 1
    %11297 = vsyncpa [#allocation24], 1
    %11298 = vsyncpa [#allocation27], 1
    %11299 = vsyncpa [#allocation4], 1

</llo_original>
